<compile_context>
chip_gen: v7x
topology: tpu7x:2x2x1
jax: 0.10.0
libtpu: 0.0.40
codegen_flags: <defaults>
</compile_context>

<pallas_src>
import functools

import jax
import jax.numpy as jnp
from jax.experimental import pallas as pl
from jax.experimental.pallas import tpu as pltpu

# ---------------------------------------------------------------------------
# small config consistent with the module
# (input 32x32 so that the flattened feature dim is ndf*8 * 2*2 = ndf*8*4,
#  exactly what fc_out_cond / fc_out_uncond expect)
# ---------------------------------------------------------------------------
NUM_K = 4
NC = 3
NDF = 16
BATCH = 2
IMG = 32
CP = 128            # lane-padded channel width (== ndf*8 here)
BN_EPS = 1e-5
NEG_SLOPE = 0.2

_VMEM = pl.BlockSpec(memory_space=pltpu.MemorySpace.VMEM)


# ---------------------------------------------------------------------------
# Pallas kernels (one matmul per layer, fused epilogues)
# ---------------------------------------------------------------------------
def conv_lrelu_kernel(x_ref, w_ref, o_ref):
    # (M, K) bf16 @ (K, Cout) bf16 -> f32, then LeakyReLU(0.2)
    acc = jnp.dot(x_ref[...], w_ref[...], preferred_element_type=jnp.float32)
    o_ref[...] = jnp.where(acc > 0, acc, NEG_SLOPE * acc).astype(o_ref.dtype)


def conv_bn_lrelu_kernel(x_ref, w_ref, g_ref, b_ref, o_ref):
    # matmul (f32 accumulate) + BatchNorm (batch stats over N*H*W, one pass,
    # biased variance as in PyTorch training mode) + LeakyReLU(0.2)
    acc = jnp.dot(x_ref[...], w_ref[...], preferred_element_type=jnp.float32)
    m = acc.shape[0]
    s1 = jnp.sum(acc, axis=0, keepdims=True)
    s2 = jnp.sum(acc * acc, axis=0, keepdims=True)
    mean = s1 / m
    var = jnp.maximum(s2 / m - mean * mean, 0.0)
    y = (acc - mean) * jax.lax.rsqrt(var + BN_EPS) * g_ref[...] + b_ref[...]
    o_ref[...] = jnp.where(y > 0, y, NEG_SLOPE * y).astype(o_ref.dtype)


def fc_kernel(x_ref, w_ref, b_ref, o_ref):
    o_ref[...] = (
        jnp.dot(x_ref[...], w_ref[...], preferred_element_type=jnp.float32)
        + b_ref[...]
    )


# ---------------------------------------------------------------------------
# pallas_call wrappers (gridless: whole arrays as single VMEM blocks)
# ---------------------------------------------------------------------------
def conv_lrelu_pallas(x2d, w2d):
    M, Co = x2d.shape[0], w2d.shape[1]
    return pl.pallas_call(
        conv_lrelu_kernel,
        out_shape=jax.ShapeDtypeStruct((M, Co), jnp.bfloat16),
        in_specs=[_VMEM, _VMEM],
        out_specs=_VMEM,
    )(x2d, w2d)


def conv_bn_lrelu_pallas(x2d, w2d, gamma, beta):
    M, Co = x2d.shape[0], w2d.shape[1]
    return pl.pallas_call(
        conv_bn_lrelu_kernel,
        out_shape=jax.ShapeDtypeStruct((M, Co), jnp.bfloat16),
        in_specs=[_VMEM] * 4,
        out_specs=_VMEM,
    )(x2d, w2d, gamma, beta)


def fc_pallas(x, w, b):
    B, N = x.shape[0], w.shape[1]
    return pl.pallas_call(
        fc_kernel,
        out_shape=jax.ShapeDtypeStruct((B, N), jnp.float32),
        in_specs=[_VMEM] * 3,
        out_specs=_VMEM,
    )(x, w, b)


# ---------------------------------------------------------------------------
# plain-JAX glue (layout / parameter transforms only)
# ---------------------------------------------------------------------------
def im2col_s2_k4_p1(x_nhwc):
    """NHWC activation -> (B*Ho*Wo, 16*C) patch matrix for Conv2d(k=4,s=2,p=1).
    Strided slices + a single channel-last concat: no scatter."""
    B, H, W, C = x_nhwc.shape
    Ho, Wo = H // 2, W // 2
    xp = jnp.pad(x_nhwc, ((0, 0), (1, 1), (1, 1), (0, 0)))
    taps = [xp[:, kh:kh + 2 * Ho:2, kw:kw + 2 * Wo:2, :]
            for kh in range(4) for kw in range(4)]
    patches = jnp.concatenate(taps, axis=-1)            # (B, Ho, Wo, 16*C)
    return patches.reshape(B * Ho * Wo, 16 * C), (Ho, Wo)


def conv_weight_stack(w_pt, cin_pad, cout_pad):
    """PyTorch Conv2d weight (Cout, Cin, 4, 4) -> (16*cin_pad, cout_pad) bf16
    matmul stack matching the im2col (kh, kw, cin) ordering; zero-padded."""
    Co, Ci, KH, KW = w_pt.shape
    w = jnp.transpose(w_pt, (2, 3, 1, 0))                # (KH, KW, Cin, Cout)
    w = jnp.pad(w, ((0, 0), (0, 0), (0, cin_pad - Ci), (0, cout_pad - Co)))
    return w.reshape(KH * KW * cin_pad, cout_pad).astype(jnp.bfloat16)


def init_params(key):
    ks = jax.random.split(key, 8)
    s = 0.05
    feat = NDF * 8 * 2 * 2                                # == ndf*8*4
    return {
        # Conv2d weights, PyTorch layout (Cout, Cin, 4, 4), bias=False
        "w1": s * jax.random.normal(ks[0], (NDF, NC, 4, 4), jnp.float32),
        "w2": s * jax.random.normal(ks[1], (NDF * 2, NDF, 4, 4), jnp.float32),
        "w3": s * jax.random.normal(ks[2], (NDF * 4, NDF * 2, 4, 4), jnp.float32),
        "w4": s * jax.random.normal(ks[3], (NDF * 8, NDF * 4, 4, 4), jnp.float32),
        # BatchNorm affine (PyTorch init gamma=1, beta=0), stored lane-padded:
        # padded channels keep gamma=1 / beta=0 so they stay exactly zero.
        "g2": jnp.ones((1, CP), jnp.float32), "b2": jnp.zeros((1, CP), jnp.float32),
        "g3": jnp.ones((1, CP), jnp.float32), "b3": jnp.zeros((1, CP), jnp.float32),
        "g4": jnp.ones((1, CP), jnp.float32), "b4": jnp.zeros((1, CP), jnp.float32),
        # fc_out_cond: Linear(feat, num_k);  fc_out_uncond: Linear(feat, 1)
        "wc": s * jax.random.normal(ks[4], (feat, NUM_K), jnp.float32),
        "bc": s * jax.random.normal(ks[5], (1, NUM_K), jnp.float32),
        "wu": s * jax.random.normal(ks[6], (feat, 1), jnp.float32),
        "bu": s * jax.random.normal(ks[7], (1, 1), jnp.float32),
    }


def prepare_params(p):
    """One-time layout prep: bf16 weight stacks, lane-padded fc weights."""
    return {
        "w1": conv_weight_stack(p["w1"], NC, CP),
        "w2": conv_weight_stack(p["w2"], CP, CP),
        "w3": conv_weight_stack(p["w3"], CP, CP),
        "w4": conv_weight_stack(p["w4"], CP, CP),
        "g2": p["g2"], "b2": p["b2"],
        "g3": p["g3"], "b3": p["b3"],
        "g4": p["g4"], "b4": p["b4"],
        "wc": jnp.pad(p["wc"], ((0, 0), (0, CP - NUM_K))).astype(jnp.bfloat16),
        "bc": jnp.pad(p["bc"], ((0, 0), (0, CP - NUM_K))),
        "wu": jnp.pad(p["wu"], ((0, 0), (0, CP - 1))).astype(jnp.bfloat16),
        "bu": jnp.pad(p["bu"], ((0, 0), (0, CP - 1))),
    }


# ---------------------------------------------------------------------------
# forward pass (matches Discriminator.forward semantics)
# ---------------------------------------------------------------------------
@functools.partial(jax.jit, static_argnames=("condition",))
def discriminator_forward(params, x_nchw, y, condition=False):
    B = x_nchw.shape[0]
    h = jnp.transpose(x_nchw, (0, 2, 3, 1)).astype(jnp.bfloat16)   # NHWC, bf16

    # conv1: Conv(nc -> ndf, 4, 2, 1) + LeakyReLU(0.2)   (no BN)
    x2d, (Ho, Wo) = im2col_s2_k4_p1(h)
    h = conv_lrelu_pallas(x2d, params["w1"]).reshape(B, Ho, Wo, CP)

    # conv2..conv4: Conv(4, 2, 1) + BatchNorm(batch stats) + LeakyReLU(0.2)
    for wk, gk, bk in (("w2", "g2", "b2"), ("w3", "g3", "b3"), ("w4", "g4", "b4")):
        x2d, (Ho, Wo) = im2col_s2_k4_p1(h)
        h = conv_bn_lrelu_pallas(
            x2d, params[wk], params[gk], params[bk]).reshape(B, Ho, Wo, CP)

    # out.view(B, -1) in PyTorch NCHW order (real channels = first NDF*8)
    feats = jnp.transpose(h[..., :NDF * 8], (0, 3, 1, 2)).reshape(B, -1)

    # y.clamp(None, num_k - 1): upper bound only, matching the reference.
    y = jnp.minimum(y, NUM_K - 1)

    if condition:
        # LinearConditionalMaskLogits: per-class logits, pick the one for y.
        logits = fc_pallas(feats, params["wc"], params["bc"])   # (B, CP), cols [0, NUM_K) real
        result = logits[jnp.arange(B), y]
    else:
        # LinearUnconditionalLogits: single logit, squeezed to (B,).
        logits = fc_pallas(feats, params["wu"], params["bu"])   # (B, CP), col 0 real
        result = logits[:, 0]

    assert result.ndim == 1
    return result


if __name__ == "__main__":
    key = jax.random.PRNGKey(0)
    kp, kx, ky = jax.random.split(key, 3)
    params = prepare_params(init_params(kp))

    x = jax.random.normal(kx, (BATCH, NC, IMG, IMG), jnp.float32)   # images
    y = jax.random.randint(ky, (BATCH,), 0, NUM_K, jnp.int32)       # class labels

    out_uncond = discriminator_forward(params, x, y, condition=False)
    out_cond = discriminator_forward(params, x, y, condition=True)
    out_uncond, out_cond = jax.block_until_ready((out_uncond, out_cond))

    assert out_uncond.shape == (BATCH,), out_uncond.shape
    assert out_cond.shape == (BATCH,), out_cond.shape
    assert bool(jnp.all(jnp.isfinite(out_uncond)))
    assert bool(jnp.all(jnp.isfinite(out_cond)))
    print("KERNEL_OK")
</pallas_src>

<mosaic_0001>
module attributes {stable_mosaic.version = 11 : i64} {
  func.func @conv_lrelu_kernel(%arg0: memref<512x48xbf16, #tpu.memory_space<vmem>>, %arg1: memref<48x128xbf16, #tpu.memory_space<vmem>>, %arg2: memref<512x128xbf16, #tpu.memory_space<vmem>>) attributes {dimension_semantics = [], scalar_prefetch = 0 : i64, scratch_operands = 0 : i64, tpu.core_type = #tpu.core_type<tc>} {
    %c0 = arith.constant 0 : index
    %c0_0 = arith.constant 0 : index
    %0 = vector.load %arg0[%c0, %c0_0] : memref<512x48xbf16, #tpu.memory_space<vmem>>, vector<512x48xbf16>
    %c0_1 = arith.constant 0 : index
    %c0_2 = arith.constant 0 : index
    %1 = vector.load %arg1[%c0_1, %c0_2] : memref<48x128xbf16, #tpu.memory_space<vmem>>, vector<48x128xbf16>
    %cst = arith.constant dense<0.000000e+00> : vector<512x128xf32>
    %2 = tpu.matmul %0, %1, %cst {dimension_numbers = #tpu.dot_dimension_numbers<[1], [0], [0], [1], [0, 0, 1, 1], [], []>} : vector<512x48xbf16>, vector<48x128xbf16>, vector<512x128xf32> -> vector<512x128xf32>
    %cst_3 = arith.constant 0.000000e+00 : f32
    %3 = vector.broadcast %cst_3 : f32 to vector<512x128xf32>
    %4 = arith.cmpf ogt, %2, %3 : vector<512x128xf32>
    %cst_4 = arith.constant 2.000000e-01 : f32
    %5 = vector.broadcast %cst_4 : f32 to vector<512x128xf32>
    %6 = arith.mulf %5, %2 : vector<512x128xf32>
    %7 = arith.select %4, %2, %6 : vector<512x128xi1>, vector<512x128xf32>
    %8 = arith.truncf %7 : vector<512x128xf32> to vector<512x128xbf16>
    %c0_5 = arith.constant 0 : index
    %c0_6 = arith.constant 0 : index
    %9 = vector.load %arg2[%c0_5, %c0_6] : memref<512x128xbf16, #tpu.memory_space<vmem>>, vector<512x128xbf16>
    tpu.vector_store %arg2[%c0_5, %c0_6], %8 {strides = array<i32>} : memref<512x128xbf16, #tpu.memory_space<vmem>>, vector<512x128xbf16>,
    return
  }
}

module attributes {stable_mosaic.version = 11 : i64} {
  func.func @conv_bn_lrelu_kernel(%arg0: memref<128x2048xbf16, #tpu.memory_space<vmem>>, %arg1: memref<2048x128xbf16, #tpu.memory_space<vmem>>, %arg2: memref<1x128xf32, #tpu.memory_space<vmem>>, %arg3: memref<1x128xf32, #tpu.memory_space<vmem>>, %arg4: memref<128x128xbf16, #tpu.memory_space<vmem>>) attributes {dimension_semantics = [], scalar_prefetch = 0 : i64, scratch_operands = 0 : i64, tpu.core_type = #tpu.core_type<tc>} {
    %c0 = arith.constant 0 : index
    %c0_0 = arith.constant 0 : index
    %0 = vector.load %arg0[%c0, %c0_0] : memref<128x2048xbf16, #tpu.memory_space<vmem>>, vector<128x2048xbf16>
    %c0_1 = arith.constant 0 : index
    %c0_2 = arith.constant 0 : index
    %1 = vector.load %arg1[%c0_1, %c0_2] : memref<2048x128xbf16, #tpu.memory_space<vmem>>, vector<2048x128xbf16>
    %cst = arith.constant dense<0.000000e+00> : vector<128x128xf32>
    %2 = tpu.matmul %0, %1, %cst {dimension_numbers = #tpu.dot_dimension_numbers<[1], [0], [0], [1], [0, 0, 1, 1], [], []>} : vector<128x2048xbf16>, vector<2048x128xbf16>, vector<128x128xf32> -> vector<128x128xf32>
    %cst_3 = arith.constant dense<0.000000e+00> : vector<128xf32>
    %3 = vector.multi_reduction <add>, %2, %cst_3 [0] : vector<128x128xf32> to vector<128xf32>
    %4 = vector.shape_cast %3 : vector<128xf32> to vector<1x128xf32>
    %5 = arith.mulf %2, %2 : vector<128x128xf32>
    %cst_4 = arith.constant dense<0.000000e+00> : vector<128xf32>
    %6 = vector.multi_reduction <add>, %5, %cst_4 [0] : vector<128x128xf32> to vector<128xf32>
    %7 = vector.shape_cast %6 : vector<128xf32> to vector<1x128xf32>
    %cst_5 = arith.constant 1.280000e+02 : f32
    %8 = vector.broadcast %cst_5 : f32 to vector<1x128xf32>
    %9 = arith.divf %4, %8 : vector<1x128xf32>
    %cst_6 = arith.constant 1.280000e+02 : f32
    %10 = vector.broadcast %cst_6 : f32 to vector<1x128xf32>
    %11 = arith.divf %7, %10 : vector<1x128xf32>
    %12 = arith.mulf %9, %9 : vector<1x128xf32>
    %13 = arith.subf %11, %12 : vector<1x128xf32>
    %cst_7 = arith.constant 0.000000e+00 : f32
    %14 = vector.broadcast %cst_7 : f32 to vector<1x128xf32>
    %15 = arith.maximumf %13, %14 : vector<1x128xf32>
    %16 = vector.broadcast %9 : vector<1x128xf32> to vector<128x128xf32>
    %17 = arith.subf %2, %16 : vector<128x128xf32>
    %cst_8 = arith.constant 9.99999974E-6 : f32
    %18 = vector.broadcast %cst_8 : f32 to vector<1x128xf32>
    %19 = arith.addf %15, %18 : vector<1x128xf32>
    %20 = math.rsqrt %19 : vector<1x128xf32>
    %21 = vector.broadcast %20 : vector<1x128xf32> to vector<128x128xf32>
    %22 = arith.mulf %17, %21 : vector<128x128xf32>
    %c0_9 = arith.constant 0 : index
    %c0_10 = arith.constant 0 : index
    %23 = vector.load %arg2[%c0_9, %c0_10] : memref<1x128xf32, #tpu.memory_space<vmem>>, vector<1x128xf32>
    %24 = vector.broadcast %23 : vector<1x128xf32> to vector<128x128xf32>
    %25 = arith.mulf %22, %24 : vector<128x128xf32>
    %c0_11 = arith.constant 0 : index
    %c0_12 = arith.constant 0 : index
    %26 = vector.load %arg3[%c0_11, %c0_12] : memref<1x128xf32, #tpu.memory_space<vmem>>, vector<1x128xf32>
    %27 = vector.broadcast %26 : vector<1x128xf32> to vector<128x128xf32>
    %28 = arith.addf %25, %27 : vector<128x128xf32>
    %cst_13 = arith.constant 0.000000e+00 : f32
    %29 = vector.broadcast %cst_13 : f32 to vector<128x128xf32>
    %30 = arith.cmpf ogt, %28, %29 : vector<128x128xf32>
    %cst_14 = arith.constant 2.000000e-01 : f32
    %31 = vector.broadcast %cst_14 : f32 to vector<128x128xf32>
    %32 = arith.mulf %31, %28 : vector<128x128xf32>
    %33 = arith.select %30, %28, %32 : vector<128x128xi1>, vector<128x128xf32>
    %34 = arith.truncf %33 : vector<128x128xf32> to vector<128x128xbf16>
    %c0_15 = arith.constant 0 : index
    %c0_16 = arith.constant 0 : index
    %35 = vector.load %arg4[%c0_15, %c0_16] : memref<128x128xbf16, #tpu.memory_space<vmem>>, vector<128x128xbf16>
    tpu.vector_store %arg4[%c0_15, %c0_16], %34 {strides = array<i32>} : memref<128x128xbf16, #tpu.memory_space<vmem>>, vector<128x128xbf16>,
    return
  }
}

module attributes {stable_mosaic.version = 11 : i64} {
  func.func @conv_bn_lrelu_kernel(%arg0: memref<32x2048xbf16, #tpu.memory_space<vmem>>, %arg1: memref<2048x128xbf16, #tpu.memory_space<vmem>>, %arg2: memref<1x128xf32, #tpu.memory_space<vmem>>, %arg3: memref<1x128xf32, #tpu.memory_space<vmem>>, %arg4: memref<32x128xbf16, #tpu.memory_space<vmem>>) attributes {dimension_semantics = [], scalar_prefetch = 0 : i64, scratch_operands = 0 : i64, tpu.core_type = #tpu.core_type<tc>} {
    %c0 = arith.constant 0 : index
    %c0_0 = arith.constant 0 : index
    %0 = vector.load %arg0[%c0, %c0_0] : memref<32x2048xbf16, #tpu.memory_space<vmem>>, vector<32x2048xbf16>
    %c0_1 = arith.constant 0 : index
    %c0_2 = arith.constant 0 : index
    %1 = vector.load %arg1[%c0_1, %c0_2] : memref<2048x128xbf16, #tpu.memory_space<vmem>>, vector<2048x128xbf16>
    %cst = arith.constant dense<0.000000e+00> : vector<32x128xf32>
    %2 = tpu.matmul %0, %1, %cst {dimension_numbers = #tpu.dot_dimension_numbers<[1], [0], [0], [1], [0, 0, 1, 1], [], []>} : vector<32x2048xbf16>, vector<2048x128xbf16>, vector<32x128xf32> -> vector<32x128xf32>
    %cst_3 = arith.constant dense<0.000000e+00> : vector<128xf32>
    %3 = vector.multi_reduction <add>, %2, %cst_3 [0] : vector<32x128xf32> to vector<128xf32>
    %4 = vector.shape_cast %3 : vector<128xf32> to vector<1x128xf32>
    %5 = arith.mulf %2, %2 : vector<32x128xf32>
    %cst_4 = arith.constant dense<0.000000e+00> : vector<128xf32>
    %6 = vector.multi_reduction <add>, %5, %cst_4 [0] : vector<32x128xf32> to vector<128xf32>
    %7 = vector.shape_cast %6 : vector<128xf32> to vector<1x128xf32>
    %cst_5 = arith.constant 3.200000e+01 : f32
    %8 = vector.broadcast %cst_5 : f32 to vector<1x128xf32>
    %9 = arith.divf %4, %8 : vector<1x128xf32>
    %cst_6 = arith.constant 3.200000e+01 : f32
    %10 = vector.broadcast %cst_6 : f32 to vector<1x128xf32>
    %11 = arith.divf %7, %10 : vector<1x128xf32>
    %12 = arith.mulf %9, %9 : vector<1x128xf32>
    %13 = arith.subf %11, %12 : vector<1x128xf32>
    %cst_7 = arith.constant 0.000000e+00 : f32
    %14 = vector.broadcast %cst_7 : f32 to vector<1x128xf32>
    %15 = arith.maximumf %13, %14 : vector<1x128xf32>
    %16 = vector.broadcast %9 : vector<1x128xf32> to vector<32x128xf32>
    %17 = arith.subf %2, %16 : vector<32x128xf32>
    %cst_8 = arith.constant 9.99999974E-6 : f32
    %18 = vector.broadcast %cst_8 : f32 to vector<1x128xf32>
    %19 = arith.addf %15, %18 : vector<1x128xf32>
    %20 = math.rsqrt %19 : vector<1x128xf32>
    %21 = vector.broadcast %20 : vector<1x128xf32> to vector<32x128xf32>
    %22 = arith.mulf %17, %21 : vector<32x128xf32>
    %c0_9 = arith.constant 0 : index
    %c0_10 = arith.constant 0 : index
    %23 = vector.load %arg2[%c0_9, %c0_10] : memref<1x128xf32, #tpu.memory_space<vmem>>, vector<1x128xf32>
    %24 = vector.broadcast %23 : vector<1x128xf32> to vector<32x128xf32>
    %25 = arith.mulf %22, %24 : vector<32x128xf32>
    %c0_11 = arith.constant 0 : index
    %c0_12 = arith.constant 0 : index
    %26 = vector.load %arg3[%c0_11, %c0_12] : memref<1x128xf32, #tpu.memory_space<vmem>>, vector<1x128xf32>
    %27 = vector.broadcast %26 : vector<1x128xf32> to vector<32x128xf32>
    %28 = arith.addf %25, %27 : vector<32x128xf32>
    %cst_13 = arith.constant 0.000000e+00 : f32
    %29 = vector.broadcast %cst_13 : f32 to vector<32x128xf32>
    %30 = arith.cmpf ogt, %28, %29 : vector<32x128xf32>
    %cst_14 = arith.constant 2.000000e-01 : f32
    %31 = vector.broadcast %cst_14 : f32 to vector<32x128xf32>
    %32 = arith.mulf %31, %28 : vector<32x128xf32>
    %33 = arith.select %30, %28, %32 : vector<32x128xi1>, vector<32x128xf32>
    %34 = arith.truncf %33 : vector<32x128xf32> to vector<32x128xbf16>
    %c0_15 = arith.constant 0 : index
    %c0_16 = arith.constant 0 : index
    %35 = vector.load %arg4[%c0_15, %c0_16] : memref<32x128xbf16, #tpu.memory_space<vmem>>, vector<32x128xbf16>
    tpu.vector_store %arg4[%c0_15, %c0_16], %34 {strides = array<i32>} : memref<32x128xbf16, #tpu.memory_space<vmem>>, vector<32x128xbf16>,
    return
  }
}

module attributes {stable_mosaic.version = 11 : i64} {
  func.func @conv_bn_lrelu_kernel(%arg0: memref<8x2048xbf16, #tpu.memory_space<vmem>>, %arg1: memref<2048x128xbf16, #tpu.memory_space<vmem>>, %arg2: memref<1x128xf32, #tpu.memory_space<vmem>>, %arg3: memref<1x128xf32, #tpu.memory_space<vmem>>, %arg4: memref<8x128xbf16, #tpu.memory_space<vmem>>) attributes {dimension_semantics = [], scalar_prefetch = 0 : i64, scratch_operands = 0 : i64, tpu.core_type = #tpu.core_type<tc>} {
    %c0 = arith.constant 0 : index
    %c0_0 = arith.constant 0 : index
    %0 = vector.load %arg0[%c0, %c0_0] : memref<8x2048xbf16, #tpu.memory_space<vmem>>, vector<8x2048xbf16>
    %c0_1 = arith.constant 0 : index
    %c0_2 = arith.constant 0 : index
    %1 = vector.load %arg1[%c0_1, %c0_2] : memref<2048x128xbf16, #tpu.memory_space<vmem>>, vector<2048x128xbf16>
    %cst = arith.constant dense<0.000000e+00> : vector<8x128xf32>
    %2 = tpu.matmul %0, %1, %cst {dimension_numbers = #tpu.dot_dimension_numbers<[1], [0], [0], [1], [0, 0, 1, 1], [], []>} : vector<8x2048xbf16>, vector<2048x128xbf16>, vector<8x128xf32> -> vector<8x128xf32>
    %cst_3 = arith.constant dense<0.000000e+00> : vector<128xf32>
    %3 = vector.multi_reduction <add>, %2, %cst_3 [0] : vector<8x128xf32> to vector<128xf32>
    %4 = vector.shape_cast %3 : vector<128xf32> to vector<1x128xf32>
    %5 = arith.mulf %2, %2 : vector<8x128xf32>
    %cst_4 = arith.constant dense<0.000000e+00> : vector<128xf32>
    %6 = vector.multi_reduction <add>, %5, %cst_4 [0] : vector<8x128xf32> to vector<128xf32>
    %7 = vector.shape_cast %6 : vector<128xf32> to vector<1x128xf32>
    %cst_5 = arith.constant 8.000000e+00 : f32
    %8 = vector.broadcast %cst_5 : f32 to vector<1x128xf32>
    %9 = arith.divf %4, %8 : vector<1x128xf32>
    %cst_6 = arith.constant 8.000000e+00 : f32
    %10 = vector.broadcast %cst_6 : f32 to vector<1x128xf32>
    %11 = arith.divf %7, %10 : vector<1x128xf32>
    %12 = arith.mulf %9, %9 : vector<1x128xf32>
    %13 = arith.subf %11, %12 : vector<1x128xf32>
    %cst_7 = arith.constant 0.000000e+00 : f32
    %14 = vector.broadcast %cst_7 : f32 to vector<1x128xf32>
    %15 = arith.maximumf %13, %14 : vector<1x128xf32>
    %16 = vector.broadcast %9 : vector<1x128xf32> to vector<8x128xf32>
    %17 = arith.subf %2, %16 : vector<8x128xf32>
    %cst_8 = arith.constant 9.99999974E-6 : f32
    %18 = vector.broadcast %cst_8 : f32 to vector<1x128xf32>
    %19 = arith.addf %15, %18 : vector<1x128xf32>
    %20 = math.rsqrt %19 : vector<1x128xf32>
    %21 = vector.broadcast %20 : vector<1x128xf32> to vector<8x128xf32>
    %22 = arith.mulf %17, %21 : vector<8x128xf32>
    %c0_9 = arith.constant 0 : index
    %c0_10 = arith.constant 0 : index
    %23 = vector.load %arg2[%c0_9, %c0_10] : memref<1x128xf32, #tpu.memory_space<vmem>>, vector<1x128xf32>
    %24 = vector.broadcast %23 : vector<1x128xf32> to vector<8x128xf32>
    %25 = arith.mulf %22, %24 : vector<8x128xf32>
    %c0_11 = arith.constant 0 : index
    %c0_12 = arith.constant 0 : index
    %26 = vector.load %arg3[%c0_11, %c0_12] : memref<1x128xf32, #tpu.memory_space<vmem>>, vector<1x128xf32>
    %27 = vector.broadcast %26 : vector<1x128xf32> to vector<8x128xf32>
    %28 = arith.addf %25, %27 : vector<8x128xf32>
    %cst_13 = arith.constant 0.000000e+00 : f32
    %29 = vector.broadcast %cst_13 : f32 to vector<8x128xf32>
    %30 = arith.cmpf ogt, %28, %29 : vector<8x128xf32>
    %cst_14 = arith.constant 2.000000e-01 : f32
    %31 = vector.broadcast %cst_14 : f32 to vector<8x128xf32>
    %32 = arith.mulf %31, %28 : vector<8x128xf32>
    %33 = arith.select %30, %28, %32 : vector<8x128xi1>, vector<8x128xf32>
    %34 = arith.truncf %33 : vector<8x128xf32> to vector<8x128xbf16>
    %c0_15 = arith.constant 0 : index
    %c0_16 = arith.constant 0 : index
    %35 = vector.load %arg4[%c0_15, %c0_16] : memref<8x128xbf16, #tpu.memory_space<vmem>>, vector<8x128xbf16>
    tpu.vector_store %arg4[%c0_15, %c0_16], %34 {strides = array<i32>} : memref<8x128xbf16, #tpu.memory_space<vmem>>, vector<8x128xbf16>,
    return
  }
}

module attributes {stable_mosaic.version = 11 : i64} {
  func.func @fc_kernel(%arg0: memref<2x512xbf16, #tpu.memory_space<vmem>>, %arg1: memref<512x128xbf16, #tpu.memory_space<vmem>>, %arg2: memref<1x128xf32, #tpu.memory_space<vmem>>, %arg3: memref<2x128xf32, #tpu.memory_space<vmem>>) attributes {dimension_semantics = [], scalar_prefetch = 0 : i64, scratch_operands = 0 : i64, tpu.core_type = #tpu.core_type<tc>} {
    %c0 = arith.constant 0 : index
    %c0_0 = arith.constant 0 : index
    %0 = vector.load %arg0[%c0, %c0_0] : memref<2x512xbf16, #tpu.memory_space<vmem>>, vector<2x512xbf16>
    %c0_1 = arith.constant 0 : index
    %c0_2 = arith.constant 0 : index
    %1 = vector.load %arg1[%c0_1, %c0_2] : memref<512x128xbf16, #tpu.memory_space<vmem>>, vector<512x128xbf16>
    %cst = arith.constant dense<0.000000e+00> : vector<2x128xf32>
    %2 = tpu.matmul %0, %1, %cst {dimension_numbers = #tpu.dot_dimension_numbers<[1], [0], [0], [1], [0, 0, 1, 1], [], []>} : vector<2x512xbf16>, vector<512x128xbf16>, vector<2x128xf32> -> vector<2x128xf32>
    %c0_3 = arith.constant 0 : index
    %c0_4 = arith.constant 0 : index
    %3 = vector.load %arg2[%c0_3, %c0_4] : memref<1x128xf32, #tpu.memory_space<vmem>>, vector<1x128xf32>
    %4 = vector.broadcast %3 : vector<1x128xf32> to vector<2x128xf32>
    %5 = arith.addf %2, %4 : vector<2x128xf32>
    %c0_5 = arith.constant 0 : index
    %c0_6 = arith.constant 0 : index
    %6 = vector.load %arg3[%c0_5, %c0_6] : memref<2x128xf32, #tpu.memory_space<vmem>>, vector<2x128xf32>
    tpu.vector_store %arg3[%c0_5, %c0_6], %5 {strides = array<i32>} : memref<2x128xf32, #tpu.memory_space<vmem>>, vector<2x128xf32>,
    return
  }
}

</mosaic_0001>

<llo_original>
// kernel: discriminator_forward.5
$region0: #{discriminator_forward.5}
  #allocation0 [shape = 'u32[]', space=smem, size = 0x4, offset = 0x4, fixed_abs, tag = 'smem constant byte address 0x4 - core index']
  #allocation1 [shape = 'u32[144,128]{1,0:T(1,128)}', space=vmem, size = 0x12000, scoped, tag = 'internal scratch']
  %s0 = inlined_call_operand.vmem [shape: bf16[512,48], index: 0, kind: input, shape index: {}]
  %s1 = inlined_call_operand.vmem [shape: bf16[48,128], index: 1, kind: input, shape index: {}]
  %s2 = inlined_call_operand.vmem [shape: bf16[512,128], index: 2, kind: output, shape index: {}]
  %s3 = sld [smem:[#allocation0]]
  $region18: #{discriminator_forward.5} parent=0
    _
  %s5 = ssub.s32 1, %s3
  %s6 = scalar_select 0, %s5, %s3
  // Predicated region
  $region2: #{discriminator_forward.5} parent=0 // pred_check
    _
  $region3: #{discriminator_forward.5} parent=0 // pred_check_branch
    %8 = sbr.rel (0) target = $region5
  $region4: #{discriminator_forward.5} parent=0 // pred_region
    _
  $region5: #{discriminator_forward.5} parent=0 // pred_fallthru
    _
  // Predicated region
  $region6: #{discriminator_forward.5} parent=0 // pred_check
    _
  $region7: #{discriminator_forward.5} parent=0 // pred_check_branch
    %10 = sbr.rel (0) target = $region9
  $region8: #{discriminator_forward.5} parent=0 // pred_region
    _
  $region9: #{discriminator_forward.5} parent=0 // pred_fallthru
    _
  %v12 = vld [vmem:[%s0] sm:$0xf]
  %v13 = vld [vmem:[%s0 + $0x4] sm:$0xf]
  %v14 = vld [vmem:[%s0 + $0x8] sm:$0xf]
  %v15 = vld [vmem:[%s0 + $0xc] sm:$0xf]
  %v16 = vld [vmem:[%s0 + $0x10] sm:$0xf]
  %v17 = vld [vmem:[%s0 + $0x14] sm:$0xf]
  %v18 = vld [vmem:[%s0 + $0x18] sm:$0xf]
  %v19 = vld [vmem:[%s0 + $0x1c] sm:$0xf]
  %v20 = vld [vmem:[%s0 + $0x20] sm:$0xf]
  %v21 = vld [vmem:[%s0 + $0x24] sm:$0xf]
  %v22 = vld [vmem:[%s0 + $0x28] sm:$0xf]
  %v23 = vld [vmem:[%s0 + $0x2c] sm:$0xf]
  %v24 = vld [vmem:[%s0 + $0x30] sm:$0xf]
  %v25 = vld [vmem:[%s0 + $0x34] sm:$0xf]
  %v26 = vld [vmem:[%s0 + $0x38] sm:$0xf]
  %v27 = vld [vmem:[%s0 + $0x3c] sm:$0xf]
  %v28 = vld [vmem:[%s0 + $0x40] sm:$0xf]
  %v29 = vld [vmem:[%s0 + $0x44] sm:$0xf]
  %v30 = vld [vmem:[%s0 + $0x48] sm:$0xf]
  %v31 = vld [vmem:[%s0 + $0x4c] sm:$0xf]
  %v32 = vld [vmem:[%s0 + $0x50] sm:$0xf]
  %v33 = vld [vmem:[%s0 + $0x54] sm:$0xf]
  %v34 = vld [vmem:[%s0 + $0x58] sm:$0xf]
  %v35 = vld [vmem:[%s0 + $0x5c] sm:$0xf]
  %v36 = vld [vmem:[%s0 + $0x60] sm:$0xf]
  %v37 = vld [vmem:[%s0 + $0x64] sm:$0xf]
  %v38 = vld [vmem:[%s0 + $0x68] sm:$0xf]
  %v39 = vld [vmem:[%s0 + $0x6c] sm:$0xf]
  %v40 = vld [vmem:[%s0 + $0x70] sm:$0xf]
  %v41 = vld [vmem:[%s0 + $0x74] sm:$0xf]
  %v42 = vld [vmem:[%s0 + $0x78] sm:$0xf]
  %v43 = vld [vmem:[%s0 + $0x7c] sm:$0xf]
  %v44 = vld [vmem:[%s0 + $0x80] sm:$0xf]
  %v45 = vld [vmem:[%s0 + $0x84] sm:$0xf]
  %v46 = vld [vmem:[%s0 + $0x88] sm:$0xf]
  %v47 = vld [vmem:[%s0 + $0x8c] sm:$0xf]
  %v48 = vld [vmem:[%s0 + $0x90] sm:$0xf]
  %v49 = vld [vmem:[%s0 + $0x94] sm:$0xf]
  %v50 = vld [vmem:[%s0 + $0x98] sm:$0xf]
  %v51 = vld [vmem:[%s0 + $0x9c] sm:$0xf]
  %v52 = vld [vmem:[%s0 + $0xa0] sm:$0xf]
  %v53 = vld [vmem:[%s0 + $0xa4] sm:$0xf]
  %v54 = vld [vmem:[%s0 + $0xa8] sm:$0xf]
  %v55 = vld [vmem:[%s0 + $0xac] sm:$0xf]
  %v56 = vld [vmem:[%s0 + $0xb0] sm:$0xf]
  %v57 = vld [vmem:[%s0 + $0xb4] sm:$0xf]
  %v58 = vld [vmem:[%s0 + $0xb8] sm:$0xf]
  %v59 = vld [vmem:[%s0 + $0xbc] sm:$0xf]
  %v60 = vld [vmem:[%s0 + $0xc0] sm:$0xf]
  %v61 = vld [vmem:[%s0 + $0xc4] sm:$0xf]
  %v62 = vld [vmem:[%s0 + $0xc8] sm:$0xf]
  %v63 = vld [vmem:[%s0 + $0xcc] sm:$0xf]
  %v64 = vld [vmem:[%s0 + $0xd0] sm:$0xf]
  %v65 = vld [vmem:[%s0 + $0xd4] sm:$0xf]
  %v66 = vld [vmem:[%s0 + $0xd8] sm:$0xf]
  %v67 = vld [vmem:[%s0 + $0xdc] sm:$0xf]
  %v68 = vld [vmem:[%s0 + $0xe0] sm:$0xf]
  %v69 = vld [vmem:[%s0 + $0xe4] sm:$0xf]
  %v70 = vld [vmem:[%s0 + $0xe8] sm:$0xf]
  %v71 = vld [vmem:[%s0 + $0xec] sm:$0xf]
  %v72 = vld [vmem:[%s0 + $0xf0] sm:$0xf]
  %v73 = vld [vmem:[%s0 + $0xf4] sm:$0xf]
  %v74 = vld [vmem:[%s0 + $0xf8] sm:$0xf]
  %v75 = vld [vmem:[%s0 + $0xfc] sm:$0xf]
  %v76 = vld [vmem:[%s1] sm:$0xf]
  %v77 = vld [vmem:[%s1 + $0x4] sm:$0xf]
  %v78 = vld [vmem:[%s1 + $0x8] sm:$0xf]
  %v79 = vld [vmem:[%s1 + $0xc] sm:$0xf]
  %v80 = vld [vmem:[%s1 + $0x10] sm:$0xf]
  %v81 = vld [vmem:[%s1 + $0x14] sm:$0xf]
  %v146 = vunpack.c.l.b16 %v12
  %v147 = vunpack.c.l.b16 %v13
  %v148 = vunpack.c.l.b16 %v14
  %v149 = vunpack.c.l.b16 %v15
  %v150 = vunpack.c.l.b16 %v16
  %v151 = vunpack.c.l.b16 %v17
  %v152 = vunpack.c.l.b16 %v18
  %v153 = vunpack.c.l.b16 %v19
  %v154 = vunpack.c.l.b16 %v20
  %v155 = vunpack.c.l.b16 %v21
  %v156 = vunpack.c.l.b16 %v22
  %v157 = vunpack.c.l.b16 %v23
  %v158 = vunpack.c.l.b16 %v24
  %v159 = vunpack.c.l.b16 %v25
  %v160 = vunpack.c.l.b16 %v26
  %v161 = vunpack.c.l.b16 %v27
  %v162 = vunpack.c.l.b16 %v28
  %v163 = vunpack.c.l.b16 %v29
  %v164 = vunpack.c.l.b16 %v30
  %v165 = vunpack.c.l.b16 %v31
  %v166 = vunpack.c.l.b16 %v32
  %v167 = vunpack.c.l.b16 %v33
  %v168 = vunpack.c.l.b16 %v34
  %v169 = vunpack.c.l.b16 %v35
  %v170 = vunpack.c.l.b16 %v36
  %v171 = vunpack.c.l.b16 %v37
  %v172 = vunpack.c.l.b16 %v38
  %v173 = vunpack.c.l.b16 %v39
  %v174 = vunpack.c.l.b16 %v40
  %v175 = vunpack.c.l.b16 %v41
  %v176 = vunpack.c.l.b16 %v42
  %v177 = vunpack.c.l.b16 %v43
  %v178 = vunpack.c.l.b16 %v44
  %v179 = vunpack.c.l.b16 %v45
  %v180 = vunpack.c.l.b16 %v46
  %v181 = vunpack.c.l.b16 %v47
  %v182 = vunpack.c.l.b16 %v48
  %v183 = vunpack.c.l.b16 %v49
  %v184 = vunpack.c.l.b16 %v50
  %v185 = vunpack.c.l.b16 %v51
  %v186 = vunpack.c.l.b16 %v52
  %v187 = vunpack.c.l.b16 %v53
  %v188 = vunpack.c.l.b16 %v54
  %v189 = vunpack.c.l.b16 %v55
  %v190 = vunpack.c.l.b16 %v56
  %v191 = vunpack.c.l.b16 %v57
  %v192 = vunpack.c.l.b16 %v58
  %v193 = vunpack.c.l.b16 %v59
  %v194 = vunpack.c.l.b16 %v60
  %v195 = vunpack.c.l.b16 %v61
  %v196 = vunpack.c.l.b16 %v62
  %v197 = vunpack.c.l.b16 %v63
  %v198 = vunpack.c.l.b16 %v64
  %v199 = vunpack.c.l.b16 %v65
  %v200 = vunpack.c.l.b16 %v66
  %v201 = vunpack.c.l.b16 %v67
  %v202 = vunpack.c.l.b16 %v68
  %v203 = vunpack.c.l.b16 %v69
  %v204 = vunpack.c.l.b16 %v70
  %v205 = vunpack.c.l.b16 %v71
  %v206 = vunpack.c.l.b16 %v72
  %v207 = vunpack.c.l.b16 %v73
  %v208 = vunpack.c.l.b16 %v74
  %v209 = vunpack.c.l.b16 %v75
  %v210 = vpack.c.b16 %v147, %v146
  %v211 = vpack.c.b16 %v149, %v148
  %v212 = vpack.c.b16 %v151, %v150
  %v213 = vpack.c.b16 %v153, %v152
  %v214 = vpack.c.b16 %v155, %v154
  %v215 = vpack.c.b16 %v157, %v156
  %v216 = vpack.c.b16 %v159, %v158
  %v217 = vpack.c.b16 %v161, %v160
  %v218 = vpack.c.b16 %v163, %v162
  %v219 = vpack.c.b16 %v165, %v164
  %v220 = vpack.c.b16 %v167, %v166
  %v221 = vpack.c.b16 %v169, %v168
  %v222 = vpack.c.b16 %v171, %v170
  %v223 = vpack.c.b16 %v173, %v172
  %v224 = vpack.c.b16 %v175, %v174
  %v225 = vpack.c.b16 %v177, %v176
  %v226 = vpack.c.b16 %v179, %v178
  %v227 = vpack.c.b16 %v181, %v180
  %v228 = vpack.c.b16 %v183, %v182
  %v229 = vpack.c.b16 %v185, %v184
  %v230 = vpack.c.b16 %v187, %v186
  %v231 = vpack.c.b16 %v189, %v188
  %v232 = vpack.c.b16 %v191, %v190
  %v233 = vpack.c.b16 %v193, %v192
  %v234 = vpack.c.b16 %v195, %v194
  %v235 = vpack.c.b16 %v197, %v196
  %v236 = vpack.c.b16 %v199, %v198
  %v237 = vpack.c.b16 %v201, %v200
  %v238 = vpack.c.b16 %v203, %v202
  %v239 = vpack.c.b16 %v205, %v204
  %v240 = vpack.c.b16 %v207, %v206
  %v241 = vpack.c.b16 %v209, %v208
  %v248 = vunpack.c.l.b16 %v76
  %v249 = vunpack.c.l.b16 %v77
  %v250 = vunpack.c.l.b16 %v78
  %v251 = vunpack.c.l.b16 %v79
  %v252 = vunpack.c.l.b16 %v80
  %v253 = vunpack.c.l.b16 %v81
  %v254 = vpack.c.b16 %v249, %v248
  %v255 = vpack.c.b16 %v251, %v250
  %v256 = vpack.c.b16 %v253, %v252
  %vm260 = vcmask 392192
  %v262 = vsel %vm260, %v210, 0
  %v265 = vsel %vm260, %v211, 0
  %v268 = vsel %vm260, %v212, 0
  %v271 = vsel %vm260, %v213, 0
  %v274 = vsel %vm260, %v214, 0
  %v277 = vsel %vm260, %v215, 0
  %v280 = vsel %vm260, %v216, 0
  %v283 = vsel %vm260, %v217, 0
  %v286 = vsel %vm260, %v218, 0
  %v289 = vsel %vm260, %v219, 0
  %v292 = vsel %vm260, %v220, 0
  %v295 = vsel %vm260, %v221, 0
  %v298 = vsel %vm260, %v222, 0
  %v301 = vsel %vm260, %v223, 0
  %v304 = vsel %vm260, %v224, 0
  %v307 = vsel %vm260, %v225, 0
  %v310 = vsel %vm260, %v226, 0
  %v313 = vsel %vm260, %v227, 0
  %v316 = vsel %vm260, %v228, 0
  %v319 = vsel %vm260, %v229, 0
  %v322 = vsel %vm260, %v230, 0
  %v325 = vsel %vm260, %v231, 0
  %v328 = vsel %vm260, %v232, 0
  %v331 = vsel %vm260, %v233, 0
  %v334 = vsel %vm260, %v234, 0
  %v337 = vsel %vm260, %v235, 0
  %v340 = vsel %vm260, %v236, 0
  %v343 = vsel %vm260, %v237, 0
  %v346 = vsel %vm260, %v238, 0
  %v349 = vsel %vm260, %v239, 0
  %v352 = vsel %vm260, %v240, 0
  %v355 = vsel %vm260, %v241, 0
  %357 = vmatprep.subr.bf16.mxu0 0
  %358 = vmatpush1.bf16.msra.mxu0 %v254
  %359 = vmatprep.subr.bf16.mxu0 0
  %360 = vmatpush1.bf16.msra.mxu0 %v255
  %361 = vmatprep.subr.bf16.mxu0 0
  %362 = vmatpush1.bf16.msra.mxu0 %v256
  %363 = vmatprep.subr.bf16.mxu0 0
  %364 = vmatpush1.bf16.msra.mxu0 0
  %365 = vmatprep.subr.bf16.mxu0 0
  %366 = vmatpush1.bf16.msra.mxu0 0
  %367 = vmatprep.subr.bf16.mxu0 0
  %368 = vmatpush1.bf16.msra.mxu0 0
  %369 = vmatprep.subr.bf16.mxu0 0
  %370 = vmatpush1.bf16.msra.mxu0 0
  %371 = vmatprep.subr.bf16.mxu0 0
  %372 = vmatpush1.bf16.msra.mxu0 0
  %373 = vmatprep.subr.bf16.mxu0 0
  %374 = vmatpush1.bf16.msra.mxu0 0
  %375 = vmatprep.subr.bf16.mxu0 0
  %376 = vmatpush1.bf16.msra.mxu0 0
  %377 = vmatprep.subr.bf16.mxu0 0
  %378 = vmatpush1.bf16.msra.mxu0 0
  %379 = vmatprep.subr.bf16.mxu0 0
  %380 = vmatpush1.bf16.msra.mxu0 0
  %381 = vmatprep.subr.bf16.mxu0 0
  %382 = vmatpush1.bf16.msra.mxu0 0
  %383 = vmatprep.subr.bf16.mxu0 0
  %384 = vmatpush1.bf16.msra.mxu0 0
  %385 = vmatprep.subr.bf16.mxu0 0
  %386 = vmatpush1.bf16.msra.mxu0 0
  %387 = vmatprep.subr.bf16.mxu0 0
  %388 = vmatpush1.bf16.msra.mxu0 0
  %389 = vmatprep.mubr.bf16.mxu0 0
  %390 = vmatmul.mubr.bf16.gmra.mrb[0].mxu0 %v262
  %v391 = vpop.f32.mrb[0].mxu0
  %v392 = vadd.f32 0.0, %v391
  %v393 = vpop.f32.mrb[0].mxu0
  %v394 = vpop.f32.mrb[0].mxu0
  %v395 = vadd.f32 0.0, %v394
  %v396 = vpop.f32.mrb[0].mxu0
  %397 = vmatprep.mubr.bf16.mxu0 0
  %398 = vmatmul.mubr.bf16.gmra.mrb[0].mxu0 %v265
  %v399 = vpop.f32.mrb[0].mxu0
  %v400 = vadd.f32 0.0, %v399
  %v401 = vpop.f32.mrb[0].mxu0
  %v402 = vpop.f32.mrb[0].mxu0
  %v403 = vadd.f32 0.0, %v402
  %v404 = vpop.f32.mrb[0].mxu0
  %405 = vmatprep.mubr.bf16.mxu0 0
  %406 = vmatmul.mubr.bf16.gmra.mrb[0].mxu0 %v268
  %v407 = vpop.f32.mrb[0].mxu0
  %v408 = vadd.f32 0.0, %v407
  %v409 = vpop.f32.mrb[0].mxu0
  %v410 = vpop.f32.mrb[0].mxu0
  %v411 = vadd.f32 0.0, %v410
  %v412 = vpop.f32.mrb[0].mxu0
  %413 = vmatprep.mubr.bf16.mxu0 0
  %414 = vmatmul.mubr.bf16.gmra.mrb[0].mxu0 %v271
  %v415 = vpop.f32.mrb[0].mxu0
  %v416 = vadd.f32 0.0, %v415
  %v417 = vpop.f32.mrb[0].mxu0
  %v418 = vpop.f32.mrb[0].mxu0
  %v419 = vadd.f32 0.0, %v418
  %v420 = vpop.f32.mrb[0].mxu0
  %421 = vmatprep.mubr.bf16.mxu0 0
  %422 = vmatmul.mubr.bf16.gmra.mrb[0].mxu0 %v274
  %v423 = vpop.f32.mrb[0].mxu0
  %v424 = vadd.f32 0.0, %v423
  %v425 = vpop.f32.mrb[0].mxu0
  %v426 = vpop.f32.mrb[0].mxu0
  %v427 = vadd.f32 0.0, %v426
  %v428 = vpop.f32.mrb[0].mxu0
  %429 = vmatprep.mubr.bf16.mxu0 0
  %430 = vmatmul.mubr.bf16.gmra.mrb[0].mxu0 %v277
  %v431 = vpop.f32.mrb[0].mxu0
  %v432 = vadd.f32 0.0, %v431
  %v433 = vpop.f32.mrb[0].mxu0
  %v434 = vpop.f32.mrb[0].mxu0
  %v435 = vadd.f32 0.0, %v434
  %v436 = vpop.f32.mrb[0].mxu0
  %437 = vmatprep.mubr.bf16.mxu0 0
  %438 = vmatmul.mubr.bf16.gmra.mrb[0].mxu0 %v280
  %v439 = vpop.f32.mrb[0].mxu0
  %v440 = vadd.f32 0.0, %v439
  %v441 = vpop.f32.mrb[0].mxu0
  %v442 = vpop.f32.mrb[0].mxu0
  %v443 = vadd.f32 0.0, %v442
  %v444 = vpop.f32.mrb[0].mxu0
  %445 = vmatprep.mubr.bf16.mxu0 0
  %446 = vmatmul.mubr.bf16.gmra.mrb[0].mxu0 %v283
  %v447 = vpop.f32.mrb[0].mxu0
  %v448 = vadd.f32 0.0, %v447
  %v449 = vpop.f32.mrb[0].mxu0
  %v450 = vpop.f32.mrb[0].mxu0
  %v451 = vadd.f32 0.0, %v450
  %v452 = vpop.f32.mrb[0].mxu0
  %453 = vmatprep.mubr.bf16.mxu0 0
  %454 = vmatmul.mubr.bf16.gmra.mrb[0].mxu0 %v286
  %v455 = vpop.f32.mrb[0].mxu0
  %v456 = vadd.f32 0.0, %v455
  %v457 = vpop.f32.mrb[0].mxu0
  %v458 = vpop.f32.mrb[0].mxu0
  %v459 = vadd.f32 0.0, %v458
  %v460 = vpop.f32.mrb[0].mxu0
  %461 = vmatprep.mubr.bf16.mxu0 0
  %462 = vmatmul.mubr.bf16.gmra.mrb[0].mxu0 %v289
  %v463 = vpop.f32.mrb[0].mxu0
  %v464 = vadd.f32 0.0, %v463
  %v465 = vpop.f32.mrb[0].mxu0
  %v466 = vpop.f32.mrb[0].mxu0
  %v467 = vadd.f32 0.0, %v466
  %v468 = vpop.f32.mrb[0].mxu0
  %469 = vmatprep.mubr.bf16.mxu0 0
  %470 = vmatmul.mubr.bf16.gmra.mrb[0].mxu0 %v292
  %v471 = vpop.f32.mrb[0].mxu0
  %v472 = vadd.f32 0.0, %v471
  %v473 = vpop.f32.mrb[0].mxu0
  %v474 = vpop.f32.mrb[0].mxu0
  %v475 = vadd.f32 0.0, %v474
  %v476 = vpop.f32.mrb[0].mxu0
  %477 = vmatprep.mubr.bf16.mxu0 0
  %478 = vmatmul.mubr.bf16.gmra.mrb[0].mxu0 %v295
  %v479 = vpop.f32.mrb[0].mxu0
  %v480 = vadd.f32 0.0, %v479
  %v481 = vpop.f32.mrb[0].mxu0
  %v482 = vpop.f32.mrb[0].mxu0
  %v483 = vadd.f32 0.0, %v482
  %v484 = vpop.f32.mrb[0].mxu0
  %485 = vmatprep.mubr.bf16.mxu0 0
  %486 = vmatmul.mubr.bf16.gmra.mrb[0].mxu0 %v298
  %v487 = vpop.f32.mrb[0].mxu0
  %v488 = vadd.f32 0.0, %v487
  %v489 = vpop.f32.mrb[0].mxu0
  %v490 = vpop.f32.mrb[0].mxu0
  %v491 = vadd.f32 0.0, %v490
  %v492 = vpop.f32.mrb[0].mxu0
  %493 = vmatprep.mubr.bf16.mxu0 0
  %494 = vmatmul.mubr.bf16.gmra.mrb[0].mxu0 %v301
  %v495 = vpop.f32.mrb[0].mxu0
  %v496 = vadd.f32 0.0, %v495
  %v497 = vpop.f32.mrb[0].mxu0
  %v498 = vpop.f32.mrb[0].mxu0
  %v499 = vadd.f32 0.0, %v498
  %v500 = vpop.f32.mrb[0].mxu0
  %501 = vmatprep.mubr.bf16.mxu0 0
  %502 = vmatmul.mubr.bf16.gmra.mrb[0].mxu0 %v304
  %v503 = vpop.f32.mrb[0].mxu0
  %v504 = vadd.f32 0.0, %v503
  %v505 = vpop.f32.mrb[0].mxu0
  %v506 = vpop.f32.mrb[0].mxu0
  %v507 = vadd.f32 0.0, %v506
  %v508 = vpop.f32.mrb[0].mxu0
  %509 = vmatprep.mubr.bf16.mxu0 0
  %510 = vmatmul.mubr.bf16.gmra.mrb[0].mxu0 %v307
  %v511 = vpop.f32.mrb[0].mxu0
  %v512 = vadd.f32 0.0, %v511
  %v513 = vpop.f32.mrb[0].mxu0
  %v514 = vpop.f32.mrb[0].mxu0
  %v515 = vadd.f32 0.0, %v514
  %v516 = vpop.f32.mrb[0].mxu0
  %517 = vmatprep.mubr.bf16.mxu0 0
  %518 = vmatmul.mubr.bf16.gmra.mrb[0].mxu0 %v310
  %v519 = vpop.f32.mrb[0].mxu0
  %v520 = vadd.f32 0.0, %v519
  %v521 = vpop.f32.mrb[0].mxu0
  %v522 = vpop.f32.mrb[0].mxu0
  %v523 = vadd.f32 0.0, %v522
  %v524 = vpop.f32.mrb[0].mxu0
  %525 = vmatprep.mubr.bf16.mxu0 0
  %526 = vmatmul.mubr.bf16.gmra.mrb[0].mxu0 %v313
  %v527 = vpop.f32.mrb[0].mxu0
  %v528 = vadd.f32 0.0, %v527
  %v529 = vpop.f32.mrb[0].mxu0
  %v530 = vpop.f32.mrb[0].mxu0
  %v531 = vadd.f32 0.0, %v530
  %v532 = vpop.f32.mrb[0].mxu0
  %533 = vmatprep.mubr.bf16.mxu0 0
  %534 = vmatmul.mubr.bf16.gmra.mrb[0].mxu0 %v316
  %v535 = vpop.f32.mrb[0].mxu0
  %v536 = vadd.f32 0.0, %v535
  %v537 = vpop.f32.mrb[0].mxu0
  %v538 = vpop.f32.mrb[0].mxu0
  %v539 = vadd.f32 0.0, %v538
  %v540 = vpop.f32.mrb[0].mxu0
  %541 = vmatprep.mubr.bf16.mxu0 0
  %542 = vmatmul.mubr.bf16.gmra.mrb[0].mxu0 %v319
  %v543 = vpop.f32.mrb[0].mxu0
  %v544 = vadd.f32 0.0, %v543
  %v545 = vpop.f32.mrb[0].mxu0
  %v546 = vpop.f32.mrb[0].mxu0
  %v547 = vadd.f32 0.0, %v546
  %v548 = vpop.f32.mrb[0].mxu0
  %549 = vmatprep.mubr.bf16.mxu0 0
  %550 = vmatmul.mubr.bf16.gmra.mrb[0].mxu0 %v322
  %v551 = vpop.f32.mrb[0].mxu0
  %v552 = vadd.f32 0.0, %v551
  %v553 = vpop.f32.mrb[0].mxu0
  %v554 = vpop.f32.mrb[0].mxu0
  %v555 = vadd.f32 0.0, %v554
  %v556 = vpop.f32.mrb[0].mxu0
  %557 = vmatprep.mubr.bf16.mxu0 0
  %558 = vmatmul.mubr.bf16.gmra.mrb[0].mxu0 %v325
  %v559 = vpop.f32.mrb[0].mxu0
  %v560 = vadd.f32 0.0, %v559
  %v561 = vpop.f32.mrb[0].mxu0
  %v562 = vpop.f32.mrb[0].mxu0
  %v563 = vadd.f32 0.0, %v562
  %v564 = vpop.f32.mrb[0].mxu0
  %565 = vmatprep.mubr.bf16.mxu0 0
  %566 = vmatmul.mubr.bf16.gmra.mrb[0].mxu0 %v328
  %v567 = vpop.f32.mrb[0].mxu0
  %v568 = vadd.f32 0.0, %v567
  %v569 = vpop.f32.mrb[0].mxu0
  %v570 = vpop.f32.mrb[0].mxu0
  %v571 = vadd.f32 0.0, %v570
  %v572 = vpop.f32.mrb[0].mxu0
  %573 = vmatprep.mubr.bf16.mxu0 0
  %574 = vmatmul.mubr.bf16.gmra.mrb[0].mxu0 %v331
  %v575 = vpop.f32.mrb[0].mxu0
  %v576 = vadd.f32 0.0, %v575
  %v577 = vpop.f32.mrb[0].mxu0
  %v578 = vpop.f32.mrb[0].mxu0
  %v579 = vadd.f32 0.0, %v578
  %v580 = vpop.f32.mrb[0].mxu0
  %581 = vmatprep.mubr.bf16.mxu0 0
  %582 = vmatmul.mubr.bf16.gmra.mrb[0].mxu0 %v334
  %v583 = vpop.f32.mrb[0].mxu0
  %v584 = vadd.f32 0.0, %v583
  %v585 = vpop.f32.mrb[0].mxu0
  %v586 = vpop.f32.mrb[0].mxu0
  %v587 = vadd.f32 0.0, %v586
  %v588 = vpop.f32.mrb[0].mxu0
  %589 = vmatprep.mubr.bf16.mxu0 0
  %590 = vmatmul.mubr.bf16.gmra.mrb[0].mxu0 %v337
  %v591 = vpop.f32.mrb[0].mxu0
  %v592 = vadd.f32 0.0, %v591
  %v593 = vpop.f32.mrb[0].mxu0
  %v594 = vpop.f32.mrb[0].mxu0
  %v595 = vadd.f32 0.0, %v594
  %v596 = vpop.f32.mrb[0].mxu0
  %597 = vmatprep.mubr.bf16.mxu0 0
  %598 = vmatmul.mubr.bf16.gmra.mrb[0].mxu0 %v340
  %v599 = vpop.f32.mrb[0].mxu0
  %v600 = vadd.f32 0.0, %v599
  %v601 = vpop.f32.mrb[0].mxu0
  %v602 = vpop.f32.mrb[0].mxu0
  %v603 = vadd.f32 0.0, %v602
  %v604 = vpop.f32.mrb[0].mxu0
  %605 = vmatprep.mubr.bf16.mxu0 0
  %606 = vmatmul.mubr.bf16.gmra.mrb[0].mxu0 %v343
  %v607 = vpop.f32.mrb[0].mxu0
  %v608 = vadd.f32 0.0, %v607
  %v609 = vpop.f32.mrb[0].mxu0
  %v610 = vpop.f32.mrb[0].mxu0
  %v611 = vadd.f32 0.0, %v610
  %v612 = vpop.f32.mrb[0].mxu0
  %613 = vmatprep.mubr.bf16.mxu0 0
  %614 = vmatmul.mubr.bf16.gmra.mrb[0].mxu0 %v346
  %v615 = vpop.f32.mrb[0].mxu0
  %v616 = vadd.f32 0.0, %v615
  %v617 = vpop.f32.mrb[0].mxu0
  %v618 = vpop.f32.mrb[0].mxu0
  %v619 = vadd.f32 0.0, %v618
  %v620 = vpop.f32.mrb[0].mxu0
  %621 = vmatprep.mubr.bf16.mxu0 0
  %622 = vmatmul.mubr.bf16.gmra.mrb[0].mxu0 %v349
  %v623 = vpop.f32.mrb[0].mxu0
  %v624 = vadd.f32 0.0, %v623
  %v625 = vpop.f32.mrb[0].mxu0
  %v626 = vpop.f32.mrb[0].mxu0
  %v627 = vadd.f32 0.0, %v626
  %v628 = vpop.f32.mrb[0].mxu0
  %629 = vmatprep.mubr.bf16.mxu0 0
  %630 = vmatmul.mubr.bf16.gmra.mrb[0].mxu0 %v352
  %v631 = vpop.f32.mrb[0].mxu0
  %v632 = vadd.f32 0.0, %v631
  %v633 = vpop.f32.mrb[0].mxu0
  %v634 = vpop.f32.mrb[0].mxu0
  %v635 = vadd.f32 0.0, %v634
  %v636 = vpop.f32.mrb[0].mxu0
  %637 = vmatprep.mubr.bf16.mxu0 0
  %638 = vmatmul.mubr.bf16.gmra.mrb[0].mxu0 %v355
  %v639 = vpop.f32.mrb[0].mxu0
  %v640 = vadd.f32 0.0, %v639
  %v641 = vpop.f32.mrb[0].mxu0
  %v642 = vpop.f32.mrb[0].mxu0
  %v643 = vadd.f32 0.0, %v642
  %v644 = vpop.f32.mrb[0].mxu0
  %645 = vdwg.mxu0
  %vm646 = vcmp.gt.f32.partialorder %v392, 0.0
  %vm647 = vcmp.gt.f32.partialorder %v395, 0.0
  %vm648 = vcmp.gt.f32.partialorder %v400, 0.0
  %vm649 = vcmp.gt.f32.partialorder %v403, 0.0
  %vm650 = vcmp.gt.f32.partialorder %v408, 0.0
  %vm651 = vcmp.gt.f32.partialorder %v411, 0.0
  %vm652 = vcmp.gt.f32.partialorder %v416, 0.0
  %vm653 = vcmp.gt.f32.partialorder %v419, 0.0
  %vm654 = vcmp.gt.f32.partialorder %v424, 0.0
  %vm655 = vcmp.gt.f32.partialorder %v427, 0.0
  %vm656 = vcmp.gt.f32.partialorder %v432, 0.0
  %vm657 = vcmp.gt.f32.partialorder %v435, 0.0
  %vm658 = vcmp.gt.f32.partialorder %v440, 0.0
  %vm659 = vcmp.gt.f32.partialorder %v443, 0.0
  %vm660 = vcmp.gt.f32.partialorder %v448, 0.0
  %vm661 = vcmp.gt.f32.partialorder %v451, 0.0
  %vm662 = vcmp.gt.f32.partialorder %v456, 0.0
  %vm663 = vcmp.gt.f32.partialorder %v459, 0.0
  %vm664 = vcmp.gt.f32.partialorder %v464, 0.0
  %vm665 = vcmp.gt.f32.partialorder %v467, 0.0
  %vm666 = vcmp.gt.f32.partialorder %v472, 0.0
  %vm667 = vcmp.gt.f32.partialorder %v475, 0.0
  %vm668 = vcmp.gt.f32.partialorder %v480, 0.0
  %vm669 = vcmp.gt.f32.partialorder %v483, 0.0
  %vm670 = vcmp.gt.f32.partialorder %v488, 0.0
  %vm671 = vcmp.gt.f32.partialorder %v491, 0.0
  %vm672 = vcmp.gt.f32.partialorder %v496, 0.0
  %vm673 = vcmp.gt.f32.partialorder %v499, 0.0
  %vm674 = vcmp.gt.f32.partialorder %v504, 0.0
  %vm675 = vcmp.gt.f32.partialorder %v507, 0.0
  %vm676 = vcmp.gt.f32.partialorder %v512, 0.0
  %vm677 = vcmp.gt.f32.partialorder %v515, 0.0
  %vm678 = vcmp.gt.f32.partialorder %v520, 0.0
  %vm679 = vcmp.gt.f32.partialorder %v523, 0.0
  %vm680 = vcmp.gt.f32.partialorder %v528, 0.0
  %vm681 = vcmp.gt.f32.partialorder %v531, 0.0
  %vm682 = vcmp.gt.f32.partialorder %v536, 0.0
  %vm683 = vcmp.gt.f32.partialorder %v539, 0.0
  %vm684 = vcmp.gt.f32.partialorder %v544, 0.0
  %vm685 = vcmp.gt.f32.partialorder %v547, 0.0
  %vm686 = vcmp.gt.f32.partialorder %v552, 0.0
  %vm687 = vcmp.gt.f32.partialorder %v555, 0.0
  %vm688 = vcmp.gt.f32.partialorder %v560, 0.0
  %vm689 = vcmp.gt.f32.partialorder %v563, 0.0
  %vm690 = vcmp.gt.f32.partialorder %v568, 0.0
  %vm691 = vcmp.gt.f32.partialorder %v571, 0.0
  %vm692 = vcmp.gt.f32.partialorder %v576, 0.0
  %vm693 = vcmp.gt.f32.partialorder %v579, 0.0
  %vm694 = vcmp.gt.f32.partialorder %v584, 0.0
  %vm695 = vcmp.gt.f32.partialorder %v587, 0.0
  %vm696 = vcmp.gt.f32.partialorder %v592, 0.0
  %vm697 = vcmp.gt.f32.partialorder %v595, 0.0
  %vm698 = vcmp.gt.f32.partialorder %v600, 0.0
  %vm699 = vcmp.gt.f32.partialorder %v603, 0.0
  %vm700 = vcmp.gt.f32.partialorder %v608, 0.0
  %vm701 = vcmp.gt.f32.partialorder %v611, 0.0
  %vm702 = vcmp.gt.f32.partialorder %v616, 0.0
  %vm703 = vcmp.gt.f32.partialorder %v619, 0.0
  %vm704 = vcmp.gt.f32.partialorder %v624, 0.0
  %vm705 = vcmp.gt.f32.partialorder %v627, 0.0
  %vm706 = vcmp.gt.f32.partialorder %v632, 0.0
  %vm707 = vcmp.gt.f32.partialorder %v635, 0.0
  %vm708 = vcmp.gt.f32.partialorder %v640, 0.0
  %vm709 = vcmp.gt.f32.partialorder %v643, 0.0
  %v710 = vmul.f32 %v392, 0.2
  %v711 = vmul.f32 %v395, 0.2
  %v712 = vmul.f32 %v400, 0.2
  %v713 = vmul.f32 %v403, 0.2
  %v714 = vmul.f32 %v408, 0.2
  %v715 = vmul.f32 %v411, 0.2
  %v716 = vmul.f32 %v416, 0.2
  %v717 = vmul.f32 %v419, 0.2
  %v718 = vmul.f32 %v424, 0.2
  %v719 = vmul.f32 %v427, 0.2
  %v720 = vmul.f32 %v432, 0.2
  %v721 = vmul.f32 %v435, 0.2
  %v722 = vmul.f32 %v440, 0.2
  %v723 = vmul.f32 %v443, 0.2
  %v724 = vmul.f32 %v448, 0.2
  %v725 = vmul.f32 %v451, 0.2
  %v726 = vmul.f32 %v456, 0.2
  %v727 = vmul.f32 %v459, 0.2
  %v728 = vmul.f32 %v464, 0.2
  %v729 = vmul.f32 %v467, 0.2
  %v730 = vmul.f32 %v472, 0.2
  %v731 = vmul.f32 %v475, 0.2
  %v732 = vmul.f32 %v480, 0.2
  %v733 = vmul.f32 %v483, 0.2
  %v734 = vmul.f32 %v488, 0.2
  %v735 = vmul.f32 %v491, 0.2
  %v736 = vmul.f32 %v496, 0.2
  %v737 = vmul.f32 %v499, 0.2
  %v738 = vmul.f32 %v504, 0.2
  %v739 = vmul.f32 %v507, 0.2
  %v740 = vmul.f32 %v512, 0.2
  %v741 = vmul.f32 %v515, 0.2
  %v742 = vmul.f32 %v520, 0.2
  %v743 = vmul.f32 %v523, 0.2
  %v744 = vmul.f32 %v528, 0.2
  %v745 = vmul.f32 %v531, 0.2
  %v746 = vmul.f32 %v536, 0.2
  %v747 = vmul.f32 %v539, 0.2
  %v748 = vmul.f32 %v544, 0.2
  %v749 = vmul.f32 %v547, 0.2
  %v750 = vmul.f32 %v552, 0.2
  %v751 = vmul.f32 %v555, 0.2
  %v752 = vmul.f32 %v560, 0.2
  %v753 = vmul.f32 %v563, 0.2
  %v754 = vmul.f32 %v568, 0.2
  %v755 = vmul.f32 %v571, 0.2
  %v756 = vmul.f32 %v576, 0.2
  %v757 = vmul.f32 %v579, 0.2
  %v758 = vmul.f32 %v584, 0.2
  %v759 = vmul.f32 %v587, 0.2
  %v760 = vmul.f32 %v592, 0.2
  %v761 = vmul.f32 %v595, 0.2
  %v762 = vmul.f32 %v600, 0.2
  %v763 = vmul.f32 %v603, 0.2
  %v764 = vmul.f32 %v608, 0.2
  %v765 = vmul.f32 %v611, 0.2
  %v766 = vmul.f32 %v616, 0.2
  %v767 = vmul.f32 %v619, 0.2
  %v768 = vmul.f32 %v624, 0.2
  %v769 = vmul.f32 %v627, 0.2
  %v770 = vmul.f32 %v632, 0.2
  %v771 = vmul.f32 %v635, 0.2
  %v772 = vmul.f32 %v640, 0.2
  %v773 = vmul.f32 %v643, 0.2
  %v774 = vsel %vm646, %v392, %v710
  %v775 = vsel %vm647, %v395, %v711
  %v776 = vsel %vm648, %v400, %v712
  %v777 = vsel %vm649, %v403, %v713
  %v778 = vsel %vm650, %v408, %v714
  %v779 = vsel %vm651, %v411, %v715
  %v780 = vsel %vm652, %v416, %v716
  %v781 = vsel %vm653, %v419, %v717
  %v782 = vsel %vm654, %v424, %v718
  %v783 = vsel %vm655, %v427, %v719
  %v784 = vsel %vm656, %v432, %v720
  %v785 = vsel %vm657, %v435, %v721
  %v786 = vsel %vm658, %v440, %v722
  %v787 = vsel %vm659, %v443, %v723
  %v788 = vsel %vm660, %v448, %v724
  %v789 = vsel %vm661, %v451, %v725
  %v790 = vsel %vm662, %v456, %v726
  %v791 = vsel %vm663, %v459, %v727
  %v792 = vsel %vm664, %v464, %v728
  %v793 = vsel %vm665, %v467, %v729
  %v794 = vsel %vm666, %v472, %v730
  %v795 = vsel %vm667, %v475, %v731
  %v796 = vsel %vm668, %v480, %v732
  %v797 = vsel %vm669, %v483, %v733
  %v798 = vsel %vm670, %v488, %v734
  %v799 = vsel %vm671, %v491, %v735
  %v800 = vsel %vm672, %v496, %v736
  %v801 = vsel %vm673, %v499, %v737
  %v802 = vsel %vm674, %v504, %v738
  %v803 = vsel %vm675, %v507, %v739
  %v804 = vsel %vm676, %v512, %v740
  %v805 = vsel %vm677, %v515, %v741
  %v806 = vsel %vm678, %v520, %v742
  %v807 = vsel %vm679, %v523, %v743
  %v808 = vsel %vm680, %v528, %v744
  %v809 = vsel %vm681, %v531, %v745
  %v810 = vsel %vm682, %v536, %v746
  %v811 = vsel %vm683, %v539, %v747
  %v812 = vsel %vm684, %v544, %v748
  %v813 = vsel %vm685, %v547, %v749
  %v814 = vsel %vm686, %v552, %v750
  %v815 = vsel %vm687, %v555, %v751
  %v816 = vsel %vm688, %v560, %v752
  %v817 = vsel %vm689, %v563, %v753
  %v818 = vsel %vm690, %v568, %v754
  %v819 = vsel %vm691, %v571, %v755
  %v820 = vsel %vm692, %v576, %v756
  %v821 = vsel %vm693, %v579, %v757
  %v822 = vsel %vm694, %v584, %v758
  %v823 = vsel %vm695, %v587, %v759
  %v824 = vsel %vm696, %v592, %v760
  %v825 = vsel %vm697, %v595, %v761
  %v826 = vsel %vm698, %v600, %v762
  %v827 = vsel %vm699, %v603, %v763
  %v828 = vsel %vm700, %v608, %v764
  %v829 = vsel %vm701, %v611, %v765
  %v830 = vsel %vm702, %v616, %v766
  %v831 = vsel %vm703, %v619, %v767
  %v832 = vsel %vm704, %v624, %v768
  %v833 = vsel %vm705, %v627, %v769
  %v834 = vsel %vm706, %v632, %v770
  %v835 = vsel %vm707, %v635, %v771
  %v836 = vsel %vm708, %v640, %v772
  %v837 = vsel %vm709, %v643, %v773
  %v838 = vpack.c.bf16 %v775, %v774
  %v839 = vpack.c.bf16 %v777, %v776
  %v840 = vpack.c.bf16 %v779, %v778
  %v841 = vpack.c.bf16 %v781, %v780
  %v842 = vpack.c.bf16 %v783, %v782
  %v843 = vpack.c.bf16 %v785, %v784
  %v844 = vpack.c.bf16 %v787, %v786
  %v845 = vpack.c.bf16 %v789, %v788
  %v846 = vpack.c.bf16 %v791, %v790
  %v847 = vpack.c.bf16 %v793, %v792
  %v848 = vpack.c.bf16 %v795, %v794
  %v849 = vpack.c.bf16 %v797, %v796
  %v850 = vpack.c.bf16 %v799, %v798
  %v851 = vpack.c.bf16 %v801, %v800
  %v852 = vpack.c.bf16 %v803, %v802
  %v853 = vpack.c.bf16 %v805, %v804
  %v854 = vpack.c.bf16 %v807, %v806
  %v855 = vpack.c.bf16 %v809, %v808
  %v856 = vpack.c.bf16 %v811, %v810
  %v857 = vpack.c.bf16 %v813, %v812
  %v858 = vpack.c.bf16 %v815, %v814
  %v859 = vpack.c.bf16 %v817, %v816
  %v860 = vpack.c.bf16 %v819, %v818
  %v861 = vpack.c.bf16 %v821, %v820
  %v862 = vpack.c.bf16 %v823, %v822
  %v863 = vpack.c.bf16 %v825, %v824
  %v864 = vpack.c.bf16 %v827, %v826
  %v865 = vpack.c.bf16 %v829, %v828
  %v866 = vpack.c.bf16 %v831, %v830
  %v867 = vpack.c.bf16 %v833, %v832
  %v868 = vpack.c.bf16 %v835, %v834
  %v869 = vpack.c.bf16 %v837, %v836
  %v902 = vunpack.c.l.b16 %v838
  %v903 = vunpack.c.h.b16 %v838
  %v904 = vunpack.c.l.b16 %v839
  %v905 = vunpack.c.h.b16 %v839
  %v906 = vunpack.c.l.b16 %v840
  %v907 = vunpack.c.h.b16 %v840
  %v908 = vunpack.c.l.b16 %v841
  %v909 = vunpack.c.h.b16 %v841
  %v910 = vunpack.c.l.b16 %v842
  %v911 = vunpack.c.h.b16 %v842
  %v912 = vunpack.c.l.b16 %v843
  %v913 = vunpack.c.h.b16 %v843
  %v914 = vunpack.c.l.b16 %v844
  %v915 = vunpack.c.h.b16 %v844
  %v916 = vunpack.c.l.b16 %v845
  %v917 = vunpack.c.h.b16 %v845
  %v918 = vunpack.c.l.b16 %v846
  %v919 = vunpack.c.h.b16 %v846
  %v920 = vunpack.c.l.b16 %v847
  %v921 = vunpack.c.h.b16 %v847
  %v922 = vunpack.c.l.b16 %v848
  %v923 = vunpack.c.h.b16 %v848
  %v924 = vunpack.c.l.b16 %v849
  %v925 = vunpack.c.h.b16 %v849
  %v926 = vunpack.c.l.b16 %v850
  %v927 = vunpack.c.h.b16 %v850
  %v928 = vunpack.c.l.b16 %v851
  %v929 = vunpack.c.h.b16 %v851
  %v930 = vunpack.c.l.b16 %v852
  %v931 = vunpack.c.h.b16 %v852
  %v932 = vunpack.c.l.b16 %v853
  %v933 = vunpack.c.h.b16 %v853
  %v934 = vunpack.c.l.b16 %v854
  %v935 = vunpack.c.h.b16 %v854
  %v936 = vunpack.c.l.b16 %v855
  %v937 = vunpack.c.h.b16 %v855
  %v938 = vunpack.c.l.b16 %v856
  %v939 = vunpack.c.h.b16 %v856
  %v940 = vunpack.c.l.b16 %v857
  %v941 = vunpack.c.h.b16 %v857
  %v942 = vunpack.c.l.b16 %v858
  %v943 = vunpack.c.h.b16 %v858
  %v944 = vunpack.c.l.b16 %v859
  %v945 = vunpack.c.h.b16 %v859
  %v946 = vunpack.c.l.b16 %v860
  %v947 = vunpack.c.h.b16 %v860
  %v948 = vunpack.c.l.b16 %v861
  %v949 = vunpack.c.h.b16 %v861
  %v950 = vunpack.c.l.b16 %v862
  %v951 = vunpack.c.h.b16 %v862
  %v952 = vunpack.c.l.b16 %v863
  %v953 = vunpack.c.h.b16 %v863
  %v954 = vunpack.c.l.b16 %v864
  %v955 = vunpack.c.h.b16 %v864
  %v956 = vunpack.c.l.b16 %v865
  %v957 = vunpack.c.h.b16 %v865
  %v958 = vunpack.c.l.b16 %v866
  %v959 = vunpack.c.h.b16 %v866
  %v960 = vunpack.c.l.b16 %v867
  %v961 = vunpack.c.h.b16 %v867
  %v962 = vunpack.c.l.b16 %v868
  %v963 = vunpack.c.h.b16 %v868
  %v964 = vunpack.c.l.b16 %v869
  %v965 = vunpack.c.h.b16 %v869
  %v966 = vpack.c.b16 %v902, %v902
  %v967 = vpack.c.b16 %v903, %v903
  %v968 = vpack.c.b16 %v904, %v904
  %v969 = vpack.c.b16 %v905, %v905
  %v970 = vpack.c.b16 %v906, %v906
  %v971 = vpack.c.b16 %v907, %v907
  %v972 = vpack.c.b16 %v908, %v908
  %v973 = vpack.c.b16 %v909, %v909
  %v974 = vpack.c.b16 %v910, %v910
  %v975 = vpack.c.b16 %v911, %v911
  %v976 = vpack.c.b16 %v912, %v912
  %v977 = vpack.c.b16 %v913, %v913
  %v978 = vpack.c.b16 %v914, %v914
  %v979 = vpack.c.b16 %v915, %v915
  %v980 = vpack.c.b16 %v916, %v916
  %v981 = vpack.c.b16 %v917, %v917
  %v982 = vpack.c.b16 %v918, %v918
  %v983 = vpack.c.b16 %v919, %v919
  %v984 = vpack.c.b16 %v920, %v920
  %v985 = vpack.c.b16 %v921, %v921
  %v986 = vpack.c.b16 %v922, %v922
  %v987 = vpack.c.b16 %v923, %v923
  %v988 = vpack.c.b16 %v924, %v924
  %v989 = vpack.c.b16 %v925, %v925
  %v990 = vpack.c.b16 %v926, %v926
  %v991 = vpack.c.b16 %v927, %v927
  %v992 = vpack.c.b16 %v928, %v928
  %v993 = vpack.c.b16 %v929, %v929
  %v994 = vpack.c.b16 %v930, %v930
  %v995 = vpack.c.b16 %v931, %v931
  %v996 = vpack.c.b16 %v932, %v932
  %v997 = vpack.c.b16 %v933, %v933
  %v998 = vpack.c.b16 %v934, %v934
  %v999 = vpack.c.b16 %v935, %v935
  %v1000 = vpack.c.b16 %v936, %v936
  %v1001 = vpack.c.b16 %v937, %v937
  %v1002 = vpack.c.b16 %v938, %v938
  %v1003 = vpack.c.b16 %v939, %v939
  %v1004 = vpack.c.b16 %v940, %v940
  %v1005 = vpack.c.b16 %v941, %v941
  %v1006 = vpack.c.b16 %v942, %v942
  %v1007 = vpack.c.b16 %v943, %v943
  %v1008 = vpack.c.b16 %v944, %v944
  %v1009 = vpack.c.b16 %v945, %v945
  %v1010 = vpack.c.b16 %v946, %v946
  %v1011 = vpack.c.b16 %v947, %v947
  %v1012 = vpack.c.b16 %v948, %v948
  %v1013 = vpack.c.b16 %v949, %v949
  %v1014 = vpack.c.b16 %v950, %v950
  %v1015 = vpack.c.b16 %v951, %v951
  %v1016 = vpack.c.b16 %v952, %v952
  %v1017 = vpack.c.b16 %v953, %v953
  %v1018 = vpack.c.b16 %v954, %v954
  %v1019 = vpack.c.b16 %v955, %v955
  %v1020 = vpack.c.b16 %v956, %v956
  %v1021 = vpack.c.b16 %v957, %v957
  %v1022 = vpack.c.b16 %v958, %v958
  %v1023 = vpack.c.b16 %v959, %v959
  %v1024 = vpack.c.b16 %v960, %v960
  %v1025 = vpack.c.b16 %v961, %v961
  %v1026 = vpack.c.b16 %v962, %v962
  %v1027 = vpack.c.b16 %v963, %v963
  %v1028 = vpack.c.b16 %v964, %v964
  %v1029 = vpack.c.b16 %v965, %v965
  %1094 = vst [vmem:[%s2] sm:$0xf] %v966
  %1095 = vst [vmem:[%s2 + $0x4] sm:$0xf] %v967
  %1096 = vst [vmem:[%s2 + $0x8] sm:$0xf] %v968
  %1097 = vst [vmem:[%s2 + $0xc] sm:$0xf] %v969
  %1098 = vst [vmem:[%s2 + $0x10] sm:$0xf] %v970
  %1099 = vst [vmem:[%s2 + $0x14] sm:$0xf] %v971
  %1100 = vst [vmem:[%s2 + $0x18] sm:$0xf] %v972
  %1101 = vst [vmem:[%s2 + $0x1c] sm:$0xf] %v973
  %1102 = vst [vmem:[%s2 + $0x20] sm:$0xf] %v974
  %1103 = vst [vmem:[%s2 + $0x24] sm:$0xf] %v975
  %1104 = vst [vmem:[%s2 + $0x28] sm:$0xf] %v976
  %1105 = vst [vmem:[%s2 + $0x2c] sm:$0xf] %v977
  %1106 = vst [vmem:[%s2 + $0x30] sm:$0xf] %v978
  %1107 = vst [vmem:[%s2 + $0x34] sm:$0xf] %v979
  %1108 = vst [vmem:[%s2 + $0x38] sm:$0xf] %v980
  %1109 = vst [vmem:[%s2 + $0x3c] sm:$0xf] %v981
  %1110 = vst [vmem:[%s2 + $0x40] sm:$0xf] %v982
  %1111 = vst [vmem:[%s2 + $0x44] sm:$0xf] %v983
  %1112 = vst [vmem:[%s2 + $0x48] sm:$0xf] %v984
  %1113 = vst [vmem:[%s2 + $0x4c] sm:$0xf] %v985
  %1114 = vst [vmem:[%s2 + $0x50] sm:$0xf] %v986
  %1115 = vst [vmem:[%s2 + $0x54] sm:$0xf] %v987
  %1116 = vst [vmem:[%s2 + $0x58] sm:$0xf] %v988
  %1117 = vst [vmem:[%s2 + $0x5c] sm:$0xf] %v989
  %1118 = vst [vmem:[%s2 + $0x60] sm:$0xf] %v990
  %1119 = vst [vmem:[%s2 + $0x64] sm:$0xf] %v991
  %1120 = vst [vmem:[%s2 + $0x68] sm:$0xf] %v992
  %1121 = vst [vmem:[%s2 + $0x6c] sm:$0xf] %v993
  %1122 = vst [vmem:[%s2 + $0x70] sm:$0xf] %v994
  %1123 = vst [vmem:[%s2 + $0x74] sm:$0xf] %v995
  %1124 = vst [vmem:[%s2 + $0x78] sm:$0xf] %v996
  %1125 = vst [vmem:[%s2 + $0x7c] sm:$0xf] %v997
  %1126 = vst [vmem:[%s2 + $0x80] sm:$0xf] %v998
  %1127 = vst [vmem:[%s2 + $0x84] sm:$0xf] %v999
  %1128 = vst [vmem:[%s2 + $0x88] sm:$0xf] %v1000
  %1129 = vst [vmem:[%s2 + $0x8c] sm:$0xf] %v1001
  %1130 = vst [vmem:[%s2 + $0x90] sm:$0xf] %v1002
  %1131 = vst [vmem:[%s2 + $0x94] sm:$0xf] %v1003
  %1132 = vst [vmem:[%s2 + $0x98] sm:$0xf] %v1004
  %1133 = vst [vmem:[%s2 + $0x9c] sm:$0xf] %v1005
  %1134 = vst [vmem:[%s2 + $0xa0] sm:$0xf] %v1006
  %1135 = vst [vmem:[%s2 + $0xa4] sm:$0xf] %v1007
  %1136 = vst [vmem:[%s2 + $0xa8] sm:$0xf] %v1008
  %1137 = vst [vmem:[%s2 + $0xac] sm:$0xf] %v1009
  %1138 = vst [vmem:[%s2 + $0xb0] sm:$0xf] %v1010
  %1139 = vst [vmem:[%s2 + $0xb4] sm:$0xf] %v1011
  %1140 = vst [vmem:[%s2 + $0xb8] sm:$0xf] %v1012
  %1141 = vst [vmem:[%s2 + $0xbc] sm:$0xf] %v1013
  %1142 = vst [vmem:[%s2 + $0xc0] sm:$0xf] %v1014
  %1143 = vst [vmem:[%s2 + $0xc4] sm:$0xf] %v1015
  %1144 = vst [vmem:[%s2 + $0xc8] sm:$0xf] %v1016
  %1145 = vst [vmem:[%s2 + $0xcc] sm:$0xf] %v1017
  %1146 = vst [vmem:[%s2 + $0xd0] sm:$0xf] %v1018
  %1147 = vst [vmem:[%s2 + $0xd4] sm:$0xf] %v1019
  %1148 = vst [vmem:[%s2 + $0xd8] sm:$0xf] %v1020
  %1149 = vst [vmem:[%s2 + $0xdc] sm:$0xf] %v1021
  %1150 = vst [vmem:[%s2 + $0xe0] sm:$0xf] %v1022
  %1151 = vst [vmem:[%s2 + $0xe4] sm:$0xf] %v1023
  %1152 = vst [vmem:[%s2 + $0xe8] sm:$0xf] %v1024
  %1153 = vst [vmem:[%s2 + $0xec] sm:$0xf] %v1025
  %1154 = vst [vmem:[%s2 + $0xf0] sm:$0xf] %v1026
  %1155 = vst [vmem:[%s2 + $0xf4] sm:$0xf] %v1027
  %1156 = vst [vmem:[%s2 + $0xf8] sm:$0xf] %v1028
  %1157 = vst [vmem:[%s2 + $0xfc] sm:$0xf] %v1029
  // Predicated region
  $region10: #{discriminator_forward.5} parent=0 // pred_check
    _
  $region11: #{discriminator_forward.5} parent=0 // pred_check_branch
    %1159 = sbr.rel (0) target = $region13
  $region12: #{discriminator_forward.5} parent=0 // pred_region
    _
  $region13: #{discriminator_forward.5} parent=0 // pred_fallthru
    _
  // Predicated region
  $region14: #{discriminator_forward.5} parent=0 // pred_check
    _
  $region15: #{discriminator_forward.5} parent=0 // pred_check_branch
    %1161 = sbr.rel (0) target = $region17
  $region16: #{discriminator_forward.5} parent=0 // pred_region
    _
  $region17: #{discriminator_forward.5} parent=0 // pred_fallthru
    _

// kernel: discriminator_forward.6
$region0: #{discriminator_forward.6}
  #allocation0 [shape = 'u32[]', space=smem, size = 0x4, offset = 0x4, fixed_abs, tag = 'smem constant byte address 0x4 - core index']
  #allocation1 [shape = 'u32[144,128]{1,0:T(1,128)}', space=vmem, size = 0x12000, scoped, tag = 'internal scratch']
  %s0 = inlined_call_operand.vmem [shape: bf16[128,2048], index: 0, kind: input, shape index: {}]
  %s1 = inlined_call_operand.vmem [shape: bf16[2048,128], index: 1, kind: input, shape index: {}]
  %s2 = inlined_call_operand.vmem [shape: f32[1,128], index: 2, kind: input, shape index: {}]
  %s3 = inlined_call_operand.vmem [shape: f32[1,128], index: 3, kind: input, shape index: {}]
  %s4 = inlined_call_operand.vmem [shape: bf16[128,128], index: 4, kind: output, shape index: {}]
  %s5 = sld [smem:[#allocation0]]
  $region26: #{discriminator_forward.6} parent=0
    _
  %s7 = ssub.s32 1, %s5
  %s8 = scalar_select 0, %s7, %s5
  // Predicated region
  $region2: #{discriminator_forward.6} parent=0 // pred_check
    _
  $region3: #{discriminator_forward.6} parent=0 // pred_check_branch
    %10 = sbr.rel (0) target = $region5
  $region4: #{discriminator_forward.6} parent=0 // pred_region
    _
  $region5: #{discriminator_forward.6} parent=0 // pred_fallthru
    _
  // Predicated region
  $region6: #{discriminator_forward.6} parent=0 // pred_check
    _
  $region7: #{discriminator_forward.6} parent=0 // pred_check_branch
    %12 = sbr.rel (0) target = $region9
  $region8: #{discriminator_forward.6} parent=0 // pred_region
    _
  $region9: #{discriminator_forward.6} parent=0 // pred_fallthru
    _
  // Predicated region
  $region10: #{discriminator_forward.6} parent=0 // pred_check
    _
  $region11: #{discriminator_forward.6} parent=0 // pred_check_branch
    %14 = sbr.rel (0) target = $region13
  $region12: #{discriminator_forward.6} parent=0 // pred_region
    _
  $region13: #{discriminator_forward.6} parent=0 // pred_fallthru
    _
  // Predicated region
  $region14: #{discriminator_forward.6} parent=0 // pred_check
    _
  $region15: #{discriminator_forward.6} parent=0 // pred_check_branch
    %16 = sbr.rel (0) target = $region17
  $region16: #{discriminator_forward.6} parent=0 // pred_region
    _
  $region17: #{discriminator_forward.6} parent=0 // pred_fallthru
    _
  %v18 = vld [vmem:[%s0] sm:$0xff]
  %v19 = vld [vmem:[%s0 + $0x8] sm:$0xff]
  %v20 = vld [vmem:[%s0 + $0x10] sm:$0xff]
  %v21 = vld [vmem:[%s0 + $0x18] sm:$0xff]
  %v22 = vld [vmem:[%s0 + $0x20] sm:$0xff]
  %v23 = vld [vmem:[%s0 + $0x28] sm:$0xff]
  %v24 = vld [vmem:[%s0 + $0x30] sm:$0xff]
  %v25 = vld [vmem:[%s0 + $0x38] sm:$0xff]
  %v26 = vld [vmem:[%s0 + $0x40] sm:$0xff]
  %v27 = vld [vmem:[%s0 + $0x48] sm:$0xff]
  %v28 = vld [vmem:[%s0 + $0x50] sm:$0xff]
  %v29 = vld [vmem:[%s0 + $0x58] sm:$0xff]
  %v30 = vld [vmem:[%s0 + $0x60] sm:$0xff]
  %v31 = vld [vmem:[%s0 + $0x68] sm:$0xff]
  %v32 = vld [vmem:[%s0 + $0x70] sm:$0xff]
  %v33 = vld [vmem:[%s0 + $0x78] sm:$0xff]
  %v34 = vld [vmem:[%s0 + $0x80] sm:$0xff]
  %v35 = vld [vmem:[%s0 + $0x88] sm:$0xff]
  %v36 = vld [vmem:[%s0 + $0x90] sm:$0xff]
  %v37 = vld [vmem:[%s0 + $0x98] sm:$0xff]
  %v38 = vld [vmem:[%s0 + $0xa0] sm:$0xff]
  %v39 = vld [vmem:[%s0 + $0xa8] sm:$0xff]
  %v40 = vld [vmem:[%s0 + $0xb0] sm:$0xff]
  %v41 = vld [vmem:[%s0 + $0xb8] sm:$0xff]
  %v42 = vld [vmem:[%s0 + $0xc0] sm:$0xff]
  %v43 = vld [vmem:[%s0 + $0xc8] sm:$0xff]
  %v44 = vld [vmem:[%s0 + $0xd0] sm:$0xff]
  %v45 = vld [vmem:[%s0 + $0xd8] sm:$0xff]
  %v46 = vld [vmem:[%s0 + $0xe0] sm:$0xff]
  %v47 = vld [vmem:[%s0 + $0xe8] sm:$0xff]
  %v48 = vld [vmem:[%s0 + $0xf0] sm:$0xff]
  %v49 = vld [vmem:[%s0 + $0xf8] sm:$0xff]
  %v50 = vld [vmem:[%s0 + $0x100] sm:$0xff]
  %v51 = vld [vmem:[%s0 + $0x108] sm:$0xff]
  %v52 = vld [vmem:[%s0 + $0x110] sm:$0xff]
  %v53 = vld [vmem:[%s0 + $0x118] sm:$0xff]
  %v54 = vld [vmem:[%s0 + $0x120] sm:$0xff]
  %v55 = vld [vmem:[%s0 + $0x128] sm:$0xff]
  %v56 = vld [vmem:[%s0 + $0x130] sm:$0xff]
  %v57 = vld [vmem:[%s0 + $0x138] sm:$0xff]
  %v58 = vld [vmem:[%s0 + $0x140] sm:$0xff]
  %v59 = vld [vmem:[%s0 + $0x148] sm:$0xff]
  %v60 = vld [vmem:[%s0 + $0x150] sm:$0xff]
  %v61 = vld [vmem:[%s0 + $0x158] sm:$0xff]
  %v62 = vld [vmem:[%s0 + $0x160] sm:$0xff]
  %v63 = vld [vmem:[%s0 + $0x168] sm:$0xff]
  %v64 = vld [vmem:[%s0 + $0x170] sm:$0xff]
  %v65 = vld [vmem:[%s0 + $0x178] sm:$0xff]
  %v66 = vld [vmem:[%s0 + $0x180] sm:$0xff]
  %v67 = vld [vmem:[%s0 + $0x188] sm:$0xff]
  %v68 = vld [vmem:[%s0 + $0x190] sm:$0xff]
  %v69 = vld [vmem:[%s0 + $0x198] sm:$0xff]
  %v70 = vld [vmem:[%s0 + $0x1a0] sm:$0xff]
  %v71 = vld [vmem:[%s0 + $0x1a8] sm:$0xff]
  %v72 = vld [vmem:[%s0 + $0x1b0] sm:$0xff]
  %v73 = vld [vmem:[%s0 + $0x1b8] sm:$0xff]
  %v74 = vld [vmem:[%s0 + $0x1c0] sm:$0xff]
  %v75 = vld [vmem:[%s0 + $0x1c8] sm:$0xff]
  %v76 = vld [vmem:[%s0 + $0x1d0] sm:$0xff]
  %v77 = vld [vmem:[%s0 + $0x1d8] sm:$0xff]
  %v78 = vld [vmem:[%s0 + $0x1e0] sm:$0xff]
  %v79 = vld [vmem:[%s0 + $0x1e8] sm:$0xff]
  %v80 = vld [vmem:[%s0 + $0x1f0] sm:$0xff]
  %v81 = vld [vmem:[%s0 + $0x1f8] sm:$0xff]
  %v82 = vld [vmem:[%s0 + $0x200] sm:$0xff]
  %v83 = vld [vmem:[%s0 + $0x208] sm:$0xff]
  %v84 = vld [vmem:[%s0 + $0x210] sm:$0xff]
  %v85 = vld [vmem:[%s0 + $0x218] sm:$0xff]
  %v86 = vld [vmem:[%s0 + $0x220] sm:$0xff]
  %v87 = vld [vmem:[%s0 + $0x228] sm:$0xff]
  %v88 = vld [vmem:[%s0 + $0x230] sm:$0xff]
  %v89 = vld [vmem:[%s0 + $0x238] sm:$0xff]
  %v90 = vld [vmem:[%s0 + $0x240] sm:$0xff]
  %v91 = vld [vmem:[%s0 + $0x248] sm:$0xff]
  %v92 = vld [vmem:[%s0 + $0x250] sm:$0xff]
  %v93 = vld [vmem:[%s0 + $0x258] sm:$0xff]
  %v94 = vld [vmem:[%s0 + $0x260] sm:$0xff]
  %v95 = vld [vmem:[%s0 + $0x268] sm:$0xff]
  %v96 = vld [vmem:[%s0 + $0x270] sm:$0xff]
  %v97 = vld [vmem:[%s0 + $0x278] sm:$0xff]
  %v98 = vld [vmem:[%s0 + $0x280] sm:$0xff]
  %v99 = vld [vmem:[%s0 + $0x288] sm:$0xff]
  %v100 = vld [vmem:[%s0 + $0x290] sm:$0xff]
  %v101 = vld [vmem:[%s0 + $0x298] sm:$0xff]
  %v102 = vld [vmem:[%s0 + $0x2a0] sm:$0xff]
  %v103 = vld [vmem:[%s0 + $0x2a8] sm:$0xff]
  %v104 = vld [vmem:[%s0 + $0x2b0] sm:$0xff]
  %v105 = vld [vmem:[%s0 + $0x2b8] sm:$0xff]
  %v106 = vld [vmem:[%s0 + $0x2c0] sm:$0xff]
  %v107 = vld [vmem:[%s0 + $0x2c8] sm:$0xff]
  %v108 = vld [vmem:[%s0 + $0x2d0] sm:$0xff]
  %v109 = vld [vmem:[%s0 + $0x2d8] sm:$0xff]
  %v110 = vld [vmem:[%s0 + $0x2e0] sm:$0xff]
  %v111 = vld [vmem:[%s0 + $0x2e8] sm:$0xff]
  %v112 = vld [vmem:[%s0 + $0x2f0] sm:$0xff]
  %v113 = vld [vmem:[%s0 + $0x2f8] sm:$0xff]
  %v114 = vld [vmem:[%s0 + $0x300] sm:$0xff]
  %v115 = vld [vmem:[%s0 + $0x308] sm:$0xff]
  %v116 = vld [vmem:[%s0 + $0x310] sm:$0xff]
  %v117 = vld [vmem:[%s0 + $0x318] sm:$0xff]
  %v118 = vld [vmem:[%s0 + $0x320] sm:$0xff]
  %v119 = vld [vmem:[%s0 + $0x328] sm:$0xff]
  %v120 = vld [vmem:[%s0 + $0x330] sm:$0xff]
  %v121 = vld [vmem:[%s0 + $0x338] sm:$0xff]
  %v122 = vld [vmem:[%s0 + $0x340] sm:$0xff]
  %v123 = vld [vmem:[%s0 + $0x348] sm:$0xff]
  %v124 = vld [vmem:[%s0 + $0x350] sm:$0xff]
  %v125 = vld [vmem:[%s0 + $0x358] sm:$0xff]
  %v126 = vld [vmem:[%s0 + $0x360] sm:$0xff]
  %v127 = vld [vmem:[%s0 + $0x368] sm:$0xff]
  %v128 = vld [vmem:[%s0 + $0x370] sm:$0xff]
  %v129 = vld [vmem:[%s0 + $0x378] sm:$0xff]
  %v130 = vld [vmem:[%s0 + $0x380] sm:$0xff]
  %v131 = vld [vmem:[%s0 + $0x388] sm:$0xff]
  %v132 = vld [vmem:[%s0 + $0x390] sm:$0xff]
  %v133 = vld [vmem:[%s0 + $0x398] sm:$0xff]
  %v134 = vld [vmem:[%s0 + $0x3a0] sm:$0xff]
  %v135 = vld [vmem:[%s0 + $0x3a8] sm:$0xff]
  %v136 = vld [vmem:[%s0 + $0x3b0] sm:$0xff]
  %v137 = vld [vmem:[%s0 + $0x3b8] sm:$0xff]
  %v138 = vld [vmem:[%s0 + $0x3c0] sm:$0xff]
  %v139 = vld [vmem:[%s0 + $0x3c8] sm:$0xff]
  %v140 = vld [vmem:[%s0 + $0x3d0] sm:$0xff]
  %v141 = vld [vmem:[%s0 + $0x3d8] sm:$0xff]
  %v142 = vld [vmem:[%s0 + $0x3e0] sm:$0xff]
  %v143 = vld [vmem:[%s0 + $0x3e8] sm:$0xff]
  %v144 = vld [vmem:[%s0 + $0x3f0] sm:$0xff]
  %v145 = vld [vmem:[%s0 + $0x3f8] sm:$0xff]
  %v146 = vld [vmem:[%s1] sm:$0xf]
  %v147 = vld [vmem:[%s1 + $0x4] sm:$0xf]
  %v148 = vld [vmem:[%s1 + $0x8] sm:$0xf]
  %v149 = vld [vmem:[%s1 + $0xc] sm:$0xf]
  %v150 = vld [vmem:[%s1 + $0x10] sm:$0xf]
  %v151 = vld [vmem:[%s1 + $0x14] sm:$0xf]
  %v152 = vld [vmem:[%s1 + $0x18] sm:$0xf]
  %v153 = vld [vmem:[%s1 + $0x1c] sm:$0xf]
  %v154 = vld [vmem:[%s1 + $0x20] sm:$0xf]
  %v155 = vld [vmem:[%s1 + $0x24] sm:$0xf]
  %v156 = vld [vmem:[%s1 + $0x28] sm:$0xf]
  %v157 = vld [vmem:[%s1 + $0x2c] sm:$0xf]
  %v158 = vld [vmem:[%s1 + $0x30] sm:$0xf]
  %v159 = vld [vmem:[%s1 + $0x34] sm:$0xf]
  %v160 = vld [vmem:[%s1 + $0x38] sm:$0xf]
  %v161 = vld [vmem:[%s1 + $0x3c] sm:$0xf]
  %v162 = vld [vmem:[%s1 + $0x40] sm:$0xf]
  %v163 = vld [vmem:[%s1 + $0x44] sm:$0xf]
  %v164 = vld [vmem:[%s1 + $0x48] sm:$0xf]
  %v165 = vld [vmem:[%s1 + $0x4c] sm:$0xf]
  %v166 = vld [vmem:[%s1 + $0x50] sm:$0xf]
  %v167 = vld [vmem:[%s1 + $0x54] sm:$0xf]
  %v168 = vld [vmem:[%s1 + $0x58] sm:$0xf]
  %v169 = vld [vmem:[%s1 + $0x5c] sm:$0xf]
  %v170 = vld [vmem:[%s1 + $0x60] sm:$0xf]
  %v171 = vld [vmem:[%s1 + $0x64] sm:$0xf]
  %v172 = vld [vmem:[%s1 + $0x68] sm:$0xf]
  %v173 = vld [vmem:[%s1 + $0x6c] sm:$0xf]
  %v174 = vld [vmem:[%s1 + $0x70] sm:$0xf]
  %v175 = vld [vmem:[%s1 + $0x74] sm:$0xf]
  %v176 = vld [vmem:[%s1 + $0x78] sm:$0xf]
  %v177 = vld [vmem:[%s1 + $0x7c] sm:$0xf]
  %v178 = vld [vmem:[%s1 + $0x80] sm:$0xf]
  %v179 = vld [vmem:[%s1 + $0x84] sm:$0xf]
  %v180 = vld [vmem:[%s1 + $0x88] sm:$0xf]
  %v181 = vld [vmem:[%s1 + $0x8c] sm:$0xf]
  %v182 = vld [vmem:[%s1 + $0x90] sm:$0xf]
  %v183 = vld [vmem:[%s1 + $0x94] sm:$0xf]
  %v184 = vld [vmem:[%s1 + $0x98] sm:$0xf]
  %v185 = vld [vmem:[%s1 + $0x9c] sm:$0xf]
  %v186 = vld [vmem:[%s1 + $0xa0] sm:$0xf]
  %v187 = vld [vmem:[%s1 + $0xa4] sm:$0xf]
  %v188 = vld [vmem:[%s1 + $0xa8] sm:$0xf]
  %v189 = vld [vmem:[%s1 + $0xac] sm:$0xf]
  %v190 = vld [vmem:[%s1 + $0xb0] sm:$0xf]
  %v191 = vld [vmem:[%s1 + $0xb4] sm:$0xf]
  %v192 = vld [vmem:[%s1 + $0xb8] sm:$0xf]
  %v193 = vld [vmem:[%s1 + $0xbc] sm:$0xf]
  %v194 = vld [vmem:[%s1 + $0xc0] sm:$0xf]
  %v195 = vld [vmem:[%s1 + $0xc4] sm:$0xf]
  %v196 = vld [vmem:[%s1 + $0xc8] sm:$0xf]
  %v197 = vld [vmem:[%s1 + $0xcc] sm:$0xf]
  %v198 = vld [vmem:[%s1 + $0xd0] sm:$0xf]
  %v199 = vld [vmem:[%s1 + $0xd4] sm:$0xf]
  %v200 = vld [vmem:[%s1 + $0xd8] sm:$0xf]
  %v201 = vld [vmem:[%s1 + $0xdc] sm:$0xf]
  %v202 = vld [vmem:[%s1 + $0xe0] sm:$0xf]
  %v203 = vld [vmem:[%s1 + $0xe4] sm:$0xf]
  %v204 = vld [vmem:[%s1 + $0xe8] sm:$0xf]
  %v205 = vld [vmem:[%s1 + $0xec] sm:$0xf]
  %v206 = vld [vmem:[%s1 + $0xf0] sm:$0xf]
  %v207 = vld [vmem:[%s1 + $0xf4] sm:$0xf]
  %v208 = vld [vmem:[%s1 + $0xf8] sm:$0xf]
  %v209 = vld [vmem:[%s1 + $0xfc] sm:$0xf]
  %v210 = vld [vmem:[%s1 + $0x100] sm:$0xf]
  %v211 = vld [vmem:[%s1 + $0x104] sm:$0xf]
  %v212 = vld [vmem:[%s1 + $0x108] sm:$0xf]
  %v213 = vld [vmem:[%s1 + $0x10c] sm:$0xf]
  %v214 = vld [vmem:[%s1 + $0x110] sm:$0xf]
  %v215 = vld [vmem:[%s1 + $0x114] sm:$0xf]
  %v216 = vld [vmem:[%s1 + $0x118] sm:$0xf]
  %v217 = vld [vmem:[%s1 + $0x11c] sm:$0xf]
  %v218 = vld [vmem:[%s1 + $0x120] sm:$0xf]
  %v219 = vld [vmem:[%s1 + $0x124] sm:$0xf]
  %v220 = vld [vmem:[%s1 + $0x128] sm:$0xf]
  %v221 = vld [vmem:[%s1 + $0x12c] sm:$0xf]
  %v222 = vld [vmem:[%s1 + $0x130] sm:$0xf]
  %v223 = vld [vmem:[%s1 + $0x134] sm:$0xf]
  %v224 = vld [vmem:[%s1 + $0x138] sm:$0xf]
  %v225 = vld [vmem:[%s1 + $0x13c] sm:$0xf]
  %v226 = vld [vmem:[%s1 + $0x140] sm:$0xf]
  %v227 = vld [vmem:[%s1 + $0x144] sm:$0xf]
  %v228 = vld [vmem:[%s1 + $0x148] sm:$0xf]
  %v229 = vld [vmem:[%s1 + $0x14c] sm:$0xf]
  %v230 = vld [vmem:[%s1 + $0x150] sm:$0xf]
  %v231 = vld [vmem:[%s1 + $0x154] sm:$0xf]
  %v232 = vld [vmem:[%s1 + $0x158] sm:$0xf]
  %v233 = vld [vmem:[%s1 + $0x15c] sm:$0xf]
  %v234 = vld [vmem:[%s1 + $0x160] sm:$0xf]
  %v235 = vld [vmem:[%s1 + $0x164] sm:$0xf]
  %v236 = vld [vmem:[%s1 + $0x168] sm:$0xf]
  %v237 = vld [vmem:[%s1 + $0x16c] sm:$0xf]
  %v238 = vld [vmem:[%s1 + $0x170] sm:$0xf]
  %v239 = vld [vmem:[%s1 + $0x174] sm:$0xf]
  %v240 = vld [vmem:[%s1 + $0x178] sm:$0xf]
  %v241 = vld [vmem:[%s1 + $0x17c] sm:$0xf]
  %v242 = vld [vmem:[%s1 + $0x180] sm:$0xf]
  %v243 = vld [vmem:[%s1 + $0x184] sm:$0xf]
  %v244 = vld [vmem:[%s1 + $0x188] sm:$0xf]
  %v245 = vld [vmem:[%s1 + $0x18c] sm:$0xf]
  %v246 = vld [vmem:[%s1 + $0x190] sm:$0xf]
  %v247 = vld [vmem:[%s1 + $0x194] sm:$0xf]
  %v248 = vld [vmem:[%s1 + $0x198] sm:$0xf]
  %v249 = vld [vmem:[%s1 + $0x19c] sm:$0xf]
  %v250 = vld [vmem:[%s1 + $0x1a0] sm:$0xf]
  %v251 = vld [vmem:[%s1 + $0x1a4] sm:$0xf]
  %v252 = vld [vmem:[%s1 + $0x1a8] sm:$0xf]
  %v253 = vld [vmem:[%s1 + $0x1ac] sm:$0xf]
  %v254 = vld [vmem:[%s1 + $0x1b0] sm:$0xf]
  %v255 = vld [vmem:[%s1 + $0x1b4] sm:$0xf]
  %v256 = vld [vmem:[%s1 + $0x1b8] sm:$0xf]
  %v257 = vld [vmem:[%s1 + $0x1bc] sm:$0xf]
  %v258 = vld [vmem:[%s1 + $0x1c0] sm:$0xf]
  %v259 = vld [vmem:[%s1 + $0x1c4] sm:$0xf]
  %v260 = vld [vmem:[%s1 + $0x1c8] sm:$0xf]
  %v261 = vld [vmem:[%s1 + $0x1cc] sm:$0xf]
  %v262 = vld [vmem:[%s1 + $0x1d0] sm:$0xf]
  %v263 = vld [vmem:[%s1 + $0x1d4] sm:$0xf]
  %v264 = vld [vmem:[%s1 + $0x1d8] sm:$0xf]
  %v265 = vld [vmem:[%s1 + $0x1dc] sm:$0xf]
  %v266 = vld [vmem:[%s1 + $0x1e0] sm:$0xf]
  %v267 = vld [vmem:[%s1 + $0x1e4] sm:$0xf]
  %v268 = vld [vmem:[%s1 + $0x1e8] sm:$0xf]
  %v269 = vld [vmem:[%s1 + $0x1ec] sm:$0xf]
  %v270 = vld [vmem:[%s1 + $0x1f0] sm:$0xf]
  %v271 = vld [vmem:[%s1 + $0x1f4] sm:$0xf]
  %v272 = vld [vmem:[%s1 + $0x1f8] sm:$0xf]
  %v273 = vld [vmem:[%s1 + $0x1fc] sm:$0xf]
  %v274 = vld [vmem:[%s1 + $0x200] sm:$0xf]
  %v275 = vld [vmem:[%s1 + $0x204] sm:$0xf]
  %v276 = vld [vmem:[%s1 + $0x208] sm:$0xf]
  %v277 = vld [vmem:[%s1 + $0x20c] sm:$0xf]
  %v278 = vld [vmem:[%s1 + $0x210] sm:$0xf]
  %v279 = vld [vmem:[%s1 + $0x214] sm:$0xf]
  %v280 = vld [vmem:[%s1 + $0x218] sm:$0xf]
  %v281 = vld [vmem:[%s1 + $0x21c] sm:$0xf]
  %v282 = vld [vmem:[%s1 + $0x220] sm:$0xf]
  %v283 = vld [vmem:[%s1 + $0x224] sm:$0xf]
  %v284 = vld [vmem:[%s1 + $0x228] sm:$0xf]
  %v285 = vld [vmem:[%s1 + $0x22c] sm:$0xf]
  %v286 = vld [vmem:[%s1 + $0x230] sm:$0xf]
  %v287 = vld [vmem:[%s1 + $0x234] sm:$0xf]
  %v288 = vld [vmem:[%s1 + $0x238] sm:$0xf]
  %v289 = vld [vmem:[%s1 + $0x23c] sm:$0xf]
  %v290 = vld [vmem:[%s1 + $0x240] sm:$0xf]
  %v291 = vld [vmem:[%s1 + $0x244] sm:$0xf]
  %v292 = vld [vmem:[%s1 + $0x248] sm:$0xf]
  %v293 = vld [vmem:[%s1 + $0x24c] sm:$0xf]
  %v294 = vld [vmem:[%s1 + $0x250] sm:$0xf]
  %v295 = vld [vmem:[%s1 + $0x254] sm:$0xf]
  %v296 = vld [vmem:[%s1 + $0x258] sm:$0xf]
  %v297 = vld [vmem:[%s1 + $0x25c] sm:$0xf]
  %v298 = vld [vmem:[%s1 + $0x260] sm:$0xf]
  %v299 = vld [vmem:[%s1 + $0x264] sm:$0xf]
  %v300 = vld [vmem:[%s1 + $0x268] sm:$0xf]
  %v301 = vld [vmem:[%s1 + $0x26c] sm:$0xf]
  %v302 = vld [vmem:[%s1 + $0x270] sm:$0xf]
  %v303 = vld [vmem:[%s1 + $0x274] sm:$0xf]
  %v304 = vld [vmem:[%s1 + $0x278] sm:$0xf]
  %v305 = vld [vmem:[%s1 + $0x27c] sm:$0xf]
  %v306 = vld [vmem:[%s1 + $0x280] sm:$0xf]
  %v307 = vld [vmem:[%s1 + $0x284] sm:$0xf]
  %v308 = vld [vmem:[%s1 + $0x288] sm:$0xf]
  %v309 = vld [vmem:[%s1 + $0x28c] sm:$0xf]
  %v310 = vld [vmem:[%s1 + $0x290] sm:$0xf]
  %v311 = vld [vmem:[%s1 + $0x294] sm:$0xf]
  %v312 = vld [vmem:[%s1 + $0x298] sm:$0xf]
  %v313 = vld [vmem:[%s1 + $0x29c] sm:$0xf]
  %v314 = vld [vmem:[%s1 + $0x2a0] sm:$0xf]
  %v315 = vld [vmem:[%s1 + $0x2a4] sm:$0xf]
  %v316 = vld [vmem:[%s1 + $0x2a8] sm:$0xf]
  %v317 = vld [vmem:[%s1 + $0x2ac] sm:$0xf]
  %v318 = vld [vmem:[%s1 + $0x2b0] sm:$0xf]
  %v319 = vld [vmem:[%s1 + $0x2b4] sm:$0xf]
  %v320 = vld [vmem:[%s1 + $0x2b8] sm:$0xf]
  %v321 = vld [vmem:[%s1 + $0x2bc] sm:$0xf]
  %v322 = vld [vmem:[%s1 + $0x2c0] sm:$0xf]
  %v323 = vld [vmem:[%s1 + $0x2c4] sm:$0xf]
  %v324 = vld [vmem:[%s1 + $0x2c8] sm:$0xf]
  %v325 = vld [vmem:[%s1 + $0x2cc] sm:$0xf]
  %v326 = vld [vmem:[%s1 + $0x2d0] sm:$0xf]
  %v327 = vld [vmem:[%s1 + $0x2d4] sm:$0xf]
  %v328 = vld [vmem:[%s1 + $0x2d8] sm:$0xf]
  %v329 = vld [vmem:[%s1 + $0x2dc] sm:$0xf]
  %v330 = vld [vmem:[%s1 + $0x2e0] sm:$0xf]
  %v331 = vld [vmem:[%s1 + $0x2e4] sm:$0xf]
  %v332 = vld [vmem:[%s1 + $0x2e8] sm:$0xf]
  %v333 = vld [vmem:[%s1 + $0x2ec] sm:$0xf]
  %v334 = vld [vmem:[%s1 + $0x2f0] sm:$0xf]
  %v335 = vld [vmem:[%s1 + $0x2f4] sm:$0xf]
  %v336 = vld [vmem:[%s1 + $0x2f8] sm:$0xf]
  %v337 = vld [vmem:[%s1 + $0x2fc] sm:$0xf]
  %v338 = vld [vmem:[%s1 + $0x300] sm:$0xf]
  %v339 = vld [vmem:[%s1 + $0x304] sm:$0xf]
  %v340 = vld [vmem:[%s1 + $0x308] sm:$0xf]
  %v341 = vld [vmem:[%s1 + $0x30c] sm:$0xf]
  %v342 = vld [vmem:[%s1 + $0x310] sm:$0xf]
  %v343 = vld [vmem:[%s1 + $0x314] sm:$0xf]
  %v344 = vld [vmem:[%s1 + $0x318] sm:$0xf]
  %v345 = vld [vmem:[%s1 + $0x31c] sm:$0xf]
  %v346 = vld [vmem:[%s1 + $0x320] sm:$0xf]
  %v347 = vld [vmem:[%s1 + $0x324] sm:$0xf]
  %v348 = vld [vmem:[%s1 + $0x328] sm:$0xf]
  %v349 = vld [vmem:[%s1 + $0x32c] sm:$0xf]
  %v350 = vld [vmem:[%s1 + $0x330] sm:$0xf]
  %v351 = vld [vmem:[%s1 + $0x334] sm:$0xf]
  %v352 = vld [vmem:[%s1 + $0x338] sm:$0xf]
  %v353 = vld [vmem:[%s1 + $0x33c] sm:$0xf]
  %v354 = vld [vmem:[%s1 + $0x340] sm:$0xf]
  %v355 = vld [vmem:[%s1 + $0x344] sm:$0xf]
  %v356 = vld [vmem:[%s1 + $0x348] sm:$0xf]
  %v357 = vld [vmem:[%s1 + $0x34c] sm:$0xf]
  %v358 = vld [vmem:[%s1 + $0x350] sm:$0xf]
  %v359 = vld [vmem:[%s1 + $0x354] sm:$0xf]
  %v360 = vld [vmem:[%s1 + $0x358] sm:$0xf]
  %v361 = vld [vmem:[%s1 + $0x35c] sm:$0xf]
  %v362 = vld [vmem:[%s1 + $0x360] sm:$0xf]
  %v363 = vld [vmem:[%s1 + $0x364] sm:$0xf]
  %v364 = vld [vmem:[%s1 + $0x368] sm:$0xf]
  %v365 = vld [vmem:[%s1 + $0x36c] sm:$0xf]
  %v366 = vld [vmem:[%s1 + $0x370] sm:$0xf]
  %v367 = vld [vmem:[%s1 + $0x374] sm:$0xf]
  %v368 = vld [vmem:[%s1 + $0x378] sm:$0xf]
  %v369 = vld [vmem:[%s1 + $0x37c] sm:$0xf]
  %v370 = vld [vmem:[%s1 + $0x380] sm:$0xf]
  %v371 = vld [vmem:[%s1 + $0x384] sm:$0xf]
  %v372 = vld [vmem:[%s1 + $0x388] sm:$0xf]
  %v373 = vld [vmem:[%s1 + $0x38c] sm:$0xf]
  %v374 = vld [vmem:[%s1 + $0x390] sm:$0xf]
  %v375 = vld [vmem:[%s1 + $0x394] sm:$0xf]
  %v376 = vld [vmem:[%s1 + $0x398] sm:$0xf]
  %v377 = vld [vmem:[%s1 + $0x39c] sm:$0xf]
  %v378 = vld [vmem:[%s1 + $0x3a0] sm:$0xf]
  %v379 = vld [vmem:[%s1 + $0x3a4] sm:$0xf]
  %v380 = vld [vmem:[%s1 + $0x3a8] sm:$0xf]
  %v381 = vld [vmem:[%s1 + $0x3ac] sm:$0xf]
  %v382 = vld [vmem:[%s1 + $0x3b0] sm:$0xf]
  %v383 = vld [vmem:[%s1 + $0x3b4] sm:$0xf]
  %v384 = vld [vmem:[%s1 + $0x3b8] sm:$0xf]
  %v385 = vld [vmem:[%s1 + $0x3bc] sm:$0xf]
  %v386 = vld [vmem:[%s1 + $0x3c0] sm:$0xf]
  %v387 = vld [vmem:[%s1 + $0x3c4] sm:$0xf]
  %v388 = vld [vmem:[%s1 + $0x3c8] sm:$0xf]
  %v389 = vld [vmem:[%s1 + $0x3cc] sm:$0xf]
  %v390 = vld [vmem:[%s1 + $0x3d0] sm:$0xf]
  %v391 = vld [vmem:[%s1 + $0x3d4] sm:$0xf]
  %v392 = vld [vmem:[%s1 + $0x3d8] sm:$0xf]
  %v393 = vld [vmem:[%s1 + $0x3dc] sm:$0xf]
  %v394 = vld [vmem:[%s1 + $0x3e0] sm:$0xf]
  %v395 = vld [vmem:[%s1 + $0x3e4] sm:$0xf]
  %v396 = vld [vmem:[%s1 + $0x3e8] sm:$0xf]
  %v397 = vld [vmem:[%s1 + $0x3ec] sm:$0xf]
  %v398 = vld [vmem:[%s1 + $0x3f0] sm:$0xf]
  %v399 = vld [vmem:[%s1 + $0x3f4] sm:$0xf]
  %v400 = vld [vmem:[%s1 + $0x3f8] sm:$0xf]
  %v401 = vld [vmem:[%s1 + $0x3fc] sm:$0xf]
  %v530 = vunpack.c.l.b16 %v18
  %v531 = vunpack.c.h.b16 %v18
  %v532 = vunpack.c.l.b16 %v19
  %v533 = vunpack.c.h.b16 %v19
  %v534 = vunpack.c.l.b16 %v20
  %v535 = vunpack.c.h.b16 %v20
  %v536 = vunpack.c.l.b16 %v21
  %v537 = vunpack.c.h.b16 %v21
  %v538 = vunpack.c.l.b16 %v22
  %v539 = vunpack.c.h.b16 %v22
  %v540 = vunpack.c.l.b16 %v23
  %v541 = vunpack.c.h.b16 %v23
  %v542 = vunpack.c.l.b16 %v24
  %v543 = vunpack.c.h.b16 %v24
  %v544 = vunpack.c.l.b16 %v25
  %v545 = vunpack.c.h.b16 %v25
  %v546 = vunpack.c.l.b16 %v26
  %v547 = vunpack.c.h.b16 %v26
  %v548 = vunpack.c.l.b16 %v27
  %v549 = vunpack.c.h.b16 %v27
  %v550 = vunpack.c.l.b16 %v28
  %v551 = vunpack.c.h.b16 %v28
  %v552 = vunpack.c.l.b16 %v29
  %v553 = vunpack.c.h.b16 %v29
  %v554 = vunpack.c.l.b16 %v30
  %v555 = vunpack.c.h.b16 %v30
  %v556 = vunpack.c.l.b16 %v31
  %v557 = vunpack.c.h.b16 %v31
  %v558 = vunpack.c.l.b16 %v32
  %v559 = vunpack.c.h.b16 %v32
  %v560 = vunpack.c.l.b16 %v33
  %v561 = vunpack.c.h.b16 %v33
  %v562 = vunpack.c.l.b16 %v34
  %v563 = vunpack.c.h.b16 %v34
  %v564 = vunpack.c.l.b16 %v35
  %v565 = vunpack.c.h.b16 %v35
  %v566 = vunpack.c.l.b16 %v36
  %v567 = vunpack.c.h.b16 %v36
  %v568 = vunpack.c.l.b16 %v37
  %v569 = vunpack.c.h.b16 %v37
  %v570 = vunpack.c.l.b16 %v38
  %v571 = vunpack.c.h.b16 %v38
  %v572 = vunpack.c.l.b16 %v39
  %v573 = vunpack.c.h.b16 %v39
  %v574 = vunpack.c.l.b16 %v40
  %v575 = vunpack.c.h.b16 %v40
  %v576 = vunpack.c.l.b16 %v41
  %v577 = vunpack.c.h.b16 %v41
  %v578 = vunpack.c.l.b16 %v42
  %v579 = vunpack.c.h.b16 %v42
  %v580 = vunpack.c.l.b16 %v43
  %v581 = vunpack.c.h.b16 %v43
  %v582 = vunpack.c.l.b16 %v44
  %v583 = vunpack.c.h.b16 %v44
  %v584 = vunpack.c.l.b16 %v45
  %v585 = vunpack.c.h.b16 %v45
  %v586 = vunpack.c.l.b16 %v46
  %v587 = vunpack.c.h.b16 %v46
  %v588 = vunpack.c.l.b16 %v47
  %v589 = vunpack.c.h.b16 %v47
  %v590 = vunpack.c.l.b16 %v48
  %v591 = vunpack.c.h.b16 %v48
  %v592 = vunpack.c.l.b16 %v49
  %v593 = vunpack.c.h.b16 %v49
  %v594 = vunpack.c.l.b16 %v50
  %v595 = vunpack.c.h.b16 %v50
  %v596 = vunpack.c.l.b16 %v51
  %v597 = vunpack.c.h.b16 %v51
  %v598 = vunpack.c.l.b16 %v52
  %v599 = vunpack.c.h.b16 %v52
  %v600 = vunpack.c.l.b16 %v53
  %v601 = vunpack.c.h.b16 %v53
  %v602 = vunpack.c.l.b16 %v54
  %v603 = vunpack.c.h.b16 %v54
  %v604 = vunpack.c.l.b16 %v55
  %v605 = vunpack.c.h.b16 %v55
  %v606 = vunpack.c.l.b16 %v56
  %v607 = vunpack.c.h.b16 %v56
  %v608 = vunpack.c.l.b16 %v57
  %v609 = vunpack.c.h.b16 %v57
  %v610 = vunpack.c.l.b16 %v58
  %v611 = vunpack.c.h.b16 %v58
  %v612 = vunpack.c.l.b16 %v59
  %v613 = vunpack.c.h.b16 %v59
  %v614 = vunpack.c.l.b16 %v60
  %v615 = vunpack.c.h.b16 %v60
  %v616 = vunpack.c.l.b16 %v61
  %v617 = vunpack.c.h.b16 %v61
  %v618 = vunpack.c.l.b16 %v62
  %v619 = vunpack.c.h.b16 %v62
  %v620 = vunpack.c.l.b16 %v63
  %v621 = vunpack.c.h.b16 %v63
  %v622 = vunpack.c.l.b16 %v64
  %v623 = vunpack.c.h.b16 %v64
  %v624 = vunpack.c.l.b16 %v65
  %v625 = vunpack.c.h.b16 %v65
  %v626 = vunpack.c.l.b16 %v66
  %v627 = vunpack.c.h.b16 %v66
  %v628 = vunpack.c.l.b16 %v67
  %v629 = vunpack.c.h.b16 %v67
  %v630 = vunpack.c.l.b16 %v68
  %v631 = vunpack.c.h.b16 %v68
  %v632 = vunpack.c.l.b16 %v69
  %v633 = vunpack.c.h.b16 %v69
  %v634 = vunpack.c.l.b16 %v70
  %v635 = vunpack.c.h.b16 %v70
  %v636 = vunpack.c.l.b16 %v71
  %v637 = vunpack.c.h.b16 %v71
  %v638 = vunpack.c.l.b16 %v72
  %v639 = vunpack.c.h.b16 %v72
  %v640 = vunpack.c.l.b16 %v73
  %v641 = vunpack.c.h.b16 %v73
  %v642 = vunpack.c.l.b16 %v74
  %v643 = vunpack.c.h.b16 %v74
  %v644 = vunpack.c.l.b16 %v75
  %v645 = vunpack.c.h.b16 %v75
  %v646 = vunpack.c.l.b16 %v76
  %v647 = vunpack.c.h.b16 %v76
  %v648 = vunpack.c.l.b16 %v77
  %v649 = vunpack.c.h.b16 %v77
  %v650 = vunpack.c.l.b16 %v78
  %v651 = vunpack.c.h.b16 %v78
  %v652 = vunpack.c.l.b16 %v79
  %v653 = vunpack.c.h.b16 %v79
  %v654 = vunpack.c.l.b16 %v80
  %v655 = vunpack.c.h.b16 %v80
  %v656 = vunpack.c.l.b16 %v81
  %v657 = vunpack.c.h.b16 %v81
  %v658 = vunpack.c.l.b16 %v82
  %v659 = vunpack.c.h.b16 %v82
  %v660 = vunpack.c.l.b16 %v83
  %v661 = vunpack.c.h.b16 %v83
  %v662 = vunpack.c.l.b16 %v84
  %v663 = vunpack.c.h.b16 %v84
  %v664 = vunpack.c.l.b16 %v85
  %v665 = vunpack.c.h.b16 %v85
  %v666 = vunpack.c.l.b16 %v86
  %v667 = vunpack.c.h.b16 %v86
  %v668 = vunpack.c.l.b16 %v87
  %v669 = vunpack.c.h.b16 %v87
  %v670 = vunpack.c.l.b16 %v88
  %v671 = vunpack.c.h.b16 %v88
  %v672 = vunpack.c.l.b16 %v89
  %v673 = vunpack.c.h.b16 %v89
  %v674 = vunpack.c.l.b16 %v90
  %v675 = vunpack.c.h.b16 %v90
  %v676 = vunpack.c.l.b16 %v91
  %v677 = vunpack.c.h.b16 %v91
  %v678 = vunpack.c.l.b16 %v92
  %v679 = vunpack.c.h.b16 %v92
  %v680 = vunpack.c.l.b16 %v93
  %v681 = vunpack.c.h.b16 %v93
  %v682 = vunpack.c.l.b16 %v94
  %v683 = vunpack.c.h.b16 %v94
  %v684 = vunpack.c.l.b16 %v95
  %v685 = vunpack.c.h.b16 %v95
  %v686 = vunpack.c.l.b16 %v96
  %v687 = vunpack.c.h.b16 %v96
  %v688 = vunpack.c.l.b16 %v97
  %v689 = vunpack.c.h.b16 %v97
  %v690 = vunpack.c.l.b16 %v98
  %v691 = vunpack.c.h.b16 %v98
  %v692 = vunpack.c.l.b16 %v99
  %v693 = vunpack.c.h.b16 %v99
  %v694 = vunpack.c.l.b16 %v100
  %v695 = vunpack.c.h.b16 %v100
  %v696 = vunpack.c.l.b16 %v101
  %v697 = vunpack.c.h.b16 %v101
  %v698 = vunpack.c.l.b16 %v102
  %v699 = vunpack.c.h.b16 %v102
  %v700 = vunpack.c.l.b16 %v103
  %v701 = vunpack.c.h.b16 %v103
  %v702 = vunpack.c.l.b16 %v104
  %v703 = vunpack.c.h.b16 %v104
  %v704 = vunpack.c.l.b16 %v105
  %v705 = vunpack.c.h.b16 %v105
  %v706 = vunpack.c.l.b16 %v106
  %v707 = vunpack.c.h.b16 %v106
  %v708 = vunpack.c.l.b16 %v107
  %v709 = vunpack.c.h.b16 %v107
  %v710 = vunpack.c.l.b16 %v108
  %v711 = vunpack.c.h.b16 %v108
  %v712 = vunpack.c.l.b16 %v109
  %v713 = vunpack.c.h.b16 %v109
  %v714 = vunpack.c.l.b16 %v110
  %v715 = vunpack.c.h.b16 %v110
  %v716 = vunpack.c.l.b16 %v111
  %v717 = vunpack.c.h.b16 %v111
  %v718 = vunpack.c.l.b16 %v112
  %v719 = vunpack.c.h.b16 %v112
  %v720 = vunpack.c.l.b16 %v113
  %v721 = vunpack.c.h.b16 %v113
  %v722 = vunpack.c.l.b16 %v114
  %v723 = vunpack.c.h.b16 %v114
  %v724 = vunpack.c.l.b16 %v115
  %v725 = vunpack.c.h.b16 %v115
  %v726 = vunpack.c.l.b16 %v116
  %v727 = vunpack.c.h.b16 %v116
  %v728 = vunpack.c.l.b16 %v117
  %v729 = vunpack.c.h.b16 %v117
  %v730 = vunpack.c.l.b16 %v118
  %v731 = vunpack.c.h.b16 %v118
  %v732 = vunpack.c.l.b16 %v119
  %v733 = vunpack.c.h.b16 %v119
  %v734 = vunpack.c.l.b16 %v120
  %v735 = vunpack.c.h.b16 %v120
  %v736 = vunpack.c.l.b16 %v121
  %v737 = vunpack.c.h.b16 %v121
  %v738 = vunpack.c.l.b16 %v122
  %v739 = vunpack.c.h.b16 %v122
  %v740 = vunpack.c.l.b16 %v123
  %v741 = vunpack.c.h.b16 %v123
  %v742 = vunpack.c.l.b16 %v124
  %v743 = vunpack.c.h.b16 %v124
  %v744 = vunpack.c.l.b16 %v125
  %v745 = vunpack.c.h.b16 %v125
  %v746 = vunpack.c.l.b16 %v126
  %v747 = vunpack.c.h.b16 %v126
  %v748 = vunpack.c.l.b16 %v127
  %v749 = vunpack.c.h.b16 %v127
  %v750 = vunpack.c.l.b16 %v128
  %v751 = vunpack.c.h.b16 %v128
  %v752 = vunpack.c.l.b16 %v129
  %v753 = vunpack.c.h.b16 %v129
  %v754 = vunpack.c.l.b16 %v130
  %v755 = vunpack.c.h.b16 %v130
  %v756 = vunpack.c.l.b16 %v131
  %v757 = vunpack.c.h.b16 %v131
  %v758 = vunpack.c.l.b16 %v132
  %v759 = vunpack.c.h.b16 %v132
  %v760 = vunpack.c.l.b16 %v133
  %v761 = vunpack.c.h.b16 %v133
  %v762 = vunpack.c.l.b16 %v134
  %v763 = vunpack.c.h.b16 %v134
  %v764 = vunpack.c.l.b16 %v135
  %v765 = vunpack.c.h.b16 %v135
  %v766 = vunpack.c.l.b16 %v136
  %v767 = vunpack.c.h.b16 %v136
  %v768 = vunpack.c.l.b16 %v137
  %v769 = vunpack.c.h.b16 %v137
  %v770 = vunpack.c.l.b16 %v138
  %v771 = vunpack.c.h.b16 %v138
  %v772 = vunpack.c.l.b16 %v139
  %v773 = vunpack.c.h.b16 %v139
  %v774 = vunpack.c.l.b16 %v140
  %v775 = vunpack.c.h.b16 %v140
  %v776 = vunpack.c.l.b16 %v141
  %v777 = vunpack.c.h.b16 %v141
  %v778 = vunpack.c.l.b16 %v142
  %v779 = vunpack.c.h.b16 %v142
  %v780 = vunpack.c.l.b16 %v143
  %v781 = vunpack.c.h.b16 %v143
  %v782 = vunpack.c.l.b16 %v144
  %v783 = vunpack.c.h.b16 %v144
  %v784 = vunpack.c.l.b16 %v145
  %v785 = vunpack.c.h.b16 %v145
  %v786 = vpack.c.b16 %v546, %v530
  %v787 = vpack.c.b16 %v547, %v531
  %v788 = vpack.c.b16 %v548, %v532
  %v789 = vpack.c.b16 %v549, %v533
  %v790 = vpack.c.b16 %v550, %v534
  %v791 = vpack.c.b16 %v551, %v535
  %v792 = vpack.c.b16 %v552, %v536
  %v793 = vpack.c.b16 %v553, %v537
  %v794 = vpack.c.b16 %v554, %v538
  %v795 = vpack.c.b16 %v555, %v539
  %v796 = vpack.c.b16 %v556, %v540
  %v797 = vpack.c.b16 %v557, %v541
  %v798 = vpack.c.b16 %v558, %v542
  %v799 = vpack.c.b16 %v559, %v543
  %v800 = vpack.c.b16 %v560, %v544
  %v801 = vpack.c.b16 %v561, %v545
  %v802 = vpack.c.b16 %v578, %v562
  %v803 = vpack.c.b16 %v579, %v563
  %v804 = vpack.c.b16 %v580, %v564
  %v805 = vpack.c.b16 %v581, %v565
  %v806 = vpack.c.b16 %v582, %v566
  %v807 = vpack.c.b16 %v583, %v567
  %v808 = vpack.c.b16 %v584, %v568
  %v809 = vpack.c.b16 %v585, %v569
  %v810 = vpack.c.b16 %v586, %v570
  %v811 = vpack.c.b16 %v587, %v571
  %v812 = vpack.c.b16 %v588, %v572
  %v813 = vpack.c.b16 %v589, %v573
  %v814 = vpack.c.b16 %v590, %v574
  %v815 = vpack.c.b16 %v591, %v575
  %v816 = vpack.c.b16 %v592, %v576
  %v817 = vpack.c.b16 %v593, %v577
  %v818 = vpack.c.b16 %v610, %v594
  %v819 = vpack.c.b16 %v611, %v595
  %v820 = vpack.c.b16 %v612, %v596
  %v821 = vpack.c.b16 %v613, %v597
  %v822 = vpack.c.b16 %v614, %v598
  %v823 = vpack.c.b16 %v615, %v599
  %v824 = vpack.c.b16 %v616, %v600
  %v825 = vpack.c.b16 %v617, %v601
  %v826 = vpack.c.b16 %v618, %v602
  %v827 = vpack.c.b16 %v619, %v603
  %v828 = vpack.c.b16 %v620, %v604
  %v829 = vpack.c.b16 %v621, %v605
  %v830 = vpack.c.b16 %v622, %v606
  %v831 = vpack.c.b16 %v623, %v607
  %v832 = vpack.c.b16 %v624, %v608
  %v833 = vpack.c.b16 %v625, %v609
  %v834 = vpack.c.b16 %v642, %v626
  %v835 = vpack.c.b16 %v643, %v627
  %v836 = vpack.c.b16 %v644, %v628
  %v837 = vpack.c.b16 %v645, %v629
  %v838 = vpack.c.b16 %v646, %v630
  %v839 = vpack.c.b16 %v647, %v631
  %v840 = vpack.c.b16 %v648, %v632
  %v841 = vpack.c.b16 %v649, %v633
  %v842 = vpack.c.b16 %v650, %v634
  %v843 = vpack.c.b16 %v651, %v635
  %v844 = vpack.c.b16 %v652, %v636
  %v845 = vpack.c.b16 %v653, %v637
  %v846 = vpack.c.b16 %v654, %v638
  %v847 = vpack.c.b16 %v655, %v639
  %v848 = vpack.c.b16 %v656, %v640
  %v849 = vpack.c.b16 %v657, %v641
  %v850 = vpack.c.b16 %v674, %v658
  %v851 = vpack.c.b16 %v675, %v659
  %v852 = vpack.c.b16 %v676, %v660
  %v853 = vpack.c.b16 %v677, %v661
  %v854 = vpack.c.b16 %v678, %v662
  %v855 = vpack.c.b16 %v679, %v663
  %v856 = vpack.c.b16 %v680, %v664
  %v857 = vpack.c.b16 %v681, %v665
  %v858 = vpack.c.b16 %v682, %v666
  %v859 = vpack.c.b16 %v683, %v667
  %v860 = vpack.c.b16 %v684, %v668
  %v861 = vpack.c.b16 %v685, %v669
  %v862 = vpack.c.b16 %v686, %v670
  %v863 = vpack.c.b16 %v687, %v671
  %v864 = vpack.c.b16 %v688, %v672
  %v865 = vpack.c.b16 %v689, %v673
  %v866 = vpack.c.b16 %v706, %v690
  %v867 = vpack.c.b16 %v707, %v691
  %v868 = vpack.c.b16 %v708, %v692
  %v869 = vpack.c.b16 %v709, %v693
  %v870 = vpack.c.b16 %v710, %v694
  %v871 = vpack.c.b16 %v711, %v695
  %v872 = vpack.c.b16 %v712, %v696
  %v873 = vpack.c.b16 %v713, %v697
  %v874 = vpack.c.b16 %v714, %v698
  %v875 = vpack.c.b16 %v715, %v699
  %v876 = vpack.c.b16 %v716, %v700
  %v877 = vpack.c.b16 %v717, %v701
  %v878 = vpack.c.b16 %v718, %v702
  %v879 = vpack.c.b16 %v719, %v703
  %v880 = vpack.c.b16 %v720, %v704
  %v881 = vpack.c.b16 %v721, %v705
  %v882 = vpack.c.b16 %v738, %v722
  %v883 = vpack.c.b16 %v739, %v723
  %v884 = vpack.c.b16 %v740, %v724
  %v885 = vpack.c.b16 %v741, %v725
  %v886 = vpack.c.b16 %v742, %v726
  %v887 = vpack.c.b16 %v743, %v727
  %v888 = vpack.c.b16 %v744, %v728
  %v889 = vpack.c.b16 %v745, %v729
  %v890 = vpack.c.b16 %v746, %v730
  %v891 = vpack.c.b16 %v747, %v731
  %v892 = vpack.c.b16 %v748, %v732
  %v893 = vpack.c.b16 %v749, %v733
  %v894 = vpack.c.b16 %v750, %v734
  %v895 = vpack.c.b16 %v751, %v735
  %v896 = vpack.c.b16 %v752, %v736
  %v897 = vpack.c.b16 %v753, %v737
  %v898 = vpack.c.b16 %v770, %v754
  %v899 = vpack.c.b16 %v771, %v755
  %v900 = vpack.c.b16 %v772, %v756
  %v901 = vpack.c.b16 %v773, %v757
  %v902 = vpack.c.b16 %v774, %v758
  %v903 = vpack.c.b16 %v775, %v759
  %v904 = vpack.c.b16 %v776, %v760
  %v905 = vpack.c.b16 %v777, %v761
  %v906 = vpack.c.b16 %v778, %v762
  %v907 = vpack.c.b16 %v779, %v763
  %v908 = vpack.c.b16 %v780, %v764
  %v909 = vpack.c.b16 %v781, %v765
  %v910 = vpack.c.b16 %v782, %v766
  %v911 = vpack.c.b16 %v783, %v767
  %v912 = vpack.c.b16 %v784, %v768
  %v913 = vpack.c.b16 %v785, %v769
  %v1298 = vunpack.c.l.b16 %v146
  %v1299 = vunpack.c.l.b16 %v147
  %v1300 = vunpack.c.l.b16 %v148
  %v1301 = vunpack.c.l.b16 %v149
  %v1302 = vunpack.c.l.b16 %v150
  %v1303 = vunpack.c.l.b16 %v151
  %v1304 = vunpack.c.l.b16 %v152
  %v1305 = vunpack.c.l.b16 %v153
  %v1306 = vunpack.c.l.b16 %v154
  %v1307 = vunpack.c.l.b16 %v155
  %v1308 = vunpack.c.l.b16 %v156
  %v1309 = vunpack.c.l.b16 %v157
  %v1310 = vunpack.c.l.b16 %v158
  %v1311 = vunpack.c.l.b16 %v159
  %v1312 = vunpack.c.l.b16 %v160
  %v1313 = vunpack.c.l.b16 %v161
  %v1314 = vunpack.c.l.b16 %v162
  %v1315 = vunpack.c.l.b16 %v163
  %v1316 = vunpack.c.l.b16 %v164
  %v1317 = vunpack.c.l.b16 %v165
  %v1318 = vunpack.c.l.b16 %v166
  %v1319 = vunpack.c.l.b16 %v167
  %v1320 = vunpack.c.l.b16 %v168
  %v1321 = vunpack.c.l.b16 %v169
  %v1322 = vunpack.c.l.b16 %v170
  %v1323 = vunpack.c.l.b16 %v171
  %v1324 = vunpack.c.l.b16 %v172
  %v1325 = vunpack.c.l.b16 %v173
  %v1326 = vunpack.c.l.b16 %v174
  %v1327 = vunpack.c.l.b16 %v175
  %v1328 = vunpack.c.l.b16 %v176
  %v1329 = vunpack.c.l.b16 %v177
  %v1330 = vunpack.c.l.b16 %v178
  %v1331 = vunpack.c.l.b16 %v179
  %v1332 = vunpack.c.l.b16 %v180
  %v1333 = vunpack.c.l.b16 %v181
  %v1334 = vunpack.c.l.b16 %v182
  %v1335 = vunpack.c.l.b16 %v183
  %v1336 = vunpack.c.l.b16 %v184
  %v1337 = vunpack.c.l.b16 %v185
  %v1338 = vunpack.c.l.b16 %v186
  %v1339 = vunpack.c.l.b16 %v187
  %v1340 = vunpack.c.l.b16 %v188
  %v1341 = vunpack.c.l.b16 %v189
  %v1342 = vunpack.c.l.b16 %v190
  %v1343 = vunpack.c.l.b16 %v191
  %v1344 = vunpack.c.l.b16 %v192
  %v1345 = vunpack.c.l.b16 %v193
  %v1346 = vunpack.c.l.b16 %v194
  %v1347 = vunpack.c.l.b16 %v195
  %v1348 = vunpack.c.l.b16 %v196
  %v1349 = vunpack.c.l.b16 %v197
  %v1350 = vunpack.c.l.b16 %v198
  %v1351 = vunpack.c.l.b16 %v199
  %v1352 = vunpack.c.l.b16 %v200
  %v1353 = vunpack.c.l.b16 %v201
  %v1354 = vunpack.c.l.b16 %v202
  %v1355 = vunpack.c.l.b16 %v203
  %v1356 = vunpack.c.l.b16 %v204
  %v1357 = vunpack.c.l.b16 %v205
  %v1358 = vunpack.c.l.b16 %v206
  %v1359 = vunpack.c.l.b16 %v207
  %v1360 = vunpack.c.l.b16 %v208
  %v1361 = vunpack.c.l.b16 %v209
  %v1362 = vunpack.c.l.b16 %v210
  %v1363 = vunpack.c.l.b16 %v211
  %v1364 = vunpack.c.l.b16 %v212
  %v1365 = vunpack.c.l.b16 %v213
  %v1366 = vunpack.c.l.b16 %v214
  %v1367 = vunpack.c.l.b16 %v215
  %v1368 = vunpack.c.l.b16 %v216
  %v1369 = vunpack.c.l.b16 %v217
  %v1370 = vunpack.c.l.b16 %v218
  %v1371 = vunpack.c.l.b16 %v219
  %v1372 = vunpack.c.l.b16 %v220
  %v1373 = vunpack.c.l.b16 %v221
  %v1374 = vunpack.c.l.b16 %v222
  %v1375 = vunpack.c.l.b16 %v223
  %v1376 = vunpack.c.l.b16 %v224
  %v1377 = vunpack.c.l.b16 %v225
  %v1378 = vunpack.c.l.b16 %v226
  %v1379 = vunpack.c.l.b16 %v227
  %v1380 = vunpack.c.l.b16 %v228
  %v1381 = vunpack.c.l.b16 %v229
  %v1382 = vunpack.c.l.b16 %v230
  %v1383 = vunpack.c.l.b16 %v231
  %v1384 = vunpack.c.l.b16 %v232
  %v1385 = vunpack.c.l.b16 %v233
  %v1386 = vunpack.c.l.b16 %v234
  %v1387 = vunpack.c.l.b16 %v235
  %v1388 = vunpack.c.l.b16 %v236
  %v1389 = vunpack.c.l.b16 %v237
  %v1390 = vunpack.c.l.b16 %v238
  %v1391 = vunpack.c.l.b16 %v239
  %v1392 = vunpack.c.l.b16 %v240
  %v1393 = vunpack.c.l.b16 %v241
  %v1394 = vunpack.c.l.b16 %v242
  %v1395 = vunpack.c.l.b16 %v243
  %v1396 = vunpack.c.l.b16 %v244
  %v1397 = vunpack.c.l.b16 %v245
  %v1398 = vunpack.c.l.b16 %v246
  %v1399 = vunpack.c.l.b16 %v247
  %v1400 = vunpack.c.l.b16 %v248
  %v1401 = vunpack.c.l.b16 %v249
  %v1402 = vunpack.c.l.b16 %v250
  %v1403 = vunpack.c.l.b16 %v251
  %v1404 = vunpack.c.l.b16 %v252
  %v1405 = vunpack.c.l.b16 %v253
  %v1406 = vunpack.c.l.b16 %v254
  %v1407 = vunpack.c.l.b16 %v255
  %v1408 = vunpack.c.l.b16 %v256
  %v1409 = vunpack.c.l.b16 %v257
  %v1410 = vunpack.c.l.b16 %v258
  %v1411 = vunpack.c.l.b16 %v259
  %v1412 = vunpack.c.l.b16 %v260
  %v1413 = vunpack.c.l.b16 %v261
  %v1414 = vunpack.c.l.b16 %v262
  %v1415 = vunpack.c.l.b16 %v263
  %v1416 = vunpack.c.l.b16 %v264
  %v1417 = vunpack.c.l.b16 %v265
  %v1418 = vunpack.c.l.b16 %v266
  %v1419 = vunpack.c.l.b16 %v267
  %v1420 = vunpack.c.l.b16 %v268
  %v1421 = vunpack.c.l.b16 %v269
  %v1422 = vunpack.c.l.b16 %v270
  %v1423 = vunpack.c.l.b16 %v271
  %v1424 = vunpack.c.l.b16 %v272
  %v1425 = vunpack.c.l.b16 %v273
  %v1426 = vunpack.c.l.b16 %v274
  %v1427 = vunpack.c.l.b16 %v275
  %v1428 = vunpack.c.l.b16 %v276
  %v1429 = vunpack.c.l.b16 %v277
  %v1430 = vunpack.c.l.b16 %v278
  %v1431 = vunpack.c.l.b16 %v279
  %v1432 = vunpack.c.l.b16 %v280
  %v1433 = vunpack.c.l.b16 %v281
  %v1434 = vunpack.c.l.b16 %v282
  %v1435 = vunpack.c.l.b16 %v283
  %v1436 = vunpack.c.l.b16 %v284
  %v1437 = vunpack.c.l.b16 %v285
  %v1438 = vunpack.c.l.b16 %v286
  %v1439 = vunpack.c.l.b16 %v287
  %v1440 = vunpack.c.l.b16 %v288
  %v1441 = vunpack.c.l.b16 %v289
  %v1442 = vunpack.c.l.b16 %v290
  %v1443 = vunpack.c.l.b16 %v291
  %v1444 = vunpack.c.l.b16 %v292
  %v1445 = vunpack.c.l.b16 %v293
  %v1446 = vunpack.c.l.b16 %v294
  %v1447 = vunpack.c.l.b16 %v295
  %v1448 = vunpack.c.l.b16 %v296
  %v1449 = vunpack.c.l.b16 %v297
  %v1450 = vunpack.c.l.b16 %v298
  %v1451 = vunpack.c.l.b16 %v299
  %v1452 = vunpack.c.l.b16 %v300
  %v1453 = vunpack.c.l.b16 %v301
  %v1454 = vunpack.c.l.b16 %v302
  %v1455 = vunpack.c.l.b16 %v303
  %v1456 = vunpack.c.l.b16 %v304
  %v1457 = vunpack.c.l.b16 %v305
  %v1458 = vunpack.c.l.b16 %v306
  %v1459 = vunpack.c.l.b16 %v307
  %v1460 = vunpack.c.l.b16 %v308
  %v1461 = vunpack.c.l.b16 %v309
  %v1462 = vunpack.c.l.b16 %v310
  %v1463 = vunpack.c.l.b16 %v311
  %v1464 = vunpack.c.l.b16 %v312
  %v1465 = vunpack.c.l.b16 %v313
  %v1466 = vunpack.c.l.b16 %v314
  %v1467 = vunpack.c.l.b16 %v315
  %v1468 = vunpack.c.l.b16 %v316
  %v1469 = vunpack.c.l.b16 %v317
  %v1470 = vunpack.c.l.b16 %v318
  %v1471 = vunpack.c.l.b16 %v319
  %v1472 = vunpack.c.l.b16 %v320
  %v1473 = vunpack.c.l.b16 %v321
  %v1474 = vunpack.c.l.b16 %v322
  %v1475 = vunpack.c.l.b16 %v323
  %v1476 = vunpack.c.l.b16 %v324
  %v1477 = vunpack.c.l.b16 %v325
  %v1478 = vunpack.c.l.b16 %v326
  %v1479 = vunpack.c.l.b16 %v327
  %v1480 = vunpack.c.l.b16 %v328
  %v1481 = vunpack.c.l.b16 %v329
  %v1482 = vunpack.c.l.b16 %v330
  %v1483 = vunpack.c.l.b16 %v331
  %v1484 = vunpack.c.l.b16 %v332
  %v1485 = vunpack.c.l.b16 %v333
  %v1486 = vunpack.c.l.b16 %v334
  %v1487 = vunpack.c.l.b16 %v335
  %v1488 = vunpack.c.l.b16 %v336
  %v1489 = vunpack.c.l.b16 %v337
  %v1490 = vunpack.c.l.b16 %v338
  %v1491 = vunpack.c.l.b16 %v339
  %v1492 = vunpack.c.l.b16 %v340
  %v1493 = vunpack.c.l.b16 %v341
  %v1494 = vunpack.c.l.b16 %v342
  %v1495 = vunpack.c.l.b16 %v343
  %v1496 = vunpack.c.l.b16 %v344
  %v1497 = vunpack.c.l.b16 %v345
  %v1498 = vunpack.c.l.b16 %v346
  %v1499 = vunpack.c.l.b16 %v347
  %v1500 = vunpack.c.l.b16 %v348
  %v1501 = vunpack.c.l.b16 %v349
  %v1502 = vunpack.c.l.b16 %v350
  %v1503 = vunpack.c.l.b16 %v351
  %v1504 = vunpack.c.l.b16 %v352
  %v1505 = vunpack.c.l.b16 %v353
  %v1506 = vunpack.c.l.b16 %v354
  %v1507 = vunpack.c.l.b16 %v355
  %v1508 = vunpack.c.l.b16 %v356
  %v1509 = vunpack.c.l.b16 %v357
  %v1510 = vunpack.c.l.b16 %v358
  %v1511 = vunpack.c.l.b16 %v359
  %v1512 = vunpack.c.l.b16 %v360
  %v1513 = vunpack.c.l.b16 %v361
  %v1514 = vunpack.c.l.b16 %v362
  %v1515 = vunpack.c.l.b16 %v363
  %v1516 = vunpack.c.l.b16 %v364
  %v1517 = vunpack.c.l.b16 %v365
  %v1518 = vunpack.c.l.b16 %v366
  %v1519 = vunpack.c.l.b16 %v367
  %v1520 = vunpack.c.l.b16 %v368
  %v1521 = vunpack.c.l.b16 %v369
  %v1522 = vunpack.c.l.b16 %v370
  %v1523 = vunpack.c.l.b16 %v371
  %v1524 = vunpack.c.l.b16 %v372
  %v1525 = vunpack.c.l.b16 %v373
  %v1526 = vunpack.c.l.b16 %v374
  %v1527 = vunpack.c.l.b16 %v375
  %v1528 = vunpack.c.l.b16 %v376
  %v1529 = vunpack.c.l.b16 %v377
  %v1530 = vunpack.c.l.b16 %v378
  %v1531 = vunpack.c.l.b16 %v379
  %v1532 = vunpack.c.l.b16 %v380
  %v1533 = vunpack.c.l.b16 %v381
  %v1534 = vunpack.c.l.b16 %v382
  %v1535 = vunpack.c.l.b16 %v383
  %v1536 = vunpack.c.l.b16 %v384
  %v1537 = vunpack.c.l.b16 %v385
  %v1538 = vunpack.c.l.b16 %v386
  %v1539 = vunpack.c.l.b16 %v387
  %v1540 = vunpack.c.l.b16 %v388
  %v1541 = vunpack.c.l.b16 %v389
  %v1542 = vunpack.c.l.b16 %v390
  %v1543 = vunpack.c.l.b16 %v391
  %v1544 = vunpack.c.l.b16 %v392
  %v1545 = vunpack.c.l.b16 %v393
  %v1546 = vunpack.c.l.b16 %v394
  %v1547 = vunpack.c.l.b16 %v395
  %v1548 = vunpack.c.l.b16 %v396
  %v1549 = vunpack.c.l.b16 %v397
  %v1550 = vunpack.c.l.b16 %v398
  %v1551 = vunpack.c.l.b16 %v399
  %v1552 = vunpack.c.l.b16 %v400
  %v1553 = vunpack.c.l.b16 %v401
  %v1554 = vpack.c.b16 %v1299, %v1298
  %v1555 = vpack.c.b16 %v1301, %v1300
  %v1556 = vpack.c.b16 %v1303, %v1302
  %v1557 = vpack.c.b16 %v1305, %v1304
  %v1558 = vpack.c.b16 %v1307, %v1306
  %v1559 = vpack.c.b16 %v1309, %v1308
  %v1560 = vpack.c.b16 %v1311, %v1310
  %v1561 = vpack.c.b16 %v1313, %v1312
  %v1562 = vpack.c.b16 %v1315, %v1314
  %v1563 = vpack.c.b16 %v1317, %v1316
  %v1564 = vpack.c.b16 %v1319, %v1318
  %v1565 = vpack.c.b16 %v1321, %v1320
  %v1566 = vpack.c.b16 %v1323, %v1322
  %v1567 = vpack.c.b16 %v1325, %v1324
  %v1568 = vpack.c.b16 %v1327, %v1326
  %v1569 = vpack.c.b16 %v1329, %v1328
  %v1570 = vpack.c.b16 %v1331, %v1330
  %v1571 = vpack.c.b16 %v1333, %v1332
  %v1572 = vpack.c.b16 %v1335, %v1334
  %v1573 = vpack.c.b16 %v1337, %v1336
  %v1574 = vpack.c.b16 %v1339, %v1338
  %v1575 = vpack.c.b16 %v1341, %v1340
  %v1576 = vpack.c.b16 %v1343, %v1342
  %v1577 = vpack.c.b16 %v1345, %v1344
  %v1578 = vpack.c.b16 %v1347, %v1346
  %v1579 = vpack.c.b16 %v1349, %v1348
  %v1580 = vpack.c.b16 %v1351, %v1350
  %v1581 = vpack.c.b16 %v1353, %v1352
  %v1582 = vpack.c.b16 %v1355, %v1354
  %v1583 = vpack.c.b16 %v1357, %v1356
  %v1584 = vpack.c.b16 %v1359, %v1358
  %v1585 = vpack.c.b16 %v1361, %v1360
  %v1586 = vpack.c.b16 %v1363, %v1362
  %v1587 = vpack.c.b16 %v1365, %v1364
  %v1588 = vpack.c.b16 %v1367, %v1366
  %v1589 = vpack.c.b16 %v1369, %v1368
  %v1590 = vpack.c.b16 %v1371, %v1370
  %v1591 = vpack.c.b16 %v1373, %v1372
  %v1592 = vpack.c.b16 %v1375, %v1374
  %v1593 = vpack.c.b16 %v1377, %v1376
  %v1594 = vpack.c.b16 %v1379, %v1378
  %v1595 = vpack.c.b16 %v1381, %v1380
  %v1596 = vpack.c.b16 %v1383, %v1382
  %v1597 = vpack.c.b16 %v1385, %v1384
  %v1598 = vpack.c.b16 %v1387, %v1386
  %v1599 = vpack.c.b16 %v1389, %v1388
  %v1600 = vpack.c.b16 %v1391, %v1390
  %v1601 = vpack.c.b16 %v1393, %v1392
  %v1602 = vpack.c.b16 %v1395, %v1394
  %v1603 = vpack.c.b16 %v1397, %v1396
  %v1604 = vpack.c.b16 %v1399, %v1398
  %v1605 = vpack.c.b16 %v1401, %v1400
  %v1606 = vpack.c.b16 %v1403, %v1402
  %v1607 = vpack.c.b16 %v1405, %v1404
  %v1608 = vpack.c.b16 %v1407, %v1406
  %v1609 = vpack.c.b16 %v1409, %v1408
  %v1610 = vpack.c.b16 %v1411, %v1410
  %v1611 = vpack.c.b16 %v1413, %v1412
  %v1612 = vpack.c.b16 %v1415, %v1414
  %v1613 = vpack.c.b16 %v1417, %v1416
  %v1614 = vpack.c.b16 %v1419, %v1418
  %v1615 = vpack.c.b16 %v1421, %v1420
  %v1616 = vpack.c.b16 %v1423, %v1422
  %v1617 = vpack.c.b16 %v1425, %v1424
  %v1618 = vpack.c.b16 %v1427, %v1426
  %v1619 = vpack.c.b16 %v1429, %v1428
  %v1620 = vpack.c.b16 %v1431, %v1430
  %v1621 = vpack.c.b16 %v1433, %v1432
  %v1622 = vpack.c.b16 %v1435, %v1434
  %v1623 = vpack.c.b16 %v1437, %v1436
  %v1624 = vpack.c.b16 %v1439, %v1438
  %v1625 = vpack.c.b16 %v1441, %v1440
  %v1626 = vpack.c.b16 %v1443, %v1442
  %v1627 = vpack.c.b16 %v1445, %v1444
  %v1628 = vpack.c.b16 %v1447, %v1446
  %v1629 = vpack.c.b16 %v1449, %v1448
  %v1630 = vpack.c.b16 %v1451, %v1450
  %v1631 = vpack.c.b16 %v1453, %v1452
  %v1632 = vpack.c.b16 %v1455, %v1454
  %v1633 = vpack.c.b16 %v1457, %v1456
  %v1634 = vpack.c.b16 %v1459, %v1458
  %v1635 = vpack.c.b16 %v1461, %v1460
  %v1636 = vpack.c.b16 %v1463, %v1462
  %v1637 = vpack.c.b16 %v1465, %v1464
  %v1638 = vpack.c.b16 %v1467, %v1466
  %v1639 = vpack.c.b16 %v1469, %v1468
  %v1640 = vpack.c.b16 %v1471, %v1470
  %v1641 = vpack.c.b16 %v1473, %v1472
  %v1642 = vpack.c.b16 %v1475, %v1474
  %v1643 = vpack.c.b16 %v1477, %v1476
  %v1644 = vpack.c.b16 %v1479, %v1478
  %v1645 = vpack.c.b16 %v1481, %v1480
  %v1646 = vpack.c.b16 %v1483, %v1482
  %v1647 = vpack.c.b16 %v1485, %v1484
  %v1648 = vpack.c.b16 %v1487, %v1486
  %v1649 = vpack.c.b16 %v1489, %v1488
  %v1650 = vpack.c.b16 %v1491, %v1490
  %v1651 = vpack.c.b16 %v1493, %v1492
  %v1652 = vpack.c.b16 %v1495, %v1494
  %v1653 = vpack.c.b16 %v1497, %v1496
  %v1654 = vpack.c.b16 %v1499, %v1498
  %v1655 = vpack.c.b16 %v1501, %v1500
  %v1656 = vpack.c.b16 %v1503, %v1502
  %v1657 = vpack.c.b16 %v1505, %v1504
  %v1658 = vpack.c.b16 %v1507, %v1506
  %v1659 = vpack.c.b16 %v1509, %v1508
  %v1660 = vpack.c.b16 %v1511, %v1510
  %v1661 = vpack.c.b16 %v1513, %v1512
  %v1662 = vpack.c.b16 %v1515, %v1514
  %v1663 = vpack.c.b16 %v1517, %v1516
  %v1664 = vpack.c.b16 %v1519, %v1518
  %v1665 = vpack.c.b16 %v1521, %v1520
  %v1666 = vpack.c.b16 %v1523, %v1522
  %v1667 = vpack.c.b16 %v1525, %v1524
  %v1668 = vpack.c.b16 %v1527, %v1526
  %v1669 = vpack.c.b16 %v1529, %v1528
  %v1670 = vpack.c.b16 %v1531, %v1530
  %v1671 = vpack.c.b16 %v1533, %v1532
  %v1672 = vpack.c.b16 %v1535, %v1534
  %v1673 = vpack.c.b16 %v1537, %v1536
  %v1674 = vpack.c.b16 %v1539, %v1538
  %v1675 = vpack.c.b16 %v1541, %v1540
  %v1676 = vpack.c.b16 %v1543, %v1542
  %v1677 = vpack.c.b16 %v1545, %v1544
  %v1678 = vpack.c.b16 %v1547, %v1546
  %v1679 = vpack.c.b16 %v1549, %v1548
  %v1680 = vpack.c.b16 %v1551, %v1550
  %v1681 = vpack.c.b16 %v1553, %v1552
  %1810 = vmatprep.subr.bf16.mxu0 0
  %1811 = vmatpush1.bf16.msra.mxu0 %v1554
  %1812 = vmatprep.subr.bf16.mxu0 0
  %1813 = vmatpush1.bf16.msra.mxu0 %v1555
  %1814 = vmatprep.subr.bf16.mxu0 0
  %1815 = vmatpush1.bf16.msra.mxu0 %v1556
  %1816 = vmatprep.subr.bf16.mxu0 0
  %1817 = vmatpush1.bf16.msra.mxu0 %v1557
  %1818 = vmatprep.subr.bf16.mxu0 0
  %1819 = vmatpush1.bf16.msra.mxu0 %v1558
  %1820 = vmatprep.subr.bf16.mxu0 0
  %1821 = vmatpush1.bf16.msra.mxu0 %v1559
  %1822 = vmatprep.subr.bf16.mxu0 0
  %1823 = vmatpush1.bf16.msra.mxu0 %v1560
  %1824 = vmatprep.subr.bf16.mxu0 0
  %1825 = vmatpush1.bf16.msra.mxu0 %v1561
  %1826 = vmatprep.subr.bf16.mxu0 0
  %1827 = vmatpush1.bf16.msra.mxu0 %v1562
  %1828 = vmatprep.subr.bf16.mxu0 0
  %1829 = vmatpush1.bf16.msra.mxu0 %v1563
  %1830 = vmatprep.subr.bf16.mxu0 0
  %1831 = vmatpush1.bf16.msra.mxu0 %v1564
  %1832 = vmatprep.subr.bf16.mxu0 0
  %1833 = vmatpush1.bf16.msra.mxu0 %v1565
  %1834 = vmatprep.subr.bf16.mxu0 0
  %1835 = vmatpush1.bf16.msra.mxu0 %v1566
  %1836 = vmatprep.subr.bf16.mxu0 0
  %1837 = vmatpush1.bf16.msra.mxu0 %v1567
  %1838 = vmatprep.subr.bf16.mxu0 0
  %1839 = vmatpush1.bf16.msra.mxu0 %v1568
  %1840 = vmatprep.subr.bf16.mxu0 0
  %1841 = vmatpush1.bf16.msra.mxu0 %v1569
  %1842 = vmatprep.mubr.bf16.mxu0 %v787
  %1843 = vmatmul.mubr.bf16.gmra.mrb[0].mxu0 %v786
  %v1844 = vpop.f32.mrb[0].mxu0
  %v1845 = vadd.f32 0.0, %v1844
  %v1846 = vpop.f32.mrb[0].mxu0
  %v1847 = vpop.f32.mrb[0].mxu0
  %v1848 = vadd.f32 0.0, %v1847
  %v1849 = vpop.f32.mrb[0].mxu0
  %1850 = vmatprep.mubr.bf16.mxu0 %v803
  %1851 = vmatmul.mubr.bf16.gmra.mrb[0].mxu0 %v802
  %v1852 = vpop.f32.mrb[0].mxu0
  %v1853 = vadd.f32 0.0, %v1852
  %v1854 = vpop.f32.mrb[0].mxu0
  %v1855 = vpop.f32.mrb[0].mxu0
  %v1856 = vadd.f32 0.0, %v1855
  %v1857 = vpop.f32.mrb[0].mxu0
  %1858 = vmatprep.mubr.bf16.mxu0 %v819
  %1859 = vmatmul.mubr.bf16.gmra.mrb[0].mxu0 %v818
  %v1860 = vpop.f32.mrb[0].mxu0
  %v1861 = vadd.f32 0.0, %v1860
  %v1862 = vpop.f32.mrb[0].mxu0
  %v1863 = vpop.f32.mrb[0].mxu0
  %v1864 = vadd.f32 0.0, %v1863
  %v1865 = vpop.f32.mrb[0].mxu0
  %1866 = vmatprep.mubr.bf16.mxu0 %v835
  %1867 = vmatmul.mubr.bf16.gmra.mrb[0].mxu0 %v834
  %v1868 = vpop.f32.mrb[0].mxu0
  %v1869 = vadd.f32 0.0, %v1868
  %v1870 = vpop.f32.mrb[0].mxu0
  %v1871 = vpop.f32.mrb[0].mxu0
  %v1872 = vadd.f32 0.0, %v1871
  %v1873 = vpop.f32.mrb[0].mxu0
  %1874 = vmatprep.mubr.bf16.mxu0 %v851
  %1875 = vmatmul.mubr.bf16.gmra.mrb[0].mxu0 %v850
  %v1876 = vpop.f32.mrb[0].mxu0
  %v1877 = vadd.f32 0.0, %v1876
  %v1878 = vpop.f32.mrb[0].mxu0
  %v1879 = vpop.f32.mrb[0].mxu0
  %v1880 = vadd.f32 0.0, %v1879
  %v1881 = vpop.f32.mrb[0].mxu0
  %1882 = vmatprep.mubr.bf16.mxu0 %v867
  %1883 = vmatmul.mubr.bf16.gmra.mrb[0].mxu0 %v866
  %v1884 = vpop.f32.mrb[0].mxu0
  %v1885 = vadd.f32 0.0, %v1884
  %v1886 = vpop.f32.mrb[0].mxu0
  %v1887 = vpop.f32.mrb[0].mxu0
  %v1888 = vadd.f32 0.0, %v1887
  %v1889 = vpop.f32.mrb[0].mxu0
  %1890 = vmatprep.mubr.bf16.mxu0 %v883
  %1891 = vmatmul.mubr.bf16.gmra.mrb[0].mxu0 %v882
  %v1892 = vpop.f32.mrb[0].mxu0
  %v1893 = vadd.f32 0.0, %v1892
  %v1894 = vpop.f32.mrb[0].mxu0
  %v1895 = vpop.f32.mrb[0].mxu0
  %v1896 = vadd.f32 0.0, %v1895
  %v1897 = vpop.f32.mrb[0].mxu0
  %1898 = vmatprep.mubr.bf16.mxu0 %v899
  %1899 = vmatmul.mubr.bf16.gmra.mrb[0].mxu0 %v898
  %v1900 = vpop.f32.mrb[0].mxu0
  %v1901 = vadd.f32 0.0, %v1900
  %v1902 = vpop.f32.mrb[0].mxu0
  %v1903 = vpop.f32.mrb[0].mxu0
  %v1904 = vadd.f32 0.0, %v1903
  %v1905 = vpop.f32.mrb[0].mxu0
  %1906 = vdwg.mxu0
  %1907 = vmatprep.subr.bf16.mxu0 0
  %1908 = vmatpush1.bf16.msra.mxu0 %v1570
  %1909 = vmatprep.subr.bf16.mxu0 0
  %1910 = vmatpush1.bf16.msra.mxu0 %v1571
  %1911 = vmatprep.subr.bf16.mxu0 0
  %1912 = vmatpush1.bf16.msra.mxu0 %v1572
  %1913 = vmatprep.subr.bf16.mxu0 0
  %1914 = vmatpush1.bf16.msra.mxu0 %v1573
  %1915 = vmatprep.subr.bf16.mxu0 0
  %1916 = vmatpush1.bf16.msra.mxu0 %v1574
  %1917 = vmatprep.subr.bf16.mxu0 0
  %1918 = vmatpush1.bf16.msra.mxu0 %v1575
  %1919 = vmatprep.subr.bf16.mxu0 0
  %1920 = vmatpush1.bf16.msra.mxu0 %v1576
  %1921 = vmatprep.subr.bf16.mxu0 0
  %1922 = vmatpush1.bf16.msra.mxu0 %v1577
  %1923 = vmatprep.subr.bf16.mxu0 0
  %1924 = vmatpush1.bf16.msra.mxu0 %v1578
  %1925 = vmatprep.subr.bf16.mxu0 0
  %1926 = vmatpush1.bf16.msra.mxu0 %v1579
  %1927 = vmatprep.subr.bf16.mxu0 0
  %1928 = vmatpush1.bf16.msra.mxu0 %v1580
  %1929 = vmatprep.subr.bf16.mxu0 0
  %1930 = vmatpush1.bf16.msra.mxu0 %v1581
  %1931 = vmatprep.subr.bf16.mxu0 0
  %1932 = vmatpush1.bf16.msra.mxu0 %v1582
  %1933 = vmatprep.subr.bf16.mxu0 0
  %1934 = vmatpush1.bf16.msra.mxu0 %v1583
  %1935 = vmatprep.subr.bf16.mxu0 0
  %1936 = vmatpush1.bf16.msra.mxu0 %v1584
  %1937 = vmatprep.subr.bf16.mxu0 0
  %1938 = vmatpush1.bf16.msra.mxu0 %v1585
  %1939 = vmatprep.mubr.bf16.mxu0 %v789
  %1940 = vmatmul.mubr.bf16.gmra.mrb[0].mxu0 %v788
  %v1941 = vpop.f32.mrb[0].mxu0
  %v1942 = vadd.f32 %v1845, %v1941
  %v1943 = vpop.f32.mrb[0].mxu0
  %v1944 = vpop.f32.mrb[0].mxu0
  %v1945 = vadd.f32 %v1848, %v1944
  %v1946 = vpop.f32.mrb[0].mxu0
  %1947 = vmatprep.mubr.bf16.mxu0 %v805
  %1948 = vmatmul.mubr.bf16.gmra.mrb[0].mxu0 %v804
  %v1949 = vpop.f32.mrb[0].mxu0
  %v1950 = vadd.f32 %v1853, %v1949
  %v1951 = vpop.f32.mrb[0].mxu0
  %v1952 = vpop.f32.mrb[0].mxu0
  %v1953 = vadd.f32 %v1856, %v1952
  %v1954 = vpop.f32.mrb[0].mxu0
  %1955 = vmatprep.mubr.bf16.mxu0 %v821
  %1956 = vmatmul.mubr.bf16.gmra.mrb[0].mxu0 %v820
  %v1957 = vpop.f32.mrb[0].mxu0
  %v1958 = vadd.f32 %v1861, %v1957
  %v1959 = vpop.f32.mrb[0].mxu0
  %v1960 = vpop.f32.mrb[0].mxu0
  %v1961 = vadd.f32 %v1864, %v1960
  %v1962 = vpop.f32.mrb[0].mxu0
  %1963 = vmatprep.mubr.bf16.mxu0 %v837
  %1964 = vmatmul.mubr.bf16.gmra.mrb[0].mxu0 %v836
  %v1965 = vpop.f32.mrb[0].mxu0
  %v1966 = vadd.f32 %v1869, %v1965
  %v1967 = vpop.f32.mrb[0].mxu0
  %v1968 = vpop.f32.mrb[0].mxu0
  %v1969 = vadd.f32 %v1872, %v1968
  %v1970 = vpop.f32.mrb[0].mxu0
  %1971 = vmatprep.mubr.bf16.mxu0 %v853
  %1972 = vmatmul.mubr.bf16.gmra.mrb[0].mxu0 %v852
  %v1973 = vpop.f32.mrb[0].mxu0
  %v1974 = vadd.f32 %v1877, %v1973
  %v1975 = vpop.f32.mrb[0].mxu0
  %v1976 = vpop.f32.mrb[0].mxu0
  %v1977 = vadd.f32 %v1880, %v1976
  %v1978 = vpop.f32.mrb[0].mxu0
  %1979 = vmatprep.mubr.bf16.mxu0 %v869
  %1980 = vmatmul.mubr.bf16.gmra.mrb[0].mxu0 %v868
  %v1981 = vpop.f32.mrb[0].mxu0
  %v1982 = vadd.f32 %v1885, %v1981
  %v1983 = vpop.f32.mrb[0].mxu0
  %v1984 = vpop.f32.mrb[0].mxu0
  %v1985 = vadd.f32 %v1888, %v1984
  %v1986 = vpop.f32.mrb[0].mxu0
  %1987 = vmatprep.mubr.bf16.mxu0 %v885
  %1988 = vmatmul.mubr.bf16.gmra.mrb[0].mxu0 %v884
  %v1989 = vpop.f32.mrb[0].mxu0
  %v1990 = vadd.f32 %v1893, %v1989
  %v1991 = vpop.f32.mrb[0].mxu0
  %v1992 = vpop.f32.mrb[0].mxu0
  %v1993 = vadd.f32 %v1896, %v1992
  %v1994 = vpop.f32.mrb[0].mxu0
  %1995 = vmatprep.mubr.bf16.mxu0 %v901
  %1996 = vmatmul.mubr.bf16.gmra.mrb[0].mxu0 %v900
  %v1997 = vpop.f32.mrb[0].mxu0
  %v1998 = vadd.f32 %v1901, %v1997
  %v1999 = vpop.f32.mrb[0].mxu0
  %v2000 = vpop.f32.mrb[0].mxu0
  %v2001 = vadd.f32 %v1904, %v2000
  %v2002 = vpop.f32.mrb[0].mxu0
  %2003 = vdwg.mxu0
  %2004 = vmatprep.subr.bf16.mxu0 0
  %2005 = vmatpush1.bf16.msra.mxu0 %v1586
  %2006 = vmatprep.subr.bf16.mxu0 0
  %2007 = vmatpush1.bf16.msra.mxu0 %v1587
  %2008 = vmatprep.subr.bf16.mxu0 0
  %2009 = vmatpush1.bf16.msra.mxu0 %v1588
  %2010 = vmatprep.subr.bf16.mxu0 0
  %2011 = vmatpush1.bf16.msra.mxu0 %v1589
  %2012 = vmatprep.subr.bf16.mxu0 0
  %2013 = vmatpush1.bf16.msra.mxu0 %v1590
  %2014 = vmatprep.subr.bf16.mxu0 0
  %2015 = vmatpush1.bf16.msra.mxu0 %v1591
  %2016 = vmatprep.subr.bf16.mxu0 0
  %2017 = vmatpush1.bf16.msra.mxu0 %v1592
  %2018 = vmatprep.subr.bf16.mxu0 0
  %2019 = vmatpush1.bf16.msra.mxu0 %v1593
  %2020 = vmatprep.subr.bf16.mxu0 0
  %2021 = vmatpush1.bf16.msra.mxu0 %v1594
  %2022 = vmatprep.subr.bf16.mxu0 0
  %2023 = vmatpush1.bf16.msra.mxu0 %v1595
  %2024 = vmatprep.subr.bf16.mxu0 0
  %2025 = vmatpush1.bf16.msra.mxu0 %v1596
  %2026 = vmatprep.subr.bf16.mxu0 0
  %2027 = vmatpush1.bf16.msra.mxu0 %v1597
  %2028 = vmatprep.subr.bf16.mxu0 0
  %2029 = vmatpush1.bf16.msra.mxu0 %v1598
  %2030 = vmatprep.subr.bf16.mxu0 0
  %2031 = vmatpush1.bf16.msra.mxu0 %v1599
  %2032 = vmatprep.subr.bf16.mxu0 0
  %2033 = vmatpush1.bf16.msra.mxu0 %v1600
  %2034 = vmatprep.subr.bf16.mxu0 0
  %2035 = vmatpush1.bf16.msra.mxu0 %v1601
  %2036 = vmatprep.mubr.bf16.mxu0 %v791
  %2037 = vmatmul.mubr.bf16.gmra.mrb[0].mxu0 %v790
  %v2038 = vpop.f32.mrb[0].mxu0
  %v2039 = vadd.f32 %v1942, %v2038
  %v2040 = vpop.f32.mrb[0].mxu0
  %v2041 = vpop.f32.mrb[0].mxu0
  %v2042 = vadd.f32 %v1945, %v2041
  %v2043 = vpop.f32.mrb[0].mxu0
  %2044 = vmatprep.mubr.bf16.mxu0 %v807
  %2045 = vmatmul.mubr.bf16.gmra.mrb[0].mxu0 %v806
  %v2046 = vpop.f32.mrb[0].mxu0
  %v2047 = vadd.f32 %v1950, %v2046
  %v2048 = vpop.f32.mrb[0].mxu0
  %v2049 = vpop.f32.mrb[0].mxu0
  %v2050 = vadd.f32 %v1953, %v2049
  %v2051 = vpop.f32.mrb[0].mxu0
  %2052 = vmatprep.mubr.bf16.mxu0 %v823
  %2053 = vmatmul.mubr.bf16.gmra.mrb[0].mxu0 %v822
  %v2054 = vpop.f32.mrb[0].mxu0
  %v2055 = vadd.f32 %v1958, %v2054
  %v2056 = vpop.f32.mrb[0].mxu0
  %v2057 = vpop.f32.mrb[0].mxu0
  %v2058 = vadd.f32 %v1961, %v2057
  %v2059 = vpop.f32.mrb[0].mxu0
  %2060 = vmatprep.mubr.bf16.mxu0 %v839
  %2061 = vmatmul.mubr.bf16.gmra.mrb[0].mxu0 %v838
  %v2062 = vpop.f32.mrb[0].mxu0
  %v2063 = vadd.f32 %v1966, %v2062
  %v2064 = vpop.f32.mrb[0].mxu0
  %v2065 = vpop.f32.mrb[0].mxu0
  %v2066 = vadd.f32 %v1969, %v2065
  %v2067 = vpop.f32.mrb[0].mxu0
  %2068 = vmatprep.mubr.bf16.mxu0 %v855
  %2069 = vmatmul.mubr.bf16.gmra.mrb[0].mxu0 %v854
  %v2070 = vpop.f32.mrb[0].mxu0
  %v2071 = vadd.f32 %v1974, %v2070
  %v2072 = vpop.f32.mrb[0].mxu0
  %v2073 = vpop.f32.mrb[0].mxu0
  %v2074 = vadd.f32 %v1977, %v2073
  %v2075 = vpop.f32.mrb[0].mxu0
  %2076 = vmatprep.mubr.bf16.mxu0 %v871
  %2077 = vmatmul.mubr.bf16.gmra.mrb[0].mxu0 %v870
  %v2078 = vpop.f32.mrb[0].mxu0
  %v2079 = vadd.f32 %v1982, %v2078
  %v2080 = vpop.f32.mrb[0].mxu0
  %v2081 = vpop.f32.mrb[0].mxu0
  %v2082 = vadd.f32 %v1985, %v2081
  %v2083 = vpop.f32.mrb[0].mxu0
  %2084 = vmatprep.mubr.bf16.mxu0 %v887
  %2085 = vmatmul.mubr.bf16.gmra.mrb[0].mxu0 %v886
  %v2086 = vpop.f32.mrb[0].mxu0
  %v2087 = vadd.f32 %v1990, %v2086
  %v2088 = vpop.f32.mrb[0].mxu0
  %v2089 = vpop.f32.mrb[0].mxu0
  %v2090 = vadd.f32 %v1993, %v2089
  %v2091 = vpop.f32.mrb[0].mxu0
  %2092 = vmatprep.mubr.bf16.mxu0 %v903
  %2093 = vmatmul.mubr.bf16.gmra.mrb[0].mxu0 %v902
  %v2094 = vpop.f32.mrb[0].mxu0
  %v2095 = vadd.f32 %v1998, %v2094
  %v2096 = vpop.f32.mrb[0].mxu0
  %v2097 = vpop.f32.mrb[0].mxu0
  %v2098 = vadd.f32 %v2001, %v2097
  %v2099 = vpop.f32.mrb[0].mxu0
  %2100 = vdwg.mxu0
  %2101 = vmatprep.subr.bf16.mxu0 0
  %2102 = vmatpush1.bf16.msra.mxu0 %v1602
  %2103 = vmatprep.subr.bf16.mxu0 0
  %2104 = vmatpush1.bf16.msra.mxu0 %v1603
  %2105 = vmatprep.subr.bf16.mxu0 0
  %2106 = vmatpush1.bf16.msra.mxu0 %v1604
  %2107 = vmatprep.subr.bf16.mxu0 0
  %2108 = vmatpush1.bf16.msra.mxu0 %v1605
  %2109 = vmatprep.subr.bf16.mxu0 0
  %2110 = vmatpush1.bf16.msra.mxu0 %v1606
  %2111 = vmatprep.subr.bf16.mxu0 0
  %2112 = vmatpush1.bf16.msra.mxu0 %v1607
  %2113 = vmatprep.subr.bf16.mxu0 0
  %2114 = vmatpush1.bf16.msra.mxu0 %v1608
  %2115 = vmatprep.subr.bf16.mxu0 0
  %2116 = vmatpush1.bf16.msra.mxu0 %v1609
  %2117 = vmatprep.subr.bf16.mxu0 0
  %2118 = vmatpush1.bf16.msra.mxu0 %v1610
  %2119 = vmatprep.subr.bf16.mxu0 0
  %2120 = vmatpush1.bf16.msra.mxu0 %v1611
  %2121 = vmatprep.subr.bf16.mxu0 0
  %2122 = vmatpush1.bf16.msra.mxu0 %v1612
  %2123 = vmatprep.subr.bf16.mxu0 0
  %2124 = vmatpush1.bf16.msra.mxu0 %v1613
  %2125 = vmatprep.subr.bf16.mxu0 0
  %2126 = vmatpush1.bf16.msra.mxu0 %v1614
  %2127 = vmatprep.subr.bf16.mxu0 0
  %2128 = vmatpush1.bf16.msra.mxu0 %v1615
  %2129 = vmatprep.subr.bf16.mxu0 0
  %2130 = vmatpush1.bf16.msra.mxu0 %v1616
  %2131 = vmatprep.subr.bf16.mxu0 0
  %2132 = vmatpush1.bf16.msra.mxu0 %v1617
  %2133 = vmatprep.mubr.bf16.mxu0 %v793
  %2134 = vmatmul.mubr.bf16.gmra.mrb[0].mxu0 %v792
  %v2135 = vpop.f32.mrb[0].mxu0
  %v2136 = vadd.f32 %v2039, %v2135
  %v2137 = vpop.f32.mrb[0].mxu0
  %v2138 = vpop.f32.mrb[0].mxu0
  %v2139 = vadd.f32 %v2042, %v2138
  %v2140 = vpop.f32.mrb[0].mxu0
  %2141 = vmatprep.mubr.bf16.mxu0 %v809
  %2142 = vmatmul.mubr.bf16.gmra.mrb[0].mxu0 %v808
  %v2143 = vpop.f32.mrb[0].mxu0
  %v2144 = vadd.f32 %v2047, %v2143
  %v2145 = vpop.f32.mrb[0].mxu0
  %v2146 = vpop.f32.mrb[0].mxu0
  %v2147 = vadd.f32 %v2050, %v2146
  %v2148 = vpop.f32.mrb[0].mxu0
  %2149 = vmatprep.mubr.bf16.mxu0 %v825
  %2150 = vmatmul.mubr.bf16.gmra.mrb[0].mxu0 %v824
  %v2151 = vpop.f32.mrb[0].mxu0
  %v2152 = vadd.f32 %v2055, %v2151
  %v2153 = vpop.f32.mrb[0].mxu0
  %v2154 = vpop.f32.mrb[0].mxu0
  %v2155 = vadd.f32 %v2058, %v2154
  %v2156 = vpop.f32.mrb[0].mxu0
  %2157 = vmatprep.mubr.bf16.mxu0 %v841
  %2158 = vmatmul.mubr.bf16.gmra.mrb[0].mxu0 %v840
  %v2159 = vpop.f32.mrb[0].mxu0
  %v2160 = vadd.f32 %v2063, %v2159
  %v2161 = vpop.f32.mrb[0].mxu0
  %v2162 = vpop.f32.mrb[0].mxu0
  %v2163 = vadd.f32 %v2066, %v2162
  %v2164 = vpop.f32.mrb[0].mxu0
  %2165 = vmatprep.mubr.bf16.mxu0 %v857
  %2166 = vmatmul.mubr.bf16.gmra.mrb[0].mxu0 %v856
  %v2167 = vpop.f32.mrb[0].mxu0
  %v2168 = vadd.f32 %v2071, %v2167
  %v2169 = vpop.f32.mrb[0].mxu0
  %v2170 = vpop.f32.mrb[0].mxu0
  %v2171 = vadd.f32 %v2074, %v2170
  %v2172 = vpop.f32.mrb[0].mxu0
  %2173 = vmatprep.mubr.bf16.mxu0 %v873
  %2174 = vmatmul.mubr.bf16.gmra.mrb[0].mxu0 %v872
  %v2175 = vpop.f32.mrb[0].mxu0
  %v2176 = vadd.f32 %v2079, %v2175
  %v2177 = vpop.f32.mrb[0].mxu0
  %v2178 = vpop.f32.mrb[0].mxu0
  %v2179 = vadd.f32 %v2082, %v2178
  %v2180 = vpop.f32.mrb[0].mxu0
  %2181 = vmatprep.mubr.bf16.mxu0 %v889
  %2182 = vmatmul.mubr.bf16.gmra.mrb[0].mxu0 %v888
  %v2183 = vpop.f32.mrb[0].mxu0
  %v2184 = vadd.f32 %v2087, %v2183
  %v2185 = vpop.f32.mrb[0].mxu0
  %v2186 = vpop.f32.mrb[0].mxu0
  %v2187 = vadd.f32 %v2090, %v2186
  %v2188 = vpop.f32.mrb[0].mxu0
  %2189 = vmatprep.mubr.bf16.mxu0 %v905
  %2190 = vmatmul.mubr.bf16.gmra.mrb[0].mxu0 %v904
  %v2191 = vpop.f32.mrb[0].mxu0
  %v2192 = vadd.f32 %v2095, %v2191
  %v2193 = vpop.f32.mrb[0].mxu0
  %v2194 = vpop.f32.mrb[0].mxu0
  %v2195 = vadd.f32 %v2098, %v2194
  %v2196 = vpop.f32.mrb[0].mxu0
  %2197 = vdwg.mxu0
  %2198 = vmatprep.subr.bf16.mxu0 0
  %2199 = vmatpush1.bf16.msra.mxu0 %v1618
  %2200 = vmatprep.subr.bf16.mxu0 0
  %2201 = vmatpush1.bf16.msra.mxu0 %v1619
  %2202 = vmatprep.subr.bf16.mxu0 0
  %2203 = vmatpush1.bf16.msra.mxu0 %v1620
  %2204 = vmatprep.subr.bf16.mxu0 0
  %2205 = vmatpush1.bf16.msra.mxu0 %v1621
  %2206 = vmatprep.subr.bf16.mxu0 0
  %2207 = vmatpush1.bf16.msra.mxu0 %v1622
  %2208 = vmatprep.subr.bf16.mxu0 0
  %2209 = vmatpush1.bf16.msra.mxu0 %v1623
  %2210 = vmatprep.subr.bf16.mxu0 0
  %2211 = vmatpush1.bf16.msra.mxu0 %v1624
  %2212 = vmatprep.subr.bf16.mxu0 0
  %2213 = vmatpush1.bf16.msra.mxu0 %v1625
  %2214 = vmatprep.subr.bf16.mxu0 0
  %2215 = vmatpush1.bf16.msra.mxu0 %v1626
  %2216 = vmatprep.subr.bf16.mxu0 0
  %2217 = vmatpush1.bf16.msra.mxu0 %v1627
  %2218 = vmatprep.subr.bf16.mxu0 0
  %2219 = vmatpush1.bf16.msra.mxu0 %v1628
  %2220 = vmatprep.subr.bf16.mxu0 0
  %2221 = vmatpush1.bf16.msra.mxu0 %v1629
  %2222 = vmatprep.subr.bf16.mxu0 0
  %2223 = vmatpush1.bf16.msra.mxu0 %v1630
  %2224 = vmatprep.subr.bf16.mxu0 0
  %2225 = vmatpush1.bf16.msra.mxu0 %v1631
  %2226 = vmatprep.subr.bf16.mxu0 0
  %2227 = vmatpush1.bf16.msra.mxu0 %v1632
  %2228 = vmatprep.subr.bf16.mxu0 0
  %2229 = vmatpush1.bf16.msra.mxu0 %v1633
  %2230 = vmatprep.mubr.bf16.mxu0 %v795
  %2231 = vmatmul.mubr.bf16.gmra.mrb[0].mxu0 %v794
  %v2232 = vpop.f32.mrb[0].mxu0
  %v2233 = vadd.f32 %v2136, %v2232
  %v2234 = vpop.f32.mrb[0].mxu0
  %v2235 = vpop.f32.mrb[0].mxu0
  %v2236 = vadd.f32 %v2139, %v2235
  %v2237 = vpop.f32.mrb[0].mxu0
  %2238 = vmatprep.mubr.bf16.mxu0 %v811
  %2239 = vmatmul.mubr.bf16.gmra.mrb[0].mxu0 %v810
  %v2240 = vpop.f32.mrb[0].mxu0
  %v2241 = vadd.f32 %v2144, %v2240
  %v2242 = vpop.f32.mrb[0].mxu0
  %v2243 = vpop.f32.mrb[0].mxu0
  %v2244 = vadd.f32 %v2147, %v2243
  %v2245 = vpop.f32.mrb[0].mxu0
  %2246 = vmatprep.mubr.bf16.mxu0 %v827
  %2247 = vmatmul.mubr.bf16.gmra.mrb[0].mxu0 %v826
  %v2248 = vpop.f32.mrb[0].mxu0
  %v2249 = vadd.f32 %v2152, %v2248
  %v2250 = vpop.f32.mrb[0].mxu0
  %v2251 = vpop.f32.mrb[0].mxu0
  %v2252 = vadd.f32 %v2155, %v2251
  %v2253 = vpop.f32.mrb[0].mxu0
  %2254 = vmatprep.mubr.bf16.mxu0 %v843
  %2255 = vmatmul.mubr.bf16.gmra.mrb[0].mxu0 %v842
  %v2256 = vpop.f32.mrb[0].mxu0
  %v2257 = vadd.f32 %v2160, %v2256
  %v2258 = vpop.f32.mrb[0].mxu0
  %v2259 = vpop.f32.mrb[0].mxu0
  %v2260 = vadd.f32 %v2163, %v2259
  %v2261 = vpop.f32.mrb[0].mxu0
  %2262 = vmatprep.mubr.bf16.mxu0 %v859
  %2263 = vmatmul.mubr.bf16.gmra.mrb[0].mxu0 %v858
  %v2264 = vpop.f32.mrb[0].mxu0
  %v2265 = vadd.f32 %v2168, %v2264
  %v2266 = vpop.f32.mrb[0].mxu0
  %v2267 = vpop.f32.mrb[0].mxu0
  %v2268 = vadd.f32 %v2171, %v2267
  %v2269 = vpop.f32.mrb[0].mxu0
  %2270 = vmatprep.mubr.bf16.mxu0 %v875
  %2271 = vmatmul.mubr.bf16.gmra.mrb[0].mxu0 %v874
  %v2272 = vpop.f32.mrb[0].mxu0
  %v2273 = vadd.f32 %v2176, %v2272
  %v2274 = vpop.f32.mrb[0].mxu0
  %v2275 = vpop.f32.mrb[0].mxu0
  %v2276 = vadd.f32 %v2179, %v2275
  %v2277 = vpop.f32.mrb[0].mxu0
  %2278 = vmatprep.mubr.bf16.mxu0 %v891
  %2279 = vmatmul.mubr.bf16.gmra.mrb[0].mxu0 %v890
  %v2280 = vpop.f32.mrb[0].mxu0
  %v2281 = vadd.f32 %v2184, %v2280
  %v2282 = vpop.f32.mrb[0].mxu0
  %v2283 = vpop.f32.mrb[0].mxu0
  %v2284 = vadd.f32 %v2187, %v2283
  %v2285 = vpop.f32.mrb[0].mxu0
  %2286 = vmatprep.mubr.bf16.mxu0 %v907
  %2287 = vmatmul.mubr.bf16.gmra.mrb[0].mxu0 %v906
  %v2288 = vpop.f32.mrb[0].mxu0
  %v2289 = vadd.f32 %v2192, %v2288
  %v2290 = vpop.f32.mrb[0].mxu0
  %v2291 = vpop.f32.mrb[0].mxu0
  %v2292 = vadd.f32 %v2195, %v2291
  %v2293 = vpop.f32.mrb[0].mxu0
  %2294 = vdwg.mxu0
  %2295 = vmatprep.subr.bf16.mxu0 0
  %2296 = vmatpush1.bf16.msra.mxu0 %v1634
  %2297 = vmatprep.subr.bf16.mxu0 0
  %2298 = vmatpush1.bf16.msra.mxu0 %v1635
  %2299 = vmatprep.subr.bf16.mxu0 0
  %2300 = vmatpush1.bf16.msra.mxu0 %v1636
  %2301 = vmatprep.subr.bf16.mxu0 0
  %2302 = vmatpush1.bf16.msra.mxu0 %v1637
  %2303 = vmatprep.subr.bf16.mxu0 0
  %2304 = vmatpush1.bf16.msra.mxu0 %v1638
  %2305 = vmatprep.subr.bf16.mxu0 0
  %2306 = vmatpush1.bf16.msra.mxu0 %v1639
  %2307 = vmatprep.subr.bf16.mxu0 0
  %2308 = vmatpush1.bf16.msra.mxu0 %v1640
  %2309 = vmatprep.subr.bf16.mxu0 0
  %2310 = vmatpush1.bf16.msra.mxu0 %v1641
  %2311 = vmatprep.subr.bf16.mxu0 0
  %2312 = vmatpush1.bf16.msra.mxu0 %v1642
  %2313 = vmatprep.subr.bf16.mxu0 0
  %2314 = vmatpush1.bf16.msra.mxu0 %v1643
  %2315 = vmatprep.subr.bf16.mxu0 0
  %2316 = vmatpush1.bf16.msra.mxu0 %v1644
  %2317 = vmatprep.subr.bf16.mxu0 0
  %2318 = vmatpush1.bf16.msra.mxu0 %v1645
  %2319 = vmatprep.subr.bf16.mxu0 0
  %2320 = vmatpush1.bf16.msra.mxu0 %v1646
  %2321 = vmatprep.subr.bf16.mxu0 0
  %2322 = vmatpush1.bf16.msra.mxu0 %v1647
  %2323 = vmatprep.subr.bf16.mxu0 0
  %2324 = vmatpush1.bf16.msra.mxu0 %v1648
  %2325 = vmatprep.subr.bf16.mxu0 0
  %2326 = vmatpush1.bf16.msra.mxu0 %v1649
  %2327 = vmatprep.mubr.bf16.mxu0 %v797
  %2328 = vmatmul.mubr.bf16.gmra.mrb[0].mxu0 %v796
  %v2329 = vpop.f32.mrb[0].mxu0
  %v2330 = vadd.f32 %v2233, %v2329
  %v2331 = vpop.f32.mrb[0].mxu0
  %v2332 = vpop.f32.mrb[0].mxu0
  %v2333 = vadd.f32 %v2236, %v2332
  %v2334 = vpop.f32.mrb[0].mxu0
  %2335 = vmatprep.mubr.bf16.mxu0 %v813
  %2336 = vmatmul.mubr.bf16.gmra.mrb[0].mxu0 %v812
  %v2337 = vpop.f32.mrb[0].mxu0
  %v2338 = vadd.f32 %v2241, %v2337
  %v2339 = vpop.f32.mrb[0].mxu0
  %v2340 = vpop.f32.mrb[0].mxu0
  %v2341 = vadd.f32 %v2244, %v2340
  %v2342 = vpop.f32.mrb[0].mxu0
  %2343 = vmatprep.mubr.bf16.mxu0 %v829
  %2344 = vmatmul.mubr.bf16.gmra.mrb[0].mxu0 %v828
  %v2345 = vpop.f32.mrb[0].mxu0
  %v2346 = vadd.f32 %v2249, %v2345
  %v2347 = vpop.f32.mrb[0].mxu0
  %v2348 = vpop.f32.mrb[0].mxu0
  %v2349 = vadd.f32 %v2252, %v2348
  %v2350 = vpop.f32.mrb[0].mxu0
  %2351 = vmatprep.mubr.bf16.mxu0 %v845
  %2352 = vmatmul.mubr.bf16.gmra.mrb[0].mxu0 %v844
  %v2353 = vpop.f32.mrb[0].mxu0
  %v2354 = vadd.f32 %v2257, %v2353
  %v2355 = vpop.f32.mrb[0].mxu0
  %v2356 = vpop.f32.mrb[0].mxu0
  %v2357 = vadd.f32 %v2260, %v2356
  %v2358 = vpop.f32.mrb[0].mxu0
  %2359 = vmatprep.mubr.bf16.mxu0 %v861
  %2360 = vmatmul.mubr.bf16.gmra.mrb[0].mxu0 %v860
  %v2361 = vpop.f32.mrb[0].mxu0
  %v2362 = vadd.f32 %v2265, %v2361
  %v2363 = vpop.f32.mrb[0].mxu0
  %v2364 = vpop.f32.mrb[0].mxu0
  %v2365 = vadd.f32 %v2268, %v2364
  %v2366 = vpop.f32.mrb[0].mxu0
  %2367 = vmatprep.mubr.bf16.mxu0 %v877
  %2368 = vmatmul.mubr.bf16.gmra.mrb[0].mxu0 %v876
  %v2369 = vpop.f32.mrb[0].mxu0
  %v2370 = vadd.f32 %v2273, %v2369
  %v2371 = vpop.f32.mrb[0].mxu0
  %v2372 = vpop.f32.mrb[0].mxu0
  %v2373 = vadd.f32 %v2276, %v2372
  %v2374 = vpop.f32.mrb[0].mxu0
  %2375 = vmatprep.mubr.bf16.mxu0 %v893
  %2376 = vmatmul.mubr.bf16.gmra.mrb[0].mxu0 %v892
  %v2377 = vpop.f32.mrb[0].mxu0
  %v2378 = vadd.f32 %v2281, %v2377
  %v2379 = vpop.f32.mrb[0].mxu0
  %v2380 = vpop.f32.mrb[0].mxu0
  %v2381 = vadd.f32 %v2284, %v2380
  %v2382 = vpop.f32.mrb[0].mxu0
  %2383 = vmatprep.mubr.bf16.mxu0 %v909
  %2384 = vmatmul.mubr.bf16.gmra.mrb[0].mxu0 %v908
  %v2385 = vpop.f32.mrb[0].mxu0
  %v2386 = vadd.f32 %v2289, %v2385
  %v2387 = vpop.f32.mrb[0].mxu0
  %v2388 = vpop.f32.mrb[0].mxu0
  %v2389 = vadd.f32 %v2292, %v2388
  %v2390 = vpop.f32.mrb[0].mxu0
  %2391 = vdwg.mxu0
  %2392 = vmatprep.subr.bf16.mxu0 0
  %2393 = vmatpush1.bf16.msra.mxu0 %v1650
  %2394 = vmatprep.subr.bf16.mxu0 0
  %2395 = vmatpush1.bf16.msra.mxu0 %v1651
  %2396 = vmatprep.subr.bf16.mxu0 0
  %2397 = vmatpush1.bf16.msra.mxu0 %v1652
  %2398 = vmatprep.subr.bf16.mxu0 0
  %2399 = vmatpush1.bf16.msra.mxu0 %v1653
  %2400 = vmatprep.subr.bf16.mxu0 0
  %2401 = vmatpush1.bf16.msra.mxu0 %v1654
  %2402 = vmatprep.subr.bf16.mxu0 0
  %2403 = vmatpush1.bf16.msra.mxu0 %v1655
  %2404 = vmatprep.subr.bf16.mxu0 0
  %2405 = vmatpush1.bf16.msra.mxu0 %v1656
  %2406 = vmatprep.subr.bf16.mxu0 0
  %2407 = vmatpush1.bf16.msra.mxu0 %v1657
  %2408 = vmatprep.subr.bf16.mxu0 0
  %2409 = vmatpush1.bf16.msra.mxu0 %v1658
  %2410 = vmatprep.subr.bf16.mxu0 0
  %2411 = vmatpush1.bf16.msra.mxu0 %v1659
  %2412 = vmatprep.subr.bf16.mxu0 0
  %2413 = vmatpush1.bf16.msra.mxu0 %v1660
  %2414 = vmatprep.subr.bf16.mxu0 0
  %2415 = vmatpush1.bf16.msra.mxu0 %v1661
  %2416 = vmatprep.subr.bf16.mxu0 0
  %2417 = vmatpush1.bf16.msra.mxu0 %v1662
  %2418 = vmatprep.subr.bf16.mxu0 0
  %2419 = vmatpush1.bf16.msra.mxu0 %v1663
  %2420 = vmatprep.subr.bf16.mxu0 0
  %2421 = vmatpush1.bf16.msra.mxu0 %v1664
  %2422 = vmatprep.subr.bf16.mxu0 0
  %2423 = vmatpush1.bf16.msra.mxu0 %v1665
  %2424 = vmatprep.mubr.bf16.mxu0 %v799
  %2425 = vmatmul.mubr.bf16.gmra.mrb[0].mxu0 %v798
  %v2426 = vpop.f32.mrb[0].mxu0
  %v2427 = vadd.f32 %v2330, %v2426
  %v2428 = vpop.f32.mrb[0].mxu0
  %v2429 = vpop.f32.mrb[0].mxu0
  %v2430 = vadd.f32 %v2333, %v2429
  %v2431 = vpop.f32.mrb[0].mxu0
  %2432 = vmatprep.mubr.bf16.mxu0 %v815
  %2433 = vmatmul.mubr.bf16.gmra.mrb[0].mxu0 %v814
  %v2434 = vpop.f32.mrb[0].mxu0
  %v2435 = vadd.f32 %v2338, %v2434
  %v2436 = vpop.f32.mrb[0].mxu0
  %v2437 = vpop.f32.mrb[0].mxu0
  %v2438 = vadd.f32 %v2341, %v2437
  %v2439 = vpop.f32.mrb[0].mxu0
  %2440 = vmatprep.mubr.bf16.mxu0 %v831
  %2441 = vmatmul.mubr.bf16.gmra.mrb[0].mxu0 %v830
  %v2442 = vpop.f32.mrb[0].mxu0
  %v2443 = vadd.f32 %v2346, %v2442
  %v2444 = vpop.f32.mrb[0].mxu0
  %v2445 = vpop.f32.mrb[0].mxu0
  %v2446 = vadd.f32 %v2349, %v2445
  %v2447 = vpop.f32.mrb[0].mxu0
  %2448 = vmatprep.mubr.bf16.mxu0 %v847
  %2449 = vmatmul.mubr.bf16.gmra.mrb[0].mxu0 %v846
  %v2450 = vpop.f32.mrb[0].mxu0
  %v2451 = vadd.f32 %v2354, %v2450
  %v2452 = vpop.f32.mrb[0].mxu0
  %v2453 = vpop.f32.mrb[0].mxu0
  %v2454 = vadd.f32 %v2357, %v2453
  %v2455 = vpop.f32.mrb[0].mxu0
  %2456 = vmatprep.mubr.bf16.mxu0 %v863
  %2457 = vmatmul.mubr.bf16.gmra.mrb[0].mxu0 %v862
  %v2458 = vpop.f32.mrb[0].mxu0
  %v2459 = vadd.f32 %v2362, %v2458
  %v2460 = vpop.f32.mrb[0].mxu0
  %v2461 = vpop.f32.mrb[0].mxu0
  %v2462 = vadd.f32 %v2365, %v2461
  %v2463 = vpop.f32.mrb[0].mxu0
  %2464 = vmatprep.mubr.bf16.mxu0 %v879
  %2465 = vmatmul.mubr.bf16.gmra.mrb[0].mxu0 %v878
  %v2466 = vpop.f32.mrb[0].mxu0
  %v2467 = vadd.f32 %v2370, %v2466
  %v2468 = vpop.f32.mrb[0].mxu0
  %v2469 = vpop.f32.mrb[0].mxu0
  %v2470 = vadd.f32 %v2373, %v2469
  %v2471 = vpop.f32.mrb[0].mxu0
  %2472 = vmatprep.mubr.bf16.mxu0 %v895
  %2473 = vmatmul.mubr.bf16.gmra.mrb[0].mxu0 %v894
  %v2474 = vpop.f32.mrb[0].mxu0
  %v2475 = vadd.f32 %v2378, %v2474
  %v2476 = vpop.f32.mrb[0].mxu0
  %v2477 = vpop.f32.mrb[0].mxu0
  %v2478 = vadd.f32 %v2381, %v2477
  %v2479 = vpop.f32.mrb[0].mxu0
  %2480 = vmatprep.mubr.bf16.mxu0 %v911
  %2481 = vmatmul.mubr.bf16.gmra.mrb[0].mxu0 %v910
  %v2482 = vpop.f32.mrb[0].mxu0
  %v2483 = vadd.f32 %v2386, %v2482
  %v2484 = vpop.f32.mrb[0].mxu0
  %v2485 = vpop.f32.mrb[0].mxu0
  %v2486 = vadd.f32 %v2389, %v2485
  %v2487 = vpop.f32.mrb[0].mxu0
  %2488 = vdwg.mxu0
  %2489 = vmatprep.subr.bf16.mxu0 0
  %2490 = vmatpush1.bf16.msra.mxu0 %v1666
  %2491 = vmatprep.subr.bf16.mxu0 0
  %2492 = vmatpush1.bf16.msra.mxu0 %v1667
  %2493 = vmatprep.subr.bf16.mxu0 0
  %2494 = vmatpush1.bf16.msra.mxu0 %v1668
  %2495 = vmatprep.subr.bf16.mxu0 0
  %2496 = vmatpush1.bf16.msra.mxu0 %v1669
  %2497 = vmatprep.subr.bf16.mxu0 0
  %2498 = vmatpush1.bf16.msra.mxu0 %v1670
  %2499 = vmatprep.subr.bf16.mxu0 0
  %2500 = vmatpush1.bf16.msra.mxu0 %v1671
  %2501 = vmatprep.subr.bf16.mxu0 0
  %2502 = vmatpush1.bf16.msra.mxu0 %v1672
  %2503 = vmatprep.subr.bf16.mxu0 0
  %2504 = vmatpush1.bf16.msra.mxu0 %v1673
  %2505 = vmatprep.subr.bf16.mxu0 0
  %2506 = vmatpush1.bf16.msra.mxu0 %v1674
  %2507 = vmatprep.subr.bf16.mxu0 0
  %2508 = vmatpush1.bf16.msra.mxu0 %v1675
  %2509 = vmatprep.subr.bf16.mxu0 0
  %2510 = vmatpush1.bf16.msra.mxu0 %v1676
  %2511 = vmatprep.subr.bf16.mxu0 0
  %2512 = vmatpush1.bf16.msra.mxu0 %v1677
  %2513 = vmatprep.subr.bf16.mxu0 0
  %2514 = vmatpush1.bf16.msra.mxu0 %v1678
  %2515 = vmatprep.subr.bf16.mxu0 0
  %2516 = vmatpush1.bf16.msra.mxu0 %v1679
  %2517 = vmatprep.subr.bf16.mxu0 0
  %2518 = vmatpush1.bf16.msra.mxu0 %v1680
  %2519 = vmatprep.subr.bf16.mxu0 0
  %2520 = vmatpush1.bf16.msra.mxu0 %v1681
  %2521 = vmatprep.mubr.bf16.mxu0 %v801
  %2522 = vmatmul.mubr.bf16.gmra.mrb[0].mxu0 %v800
  %v2523 = vpop.f32.mrb[0].mxu0
  %v2524 = vadd.f32 %v2427, %v2523
  %v2525 = vpop.f32.mrb[0].mxu0
  %v2526 = vpop.f32.mrb[0].mxu0
  %v2527 = vadd.f32 %v2430, %v2526
  %v2528 = vpop.f32.mrb[0].mxu0
  %2529 = vmatprep.mubr.bf16.mxu0 %v817
  %2530 = vmatmul.mubr.bf16.gmra.mrb[0].mxu0 %v816
  %v2531 = vpop.f32.mrb[0].mxu0
  %v2532 = vadd.f32 %v2435, %v2531
  %v2533 = vpop.f32.mrb[0].mxu0
  %v2534 = vpop.f32.mrb[0].mxu0
  %v2535 = vadd.f32 %v2438, %v2534
  %v2536 = vpop.f32.mrb[0].mxu0
  %2537 = vmatprep.mubr.bf16.mxu0 %v833
  %2538 = vmatmul.mubr.bf16.gmra.mrb[0].mxu0 %v832
  %v2539 = vpop.f32.mrb[0].mxu0
  %v2540 = vadd.f32 %v2443, %v2539
  %v2541 = vpop.f32.mrb[0].mxu0
  %v2542 = vpop.f32.mrb[0].mxu0
  %v2543 = vadd.f32 %v2446, %v2542
  %v2544 = vpop.f32.mrb[0].mxu0
  %2545 = vmatprep.mubr.bf16.mxu0 %v849
  %2546 = vmatmul.mubr.bf16.gmra.mrb[0].mxu0 %v848
  %v2547 = vpop.f32.mrb[0].mxu0
  %v2548 = vadd.f32 %v2451, %v2547
  %v2549 = vpop.f32.mrb[0].mxu0
  %v2550 = vpop.f32.mrb[0].mxu0
  %v2551 = vadd.f32 %v2454, %v2550
  %v2552 = vpop.f32.mrb[0].mxu0
  %2553 = vmatprep.mubr.bf16.mxu0 %v865
  %2554 = vmatmul.mubr.bf16.gmra.mrb[0].mxu0 %v864
  %v2555 = vpop.f32.mrb[0].mxu0
  %v2556 = vadd.f32 %v2459, %v2555
  %v2557 = vpop.f32.mrb[0].mxu0
  %v2558 = vpop.f32.mrb[0].mxu0
  %v2559 = vadd.f32 %v2462, %v2558
  %v2560 = vpop.f32.mrb[0].mxu0
  %2561 = vmatprep.mubr.bf16.mxu0 %v881
  %2562 = vmatmul.mubr.bf16.gmra.mrb[0].mxu0 %v880
  %v2563 = vpop.f32.mrb[0].mxu0
  %v2564 = vadd.f32 %v2467, %v2563
  %v2565 = vpop.f32.mrb[0].mxu0
  %v2566 = vpop.f32.mrb[0].mxu0
  %v2567 = vadd.f32 %v2470, %v2566
  %v2568 = vpop.f32.mrb[0].mxu0
  %2569 = vmatprep.mubr.bf16.mxu0 %v897
  %2570 = vmatmul.mubr.bf16.gmra.mrb[0].mxu0 %v896
  %v2571 = vpop.f32.mrb[0].mxu0
  %v2572 = vadd.f32 %v2475, %v2571
  %v2573 = vpop.f32.mrb[0].mxu0
  %v2574 = vpop.f32.mrb[0].mxu0
  %v2575 = vadd.f32 %v2478, %v2574
  %v2576 = vpop.f32.mrb[0].mxu0
  %2577 = vmatprep.mubr.bf16.mxu0 %v913
  %2578 = vmatmul.mubr.bf16.gmra.mrb[0].mxu0 %v912
  %v2579 = vpop.f32.mrb[0].mxu0
  %v2580 = vadd.f32 %v2483, %v2579
  %v2581 = vpop.f32.mrb[0].mxu0
  %v2582 = vpop.f32.mrb[0].mxu0
  %v2583 = vadd.f32 %v2486, %v2582
  %v2584 = vpop.f32.mrb[0].mxu0
  %2585 = vdwg.mxu0
  %v2586 = vadd.f32 %v2524, %v2527
  %v2587 = vadd.f32 %v2586, %v2532
  %v2588 = vadd.f32 %v2587, %v2535
  %v2589 = vadd.f32 %v2588, %v2540
  %v2590 = vadd.f32 %v2589, %v2543
  %v2591 = vadd.f32 %v2590, %v2548
  %v2592 = vadd.f32 %v2591, %v2551
  %v2593 = vadd.f32 %v2592, %v2556
  %v2594 = vadd.f32 %v2593, %v2559
  %v2595 = vadd.f32 %v2594, %v2564
  %v2596 = vadd.f32 %v2595, %v2567
  %v2597 = vadd.f32 %v2596, %v2572
  %v2598 = vadd.f32 %v2597, %v2575
  %v2599 = vadd.f32 %v2598, %v2580
  %v2600 = vadd.f32 %v2599, %v2583
  %v2601 = vrot.slane %v2600, 4
  %v2602 = vadd.f32 %v2600, %v2601
  %v2603 = vrot.slane %v2602, 2
  %v2604 = vadd.f32 %v2602, %v2603
  %v2605 = vrot.slane %v2604, 1
  %v2606 = vadd.f32 %v2604, %v2605
  %v2607 = vmul.f32 %v2524, %v2524
  %v2608 = vmul.f32 %v2527, %v2527
  %v2609 = vmul.f32 %v2532, %v2532
  %v2610 = vmul.f32 %v2535, %v2535
  %v2611 = vmul.f32 %v2540, %v2540
  %v2612 = vmul.f32 %v2543, %v2543
  %v2613 = vmul.f32 %v2548, %v2548
  %v2614 = vmul.f32 %v2551, %v2551
  %v2615 = vmul.f32 %v2556, %v2556
  %v2616 = vmul.f32 %v2559, %v2559
  %v2617 = vmul.f32 %v2564, %v2564
  %v2618 = vmul.f32 %v2567, %v2567
  %v2619 = vmul.f32 %v2572, %v2572
  %v2620 = vmul.f32 %v2575, %v2575
  %v2621 = vmul.f32 %v2580, %v2580
  %v2622 = vmul.f32 %v2583, %v2583
  %v2623 = vadd.f32 %v2607, %v2608
  %v2624 = vadd.f32 %v2623, %v2609
  %v2625 = vadd.f32 %v2624, %v2610
  %v2626 = vadd.f32 %v2625, %v2611
  %v2627 = vadd.f32 %v2626, %v2612
  %v2628 = vadd.f32 %v2627, %v2613
  %v2629 = vadd.f32 %v2628, %v2614
  %v2630 = vadd.f32 %v2629, %v2615
  %v2631 = vadd.f32 %v2630, %v2616
  %v2632 = vadd.f32 %v2631, %v2617
  %v2633 = vadd.f32 %v2632, %v2618
  %v2634 = vadd.f32 %v2633, %v2619
  %v2635 = vadd.f32 %v2634, %v2620
  %v2636 = vadd.f32 %v2635, %v2621
  %v2637 = vadd.f32 %v2636, %v2622
  %v2638 = vrot.slane %v2637, 4
  %v2639 = vadd.f32 %v2637, %v2638
  %v2640 = vrot.slane %v2639, 2
  %v2641 = vadd.f32 %v2639, %v2640
  %v2642 = vrot.slane %v2641, 1
  %v2643 = vadd.f32 %v2641, %v2642
  %v2644 = vrcp.pop 128.0
  %v2645 = vmul.f32 %v2606, %v2644
  %v2646 = vmul.f32 %v2643, %v2644
  %v2647 = vmul.f32 %v2645, %v2645
  %v2648 = vsub.f32 %v2646, %v2647
  %v2649 = vmax.f32 %v2648, 0.0
  %v2650 = vsub.f32 %v2524, %v2645
  %v2651 = vsub.f32 %v2527, %v2645
  %v2652 = vsub.f32 %v2532, %v2645
  %v2653 = vsub.f32 %v2535, %v2645
  %v2654 = vsub.f32 %v2540, %v2645
  %v2655 = vsub.f32 %v2543, %v2645
  %v2656 = vsub.f32 %v2548, %v2645
  %v2657 = vsub.f32 %v2551, %v2645
  %v2658 = vsub.f32 %v2556, %v2645
  %v2659 = vsub.f32 %v2559, %v2645
  %v2660 = vsub.f32 %v2564, %v2645
  %v2661 = vsub.f32 %v2567, %v2645
  %v2662 = vsub.f32 %v2572, %v2645
  %v2663 = vsub.f32 %v2575, %v2645
  %v2664 = vsub.f32 %v2580, %v2645
  %v2665 = vsub.f32 %v2583, %v2645
  %v2666 = vadd.f32 %v2649, 1e-05
  %v2667 = vrsqrt.pop %v2666
  %v2668 = vmul.f32 %v2650, %v2667
  %v2669 = vmul.f32 %v2651, %v2667
  %v2670 = vmul.f32 %v2652, %v2667
  %v2671 = vmul.f32 %v2653, %v2667
  %v2672 = vmul.f32 %v2654, %v2667
  %v2673 = vmul.f32 %v2655, %v2667
  %v2674 = vmul.f32 %v2656, %v2667
  %v2675 = vmul.f32 %v2657, %v2667
  %v2676 = vmul.f32 %v2658, %v2667
  %v2677 = vmul.f32 %v2659, %v2667
  %v2678 = vmul.f32 %v2660, %v2667
  %v2679 = vmul.f32 %v2661, %v2667
  %v2680 = vmul.f32 %v2662, %v2667
  %v2681 = vmul.f32 %v2663, %v2667
  %v2682 = vmul.f32 %v2664, %v2667
  %v2683 = vmul.f32 %v2665, %v2667
  %v2684 = vld [vmem:[%s2] sm:$0x1]
  %v2686 = vlaneseq
  %v2687 = vshrl.u32 %v2686, 7
  %v2688 = vsub.s32 0, %v2687
  %v2689 = vrot.slane %v2684, %v2688
  %v2691 = vmul.f32 %v2668, %v2689
  %v2692 = vmul.f32 %v2669, %v2689
  %v2693 = vmul.f32 %v2670, %v2689
  %v2694 = vmul.f32 %v2671, %v2689
  %v2695 = vmul.f32 %v2672, %v2689
  %v2696 = vmul.f32 %v2673, %v2689
  %v2697 = vmul.f32 %v2674, %v2689
  %v2698 = vmul.f32 %v2675, %v2689
  %v2699 = vmul.f32 %v2676, %v2689
  %v2700 = vmul.f32 %v2677, %v2689
  %v2701 = vmul.f32 %v2678, %v2689
  %v2702 = vmul.f32 %v2679, %v2689
  %v2703 = vmul.f32 %v2680, %v2689
  %v2704 = vmul.f32 %v2681, %v2689
  %v2705 = vmul.f32 %v2682, %v2689
  %v2706 = vmul.f32 %v2683, %v2689
  %v2707 = vld [vmem:[%s3] sm:$0x1]
  %v2709 = vlaneseq
  %v2710 = vshrl.u32 %v2709, 7
  %v2711 = vsub.s32 0, %v2710
  %v2712 = vrot.slane %v2707, %v2711
  %v2714 = vadd.f32 %v2691, %v2712
  %v2715 = vadd.f32 %v2692, %v2712
  %v2716 = vadd.f32 %v2693, %v2712
  %v2717 = vadd.f32 %v2694, %v2712
  %v2718 = vadd.f32 %v2695, %v2712
  %v2719 = vadd.f32 %v2696, %v2712
  %v2720 = vadd.f32 %v2697, %v2712
  %v2721 = vadd.f32 %v2698, %v2712
  %v2722 = vadd.f32 %v2699, %v2712
  %v2723 = vadd.f32 %v2700, %v2712
  %v2724 = vadd.f32 %v2701, %v2712
  %v2725 = vadd.f32 %v2702, %v2712
  %v2726 = vadd.f32 %v2703, %v2712
  %v2727 = vadd.f32 %v2704, %v2712
  %v2728 = vadd.f32 %v2705, %v2712
  %v2729 = vadd.f32 %v2706, %v2712
  %vm2730 = vcmp.gt.f32.partialorder %v2714, 0.0
  %vm2731 = vcmp.gt.f32.partialorder %v2715, 0.0
  %vm2732 = vcmp.gt.f32.partialorder %v2716, 0.0
  %vm2733 = vcmp.gt.f32.partialorder %v2717, 0.0
  %vm2734 = vcmp.gt.f32.partialorder %v2718, 0.0
  %vm2735 = vcmp.gt.f32.partialorder %v2719, 0.0
  %vm2736 = vcmp.gt.f32.partialorder %v2720, 0.0
  %vm2737 = vcmp.gt.f32.partialorder %v2721, 0.0
  %vm2738 = vcmp.gt.f32.partialorder %v2722, 0.0
  %vm2739 = vcmp.gt.f32.partialorder %v2723, 0.0
  %vm2740 = vcmp.gt.f32.partialorder %v2724, 0.0
  %vm2741 = vcmp.gt.f32.partialorder %v2725, 0.0
  %vm2742 = vcmp.gt.f32.partialorder %v2726, 0.0
  %vm2743 = vcmp.gt.f32.partialorder %v2727, 0.0
  %vm2744 = vcmp.gt.f32.partialorder %v2728, 0.0
  %vm2745 = vcmp.gt.f32.partialorder %v2729, 0.0
  %v2746 = vmul.f32 %v2714, 0.2
  %v2747 = vmul.f32 %v2715, 0.2
  %v2748 = vmul.f32 %v2716, 0.2
  %v2749 = vmul.f32 %v2717, 0.2
  %v2750 = vmul.f32 %v2718, 0.2
  %v2751 = vmul.f32 %v2719, 0.2
  %v2752 = vmul.f32 %v2720, 0.2
  %v2753 = vmul.f32 %v2721, 0.2
  %v2754 = vmul.f32 %v2722, 0.2
  %v2755 = vmul.f32 %v2723, 0.2
  %v2756 = vmul.f32 %v2724, 0.2
  %v2757 = vmul.f32 %v2725, 0.2
  %v2758 = vmul.f32 %v2726, 0.2
  %v2759 = vmul.f32 %v2727, 0.2
  %v2760 = vmul.f32 %v2728, 0.2
  %v2761 = vmul.f32 %v2729, 0.2
  %v2762 = vsel %vm2730, %v2714, %v2746
  %v2763 = vsel %vm2731, %v2715, %v2747
  %v2764 = vsel %vm2732, %v2716, %v2748
  %v2765 = vsel %vm2733, %v2717, %v2749
  %v2766 = vsel %vm2734, %v2718, %v2750
  %v2767 = vsel %vm2735, %v2719, %v2751
  %v2768 = vsel %vm2736, %v2720, %v2752
  %v2769 = vsel %vm2737, %v2721, %v2753
  %v2770 = vsel %vm2738, %v2722, %v2754
  %v2771 = vsel %vm2739, %v2723, %v2755
  %v2772 = vsel %vm2740, %v2724, %v2756
  %v2773 = vsel %vm2741, %v2725, %v2757
  %v2774 = vsel %vm2742, %v2726, %v2758
  %v2775 = vsel %vm2743, %v2727, %v2759
  %v2776 = vsel %vm2744, %v2728, %v2760
  %v2777 = vsel %vm2745, %v2729, %v2761
  %v2778 = vpack.c.bf16 %v2763, %v2762
  %v2779 = vpack.c.bf16 %v2765, %v2764
  %v2780 = vpack.c.bf16 %v2767, %v2766
  %v2781 = vpack.c.bf16 %v2769, %v2768
  %v2782 = vpack.c.bf16 %v2771, %v2770
  %v2783 = vpack.c.bf16 %v2773, %v2772
  %v2784 = vpack.c.bf16 %v2775, %v2774
  %v2785 = vpack.c.bf16 %v2777, %v2776
  %v2794 = vunpack.c.l.b16 %v2778
  %v2795 = vunpack.c.h.b16 %v2778
  %v2796 = vunpack.c.l.b16 %v2779
  %v2797 = vunpack.c.h.b16 %v2779
  %v2798 = vunpack.c.l.b16 %v2780
  %v2799 = vunpack.c.h.b16 %v2780
  %v2800 = vunpack.c.l.b16 %v2781
  %v2801 = vunpack.c.h.b16 %v2781
  %v2802 = vunpack.c.l.b16 %v2782
  %v2803 = vunpack.c.h.b16 %v2782
  %v2804 = vunpack.c.l.b16 %v2783
  %v2805 = vunpack.c.h.b16 %v2783
  %v2806 = vunpack.c.l.b16 %v2784
  %v2807 = vunpack.c.h.b16 %v2784
  %v2808 = vunpack.c.l.b16 %v2785
  %v2809 = vunpack.c.h.b16 %v2785
  %v2810 = vpack.c.b16 %v2794, %v2794
  %v2811 = vpack.c.b16 %v2795, %v2795
  %v2812 = vpack.c.b16 %v2796, %v2796
  %v2813 = vpack.c.b16 %v2797, %v2797
  %v2814 = vpack.c.b16 %v2798, %v2798
  %v2815 = vpack.c.b16 %v2799, %v2799
  %v2816 = vpack.c.b16 %v2800, %v2800
  %v2817 = vpack.c.b16 %v2801, %v2801
  %v2818 = vpack.c.b16 %v2802, %v2802
  %v2819 = vpack.c.b16 %v2803, %v2803
  %v2820 = vpack.c.b16 %v2804, %v2804
  %v2821 = vpack.c.b16 %v2805, %v2805
  %v2822 = vpack.c.b16 %v2806, %v2806
  %v2823 = vpack.c.b16 %v2807, %v2807
  %v2824 = vpack.c.b16 %v2808, %v2808
  %v2825 = vpack.c.b16 %v2809, %v2809
  %2842 = vst [vmem:[%s4] sm:$0xf] %v2810
  %2843 = vst [vmem:[%s4 + $0x4] sm:$0xf] %v2811
  %2844 = vst [vmem:[%s4 + $0x8] sm:$0xf] %v2812
  %2845 = vst [vmem:[%s4 + $0xc] sm:$0xf] %v2813
  %2846 = vst [vmem:[%s4 + $0x10] sm:$0xf] %v2814
  %2847 = vst [vmem:[%s4 + $0x14] sm:$0xf] %v2815
  %2848 = vst [vmem:[%s4 + $0x18] sm:$0xf] %v2816
  %2849 = vst [vmem:[%s4 + $0x1c] sm:$0xf] %v2817
  %2850 = vst [vmem:[%s4 + $0x20] sm:$0xf] %v2818
  %2851 = vst [vmem:[%s4 + $0x24] sm:$0xf] %v2819
  %2852 = vst [vmem:[%s4 + $0x28] sm:$0xf] %v2820
  %2853 = vst [vmem:[%s4 + $0x2c] sm:$0xf] %v2821
  %2854 = vst [vmem:[%s4 + $0x30] sm:$0xf] %v2822
  %2855 = vst [vmem:[%s4 + $0x34] sm:$0xf] %v2823
  %2856 = vst [vmem:[%s4 + $0x38] sm:$0xf] %v2824
  %2857 = vst [vmem:[%s4 + $0x3c] sm:$0xf] %v2825
  // Predicated region
  $region18: #{discriminator_forward.6} parent=0 // pred_check
    _
  $region19: #{discriminator_forward.6} parent=0 // pred_check_branch
    %2859 = sbr.rel (0) target = $region21
  $region20: #{discriminator_forward.6} parent=0 // pred_region
    _
  $region21: #{discriminator_forward.6} parent=0 // pred_fallthru
    _
  // Predicated region
  $region22: #{discriminator_forward.6} parent=0 // pred_check
    _
  $region23: #{discriminator_forward.6} parent=0 // pred_check_branch
    %2861 = sbr.rel (0) target = $region25
  $region24: #{discriminator_forward.6} parent=0 // pred_region
    _
  $region25: #{discriminator_forward.6} parent=0 // pred_fallthru
    _

// kernel: discriminator_forward.7
$region0: #{discriminator_forward.7}
  #allocation0 [shape = 'u32[]', space=smem, size = 0x4, offset = 0x4, fixed_abs, tag = 'smem constant byte address 0x4 - core index']
  #allocation1 [shape = 'u32[144,128]{1,0:T(1,128)}', space=vmem, size = 0x12000, scoped, tag = 'internal scratch']
  %s0 = inlined_call_operand.vmem [shape: bf16[32,2048], index: 0, kind: input, shape index: {}]
  %s1 = inlined_call_operand.vmem [shape: bf16[2048,128], index: 1, kind: input, shape index: {}]
  %s2 = inlined_call_operand.vmem [shape: f32[1,128], index: 2, kind: input, shape index: {}]
  %s3 = inlined_call_operand.vmem [shape: f32[1,128], index: 3, kind: input, shape index: {}]
  %s4 = inlined_call_operand.vmem [shape: bf16[32,128], index: 4, kind: output, shape index: {}]
  %s5 = sld [smem:[#allocation0]]
  $region26: #{discriminator_forward.7} parent=0
    _
  %s7 = ssub.s32 1, %s5
  %s8 = scalar_select 0, %s7, %s5
  // Predicated region
  $region2: #{discriminator_forward.7} parent=0 // pred_check
    _
  $region3: #{discriminator_forward.7} parent=0 // pred_check_branch
    %10 = sbr.rel (0) target = $region5
  $region4: #{discriminator_forward.7} parent=0 // pred_region
    _
  $region5: #{discriminator_forward.7} parent=0 // pred_fallthru
    _
  // Predicated region
  $region6: #{discriminator_forward.7} parent=0 // pred_check
    _
  $region7: #{discriminator_forward.7} parent=0 // pred_check_branch
    %12 = sbr.rel (0) target = $region9
  $region8: #{discriminator_forward.7} parent=0 // pred_region
    _
  $region9: #{discriminator_forward.7} parent=0 // pred_fallthru
    _
  // Predicated region
  $region10: #{discriminator_forward.7} parent=0 // pred_check
    _
  $region11: #{discriminator_forward.7} parent=0 // pred_check_branch
    %14 = sbr.rel (0) target = $region13
  $region12: #{discriminator_forward.7} parent=0 // pred_region
    _
  $region13: #{discriminator_forward.7} parent=0 // pred_fallthru
    _
  // Predicated region
  $region14: #{discriminator_forward.7} parent=0 // pred_check
    _
  $region15: #{discriminator_forward.7} parent=0 // pred_check_branch
    %16 = sbr.rel (0) target = $region17
  $region16: #{discriminator_forward.7} parent=0 // pred_region
    _
  $region17: #{discriminator_forward.7} parent=0 // pred_fallthru
    _
  %v18 = vld [vmem:[%s0] sm:$0xff]
  %v19 = vld [vmem:[%s0 + $0x8] sm:$0xff]
  %v20 = vld [vmem:[%s0 + $0x10] sm:$0xff]
  %v21 = vld [vmem:[%s0 + $0x18] sm:$0xff]
  %v22 = vld [vmem:[%s0 + $0x20] sm:$0xff]
  %v23 = vld [vmem:[%s0 + $0x28] sm:$0xff]
  %v24 = vld [vmem:[%s0 + $0x30] sm:$0xff]
  %v25 = vld [vmem:[%s0 + $0x38] sm:$0xff]
  %v26 = vld [vmem:[%s0 + $0x40] sm:$0xff]
  %v27 = vld [vmem:[%s0 + $0x48] sm:$0xff]
  %v28 = vld [vmem:[%s0 + $0x50] sm:$0xff]
  %v29 = vld [vmem:[%s0 + $0x58] sm:$0xff]
  %v30 = vld [vmem:[%s0 + $0x60] sm:$0xff]
  %v31 = vld [vmem:[%s0 + $0x68] sm:$0xff]
  %v32 = vld [vmem:[%s0 + $0x70] sm:$0xff]
  %v33 = vld [vmem:[%s0 + $0x78] sm:$0xff]
  %v34 = vld [vmem:[%s0 + $0x80] sm:$0xff]
  %v35 = vld [vmem:[%s0 + $0x88] sm:$0xff]
  %v36 = vld [vmem:[%s0 + $0x90] sm:$0xff]
  %v37 = vld [vmem:[%s0 + $0x98] sm:$0xff]
  %v38 = vld [vmem:[%s0 + $0xa0] sm:$0xff]
  %v39 = vld [vmem:[%s0 + $0xa8] sm:$0xff]
  %v40 = vld [vmem:[%s0 + $0xb0] sm:$0xff]
  %v41 = vld [vmem:[%s0 + $0xb8] sm:$0xff]
  %v42 = vld [vmem:[%s0 + $0xc0] sm:$0xff]
  %v43 = vld [vmem:[%s0 + $0xc8] sm:$0xff]
  %v44 = vld [vmem:[%s0 + $0xd0] sm:$0xff]
  %v45 = vld [vmem:[%s0 + $0xd8] sm:$0xff]
  %v46 = vld [vmem:[%s0 + $0xe0] sm:$0xff]
  %v47 = vld [vmem:[%s0 + $0xe8] sm:$0xff]
  %v48 = vld [vmem:[%s0 + $0xf0] sm:$0xff]
  %v49 = vld [vmem:[%s0 + $0xf8] sm:$0xff]
  %v50 = vld [vmem:[%s1] sm:$0xf]
  %v51 = vld [vmem:[%s1 + $0x4] sm:$0xf]
  %v52 = vld [vmem:[%s1 + $0x8] sm:$0xf]
  %v53 = vld [vmem:[%s1 + $0xc] sm:$0xf]
  %v54 = vld [vmem:[%s1 + $0x10] sm:$0xf]
  %v55 = vld [vmem:[%s1 + $0x14] sm:$0xf]
  %v56 = vld [vmem:[%s1 + $0x18] sm:$0xf]
  %v57 = vld [vmem:[%s1 + $0x1c] sm:$0xf]
  %v58 = vld [vmem:[%s1 + $0x20] sm:$0xf]
  %v59 = vld [vmem:[%s1 + $0x24] sm:$0xf]
  %v60 = vld [vmem:[%s1 + $0x28] sm:$0xf]
  %v61 = vld [vmem:[%s1 + $0x2c] sm:$0xf]
  %v62 = vld [vmem:[%s1 + $0x30] sm:$0xf]
  %v63 = vld [vmem:[%s1 + $0x34] sm:$0xf]
  %v64 = vld [vmem:[%s1 + $0x38] sm:$0xf]
  %v65 = vld [vmem:[%s1 + $0x3c] sm:$0xf]
  %v66 = vld [vmem:[%s1 + $0x40] sm:$0xf]
  %v67 = vld [vmem:[%s1 + $0x44] sm:$0xf]
  %v68 = vld [vmem:[%s1 + $0x48] sm:$0xf]
  %v69 = vld [vmem:[%s1 + $0x4c] sm:$0xf]
  %v70 = vld [vmem:[%s1 + $0x50] sm:$0xf]
  %v71 = vld [vmem:[%s1 + $0x54] sm:$0xf]
  %v72 = vld [vmem:[%s1 + $0x58] sm:$0xf]
  %v73 = vld [vmem:[%s1 + $0x5c] sm:$0xf]
  %v74 = vld [vmem:[%s1 + $0x60] sm:$0xf]
  %v75 = vld [vmem:[%s1 + $0x64] sm:$0xf]
  %v76 = vld [vmem:[%s1 + $0x68] sm:$0xf]
  %v77 = vld [vmem:[%s1 + $0x6c] sm:$0xf]
  %v78 = vld [vmem:[%s1 + $0x70] sm:$0xf]
  %v79 = vld [vmem:[%s1 + $0x74] sm:$0xf]
  %v80 = vld [vmem:[%s1 + $0x78] sm:$0xf]
  %v81 = vld [vmem:[%s1 + $0x7c] sm:$0xf]
  %v82 = vld [vmem:[%s1 + $0x80] sm:$0xf]
  %v83 = vld [vmem:[%s1 + $0x84] sm:$0xf]
  %v84 = vld [vmem:[%s1 + $0x88] sm:$0xf]
  %v85 = vld [vmem:[%s1 + $0x8c] sm:$0xf]
  %v86 = vld [vmem:[%s1 + $0x90] sm:$0xf]
  %v87 = vld [vmem:[%s1 + $0x94] sm:$0xf]
  %v88 = vld [vmem:[%s1 + $0x98] sm:$0xf]
  %v89 = vld [vmem:[%s1 + $0x9c] sm:$0xf]
  %v90 = vld [vmem:[%s1 + $0xa0] sm:$0xf]
  %v91 = vld [vmem:[%s1 + $0xa4] sm:$0xf]
  %v92 = vld [vmem:[%s1 + $0xa8] sm:$0xf]
  %v93 = vld [vmem:[%s1 + $0xac] sm:$0xf]
  %v94 = vld [vmem:[%s1 + $0xb0] sm:$0xf]
  %v95 = vld [vmem:[%s1 + $0xb4] sm:$0xf]
  %v96 = vld [vmem:[%s1 + $0xb8] sm:$0xf]
  %v97 = vld [vmem:[%s1 + $0xbc] sm:$0xf]
  %v98 = vld [vmem:[%s1 + $0xc0] sm:$0xf]
  %v99 = vld [vmem:[%s1 + $0xc4] sm:$0xf]
  %v100 = vld [vmem:[%s1 + $0xc8] sm:$0xf]
  %v101 = vld [vmem:[%s1 + $0xcc] sm:$0xf]
  %v102 = vld [vmem:[%s1 + $0xd0] sm:$0xf]
  %v103 = vld [vmem:[%s1 + $0xd4] sm:$0xf]
  %v104 = vld [vmem:[%s1 + $0xd8] sm:$0xf]
  %v105 = vld [vmem:[%s1 + $0xdc] sm:$0xf]
  %v106 = vld [vmem:[%s1 + $0xe0] sm:$0xf]
  %v107 = vld [vmem:[%s1 + $0xe4] sm:$0xf]
  %v108 = vld [vmem:[%s1 + $0xe8] sm:$0xf]
  %v109 = vld [vmem:[%s1 + $0xec] sm:$0xf]
  %v110 = vld [vmem:[%s1 + $0xf0] sm:$0xf]
  %v111 = vld [vmem:[%s1 + $0xf4] sm:$0xf]
  %v112 = vld [vmem:[%s1 + $0xf8] sm:$0xf]
  %v113 = vld [vmem:[%s1 + $0xfc] sm:$0xf]
  %v114 = vld [vmem:[%s1 + $0x100] sm:$0xf]
  %v115 = vld [vmem:[%s1 + $0x104] sm:$0xf]
  %v116 = vld [vmem:[%s1 + $0x108] sm:$0xf]
  %v117 = vld [vmem:[%s1 + $0x10c] sm:$0xf]
  %v118 = vld [vmem:[%s1 + $0x110] sm:$0xf]
  %v119 = vld [vmem:[%s1 + $0x114] sm:$0xf]
  %v120 = vld [vmem:[%s1 + $0x118] sm:$0xf]
  %v121 = vld [vmem:[%s1 + $0x11c] sm:$0xf]
  %v122 = vld [vmem:[%s1 + $0x120] sm:$0xf]
  %v123 = vld [vmem:[%s1 + $0x124] sm:$0xf]
  %v124 = vld [vmem:[%s1 + $0x128] sm:$0xf]
  %v125 = vld [vmem:[%s1 + $0x12c] sm:$0xf]
  %v126 = vld [vmem:[%s1 + $0x130] sm:$0xf]
  %v127 = vld [vmem:[%s1 + $0x134] sm:$0xf]
  %v128 = vld [vmem:[%s1 + $0x138] sm:$0xf]
  %v129 = vld [vmem:[%s1 + $0x13c] sm:$0xf]
  %v130 = vld [vmem:[%s1 + $0x140] sm:$0xf]
  %v131 = vld [vmem:[%s1 + $0x144] sm:$0xf]
  %v132 = vld [vmem:[%s1 + $0x148] sm:$0xf]
  %v133 = vld [vmem:[%s1 + $0x14c] sm:$0xf]
  %v134 = vld [vmem:[%s1 + $0x150] sm:$0xf]
  %v135 = vld [vmem:[%s1 + $0x154] sm:$0xf]
  %v136 = vld [vmem:[%s1 + $0x158] sm:$0xf]
  %v137 = vld [vmem:[%s1 + $0x15c] sm:$0xf]
  %v138 = vld [vmem:[%s1 + $0x160] sm:$0xf]
  %v139 = vld [vmem:[%s1 + $0x164] sm:$0xf]
  %v140 = vld [vmem:[%s1 + $0x168] sm:$0xf]
  %v141 = vld [vmem:[%s1 + $0x16c] sm:$0xf]
  %v142 = vld [vmem:[%s1 + $0x170] sm:$0xf]
  %v143 = vld [vmem:[%s1 + $0x174] sm:$0xf]
  %v144 = vld [vmem:[%s1 + $0x178] sm:$0xf]
  %v145 = vld [vmem:[%s1 + $0x17c] sm:$0xf]
  %v146 = vld [vmem:[%s1 + $0x180] sm:$0xf]
  %v147 = vld [vmem:[%s1 + $0x184] sm:$0xf]
  %v148 = vld [vmem:[%s1 + $0x188] sm:$0xf]
  %v149 = vld [vmem:[%s1 + $0x18c] sm:$0xf]
  %v150 = vld [vmem:[%s1 + $0x190] sm:$0xf]
  %v151 = vld [vmem:[%s1 + $0x194] sm:$0xf]
  %v152 = vld [vmem:[%s1 + $0x198] sm:$0xf]
  %v153 = vld [vmem:[%s1 + $0x19c] sm:$0xf]
  %v154 = vld [vmem:[%s1 + $0x1a0] sm:$0xf]
  %v155 = vld [vmem:[%s1 + $0x1a4] sm:$0xf]
  %v156 = vld [vmem:[%s1 + $0x1a8] sm:$0xf]
  %v157 = vld [vmem:[%s1 + $0x1ac] sm:$0xf]
  %v158 = vld [vmem:[%s1 + $0x1b0] sm:$0xf]
  %v159 = vld [vmem:[%s1 + $0x1b4] sm:$0xf]
  %v160 = vld [vmem:[%s1 + $0x1b8] sm:$0xf]
  %v161 = vld [vmem:[%s1 + $0x1bc] sm:$0xf]
  %v162 = vld [vmem:[%s1 + $0x1c0] sm:$0xf]
  %v163 = vld [vmem:[%s1 + $0x1c4] sm:$0xf]
  %v164 = vld [vmem:[%s1 + $0x1c8] sm:$0xf]
  %v165 = vld [vmem:[%s1 + $0x1cc] sm:$0xf]
  %v166 = vld [vmem:[%s1 + $0x1d0] sm:$0xf]
  %v167 = vld [vmem:[%s1 + $0x1d4] sm:$0xf]
  %v168 = vld [vmem:[%s1 + $0x1d8] sm:$0xf]
  %v169 = vld [vmem:[%s1 + $0x1dc] sm:$0xf]
  %v170 = vld [vmem:[%s1 + $0x1e0] sm:$0xf]
  %v171 = vld [vmem:[%s1 + $0x1e4] sm:$0xf]
  %v172 = vld [vmem:[%s1 + $0x1e8] sm:$0xf]
  %v173 = vld [vmem:[%s1 + $0x1ec] sm:$0xf]
  %v174 = vld [vmem:[%s1 + $0x1f0] sm:$0xf]
  %v175 = vld [vmem:[%s1 + $0x1f4] sm:$0xf]
  %v176 = vld [vmem:[%s1 + $0x1f8] sm:$0xf]
  %v177 = vld [vmem:[%s1 + $0x1fc] sm:$0xf]
  %v178 = vld [vmem:[%s1 + $0x200] sm:$0xf]
  %v179 = vld [vmem:[%s1 + $0x204] sm:$0xf]
  %v180 = vld [vmem:[%s1 + $0x208] sm:$0xf]
  %v181 = vld [vmem:[%s1 + $0x20c] sm:$0xf]
  %v182 = vld [vmem:[%s1 + $0x210] sm:$0xf]
  %v183 = vld [vmem:[%s1 + $0x214] sm:$0xf]
  %v184 = vld [vmem:[%s1 + $0x218] sm:$0xf]
  %v185 = vld [vmem:[%s1 + $0x21c] sm:$0xf]
  %v186 = vld [vmem:[%s1 + $0x220] sm:$0xf]
  %v187 = vld [vmem:[%s1 + $0x224] sm:$0xf]
  %v188 = vld [vmem:[%s1 + $0x228] sm:$0xf]
  %v189 = vld [vmem:[%s1 + $0x22c] sm:$0xf]
  %v190 = vld [vmem:[%s1 + $0x230] sm:$0xf]
  %v191 = vld [vmem:[%s1 + $0x234] sm:$0xf]
  %v192 = vld [vmem:[%s1 + $0x238] sm:$0xf]
  %v193 = vld [vmem:[%s1 + $0x23c] sm:$0xf]
  %v194 = vld [vmem:[%s1 + $0x240] sm:$0xf]
  %v195 = vld [vmem:[%s1 + $0x244] sm:$0xf]
  %v196 = vld [vmem:[%s1 + $0x248] sm:$0xf]
  %v197 = vld [vmem:[%s1 + $0x24c] sm:$0xf]
  %v198 = vld [vmem:[%s1 + $0x250] sm:$0xf]
  %v199 = vld [vmem:[%s1 + $0x254] sm:$0xf]
  %v200 = vld [vmem:[%s1 + $0x258] sm:$0xf]
  %v201 = vld [vmem:[%s1 + $0x25c] sm:$0xf]
  %v202 = vld [vmem:[%s1 + $0x260] sm:$0xf]
  %v203 = vld [vmem:[%s1 + $0x264] sm:$0xf]
  %v204 = vld [vmem:[%s1 + $0x268] sm:$0xf]
  %v205 = vld [vmem:[%s1 + $0x26c] sm:$0xf]
  %v206 = vld [vmem:[%s1 + $0x270] sm:$0xf]
  %v207 = vld [vmem:[%s1 + $0x274] sm:$0xf]
  %v208 = vld [vmem:[%s1 + $0x278] sm:$0xf]
  %v209 = vld [vmem:[%s1 + $0x27c] sm:$0xf]
  %v210 = vld [vmem:[%s1 + $0x280] sm:$0xf]
  %v211 = vld [vmem:[%s1 + $0x284] sm:$0xf]
  %v212 = vld [vmem:[%s1 + $0x288] sm:$0xf]
  %v213 = vld [vmem:[%s1 + $0x28c] sm:$0xf]
  %v214 = vld [vmem:[%s1 + $0x290] sm:$0xf]
  %v215 = vld [vmem:[%s1 + $0x294] sm:$0xf]
  %v216 = vld [vmem:[%s1 + $0x298] sm:$0xf]
  %v217 = vld [vmem:[%s1 + $0x29c] sm:$0xf]
  %v218 = vld [vmem:[%s1 + $0x2a0] sm:$0xf]
  %v219 = vld [vmem:[%s1 + $0x2a4] sm:$0xf]
  %v220 = vld [vmem:[%s1 + $0x2a8] sm:$0xf]
  %v221 = vld [vmem:[%s1 + $0x2ac] sm:$0xf]
  %v222 = vld [vmem:[%s1 + $0x2b0] sm:$0xf]
  %v223 = vld [vmem:[%s1 + $0x2b4] sm:$0xf]
  %v224 = vld [vmem:[%s1 + $0x2b8] sm:$0xf]
  %v225 = vld [vmem:[%s1 + $0x2bc] sm:$0xf]
  %v226 = vld [vmem:[%s1 + $0x2c0] sm:$0xf]
  %v227 = vld [vmem:[%s1 + $0x2c4] sm:$0xf]
  %v228 = vld [vmem:[%s1 + $0x2c8] sm:$0xf]
  %v229 = vld [vmem:[%s1 + $0x2cc] sm:$0xf]
  %v230 = vld [vmem:[%s1 + $0x2d0] sm:$0xf]
  %v231 = vld [vmem:[%s1 + $0x2d4] sm:$0xf]
  %v232 = vld [vmem:[%s1 + $0x2d8] sm:$0xf]
  %v233 = vld [vmem:[%s1 + $0x2dc] sm:$0xf]
  %v234 = vld [vmem:[%s1 + $0x2e0] sm:$0xf]
  %v235 = vld [vmem:[%s1 + $0x2e4] sm:$0xf]
  %v236 = vld [vmem:[%s1 + $0x2e8] sm:$0xf]
  %v237 = vld [vmem:[%s1 + $0x2ec] sm:$0xf]
  %v238 = vld [vmem:[%s1 + $0x2f0] sm:$0xf]
  %v239 = vld [vmem:[%s1 + $0x2f4] sm:$0xf]
  %v240 = vld [vmem:[%s1 + $0x2f8] sm:$0xf]
  %v241 = vld [vmem:[%s1 + $0x2fc] sm:$0xf]
  %v242 = vld [vmem:[%s1 + $0x300] sm:$0xf]
  %v243 = vld [vmem:[%s1 + $0x304] sm:$0xf]
  %v244 = vld [vmem:[%s1 + $0x308] sm:$0xf]
  %v245 = vld [vmem:[%s1 + $0x30c] sm:$0xf]
  %v246 = vld [vmem:[%s1 + $0x310] sm:$0xf]
  %v247 = vld [vmem:[%s1 + $0x314] sm:$0xf]
  %v248 = vld [vmem:[%s1 + $0x318] sm:$0xf]
  %v249 = vld [vmem:[%s1 + $0x31c] sm:$0xf]
  %v250 = vld [vmem:[%s1 + $0x320] sm:$0xf]
  %v251 = vld [vmem:[%s1 + $0x324] sm:$0xf]
  %v252 = vld [vmem:[%s1 + $0x328] sm:$0xf]
  %v253 = vld [vmem:[%s1 + $0x32c] sm:$0xf]
  %v254 = vld [vmem:[%s1 + $0x330] sm:$0xf]
  %v255 = vld [vmem:[%s1 + $0x334] sm:$0xf]
  %v256 = vld [vmem:[%s1 + $0x338] sm:$0xf]
  %v257 = vld [vmem:[%s1 + $0x33c] sm:$0xf]
  %v258 = vld [vmem:[%s1 + $0x340] sm:$0xf]
  %v259 = vld [vmem:[%s1 + $0x344] sm:$0xf]
  %v260 = vld [vmem:[%s1 + $0x348] sm:$0xf]
  %v261 = vld [vmem:[%s1 + $0x34c] sm:$0xf]
  %v262 = vld [vmem:[%s1 + $0x350] sm:$0xf]
  %v263 = vld [vmem:[%s1 + $0x354] sm:$0xf]
  %v264 = vld [vmem:[%s1 + $0x358] sm:$0xf]
  %v265 = vld [vmem:[%s1 + $0x35c] sm:$0xf]
  %v266 = vld [vmem:[%s1 + $0x360] sm:$0xf]
  %v267 = vld [vmem:[%s1 + $0x364] sm:$0xf]
  %v268 = vld [vmem:[%s1 + $0x368] sm:$0xf]
  %v269 = vld [vmem:[%s1 + $0x36c] sm:$0xf]
  %v270 = vld [vmem:[%s1 + $0x370] sm:$0xf]
  %v271 = vld [vmem:[%s1 + $0x374] sm:$0xf]
  %v272 = vld [vmem:[%s1 + $0x378] sm:$0xf]
  %v273 = vld [vmem:[%s1 + $0x37c] sm:$0xf]
  %v274 = vld [vmem:[%s1 + $0x380] sm:$0xf]
  %v275 = vld [vmem:[%s1 + $0x384] sm:$0xf]
  %v276 = vld [vmem:[%s1 + $0x388] sm:$0xf]
  %v277 = vld [vmem:[%s1 + $0x38c] sm:$0xf]
  %v278 = vld [vmem:[%s1 + $0x390] sm:$0xf]
  %v279 = vld [vmem:[%s1 + $0x394] sm:$0xf]
  %v280 = vld [vmem:[%s1 + $0x398] sm:$0xf]
  %v281 = vld [vmem:[%s1 + $0x39c] sm:$0xf]
  %v282 = vld [vmem:[%s1 + $0x3a0] sm:$0xf]
  %v283 = vld [vmem:[%s1 + $0x3a4] sm:$0xf]
  %v284 = vld [vmem:[%s1 + $0x3a8] sm:$0xf]
  %v285 = vld [vmem:[%s1 + $0x3ac] sm:$0xf]
  %v286 = vld [vmem:[%s1 + $0x3b0] sm:$0xf]
  %v287 = vld [vmem:[%s1 + $0x3b4] sm:$0xf]
  %v288 = vld [vmem:[%s1 + $0x3b8] sm:$0xf]
  %v289 = vld [vmem:[%s1 + $0x3bc] sm:$0xf]
  %v290 = vld [vmem:[%s1 + $0x3c0] sm:$0xf]
  %v291 = vld [vmem:[%s1 + $0x3c4] sm:$0xf]
  %v292 = vld [vmem:[%s1 + $0x3c8] sm:$0xf]
  %v293 = vld [vmem:[%s1 + $0x3cc] sm:$0xf]
  %v294 = vld [vmem:[%s1 + $0x3d0] sm:$0xf]
  %v295 = vld [vmem:[%s1 + $0x3d4] sm:$0xf]
  %v296 = vld [vmem:[%s1 + $0x3d8] sm:$0xf]
  %v297 = vld [vmem:[%s1 + $0x3dc] sm:$0xf]
  %v298 = vld [vmem:[%s1 + $0x3e0] sm:$0xf]
  %v299 = vld [vmem:[%s1 + $0x3e4] sm:$0xf]
  %v300 = vld [vmem:[%s1 + $0x3e8] sm:$0xf]
  %v301 = vld [vmem:[%s1 + $0x3ec] sm:$0xf]
  %v302 = vld [vmem:[%s1 + $0x3f0] sm:$0xf]
  %v303 = vld [vmem:[%s1 + $0x3f4] sm:$0xf]
  %v304 = vld [vmem:[%s1 + $0x3f8] sm:$0xf]
  %v305 = vld [vmem:[%s1 + $0x3fc] sm:$0xf]
  %v338 = vunpack.c.l.b16 %v18
  %v339 = vunpack.c.h.b16 %v18
  %v340 = vunpack.c.l.b16 %v19
  %v341 = vunpack.c.h.b16 %v19
  %v342 = vunpack.c.l.b16 %v20
  %v343 = vunpack.c.h.b16 %v20
  %v344 = vunpack.c.l.b16 %v21
  %v345 = vunpack.c.h.b16 %v21
  %v346 = vunpack.c.l.b16 %v22
  %v347 = vunpack.c.h.b16 %v22
  %v348 = vunpack.c.l.b16 %v23
  %v349 = vunpack.c.h.b16 %v23
  %v350 = vunpack.c.l.b16 %v24
  %v351 = vunpack.c.h.b16 %v24
  %v352 = vunpack.c.l.b16 %v25
  %v353 = vunpack.c.h.b16 %v25
  %v354 = vunpack.c.l.b16 %v26
  %v355 = vunpack.c.h.b16 %v26
  %v356 = vunpack.c.l.b16 %v27
  %v357 = vunpack.c.h.b16 %v27
  %v358 = vunpack.c.l.b16 %v28
  %v359 = vunpack.c.h.b16 %v28
  %v360 = vunpack.c.l.b16 %v29
  %v361 = vunpack.c.h.b16 %v29
  %v362 = vunpack.c.l.b16 %v30
  %v363 = vunpack.c.h.b16 %v30
  %v364 = vunpack.c.l.b16 %v31
  %v365 = vunpack.c.h.b16 %v31
  %v366 = vunpack.c.l.b16 %v32
  %v367 = vunpack.c.h.b16 %v32
  %v368 = vunpack.c.l.b16 %v33
  %v369 = vunpack.c.h.b16 %v33
  %v370 = vunpack.c.l.b16 %v34
  %v371 = vunpack.c.h.b16 %v34
  %v372 = vunpack.c.l.b16 %v35
  %v373 = vunpack.c.h.b16 %v35
  %v374 = vunpack.c.l.b16 %v36
  %v375 = vunpack.c.h.b16 %v36
  %v376 = vunpack.c.l.b16 %v37
  %v377 = vunpack.c.h.b16 %v37
  %v378 = vunpack.c.l.b16 %v38
  %v379 = vunpack.c.h.b16 %v38
  %v380 = vunpack.c.l.b16 %v39
  %v381 = vunpack.c.h.b16 %v39
  %v382 = vunpack.c.l.b16 %v40
  %v383 = vunpack.c.h.b16 %v40
  %v384 = vunpack.c.l.b16 %v41
  %v385 = vunpack.c.h.b16 %v41
  %v386 = vunpack.c.l.b16 %v42
  %v387 = vunpack.c.h.b16 %v42
  %v388 = vunpack.c.l.b16 %v43
  %v389 = vunpack.c.h.b16 %v43
  %v390 = vunpack.c.l.b16 %v44
  %v391 = vunpack.c.h.b16 %v44
  %v392 = vunpack.c.l.b16 %v45
  %v393 = vunpack.c.h.b16 %v45
  %v394 = vunpack.c.l.b16 %v46
  %v395 = vunpack.c.h.b16 %v46
  %v396 = vunpack.c.l.b16 %v47
  %v397 = vunpack.c.h.b16 %v47
  %v398 = vunpack.c.l.b16 %v48
  %v399 = vunpack.c.h.b16 %v48
  %v400 = vunpack.c.l.b16 %v49
  %v401 = vunpack.c.h.b16 %v49
  %v402 = vpack.c.b16 %v354, %v338
  %v403 = vpack.c.b16 %v355, %v339
  %v404 = vpack.c.b16 %v356, %v340
  %v405 = vpack.c.b16 %v357, %v341
  %v406 = vpack.c.b16 %v358, %v342
  %v407 = vpack.c.b16 %v359, %v343
  %v408 = vpack.c.b16 %v360, %v344
  %v409 = vpack.c.b16 %v361, %v345
  %v410 = vpack.c.b16 %v362, %v346
  %v411 = vpack.c.b16 %v363, %v347
  %v412 = vpack.c.b16 %v364, %v348
  %v413 = vpack.c.b16 %v365, %v349
  %v414 = vpack.c.b16 %v366, %v350
  %v415 = vpack.c.b16 %v367, %v351
  %v416 = vpack.c.b16 %v368, %v352
  %v417 = vpack.c.b16 %v369, %v353
  %v418 = vpack.c.b16 %v386, %v370
  %v419 = vpack.c.b16 %v387, %v371
  %v420 = vpack.c.b16 %v388, %v372
  %v421 = vpack.c.b16 %v389, %v373
  %v422 = vpack.c.b16 %v390, %v374
  %v423 = vpack.c.b16 %v391, %v375
  %v424 = vpack.c.b16 %v392, %v376
  %v425 = vpack.c.b16 %v393, %v377
  %v426 = vpack.c.b16 %v394, %v378
  %v427 = vpack.c.b16 %v395, %v379
  %v428 = vpack.c.b16 %v396, %v380
  %v429 = vpack.c.b16 %v397, %v381
  %v430 = vpack.c.b16 %v398, %v382
  %v431 = vpack.c.b16 %v399, %v383
  %v432 = vpack.c.b16 %v400, %v384
  %v433 = vpack.c.b16 %v401, %v385
  %v722 = vunpack.c.l.b16 %v50
  %v723 = vunpack.c.l.b16 %v51
  %v724 = vunpack.c.l.b16 %v52
  %v725 = vunpack.c.l.b16 %v53
  %v726 = vunpack.c.l.b16 %v54
  %v727 = vunpack.c.l.b16 %v55
  %v728 = vunpack.c.l.b16 %v56
  %v729 = vunpack.c.l.b16 %v57
  %v730 = vunpack.c.l.b16 %v58
  %v731 = vunpack.c.l.b16 %v59
  %v732 = vunpack.c.l.b16 %v60
  %v733 = vunpack.c.l.b16 %v61
  %v734 = vunpack.c.l.b16 %v62
  %v735 = vunpack.c.l.b16 %v63
  %v736 = vunpack.c.l.b16 %v64
  %v737 = vunpack.c.l.b16 %v65
  %v738 = vunpack.c.l.b16 %v66
  %v739 = vunpack.c.l.b16 %v67
  %v740 = vunpack.c.l.b16 %v68
  %v741 = vunpack.c.l.b16 %v69
  %v742 = vunpack.c.l.b16 %v70
  %v743 = vunpack.c.l.b16 %v71
  %v744 = vunpack.c.l.b16 %v72
  %v745 = vunpack.c.l.b16 %v73
  %v746 = vunpack.c.l.b16 %v74
  %v747 = vunpack.c.l.b16 %v75
  %v748 = vunpack.c.l.b16 %v76
  %v749 = vunpack.c.l.b16 %v77
  %v750 = vunpack.c.l.b16 %v78
  %v751 = vunpack.c.l.b16 %v79
  %v752 = vunpack.c.l.b16 %v80
  %v753 = vunpack.c.l.b16 %v81
  %v754 = vunpack.c.l.b16 %v82
  %v755 = vunpack.c.l.b16 %v83
  %v756 = vunpack.c.l.b16 %v84
  %v757 = vunpack.c.l.b16 %v85
  %v758 = vunpack.c.l.b16 %v86
  %v759 = vunpack.c.l.b16 %v87
  %v760 = vunpack.c.l.b16 %v88
  %v761 = vunpack.c.l.b16 %v89
  %v762 = vunpack.c.l.b16 %v90
  %v763 = vunpack.c.l.b16 %v91
  %v764 = vunpack.c.l.b16 %v92
  %v765 = vunpack.c.l.b16 %v93
  %v766 = vunpack.c.l.b16 %v94
  %v767 = vunpack.c.l.b16 %v95
  %v768 = vunpack.c.l.b16 %v96
  %v769 = vunpack.c.l.b16 %v97
  %v770 = vunpack.c.l.b16 %v98
  %v771 = vunpack.c.l.b16 %v99
  %v772 = vunpack.c.l.b16 %v100
  %v773 = vunpack.c.l.b16 %v101
  %v774 = vunpack.c.l.b16 %v102
  %v775 = vunpack.c.l.b16 %v103
  %v776 = vunpack.c.l.b16 %v104
  %v777 = vunpack.c.l.b16 %v105
  %v778 = vunpack.c.l.b16 %v106
  %v779 = vunpack.c.l.b16 %v107
  %v780 = vunpack.c.l.b16 %v108
  %v781 = vunpack.c.l.b16 %v109
  %v782 = vunpack.c.l.b16 %v110
  %v783 = vunpack.c.l.b16 %v111
  %v784 = vunpack.c.l.b16 %v112
  %v785 = vunpack.c.l.b16 %v113
  %v786 = vunpack.c.l.b16 %v114
  %v787 = vunpack.c.l.b16 %v115
  %v788 = vunpack.c.l.b16 %v116
  %v789 = vunpack.c.l.b16 %v117
  %v790 = vunpack.c.l.b16 %v118
  %v791 = vunpack.c.l.b16 %v119
  %v792 = vunpack.c.l.b16 %v120
  %v793 = vunpack.c.l.b16 %v121
  %v794 = vunpack.c.l.b16 %v122
  %v795 = vunpack.c.l.b16 %v123
  %v796 = vunpack.c.l.b16 %v124
  %v797 = vunpack.c.l.b16 %v125
  %v798 = vunpack.c.l.b16 %v126
  %v799 = vunpack.c.l.b16 %v127
  %v800 = vunpack.c.l.b16 %v128
  %v801 = vunpack.c.l.b16 %v129
  %v802 = vunpack.c.l.b16 %v130
  %v803 = vunpack.c.l.b16 %v131
  %v804 = vunpack.c.l.b16 %v132
  %v805 = vunpack.c.l.b16 %v133
  %v806 = vunpack.c.l.b16 %v134
  %v807 = vunpack.c.l.b16 %v135
  %v808 = vunpack.c.l.b16 %v136
  %v809 = vunpack.c.l.b16 %v137
  %v810 = vunpack.c.l.b16 %v138
  %v811 = vunpack.c.l.b16 %v139
  %v812 = vunpack.c.l.b16 %v140
  %v813 = vunpack.c.l.b16 %v141
  %v814 = vunpack.c.l.b16 %v142
  %v815 = vunpack.c.l.b16 %v143
  %v816 = vunpack.c.l.b16 %v144
  %v817 = vunpack.c.l.b16 %v145
  %v818 = vunpack.c.l.b16 %v146
  %v819 = vunpack.c.l.b16 %v147
  %v820 = vunpack.c.l.b16 %v148
  %v821 = vunpack.c.l.b16 %v149
  %v822 = vunpack.c.l.b16 %v150
  %v823 = vunpack.c.l.b16 %v151
  %v824 = vunpack.c.l.b16 %v152
  %v825 = vunpack.c.l.b16 %v153
  %v826 = vunpack.c.l.b16 %v154
  %v827 = vunpack.c.l.b16 %v155
  %v828 = vunpack.c.l.b16 %v156
  %v829 = vunpack.c.l.b16 %v157
  %v830 = vunpack.c.l.b16 %v158
  %v831 = vunpack.c.l.b16 %v159
  %v832 = vunpack.c.l.b16 %v160
  %v833 = vunpack.c.l.b16 %v161
  %v834 = vunpack.c.l.b16 %v162
  %v835 = vunpack.c.l.b16 %v163
  %v836 = vunpack.c.l.b16 %v164
  %v837 = vunpack.c.l.b16 %v165
  %v838 = vunpack.c.l.b16 %v166
  %v839 = vunpack.c.l.b16 %v167
  %v840 = vunpack.c.l.b16 %v168
  %v841 = vunpack.c.l.b16 %v169
  %v842 = vunpack.c.l.b16 %v170
  %v843 = vunpack.c.l.b16 %v171
  %v844 = vunpack.c.l.b16 %v172
  %v845 = vunpack.c.l.b16 %v173
  %v846 = vunpack.c.l.b16 %v174
  %v847 = vunpack.c.l.b16 %v175
  %v848 = vunpack.c.l.b16 %v176
  %v849 = vunpack.c.l.b16 %v177
  %v850 = vunpack.c.l.b16 %v178
  %v851 = vunpack.c.l.b16 %v179
  %v852 = vunpack.c.l.b16 %v180
  %v853 = vunpack.c.l.b16 %v181
  %v854 = vunpack.c.l.b16 %v182
  %v855 = vunpack.c.l.b16 %v183
  %v856 = vunpack.c.l.b16 %v184
  %v857 = vunpack.c.l.b16 %v185
  %v858 = vunpack.c.l.b16 %v186
  %v859 = vunpack.c.l.b16 %v187
  %v860 = vunpack.c.l.b16 %v188
  %v861 = vunpack.c.l.b16 %v189
  %v862 = vunpack.c.l.b16 %v190
  %v863 = vunpack.c.l.b16 %v191
  %v864 = vunpack.c.l.b16 %v192
  %v865 = vunpack.c.l.b16 %v193
  %v866 = vunpack.c.l.b16 %v194
  %v867 = vunpack.c.l.b16 %v195
  %v868 = vunpack.c.l.b16 %v196
  %v869 = vunpack.c.l.b16 %v197
  %v870 = vunpack.c.l.b16 %v198
  %v871 = vunpack.c.l.b16 %v199
  %v872 = vunpack.c.l.b16 %v200
  %v873 = vunpack.c.l.b16 %v201
  %v874 = vunpack.c.l.b16 %v202
  %v875 = vunpack.c.l.b16 %v203
  %v876 = vunpack.c.l.b16 %v204
  %v877 = vunpack.c.l.b16 %v205
  %v878 = vunpack.c.l.b16 %v206
  %v879 = vunpack.c.l.b16 %v207
  %v880 = vunpack.c.l.b16 %v208
  %v881 = vunpack.c.l.b16 %v209
  %v882 = vunpack.c.l.b16 %v210
  %v883 = vunpack.c.l.b16 %v211
  %v884 = vunpack.c.l.b16 %v212
  %v885 = vunpack.c.l.b16 %v213
  %v886 = vunpack.c.l.b16 %v214
  %v887 = vunpack.c.l.b16 %v215
  %v888 = vunpack.c.l.b16 %v216
  %v889 = vunpack.c.l.b16 %v217
  %v890 = vunpack.c.l.b16 %v218
  %v891 = vunpack.c.l.b16 %v219
  %v892 = vunpack.c.l.b16 %v220
  %v893 = vunpack.c.l.b16 %v221
  %v894 = vunpack.c.l.b16 %v222
  %v895 = vunpack.c.l.b16 %v223
  %v896 = vunpack.c.l.b16 %v224
  %v897 = vunpack.c.l.b16 %v225
  %v898 = vunpack.c.l.b16 %v226
  %v899 = vunpack.c.l.b16 %v227
  %v900 = vunpack.c.l.b16 %v228
  %v901 = vunpack.c.l.b16 %v229
  %v902 = vunpack.c.l.b16 %v230
  %v903 = vunpack.c.l.b16 %v231
  %v904 = vunpack.c.l.b16 %v232
  %v905 = vunpack.c.l.b16 %v233
  %v906 = vunpack.c.l.b16 %v234
  %v907 = vunpack.c.l.b16 %v235
  %v908 = vunpack.c.l.b16 %v236
  %v909 = vunpack.c.l.b16 %v237
  %v910 = vunpack.c.l.b16 %v238
  %v911 = vunpack.c.l.b16 %v239
  %v912 = vunpack.c.l.b16 %v240
  %v913 = vunpack.c.l.b16 %v241
  %v914 = vunpack.c.l.b16 %v242
  %v915 = vunpack.c.l.b16 %v243
  %v916 = vunpack.c.l.b16 %v244
  %v917 = vunpack.c.l.b16 %v245
  %v918 = vunpack.c.l.b16 %v246
  %v919 = vunpack.c.l.b16 %v247
  %v920 = vunpack.c.l.b16 %v248
  %v921 = vunpack.c.l.b16 %v249
  %v922 = vunpack.c.l.b16 %v250
  %v923 = vunpack.c.l.b16 %v251
  %v924 = vunpack.c.l.b16 %v252
  %v925 = vunpack.c.l.b16 %v253
  %v926 = vunpack.c.l.b16 %v254
  %v927 = vunpack.c.l.b16 %v255
  %v928 = vunpack.c.l.b16 %v256
  %v929 = vunpack.c.l.b16 %v257
  %v930 = vunpack.c.l.b16 %v258
  %v931 = vunpack.c.l.b16 %v259
  %v932 = vunpack.c.l.b16 %v260
  %v933 = vunpack.c.l.b16 %v261
  %v934 = vunpack.c.l.b16 %v262
  %v935 = vunpack.c.l.b16 %v263
  %v936 = vunpack.c.l.b16 %v264
  %v937 = vunpack.c.l.b16 %v265
  %v938 = vunpack.c.l.b16 %v266
  %v939 = vunpack.c.l.b16 %v267
  %v940 = vunpack.c.l.b16 %v268
  %v941 = vunpack.c.l.b16 %v269
  %v942 = vunpack.c.l.b16 %v270
  %v943 = vunpack.c.l.b16 %v271
  %v944 = vunpack.c.l.b16 %v272
  %v945 = vunpack.c.l.b16 %v273
  %v946 = vunpack.c.l.b16 %v274
  %v947 = vunpack.c.l.b16 %v275
  %v948 = vunpack.c.l.b16 %v276
  %v949 = vunpack.c.l.b16 %v277
  %v950 = vunpack.c.l.b16 %v278
  %v951 = vunpack.c.l.b16 %v279
  %v952 = vunpack.c.l.b16 %v280
  %v953 = vunpack.c.l.b16 %v281
  %v954 = vunpack.c.l.b16 %v282
  %v955 = vunpack.c.l.b16 %v283
  %v956 = vunpack.c.l.b16 %v284
  %v957 = vunpack.c.l.b16 %v285
  %v958 = vunpack.c.l.b16 %v286
  %v959 = vunpack.c.l.b16 %v287
  %v960 = vunpack.c.l.b16 %v288
  %v961 = vunpack.c.l.b16 %v289
  %v962 = vunpack.c.l.b16 %v290
  %v963 = vunpack.c.l.b16 %v291
  %v964 = vunpack.c.l.b16 %v292
  %v965 = vunpack.c.l.b16 %v293
  %v966 = vunpack.c.l.b16 %v294
  %v967 = vunpack.c.l.b16 %v295
  %v968 = vunpack.c.l.b16 %v296
  %v969 = vunpack.c.l.b16 %v297
  %v970 = vunpack.c.l.b16 %v298
  %v971 = vunpack.c.l.b16 %v299
  %v972 = vunpack.c.l.b16 %v300
  %v973 = vunpack.c.l.b16 %v301
  %v974 = vunpack.c.l.b16 %v302
  %v975 = vunpack.c.l.b16 %v303
  %v976 = vunpack.c.l.b16 %v304
  %v977 = vunpack.c.l.b16 %v305
  %v978 = vpack.c.b16 %v723, %v722
  %v979 = vpack.c.b16 %v725, %v724
  %v980 = vpack.c.b16 %v727, %v726
  %v981 = vpack.c.b16 %v729, %v728
  %v982 = vpack.c.b16 %v731, %v730
  %v983 = vpack.c.b16 %v733, %v732
  %v984 = vpack.c.b16 %v735, %v734
  %v985 = vpack.c.b16 %v737, %v736
  %v986 = vpack.c.b16 %v739, %v738
  %v987 = vpack.c.b16 %v741, %v740
  %v988 = vpack.c.b16 %v743, %v742
  %v989 = vpack.c.b16 %v745, %v744
  %v990 = vpack.c.b16 %v747, %v746
  %v991 = vpack.c.b16 %v749, %v748
  %v992 = vpack.c.b16 %v751, %v750
  %v993 = vpack.c.b16 %v753, %v752
  %v994 = vpack.c.b16 %v755, %v754
  %v995 = vpack.c.b16 %v757, %v756
  %v996 = vpack.c.b16 %v759, %v758
  %v997 = vpack.c.b16 %v761, %v760
  %v998 = vpack.c.b16 %v763, %v762
  %v999 = vpack.c.b16 %v765, %v764
  %v1000 = vpack.c.b16 %v767, %v766
  %v1001 = vpack.c.b16 %v769, %v768
  %v1002 = vpack.c.b16 %v771, %v770
  %v1003 = vpack.c.b16 %v773, %v772
  %v1004 = vpack.c.b16 %v775, %v774
  %v1005 = vpack.c.b16 %v777, %v776
  %v1006 = vpack.c.b16 %v779, %v778
  %v1007 = vpack.c.b16 %v781, %v780
  %v1008 = vpack.c.b16 %v783, %v782
  %v1009 = vpack.c.b16 %v785, %v784
  %v1010 = vpack.c.b16 %v787, %v786
  %v1011 = vpack.c.b16 %v789, %v788
  %v1012 = vpack.c.b16 %v791, %v790
  %v1013 = vpack.c.b16 %v793, %v792
  %v1014 = vpack.c.b16 %v795, %v794
  %v1015 = vpack.c.b16 %v797, %v796
  %v1016 = vpack.c.b16 %v799, %v798
  %v1017 = vpack.c.b16 %v801, %v800
  %v1018 = vpack.c.b16 %v803, %v802
  %v1019 = vpack.c.b16 %v805, %v804
  %v1020 = vpack.c.b16 %v807, %v806
  %v1021 = vpack.c.b16 %v809, %v808
  %v1022 = vpack.c.b16 %v811, %v810
  %v1023 = vpack.c.b16 %v813, %v812
  %v1024 = vpack.c.b16 %v815, %v814
  %v1025 = vpack.c.b16 %v817, %v816
  %v1026 = vpack.c.b16 %v819, %v818
  %v1027 = vpack.c.b16 %v821, %v820
  %v1028 = vpack.c.b16 %v823, %v822
  %v1029 = vpack.c.b16 %v825, %v824
  %v1030 = vpack.c.b16 %v827, %v826
  %v1031 = vpack.c.b16 %v829, %v828
  %v1032 = vpack.c.b16 %v831, %v830
  %v1033 = vpack.c.b16 %v833, %v832
  %v1034 = vpack.c.b16 %v835, %v834
  %v1035 = vpack.c.b16 %v837, %v836
  %v1036 = vpack.c.b16 %v839, %v838
  %v1037 = vpack.c.b16 %v841, %v840
  %v1038 = vpack.c.b16 %v843, %v842
  %v1039 = vpack.c.b16 %v845, %v844
  %v1040 = vpack.c.b16 %v847, %v846
  %v1041 = vpack.c.b16 %v849, %v848
  %v1042 = vpack.c.b16 %v851, %v850
  %v1043 = vpack.c.b16 %v853, %v852
  %v1044 = vpack.c.b16 %v855, %v854
  %v1045 = vpack.c.b16 %v857, %v856
  %v1046 = vpack.c.b16 %v859, %v858
  %v1047 = vpack.c.b16 %v861, %v860
  %v1048 = vpack.c.b16 %v863, %v862
  %v1049 = vpack.c.b16 %v865, %v864
  %v1050 = vpack.c.b16 %v867, %v866
  %v1051 = vpack.c.b16 %v869, %v868
  %v1052 = vpack.c.b16 %v871, %v870
  %v1053 = vpack.c.b16 %v873, %v872
  %v1054 = vpack.c.b16 %v875, %v874
  %v1055 = vpack.c.b16 %v877, %v876
  %v1056 = vpack.c.b16 %v879, %v878
  %v1057 = vpack.c.b16 %v881, %v880
  %v1058 = vpack.c.b16 %v883, %v882
  %v1059 = vpack.c.b16 %v885, %v884
  %v1060 = vpack.c.b16 %v887, %v886
  %v1061 = vpack.c.b16 %v889, %v888
  %v1062 = vpack.c.b16 %v891, %v890
  %v1063 = vpack.c.b16 %v893, %v892
  %v1064 = vpack.c.b16 %v895, %v894
  %v1065 = vpack.c.b16 %v897, %v896
  %v1066 = vpack.c.b16 %v899, %v898
  %v1067 = vpack.c.b16 %v901, %v900
  %v1068 = vpack.c.b16 %v903, %v902
  %v1069 = vpack.c.b16 %v905, %v904
  %v1070 = vpack.c.b16 %v907, %v906
  %v1071 = vpack.c.b16 %v909, %v908
  %v1072 = vpack.c.b16 %v911, %v910
  %v1073 = vpack.c.b16 %v913, %v912
  %v1074 = vpack.c.b16 %v915, %v914
  %v1075 = vpack.c.b16 %v917, %v916
  %v1076 = vpack.c.b16 %v919, %v918
  %v1077 = vpack.c.b16 %v921, %v920
  %v1078 = vpack.c.b16 %v923, %v922
  %v1079 = vpack.c.b16 %v925, %v924
  %v1080 = vpack.c.b16 %v927, %v926
  %v1081 = vpack.c.b16 %v929, %v928
  %v1082 = vpack.c.b16 %v931, %v930
  %v1083 = vpack.c.b16 %v933, %v932
  %v1084 = vpack.c.b16 %v935, %v934
  %v1085 = vpack.c.b16 %v937, %v936
  %v1086 = vpack.c.b16 %v939, %v938
  %v1087 = vpack.c.b16 %v941, %v940
  %v1088 = vpack.c.b16 %v943, %v942
  %v1089 = vpack.c.b16 %v945, %v944
  %v1090 = vpack.c.b16 %v947, %v946
  %v1091 = vpack.c.b16 %v949, %v948
  %v1092 = vpack.c.b16 %v951, %v950
  %v1093 = vpack.c.b16 %v953, %v952
  %v1094 = vpack.c.b16 %v955, %v954
  %v1095 = vpack.c.b16 %v957, %v956
  %v1096 = vpack.c.b16 %v959, %v958
  %v1097 = vpack.c.b16 %v961, %v960
  %v1098 = vpack.c.b16 %v963, %v962
  %v1099 = vpack.c.b16 %v965, %v964
  %v1100 = vpack.c.b16 %v967, %v966
  %v1101 = vpack.c.b16 %v969, %v968
  %v1102 = vpack.c.b16 %v971, %v970
  %v1103 = vpack.c.b16 %v973, %v972
  %v1104 = vpack.c.b16 %v975, %v974
  %v1105 = vpack.c.b16 %v977, %v976
  %1234 = vmatprep.subr.bf16.mxu0 0
  %1235 = vmatpush1.bf16.msra.mxu0 %v978
  %1236 = vmatprep.subr.bf16.mxu0 0
  %1237 = vmatpush1.bf16.msra.mxu0 %v979
  %1238 = vmatprep.subr.bf16.mxu0 0
  %1239 = vmatpush1.bf16.msra.mxu0 %v980
  %1240 = vmatprep.subr.bf16.mxu0 0
  %1241 = vmatpush1.bf16.msra.mxu0 %v981
  %1242 = vmatprep.subr.bf16.mxu0 0
  %1243 = vmatpush1.bf16.msra.mxu0 %v982
  %1244 = vmatprep.subr.bf16.mxu0 0
  %1245 = vmatpush1.bf16.msra.mxu0 %v983
  %1246 = vmatprep.subr.bf16.mxu0 0
  %1247 = vmatpush1.bf16.msra.mxu0 %v984
  %1248 = vmatprep.subr.bf16.mxu0 0
  %1249 = vmatpush1.bf16.msra.mxu0 %v985
  %1250 = vmatprep.subr.bf16.mxu0 0
  %1251 = vmatpush1.bf16.msra.mxu0 %v986
  %1252 = vmatprep.subr.bf16.mxu0 0
  %1253 = vmatpush1.bf16.msra.mxu0 %v987
  %1254 = vmatprep.subr.bf16.mxu0 0
  %1255 = vmatpush1.bf16.msra.mxu0 %v988
  %1256 = vmatprep.subr.bf16.mxu0 0
  %1257 = vmatpush1.bf16.msra.mxu0 %v989
  %1258 = vmatprep.subr.bf16.mxu0 0
  %1259 = vmatpush1.bf16.msra.mxu0 %v990
  %1260 = vmatprep.subr.bf16.mxu0 0
  %1261 = vmatpush1.bf16.msra.mxu0 %v991
  %1262 = vmatprep.subr.bf16.mxu0 0
  %1263 = vmatpush1.bf16.msra.mxu0 %v992
  %1264 = vmatprep.subr.bf16.mxu0 0
  %1265 = vmatpush1.bf16.msra.mxu0 %v993
  %1266 = vmatprep.mubr.bf16.mxu0 %v403
  %1267 = vmatmul.mubr.bf16.gmra.mrb[0].mxu0 %v402
  %v1268 = vpop.f32.mrb[0].mxu0
  %v1269 = vadd.f32 0.0, %v1268
  %v1270 = vpop.f32.mrb[0].mxu0
  %v1271 = vpop.f32.mrb[0].mxu0
  %v1272 = vadd.f32 0.0, %v1271
  %v1273 = vpop.f32.mrb[0].mxu0
  %1274 = vmatprep.mubr.bf16.mxu0 %v419
  %1275 = vmatmul.mubr.bf16.gmra.mrb[0].mxu0 %v418
  %v1276 = vpop.f32.mrb[0].mxu0
  %v1277 = vadd.f32 0.0, %v1276
  %v1278 = vpop.f32.mrb[0].mxu0
  %v1279 = vpop.f32.mrb[0].mxu0
  %v1280 = vadd.f32 0.0, %v1279
  %v1281 = vpop.f32.mrb[0].mxu0
  %1282 = vdwg.mxu0
  %1283 = vmatprep.subr.bf16.mxu0 0
  %1284 = vmatpush1.bf16.msra.mxu0 %v994
  %1285 = vmatprep.subr.bf16.mxu0 0
  %1286 = vmatpush1.bf16.msra.mxu0 %v995
  %1287 = vmatprep.subr.bf16.mxu0 0
  %1288 = vmatpush1.bf16.msra.mxu0 %v996
  %1289 = vmatprep.subr.bf16.mxu0 0
  %1290 = vmatpush1.bf16.msra.mxu0 %v997
  %1291 = vmatprep.subr.bf16.mxu0 0
  %1292 = vmatpush1.bf16.msra.mxu0 %v998
  %1293 = vmatprep.subr.bf16.mxu0 0
  %1294 = vmatpush1.bf16.msra.mxu0 %v999
  %1295 = vmatprep.subr.bf16.mxu0 0
  %1296 = vmatpush1.bf16.msra.mxu0 %v1000
  %1297 = vmatprep.subr.bf16.mxu0 0
  %1298 = vmatpush1.bf16.msra.mxu0 %v1001
  %1299 = vmatprep.subr.bf16.mxu0 0
  %1300 = vmatpush1.bf16.msra.mxu0 %v1002
  %1301 = vmatprep.subr.bf16.mxu0 0
  %1302 = vmatpush1.bf16.msra.mxu0 %v1003
  %1303 = vmatprep.subr.bf16.mxu0 0
  %1304 = vmatpush1.bf16.msra.mxu0 %v1004
  %1305 = vmatprep.subr.bf16.mxu0 0
  %1306 = vmatpush1.bf16.msra.mxu0 %v1005
  %1307 = vmatprep.subr.bf16.mxu0 0
  %1308 = vmatpush1.bf16.msra.mxu0 %v1006
  %1309 = vmatprep.subr.bf16.mxu0 0
  %1310 = vmatpush1.bf16.msra.mxu0 %v1007
  %1311 = vmatprep.subr.bf16.mxu0 0
  %1312 = vmatpush1.bf16.msra.mxu0 %v1008
  %1313 = vmatprep.subr.bf16.mxu0 0
  %1314 = vmatpush1.bf16.msra.mxu0 %v1009
  %1315 = vmatprep.mubr.bf16.mxu0 %v405
  %1316 = vmatmul.mubr.bf16.gmra.mrb[0].mxu0 %v404
  %v1317 = vpop.f32.mrb[0].mxu0
  %v1318 = vadd.f32 %v1269, %v1317
  %v1319 = vpop.f32.mrb[0].mxu0
  %v1320 = vpop.f32.mrb[0].mxu0
  %v1321 = vadd.f32 %v1272, %v1320
  %v1322 = vpop.f32.mrb[0].mxu0
  %1323 = vmatprep.mubr.bf16.mxu0 %v421
  %1324 = vmatmul.mubr.bf16.gmra.mrb[0].mxu0 %v420
  %v1325 = vpop.f32.mrb[0].mxu0
  %v1326 = vadd.f32 %v1277, %v1325
  %v1327 = vpop.f32.mrb[0].mxu0
  %v1328 = vpop.f32.mrb[0].mxu0
  %v1329 = vadd.f32 %v1280, %v1328
  %v1330 = vpop.f32.mrb[0].mxu0
  %1331 = vdwg.mxu0
  %1332 = vmatprep.subr.bf16.mxu0 0
  %1333 = vmatpush1.bf16.msra.mxu0 %v1010
  %1334 = vmatprep.subr.bf16.mxu0 0
  %1335 = vmatpush1.bf16.msra.mxu0 %v1011
  %1336 = vmatprep.subr.bf16.mxu0 0
  %1337 = vmatpush1.bf16.msra.mxu0 %v1012
  %1338 = vmatprep.subr.bf16.mxu0 0
  %1339 = vmatpush1.bf16.msra.mxu0 %v1013
  %1340 = vmatprep.subr.bf16.mxu0 0
  %1341 = vmatpush1.bf16.msra.mxu0 %v1014
  %1342 = vmatprep.subr.bf16.mxu0 0
  %1343 = vmatpush1.bf16.msra.mxu0 %v1015
  %1344 = vmatprep.subr.bf16.mxu0 0
  %1345 = vmatpush1.bf16.msra.mxu0 %v1016
  %1346 = vmatprep.subr.bf16.mxu0 0
  %1347 = vmatpush1.bf16.msra.mxu0 %v1017
  %1348 = vmatprep.subr.bf16.mxu0 0
  %1349 = vmatpush1.bf16.msra.mxu0 %v1018
  %1350 = vmatprep.subr.bf16.mxu0 0
  %1351 = vmatpush1.bf16.msra.mxu0 %v1019
  %1352 = vmatprep.subr.bf16.mxu0 0
  %1353 = vmatpush1.bf16.msra.mxu0 %v1020
  %1354 = vmatprep.subr.bf16.mxu0 0
  %1355 = vmatpush1.bf16.msra.mxu0 %v1021
  %1356 = vmatprep.subr.bf16.mxu0 0
  %1357 = vmatpush1.bf16.msra.mxu0 %v1022
  %1358 = vmatprep.subr.bf16.mxu0 0
  %1359 = vmatpush1.bf16.msra.mxu0 %v1023
  %1360 = vmatprep.subr.bf16.mxu0 0
  %1361 = vmatpush1.bf16.msra.mxu0 %v1024
  %1362 = vmatprep.subr.bf16.mxu0 0
  %1363 = vmatpush1.bf16.msra.mxu0 %v1025
  %1364 = vmatprep.mubr.bf16.mxu0 %v407
  %1365 = vmatmul.mubr.bf16.gmra.mrb[0].mxu0 %v406
  %v1366 = vpop.f32.mrb[0].mxu0
  %v1367 = vadd.f32 %v1318, %v1366
  %v1368 = vpop.f32.mrb[0].mxu0
  %v1369 = vpop.f32.mrb[0].mxu0
  %v1370 = vadd.f32 %v1321, %v1369
  %v1371 = vpop.f32.mrb[0].mxu0
  %1372 = vmatprep.mubr.bf16.mxu0 %v423
  %1373 = vmatmul.mubr.bf16.gmra.mrb[0].mxu0 %v422
  %v1374 = vpop.f32.mrb[0].mxu0
  %v1375 = vadd.f32 %v1326, %v1374
  %v1376 = vpop.f32.mrb[0].mxu0
  %v1377 = vpop.f32.mrb[0].mxu0
  %v1378 = vadd.f32 %v1329, %v1377
  %v1379 = vpop.f32.mrb[0].mxu0
  %1380 = vdwg.mxu0
  %1381 = vmatprep.subr.bf16.mxu0 0
  %1382 = vmatpush1.bf16.msra.mxu0 %v1026
  %1383 = vmatprep.subr.bf16.mxu0 0
  %1384 = vmatpush1.bf16.msra.mxu0 %v1027
  %1385 = vmatprep.subr.bf16.mxu0 0
  %1386 = vmatpush1.bf16.msra.mxu0 %v1028
  %1387 = vmatprep.subr.bf16.mxu0 0
  %1388 = vmatpush1.bf16.msra.mxu0 %v1029
  %1389 = vmatprep.subr.bf16.mxu0 0
  %1390 = vmatpush1.bf16.msra.mxu0 %v1030
  %1391 = vmatprep.subr.bf16.mxu0 0
  %1392 = vmatpush1.bf16.msra.mxu0 %v1031
  %1393 = vmatprep.subr.bf16.mxu0 0
  %1394 = vmatpush1.bf16.msra.mxu0 %v1032
  %1395 = vmatprep.subr.bf16.mxu0 0
  %1396 = vmatpush1.bf16.msra.mxu0 %v1033
  %1397 = vmatprep.subr.bf16.mxu0 0
  %1398 = vmatpush1.bf16.msra.mxu0 %v1034
  %1399 = vmatprep.subr.bf16.mxu0 0
  %1400 = vmatpush1.bf16.msra.mxu0 %v1035
  %1401 = vmatprep.subr.bf16.mxu0 0
  %1402 = vmatpush1.bf16.msra.mxu0 %v1036
  %1403 = vmatprep.subr.bf16.mxu0 0
  %1404 = vmatpush1.bf16.msra.mxu0 %v1037
  %1405 = vmatprep.subr.bf16.mxu0 0
  %1406 = vmatpush1.bf16.msra.mxu0 %v1038
  %1407 = vmatprep.subr.bf16.mxu0 0
  %1408 = vmatpush1.bf16.msra.mxu0 %v1039
  %1409 = vmatprep.subr.bf16.mxu0 0
  %1410 = vmatpush1.bf16.msra.mxu0 %v1040
  %1411 = vmatprep.subr.bf16.mxu0 0
  %1412 = vmatpush1.bf16.msra.mxu0 %v1041
  %1413 = vmatprep.mubr.bf16.mxu0 %v409
  %1414 = vmatmul.mubr.bf16.gmra.mrb[0].mxu0 %v408
  %v1415 = vpop.f32.mrb[0].mxu0
  %v1416 = vadd.f32 %v1367, %v1415
  %v1417 = vpop.f32.mrb[0].mxu0
  %v1418 = vpop.f32.mrb[0].mxu0
  %v1419 = vadd.f32 %v1370, %v1418
  %v1420 = vpop.f32.mrb[0].mxu0
  %1421 = vmatprep.mubr.bf16.mxu0 %v425
  %1422 = vmatmul.mubr.bf16.gmra.mrb[0].mxu0 %v424
  %v1423 = vpop.f32.mrb[0].mxu0
  %v1424 = vadd.f32 %v1375, %v1423
  %v1425 = vpop.f32.mrb[0].mxu0
  %v1426 = vpop.f32.mrb[0].mxu0
  %v1427 = vadd.f32 %v1378, %v1426
  %v1428 = vpop.f32.mrb[0].mxu0
  %1429 = vdwg.mxu0
  %1430 = vmatprep.subr.bf16.mxu0 0
  %1431 = vmatpush1.bf16.msra.mxu0 %v1042
  %1432 = vmatprep.subr.bf16.mxu0 0
  %1433 = vmatpush1.bf16.msra.mxu0 %v1043
  %1434 = vmatprep.subr.bf16.mxu0 0
  %1435 = vmatpush1.bf16.msra.mxu0 %v1044
  %1436 = vmatprep.subr.bf16.mxu0 0
  %1437 = vmatpush1.bf16.msra.mxu0 %v1045
  %1438 = vmatprep.subr.bf16.mxu0 0
  %1439 = vmatpush1.bf16.msra.mxu0 %v1046
  %1440 = vmatprep.subr.bf16.mxu0 0
  %1441 = vmatpush1.bf16.msra.mxu0 %v1047
  %1442 = vmatprep.subr.bf16.mxu0 0
  %1443 = vmatpush1.bf16.msra.mxu0 %v1048
  %1444 = vmatprep.subr.bf16.mxu0 0
  %1445 = vmatpush1.bf16.msra.mxu0 %v1049
  %1446 = vmatprep.subr.bf16.mxu0 0
  %1447 = vmatpush1.bf16.msra.mxu0 %v1050
  %1448 = vmatprep.subr.bf16.mxu0 0
  %1449 = vmatpush1.bf16.msra.mxu0 %v1051
  %1450 = vmatprep.subr.bf16.mxu0 0
  %1451 = vmatpush1.bf16.msra.mxu0 %v1052
  %1452 = vmatprep.subr.bf16.mxu0 0
  %1453 = vmatpush1.bf16.msra.mxu0 %v1053
  %1454 = vmatprep.subr.bf16.mxu0 0
  %1455 = vmatpush1.bf16.msra.mxu0 %v1054
  %1456 = vmatprep.subr.bf16.mxu0 0
  %1457 = vmatpush1.bf16.msra.mxu0 %v1055
  %1458 = vmatprep.subr.bf16.mxu0 0
  %1459 = vmatpush1.bf16.msra.mxu0 %v1056
  %1460 = vmatprep.subr.bf16.mxu0 0
  %1461 = vmatpush1.bf16.msra.mxu0 %v1057
  %1462 = vmatprep.mubr.bf16.mxu0 %v411
  %1463 = vmatmul.mubr.bf16.gmra.mrb[0].mxu0 %v410
  %v1464 = vpop.f32.mrb[0].mxu0
  %v1465 = vadd.f32 %v1416, %v1464
  %v1466 = vpop.f32.mrb[0].mxu0
  %v1467 = vpop.f32.mrb[0].mxu0
  %v1468 = vadd.f32 %v1419, %v1467
  %v1469 = vpop.f32.mrb[0].mxu0
  %1470 = vmatprep.mubr.bf16.mxu0 %v427
  %1471 = vmatmul.mubr.bf16.gmra.mrb[0].mxu0 %v426
  %v1472 = vpop.f32.mrb[0].mxu0
  %v1473 = vadd.f32 %v1424, %v1472
  %v1474 = vpop.f32.mrb[0].mxu0
  %v1475 = vpop.f32.mrb[0].mxu0
  %v1476 = vadd.f32 %v1427, %v1475
  %v1477 = vpop.f32.mrb[0].mxu0
  %1478 = vdwg.mxu0
  %1479 = vmatprep.subr.bf16.mxu0 0
  %1480 = vmatpush1.bf16.msra.mxu0 %v1058
  %1481 = vmatprep.subr.bf16.mxu0 0
  %1482 = vmatpush1.bf16.msra.mxu0 %v1059
  %1483 = vmatprep.subr.bf16.mxu0 0
  %1484 = vmatpush1.bf16.msra.mxu0 %v1060
  %1485 = vmatprep.subr.bf16.mxu0 0
  %1486 = vmatpush1.bf16.msra.mxu0 %v1061
  %1487 = vmatprep.subr.bf16.mxu0 0
  %1488 = vmatpush1.bf16.msra.mxu0 %v1062
  %1489 = vmatprep.subr.bf16.mxu0 0
  %1490 = vmatpush1.bf16.msra.mxu0 %v1063
  %1491 = vmatprep.subr.bf16.mxu0 0
  %1492 = vmatpush1.bf16.msra.mxu0 %v1064
  %1493 = vmatprep.subr.bf16.mxu0 0
  %1494 = vmatpush1.bf16.msra.mxu0 %v1065
  %1495 = vmatprep.subr.bf16.mxu0 0
  %1496 = vmatpush1.bf16.msra.mxu0 %v1066
  %1497 = vmatprep.subr.bf16.mxu0 0
  %1498 = vmatpush1.bf16.msra.mxu0 %v1067
  %1499 = vmatprep.subr.bf16.mxu0 0
  %1500 = vmatpush1.bf16.msra.mxu0 %v1068
  %1501 = vmatprep.subr.bf16.mxu0 0
  %1502 = vmatpush1.bf16.msra.mxu0 %v1069
  %1503 = vmatprep.subr.bf16.mxu0 0
  %1504 = vmatpush1.bf16.msra.mxu0 %v1070
  %1505 = vmatprep.subr.bf16.mxu0 0
  %1506 = vmatpush1.bf16.msra.mxu0 %v1071
  %1507 = vmatprep.subr.bf16.mxu0 0
  %1508 = vmatpush1.bf16.msra.mxu0 %v1072
  %1509 = vmatprep.subr.bf16.mxu0 0
  %1510 = vmatpush1.bf16.msra.mxu0 %v1073
  %1511 = vmatprep.mubr.bf16.mxu0 %v413
  %1512 = vmatmul.mubr.bf16.gmra.mrb[0].mxu0 %v412
  %v1513 = vpop.f32.mrb[0].mxu0
  %v1514 = vadd.f32 %v1465, %v1513
  %v1515 = vpop.f32.mrb[0].mxu0
  %v1516 = vpop.f32.mrb[0].mxu0
  %v1517 = vadd.f32 %v1468, %v1516
  %v1518 = vpop.f32.mrb[0].mxu0
  %1519 = vmatprep.mubr.bf16.mxu0 %v429
  %1520 = vmatmul.mubr.bf16.gmra.mrb[0].mxu0 %v428
  %v1521 = vpop.f32.mrb[0].mxu0
  %v1522 = vadd.f32 %v1473, %v1521
  %v1523 = vpop.f32.mrb[0].mxu0
  %v1524 = vpop.f32.mrb[0].mxu0
  %v1525 = vadd.f32 %v1476, %v1524
  %v1526 = vpop.f32.mrb[0].mxu0
  %1527 = vdwg.mxu0
  %1528 = vmatprep.subr.bf16.mxu0 0
  %1529 = vmatpush1.bf16.msra.mxu0 %v1074
  %1530 = vmatprep.subr.bf16.mxu0 0
  %1531 = vmatpush1.bf16.msra.mxu0 %v1075
  %1532 = vmatprep.subr.bf16.mxu0 0
  %1533 = vmatpush1.bf16.msra.mxu0 %v1076
  %1534 = vmatprep.subr.bf16.mxu0 0
  %1535 = vmatpush1.bf16.msra.mxu0 %v1077
  %1536 = vmatprep.subr.bf16.mxu0 0
  %1537 = vmatpush1.bf16.msra.mxu0 %v1078
  %1538 = vmatprep.subr.bf16.mxu0 0
  %1539 = vmatpush1.bf16.msra.mxu0 %v1079
  %1540 = vmatprep.subr.bf16.mxu0 0
  %1541 = vmatpush1.bf16.msra.mxu0 %v1080
  %1542 = vmatprep.subr.bf16.mxu0 0
  %1543 = vmatpush1.bf16.msra.mxu0 %v1081
  %1544 = vmatprep.subr.bf16.mxu0 0
  %1545 = vmatpush1.bf16.msra.mxu0 %v1082
  %1546 = vmatprep.subr.bf16.mxu0 0
  %1547 = vmatpush1.bf16.msra.mxu0 %v1083
  %1548 = vmatprep.subr.bf16.mxu0 0
  %1549 = vmatpush1.bf16.msra.mxu0 %v1084
  %1550 = vmatprep.subr.bf16.mxu0 0
  %1551 = vmatpush1.bf16.msra.mxu0 %v1085
  %1552 = vmatprep.subr.bf16.mxu0 0
  %1553 = vmatpush1.bf16.msra.mxu0 %v1086
  %1554 = vmatprep.subr.bf16.mxu0 0
  %1555 = vmatpush1.bf16.msra.mxu0 %v1087
  %1556 = vmatprep.subr.bf16.mxu0 0
  %1557 = vmatpush1.bf16.msra.mxu0 %v1088
  %1558 = vmatprep.subr.bf16.mxu0 0
  %1559 = vmatpush1.bf16.msra.mxu0 %v1089
  %1560 = vmatprep.mubr.bf16.mxu0 %v415
  %1561 = vmatmul.mubr.bf16.gmra.mrb[0].mxu0 %v414
  %v1562 = vpop.f32.mrb[0].mxu0
  %v1563 = vadd.f32 %v1514, %v1562
  %v1564 = vpop.f32.mrb[0].mxu0
  %v1565 = vpop.f32.mrb[0].mxu0
  %v1566 = vadd.f32 %v1517, %v1565
  %v1567 = vpop.f32.mrb[0].mxu0
  %1568 = vmatprep.mubr.bf16.mxu0 %v431
  %1569 = vmatmul.mubr.bf16.gmra.mrb[0].mxu0 %v430
  %v1570 = vpop.f32.mrb[0].mxu0
  %v1571 = vadd.f32 %v1522, %v1570
  %v1572 = vpop.f32.mrb[0].mxu0
  %v1573 = vpop.f32.mrb[0].mxu0
  %v1574 = vadd.f32 %v1525, %v1573
  %v1575 = vpop.f32.mrb[0].mxu0
  %1576 = vdwg.mxu0
  %1577 = vmatprep.subr.bf16.mxu0 0
  %1578 = vmatpush1.bf16.msra.mxu0 %v1090
  %1579 = vmatprep.subr.bf16.mxu0 0
  %1580 = vmatpush1.bf16.msra.mxu0 %v1091
  %1581 = vmatprep.subr.bf16.mxu0 0
  %1582 = vmatpush1.bf16.msra.mxu0 %v1092
  %1583 = vmatprep.subr.bf16.mxu0 0
  %1584 = vmatpush1.bf16.msra.mxu0 %v1093
  %1585 = vmatprep.subr.bf16.mxu0 0
  %1586 = vmatpush1.bf16.msra.mxu0 %v1094
  %1587 = vmatprep.subr.bf16.mxu0 0
  %1588 = vmatpush1.bf16.msra.mxu0 %v1095
  %1589 = vmatprep.subr.bf16.mxu0 0
  %1590 = vmatpush1.bf16.msra.mxu0 %v1096
  %1591 = vmatprep.subr.bf16.mxu0 0
  %1592 = vmatpush1.bf16.msra.mxu0 %v1097
  %1593 = vmatprep.subr.bf16.mxu0 0
  %1594 = vmatpush1.bf16.msra.mxu0 %v1098
  %1595 = vmatprep.subr.bf16.mxu0 0
  %1596 = vmatpush1.bf16.msra.mxu0 %v1099
  %1597 = vmatprep.subr.bf16.mxu0 0
  %1598 = vmatpush1.bf16.msra.mxu0 %v1100
  %1599 = vmatprep.subr.bf16.mxu0 0
  %1600 = vmatpush1.bf16.msra.mxu0 %v1101
  %1601 = vmatprep.subr.bf16.mxu0 0
  %1602 = vmatpush1.bf16.msra.mxu0 %v1102
  %1603 = vmatprep.subr.bf16.mxu0 0
  %1604 = vmatpush1.bf16.msra.mxu0 %v1103
  %1605 = vmatprep.subr.bf16.mxu0 0
  %1606 = vmatpush1.bf16.msra.mxu0 %v1104
  %1607 = vmatprep.subr.bf16.mxu0 0
  %1608 = vmatpush1.bf16.msra.mxu0 %v1105
  %1609 = vmatprep.mubr.bf16.mxu0 %v417
  %1610 = vmatmul.mubr.bf16.gmra.mrb[0].mxu0 %v416
  %v1611 = vpop.f32.mrb[0].mxu0
  %v1612 = vadd.f32 %v1563, %v1611
  %v1613 = vpop.f32.mrb[0].mxu0
  %v1614 = vpop.f32.mrb[0].mxu0
  %v1615 = vadd.f32 %v1566, %v1614
  %v1616 = vpop.f32.mrb[0].mxu0
  %1617 = vmatprep.mubr.bf16.mxu0 %v433
  %1618 = vmatmul.mubr.bf16.gmra.mrb[0].mxu0 %v432
  %v1619 = vpop.f32.mrb[0].mxu0
  %v1620 = vadd.f32 %v1571, %v1619
  %v1621 = vpop.f32.mrb[0].mxu0
  %v1622 = vpop.f32.mrb[0].mxu0
  %v1623 = vadd.f32 %v1574, %v1622
  %v1624 = vpop.f32.mrb[0].mxu0
  %1625 = vdwg.mxu0
  %v1626 = vadd.f32 %v1612, %v1615
  %v1627 = vadd.f32 %v1626, %v1620
  %v1628 = vadd.f32 %v1627, %v1623
  %v1629 = vrot.slane %v1628, 4
  %v1630 = vadd.f32 %v1628, %v1629
  %v1631 = vrot.slane %v1630, 2
  %v1632 = vadd.f32 %v1630, %v1631
  %v1633 = vrot.slane %v1632, 1
  %v1634 = vadd.f32 %v1632, %v1633
  %v1635 = vmul.f32 %v1612, %v1612
  %v1636 = vmul.f32 %v1615, %v1615
  %v1637 = vmul.f32 %v1620, %v1620
  %v1638 = vmul.f32 %v1623, %v1623
  %v1639 = vadd.f32 %v1635, %v1636
  %v1640 = vadd.f32 %v1639, %v1637
  %v1641 = vadd.f32 %v1640, %v1638
  %v1642 = vrot.slane %v1641, 4
  %v1643 = vadd.f32 %v1641, %v1642
  %v1644 = vrot.slane %v1643, 2
  %v1645 = vadd.f32 %v1643, %v1644
  %v1646 = vrot.slane %v1645, 1
  %v1647 = vadd.f32 %v1645, %v1646
  %v1648 = vrcp.pop 32.0
  %v1649 = vmul.f32 %v1634, %v1648
  %v1650 = vmul.f32 %v1647, %v1648
  %v1651 = vmul.f32 %v1649, %v1649
  %v1652 = vsub.f32 %v1650, %v1651
  %v1653 = vmax.f32 %v1652, 0.0
  %v1654 = vsub.f32 %v1612, %v1649
  %v1655 = vsub.f32 %v1615, %v1649
  %v1656 = vsub.f32 %v1620, %v1649
  %v1657 = vsub.f32 %v1623, %v1649
  %v1658 = vadd.f32 %v1653, 1e-05
  %v1659 = vrsqrt.pop %v1658
  %v1660 = vmul.f32 %v1654, %v1659
  %v1661 = vmul.f32 %v1655, %v1659
  %v1662 = vmul.f32 %v1656, %v1659
  %v1663 = vmul.f32 %v1657, %v1659
  %v1664 = vld [vmem:[%s2] sm:$0x1]
  %v1666 = vlaneseq
  %v1667 = vshrl.u32 %v1666, 7
  %v1668 = vsub.s32 0, %v1667
  %v1669 = vrot.slane %v1664, %v1668
  %v1671 = vmul.f32 %v1660, %v1669
  %v1672 = vmul.f32 %v1661, %v1669
  %v1673 = vmul.f32 %v1662, %v1669
  %v1674 = vmul.f32 %v1663, %v1669
  %v1675 = vld [vmem:[%s3] sm:$0x1]
  %v1677 = vlaneseq
  %v1678 = vshrl.u32 %v1677, 7
  %v1679 = vsub.s32 0, %v1678
  %v1680 = vrot.slane %v1675, %v1679
  %v1682 = vadd.f32 %v1671, %v1680
  %v1683 = vadd.f32 %v1672, %v1680
  %v1684 = vadd.f32 %v1673, %v1680
  %v1685 = vadd.f32 %v1674, %v1680
  %vm1686 = vcmp.gt.f32.partialorder %v1682, 0.0
  %vm1687 = vcmp.gt.f32.partialorder %v1683, 0.0
  %vm1688 = vcmp.gt.f32.partialorder %v1684, 0.0
  %vm1689 = vcmp.gt.f32.partialorder %v1685, 0.0
  %v1690 = vmul.f32 %v1682, 0.2
  %v1691 = vmul.f32 %v1683, 0.2
  %v1692 = vmul.f32 %v1684, 0.2
  %v1693 = vmul.f32 %v1685, 0.2
  %v1694 = vsel %vm1686, %v1682, %v1690
  %v1695 = vsel %vm1687, %v1683, %v1691
  %v1696 = vsel %vm1688, %v1684, %v1692
  %v1697 = vsel %vm1689, %v1685, %v1693
  %v1698 = vpack.c.bf16 %v1695, %v1694
  %v1699 = vpack.c.bf16 %v1697, %v1696
  %v1702 = vunpack.c.l.b16 %v1698
  %v1703 = vunpack.c.h.b16 %v1698
  %v1704 = vunpack.c.l.b16 %v1699
  %v1705 = vunpack.c.h.b16 %v1699
  %v1706 = vpack.c.b16 %v1702, %v1702
  %v1707 = vpack.c.b16 %v1703, %v1703
  %v1708 = vpack.c.b16 %v1704, %v1704
  %v1709 = vpack.c.b16 %v1705, %v1705
  %1714 = vst [vmem:[%s4] sm:$0xf] %v1706
  %1715 = vst [vmem:[%s4 + $0x4] sm:$0xf] %v1707
  %1716 = vst [vmem:[%s4 + $0x8] sm:$0xf] %v1708
  %1717 = vst [vmem:[%s4 + $0xc] sm:$0xf] %v1709
  // Predicated region
  $region18: #{discriminator_forward.7} parent=0 // pred_check
    _
  $region19: #{discriminator_forward.7} parent=0 // pred_check_branch
    %1719 = sbr.rel (0) target = $region21
  $region20: #{discriminator_forward.7} parent=0 // pred_region
    _
  $region21: #{discriminator_forward.7} parent=0 // pred_fallthru
    _
  // Predicated region
  $region22: #{discriminator_forward.7} parent=0 // pred_check
    _
  $region23: #{discriminator_forward.7} parent=0 // pred_check_branch
    %1721 = sbr.rel (0) target = $region25
  $region24: #{discriminator_forward.7} parent=0 // pred_region
    _
  $region25: #{discriminator_forward.7} parent=0 // pred_fallthru
    _

// kernel: discriminator_forward.9
$region0: #{discriminator_forward.9}
  #allocation0 [shape = 'u32[]', space=smem, size = 0x4, offset = 0x4, fixed_abs, tag = 'smem constant byte address 0x4 - core index']
  #allocation1 [shape = 'u32[144,128]{1,0:T(1,128)}', space=vmem, size = 0x12000, scoped, tag = 'internal scratch']
  %s0 = inlined_call_operand.vmem [shape: bf16[2,512], index: 0, kind: input, shape index: {}]
  %s1 = inlined_call_operand.vmem [shape: bf16[512,128], index: 1, kind: input, shape index: {}]
  %s2 = inlined_call_operand.vmem [shape: f32[1,128], index: 2, kind: input, shape index: {}]
  %s3 = inlined_call_operand.vmem [shape: f32[2,128], index: 3, kind: output, shape index: {}]
  %s4 = sld [smem:[#allocation0]]
  $region22: #{discriminator_forward.9} parent=0
    _
  %s6 = ssub.s32 1, %s4
  %s7 = scalar_select 0, %s6, %s4
  // Predicated region
  $region2: #{discriminator_forward.9} parent=0 // pred_check
    _
  $region3: #{discriminator_forward.9} parent=0 // pred_check_branch
    %9 = sbr.rel (0) target = $region5
  $region4: #{discriminator_forward.9} parent=0 // pred_region
    _
  $region5: #{discriminator_forward.9} parent=0 // pred_fallthru
    _
  // Predicated region
  $region6: #{discriminator_forward.9} parent=0 // pred_check
    _
  $region7: #{discriminator_forward.9} parent=0 // pred_check_branch
    %11 = sbr.rel (0) target = $region9
  $region8: #{discriminator_forward.9} parent=0 // pred_region
    _
  $region9: #{discriminator_forward.9} parent=0 // pred_fallthru
    _
  // Predicated region
  $region10: #{discriminator_forward.9} parent=0 // pred_check
    _
  $region11: #{discriminator_forward.9} parent=0 // pred_check_branch
    %13 = sbr.rel (0) target = $region13
  $region12: #{discriminator_forward.9} parent=0 // pred_region
    _
  $region13: #{discriminator_forward.9} parent=0 // pred_fallthru
    _
  %v15 = vld [vmem:[%s0] sm:$0xf]
  %v16 = vld [vmem:[%s1] sm:$0xf]
  %v17 = vld [vmem:[%s1 + $0x4] sm:$0xf]
  %v18 = vld [vmem:[%s1 + $0x8] sm:$0xf]
  %v19 = vld [vmem:[%s1 + $0xc] sm:$0xf]
  %v20 = vld [vmem:[%s1 + $0x10] sm:$0xf]
  %v21 = vld [vmem:[%s1 + $0x14] sm:$0xf]
  %v22 = vld [vmem:[%s1 + $0x18] sm:$0xf]
  %v23 = vld [vmem:[%s1 + $0x1c] sm:$0xf]
  %v24 = vld [vmem:[%s1 + $0x20] sm:$0xf]
  %v25 = vld [vmem:[%s1 + $0x24] sm:$0xf]
  %v26 = vld [vmem:[%s1 + $0x28] sm:$0xf]
  %v27 = vld [vmem:[%s1 + $0x2c] sm:$0xf]
  %v28 = vld [vmem:[%s1 + $0x30] sm:$0xf]
  %v29 = vld [vmem:[%s1 + $0x34] sm:$0xf]
  %v30 = vld [vmem:[%s1 + $0x38] sm:$0xf]
  %v31 = vld [vmem:[%s1 + $0x3c] sm:$0xf]
  %v32 = vld [vmem:[%s1 + $0x40] sm:$0xf]
  %v33 = vld [vmem:[%s1 + $0x44] sm:$0xf]
  %v34 = vld [vmem:[%s1 + $0x48] sm:$0xf]
  %v35 = vld [vmem:[%s1 + $0x4c] sm:$0xf]
  %v36 = vld [vmem:[%s1 + $0x50] sm:$0xf]
  %v37 = vld [vmem:[%s1 + $0x54] sm:$0xf]
  %v38 = vld [vmem:[%s1 + $0x58] sm:$0xf]
  %v39 = vld [vmem:[%s1 + $0x5c] sm:$0xf]
  %v40 = vld [vmem:[%s1 + $0x60] sm:$0xf]
  %v41 = vld [vmem:[%s1 + $0x64] sm:$0xf]
  %v42 = vld [vmem:[%s1 + $0x68] sm:$0xf]
  %v43 = vld [vmem:[%s1 + $0x6c] sm:$0xf]
  %v44 = vld [vmem:[%s1 + $0x70] sm:$0xf]
  %v45 = vld [vmem:[%s1 + $0x74] sm:$0xf]
  %v46 = vld [vmem:[%s1 + $0x78] sm:$0xf]
  %v47 = vld [vmem:[%s1 + $0x7c] sm:$0xf]
  %v48 = vld [vmem:[%s1 + $0x80] sm:$0xf]
  %v49 = vld [vmem:[%s1 + $0x84] sm:$0xf]
  %v50 = vld [vmem:[%s1 + $0x88] sm:$0xf]
  %v51 = vld [vmem:[%s1 + $0x8c] sm:$0xf]
  %v52 = vld [vmem:[%s1 + $0x90] sm:$0xf]
  %v53 = vld [vmem:[%s1 + $0x94] sm:$0xf]
  %v54 = vld [vmem:[%s1 + $0x98] sm:$0xf]
  %v55 = vld [vmem:[%s1 + $0x9c] sm:$0xf]
  %v56 = vld [vmem:[%s1 + $0xa0] sm:$0xf]
  %v57 = vld [vmem:[%s1 + $0xa4] sm:$0xf]
  %v58 = vld [vmem:[%s1 + $0xa8] sm:$0xf]
  %v59 = vld [vmem:[%s1 + $0xac] sm:$0xf]
  %v60 = vld [vmem:[%s1 + $0xb0] sm:$0xf]
  %v61 = vld [vmem:[%s1 + $0xb4] sm:$0xf]
  %v62 = vld [vmem:[%s1 + $0xb8] sm:$0xf]
  %v63 = vld [vmem:[%s1 + $0xbc] sm:$0xf]
  %v64 = vld [vmem:[%s1 + $0xc0] sm:$0xf]
  %v65 = vld [vmem:[%s1 + $0xc4] sm:$0xf]
  %v66 = vld [vmem:[%s1 + $0xc8] sm:$0xf]
  %v67 = vld [vmem:[%s1 + $0xcc] sm:$0xf]
  %v68 = vld [vmem:[%s1 + $0xd0] sm:$0xf]
  %v69 = vld [vmem:[%s1 + $0xd4] sm:$0xf]
  %v70 = vld [vmem:[%s1 + $0xd8] sm:$0xf]
  %v71 = vld [vmem:[%s1 + $0xdc] sm:$0xf]
  %v72 = vld [vmem:[%s1 + $0xe0] sm:$0xf]
  %v73 = vld [vmem:[%s1 + $0xe4] sm:$0xf]
  %v74 = vld [vmem:[%s1 + $0xe8] sm:$0xf]
  %v75 = vld [vmem:[%s1 + $0xec] sm:$0xf]
  %v76 = vld [vmem:[%s1 + $0xf0] sm:$0xf]
  %v77 = vld [vmem:[%s1 + $0xf4] sm:$0xf]
  %v78 = vld [vmem:[%s1 + $0xf8] sm:$0xf]
  %v79 = vld [vmem:[%s1 + $0xfc] sm:$0xf]
  %v80 = vld [vmem:[%s2] sm:$0x1]
  %v82 = vlaneseq
  %v83 = vshrl.u32 %v82, 7
  %v84 = vsub.s32 0, %v83
  %v85 = vrot.slane %v80, %v84
  %v89 = vunpack.c.l.s4 1966171168
  %v90 = vunpack.c.0.s8 %v89
  %v91 = vlaneseq
  %v92 = vshrl.u32 %v91, 7
  %v93 = vsub.s32 %v90, %v92
  %v94 = vrot.slane %v15, %v93
  %v95 = vcombine.high %v94, %v94
  %v97 = vunpack.c.l.s4 1966171168
  %v98 = vunpack.c.0.s8 %v97
  %v99 = vlaneseq
  %v100 = vshrl.u32 %v99, 7
  %v101 = vsub.s32 %v98, %v100
  %v102 = vrot.slane %v94, %v101
  %v104 = vunpack.c.l.s4 1966171168
  %v105 = vunpack.c.0.s8 %v104
  %v106 = vlaneseq
  %v107 = vshrl.u32 %v106, 7
  %v108 = vsub.s32 %v105, %v107
  %v109 = vrot.slane %v95, %v108
  %v110 = vcombine.high %v102, %v102
  %v111 = vcombine.high %v109, %v109
  %v180 = vunpack.c.l.b16 %v16
  %v181 = vunpack.c.l.b16 %v17
  %v182 = vunpack.c.l.b16 %v18
  %v183 = vunpack.c.l.b16 %v19
  %v184 = vunpack.c.l.b16 %v20
  %v185 = vunpack.c.l.b16 %v21
  %v186 = vunpack.c.l.b16 %v22
  %v187 = vunpack.c.l.b16 %v23
  %v188 = vunpack.c.l.b16 %v24
  %v189 = vunpack.c.l.b16 %v25
  %v190 = vunpack.c.l.b16 %v26
  %v191 = vunpack.c.l.b16 %v27
  %v192 = vunpack.c.l.b16 %v28
  %v193 = vunpack.c.l.b16 %v29
  %v194 = vunpack.c.l.b16 %v30
  %v195 = vunpack.c.l.b16 %v31
  %v196 = vunpack.c.l.b16 %v32
  %v197 = vunpack.c.l.b16 %v33
  %v198 = vunpack.c.l.b16 %v34
  %v199 = vunpack.c.l.b16 %v35
  %v200 = vunpack.c.l.b16 %v36
  %v201 = vunpack.c.l.b16 %v37
  %v202 = vunpack.c.l.b16 %v38
  %v203 = vunpack.c.l.b16 %v39
  %v204 = vunpack.c.l.b16 %v40
  %v205 = vunpack.c.l.b16 %v41
  %v206 = vunpack.c.l.b16 %v42
  %v207 = vunpack.c.l.b16 %v43
  %v208 = vunpack.c.l.b16 %v44
  %v209 = vunpack.c.l.b16 %v45
  %v210 = vunpack.c.l.b16 %v46
  %v211 = vunpack.c.l.b16 %v47
  %v212 = vunpack.c.l.b16 %v48
  %v213 = vunpack.c.l.b16 %v49
  %v214 = vunpack.c.l.b16 %v50
  %v215 = vunpack.c.l.b16 %v51
  %v216 = vunpack.c.l.b16 %v52
  %v217 = vunpack.c.l.b16 %v53
  %v218 = vunpack.c.l.b16 %v54
  %v219 = vunpack.c.l.b16 %v55
  %v220 = vunpack.c.l.b16 %v56
  %v221 = vunpack.c.l.b16 %v57
  %v222 = vunpack.c.l.b16 %v58
  %v223 = vunpack.c.l.b16 %v59
  %v224 = vunpack.c.l.b16 %v60
  %v225 = vunpack.c.l.b16 %v61
  %v226 = vunpack.c.l.b16 %v62
  %v227 = vunpack.c.l.b16 %v63
  %v228 = vunpack.c.l.b16 %v64
  %v229 = vunpack.c.l.b16 %v65
  %v230 = vunpack.c.l.b16 %v66
  %v231 = vunpack.c.l.b16 %v67
  %v232 = vunpack.c.l.b16 %v68
  %v233 = vunpack.c.l.b16 %v69
  %v234 = vunpack.c.l.b16 %v70
  %v235 = vunpack.c.l.b16 %v71
  %v236 = vunpack.c.l.b16 %v72
  %v237 = vunpack.c.l.b16 %v73
  %v238 = vunpack.c.l.b16 %v74
  %v239 = vunpack.c.l.b16 %v75
  %v240 = vunpack.c.l.b16 %v76
  %v241 = vunpack.c.l.b16 %v77
  %v242 = vunpack.c.l.b16 %v78
  %v243 = vunpack.c.l.b16 %v79
  %v244 = vpack.c.b16 %v181, %v180
  %v245 = vpack.c.b16 %v183, %v182
  %v246 = vpack.c.b16 %v185, %v184
  %v247 = vpack.c.b16 %v187, %v186
  %v248 = vpack.c.b16 %v189, %v188
  %v249 = vpack.c.b16 %v191, %v190
  %v250 = vpack.c.b16 %v193, %v192
  %v251 = vpack.c.b16 %v195, %v194
  %v252 = vpack.c.b16 %v197, %v196
  %v253 = vpack.c.b16 %v199, %v198
  %v254 = vpack.c.b16 %v201, %v200
  %v255 = vpack.c.b16 %v203, %v202
  %v256 = vpack.c.b16 %v205, %v204
  %v257 = vpack.c.b16 %v207, %v206
  %v258 = vpack.c.b16 %v209, %v208
  %v259 = vpack.c.b16 %v211, %v210
  %v260 = vpack.c.b16 %v213, %v212
  %v261 = vpack.c.b16 %v215, %v214
  %v262 = vpack.c.b16 %v217, %v216
  %v263 = vpack.c.b16 %v219, %v218
  %v264 = vpack.c.b16 %v221, %v220
  %v265 = vpack.c.b16 %v223, %v222
  %v266 = vpack.c.b16 %v225, %v224
  %v267 = vpack.c.b16 %v227, %v226
  %v268 = vpack.c.b16 %v229, %v228
  %v269 = vpack.c.b16 %v231, %v230
  %v270 = vpack.c.b16 %v233, %v232
  %v271 = vpack.c.b16 %v235, %v234
  %v272 = vpack.c.b16 %v237, %v236
  %v273 = vpack.c.b16 %v239, %v238
  %v274 = vpack.c.b16 %v241, %v240
  %v275 = vpack.c.b16 %v243, %v242
  %308 = vmatprep.subr.bf16.mxu0 0
  %309 = vmatpush1.bf16.msra.mxu0 %v244
  %310 = vmatprep.subr.bf16.mxu0 0
  %311 = vmatpush1.bf16.msra.mxu0 %v245
  %312 = vmatprep.subr.bf16.mxu0 0
  %313 = vmatpush1.bf16.msra.mxu0 %v246
  %314 = vmatprep.subr.bf16.mxu0 0
  %315 = vmatpush1.bf16.msra.mxu0 %v247
  %316 = vmatprep.subr.bf16.mxu0 0
  %317 = vmatpush1.bf16.msra.mxu0 %v248
  %318 = vmatprep.subr.bf16.mxu0 0
  %319 = vmatpush1.bf16.msra.mxu0 %v249
  %320 = vmatprep.subr.bf16.mxu0 0
  %321 = vmatpush1.bf16.msra.mxu0 %v250
  %322 = vmatprep.subr.bf16.mxu0 0
  %323 = vmatpush1.bf16.msra.mxu0 %v251
  %324 = vmatprep.subr.bf16.mxu0 0
  %325 = vmatpush1.bf16.msra.mxu0 %v252
  %326 = vmatprep.subr.bf16.mxu0 0
  %327 = vmatpush1.bf16.msra.mxu0 %v253
  %328 = vmatprep.subr.bf16.mxu0 0
  %329 = vmatpush1.bf16.msra.mxu0 %v254
  %330 = vmatprep.subr.bf16.mxu0 0
  %331 = vmatpush1.bf16.msra.mxu0 %v255
  %332 = vmatprep.subr.bf16.mxu0 0
  %333 = vmatpush1.bf16.msra.mxu0 %v256
  %334 = vmatprep.subr.bf16.mxu0 0
  %335 = vmatpush1.bf16.msra.mxu0 %v257
  %336 = vmatprep.subr.bf16.mxu0 0
  %337 = vmatpush1.bf16.msra.mxu0 %v258
  %338 = vmatprep.subr.bf16.mxu0 0
  %339 = vmatpush1.bf16.msra.mxu0 %v259
  %340 = vmatprep.mubr.bf16.mxu0 %v109
  %341 = vmatmul.mubr.bf16.gmra.mrb[0].mxu0 %v102
  %v342 = vpop.f32.mrb[0].mxu0
  %v343 = vadd.f32 %v85, %v342
  %v344 = vpop.f32.mrb[0].mxu0
  %v345 = vpop.f32.mrb[0].mxu0
  %v346 = vpop.f32.mrb[0].mxu0
  %347 = vdwg.mxu0
  %348 = vmatprep.subr.bf16.mxu0 0
  %349 = vmatpush1.bf16.msra.mxu0 %v260
  %350 = vmatprep.subr.bf16.mxu0 0
  %351 = vmatpush1.bf16.msra.mxu0 %v261
  %352 = vmatprep.subr.bf16.mxu0 0
  %353 = vmatpush1.bf16.msra.mxu0 %v262
  %354 = vmatprep.subr.bf16.mxu0 0
  %355 = vmatpush1.bf16.msra.mxu0 %v263
  %356 = vmatprep.subr.bf16.mxu0 0
  %357 = vmatpush1.bf16.msra.mxu0 %v264
  %358 = vmatprep.subr.bf16.mxu0 0
  %359 = vmatpush1.bf16.msra.mxu0 %v265
  %360 = vmatprep.subr.bf16.mxu0 0
  %361 = vmatpush1.bf16.msra.mxu0 %v266
  %362 = vmatprep.subr.bf16.mxu0 0
  %363 = vmatpush1.bf16.msra.mxu0 %v267
  %364 = vmatprep.subr.bf16.mxu0 0
  %365 = vmatpush1.bf16.msra.mxu0 %v268
  %366 = vmatprep.subr.bf16.mxu0 0
  %367 = vmatpush1.bf16.msra.mxu0 %v269
  %368 = vmatprep.subr.bf16.mxu0 0
  %369 = vmatpush1.bf16.msra.mxu0 %v270
  %370 = vmatprep.subr.bf16.mxu0 0
  %371 = vmatpush1.bf16.msra.mxu0 %v271
  %372 = vmatprep.subr.bf16.mxu0 0
  %373 = vmatpush1.bf16.msra.mxu0 %v272
  %374 = vmatprep.subr.bf16.mxu0 0
  %375 = vmatpush1.bf16.msra.mxu0 %v273
  %376 = vmatprep.subr.bf16.mxu0 0
  %377 = vmatpush1.bf16.msra.mxu0 %v274
  %378 = vmatprep.subr.bf16.mxu0 0
  %379 = vmatpush1.bf16.msra.mxu0 %v275
  %380 = vmatprep.mubr.bf16.mxu0 %v111
  %381 = vmatmul.mubr.bf16.gmra.mrb[0].mxu0 %v110
  %v382 = vpop.f32.mrb[0].mxu0
  %v383 = vadd.f32 %v343, %v382
  %v384 = vpop.f32.mrb[0].mxu0
  %v385 = vpop.f32.mrb[0].mxu0
  %v386 = vpop.f32.mrb[0].mxu0
  %387 = vdwg.mxu0
  %388 = vst [vmem:[%s3] sm:$0x3] %v383
  // Predicated region
  $region14: #{discriminator_forward.9} parent=0 // pred_check
    _
  $region15: #{discriminator_forward.9} parent=0 // pred_check_branch
    %390 = sbr.rel (0) target = $region17
  $region16: #{discriminator_forward.9} parent=0 // pred_region
    _
  $region17: #{discriminator_forward.9} parent=0 // pred_fallthru
    _
  // Predicated region
  $region18: #{discriminator_forward.9} parent=0 // pred_check
    _
  $region19: #{discriminator_forward.9} parent=0 // pred_check_branch
    %392 = sbr.rel (0) target = $region21
  $region20: #{discriminator_forward.9} parent=0 // pred_region
    _
  $region21: #{discriminator_forward.9} parent=0 // pred_fallthru
    _

// kernel: discriminator_forward.8
$region0: #{discriminator_forward.8}
  #allocation0 [shape = 'u32[]', space=smem, size = 0x4, offset = 0x4, fixed_abs, tag = 'smem constant byte address 0x4 - core index']
  #allocation1 [shape = 'u32[144,128]{1,0:T(1,128)}', space=vmem, size = 0x12000, scoped, tag = 'internal scratch']
  %s0 = inlined_call_operand.vmem [shape: bf16[8,2048], index: 0, kind: input, shape index: {}]
  %s1 = inlined_call_operand.vmem [shape: bf16[2048,128], index: 1, kind: input, shape index: {}]
  %s2 = inlined_call_operand.vmem [shape: f32[1,128], index: 2, kind: input, shape index: {}]
  %s3 = inlined_call_operand.vmem [shape: f32[1,128], index: 3, kind: input, shape index: {}]
  %s4 = inlined_call_operand.vmem [shape: bf16[8,128], index: 4, kind: output, shape index: {}]
  %s5 = sld [smem:[#allocation0]]
  $region26: #{discriminator_forward.8} parent=0
    _
  %s7 = ssub.s32 1, %s5
  %s8 = scalar_select 0, %s7, %s5
  // Predicated region
  $region2: #{discriminator_forward.8} parent=0 // pred_check
    _
  $region3: #{discriminator_forward.8} parent=0 // pred_check_branch
    %10 = sbr.rel (0) target = $region5
  $region4: #{discriminator_forward.8} parent=0 // pred_region
    _
  $region5: #{discriminator_forward.8} parent=0 // pred_fallthru
    _
  // Predicated region
  $region6: #{discriminator_forward.8} parent=0 // pred_check
    _
  $region7: #{discriminator_forward.8} parent=0 // pred_check_branch
    %12 = sbr.rel (0) target = $region9
  $region8: #{discriminator_forward.8} parent=0 // pred_region
    _
  $region9: #{discriminator_forward.8} parent=0 // pred_fallthru
    _
  // Predicated region
  $region10: #{discriminator_forward.8} parent=0 // pred_check
    _
  $region11: #{discriminator_forward.8} parent=0 // pred_check_branch
    %14 = sbr.rel (0) target = $region13
  $region12: #{discriminator_forward.8} parent=0 // pred_region
    _
  $region13: #{discriminator_forward.8} parent=0 // pred_fallthru
    _
  // Predicated region
  $region14: #{discriminator_forward.8} parent=0 // pred_check
    _
  $region15: #{discriminator_forward.8} parent=0 // pred_check_branch
    %16 = sbr.rel (0) target = $region17
  $region16: #{discriminator_forward.8} parent=0 // pred_region
    _
  $region17: #{discriminator_forward.8} parent=0 // pred_fallthru
    _
  %v18 = vld [vmem:[%s0] sm:$0xff]
  %v19 = vld [vmem:[%s0 + $0x8] sm:$0xff]
  %v20 = vld [vmem:[%s0 + $0x10] sm:$0xff]
  %v21 = vld [vmem:[%s0 + $0x18] sm:$0xff]
  %v22 = vld [vmem:[%s0 + $0x20] sm:$0xff]
  %v23 = vld [vmem:[%s0 + $0x28] sm:$0xff]
  %v24 = vld [vmem:[%s0 + $0x30] sm:$0xff]
  %v25 = vld [vmem:[%s0 + $0x38] sm:$0xff]
  %v26 = vld [vmem:[%s1] sm:$0xf]
  %v27 = vld [vmem:[%s1 + $0x4] sm:$0xf]
  %v28 = vld [vmem:[%s1 + $0x8] sm:$0xf]
  %v29 = vld [vmem:[%s1 + $0xc] sm:$0xf]
  %v30 = vld [vmem:[%s1 + $0x10] sm:$0xf]
  %v31 = vld [vmem:[%s1 + $0x14] sm:$0xf]
  %v32 = vld [vmem:[%s1 + $0x18] sm:$0xf]
  %v33 = vld [vmem:[%s1 + $0x1c] sm:$0xf]
  %v34 = vld [vmem:[%s1 + $0x20] sm:$0xf]
  %v35 = vld [vmem:[%s1 + $0x24] sm:$0xf]
  %v36 = vld [vmem:[%s1 + $0x28] sm:$0xf]
  %v37 = vld [vmem:[%s1 + $0x2c] sm:$0xf]
  %v38 = vld [vmem:[%s1 + $0x30] sm:$0xf]
  %v39 = vld [vmem:[%s1 + $0x34] sm:$0xf]
  %v40 = vld [vmem:[%s1 + $0x38] sm:$0xf]
  %v41 = vld [vmem:[%s1 + $0x3c] sm:$0xf]
  %v42 = vld [vmem:[%s1 + $0x40] sm:$0xf]
  %v43 = vld [vmem:[%s1 + $0x44] sm:$0xf]
  %v44 = vld [vmem:[%s1 + $0x48] sm:$0xf]
  %v45 = vld [vmem:[%s1 + $0x4c] sm:$0xf]
  %v46 = vld [vmem:[%s1 + $0x50] sm:$0xf]
  %v47 = vld [vmem:[%s1 + $0x54] sm:$0xf]
  %v48 = vld [vmem:[%s1 + $0x58] sm:$0xf]
  %v49 = vld [vmem:[%s1 + $0x5c] sm:$0xf]
  %v50 = vld [vmem:[%s1 + $0x60] sm:$0xf]
  %v51 = vld [vmem:[%s1 + $0x64] sm:$0xf]
  %v52 = vld [vmem:[%s1 + $0x68] sm:$0xf]
  %v53 = vld [vmem:[%s1 + $0x6c] sm:$0xf]
  %v54 = vld [vmem:[%s1 + $0x70] sm:$0xf]
  %v55 = vld [vmem:[%s1 + $0x74] sm:$0xf]
  %v56 = vld [vmem:[%s1 + $0x78] sm:$0xf]
  %v57 = vld [vmem:[%s1 + $0x7c] sm:$0xf]
  %v58 = vld [vmem:[%s1 + $0x80] sm:$0xf]
  %v59 = vld [vmem:[%s1 + $0x84] sm:$0xf]
  %v60 = vld [vmem:[%s1 + $0x88] sm:$0xf]
  %v61 = vld [vmem:[%s1 + $0x8c] sm:$0xf]
  %v62 = vld [vmem:[%s1 + $0x90] sm:$0xf]
  %v63 = vld [vmem:[%s1 + $0x94] sm:$0xf]
  %v64 = vld [vmem:[%s1 + $0x98] sm:$0xf]
  %v65 = vld [vmem:[%s1 + $0x9c] sm:$0xf]
  %v66 = vld [vmem:[%s1 + $0xa0] sm:$0xf]
  %v67 = vld [vmem:[%s1 + $0xa4] sm:$0xf]
  %v68 = vld [vmem:[%s1 + $0xa8] sm:$0xf]
  %v69 = vld [vmem:[%s1 + $0xac] sm:$0xf]
  %v70 = vld [vmem:[%s1 + $0xb0] sm:$0xf]
  %v71 = vld [vmem:[%s1 + $0xb4] sm:$0xf]
  %v72 = vld [vmem:[%s1 + $0xb8] sm:$0xf]
  %v73 = vld [vmem:[%s1 + $0xbc] sm:$0xf]
  %v74 = vld [vmem:[%s1 + $0xc0] sm:$0xf]
  %v75 = vld [vmem:[%s1 + $0xc4] sm:$0xf]
  %v76 = vld [vmem:[%s1 + $0xc8] sm:$0xf]
  %v77 = vld [vmem:[%s1 + $0xcc] sm:$0xf]
  %v78 = vld [vmem:[%s1 + $0xd0] sm:$0xf]
  %v79 = vld [vmem:[%s1 + $0xd4] sm:$0xf]
  %v80 = vld [vmem:[%s1 + $0xd8] sm:$0xf]
  %v81 = vld [vmem:[%s1 + $0xdc] sm:$0xf]
  %v82 = vld [vmem:[%s1 + $0xe0] sm:$0xf]
  %v83 = vld [vmem:[%s1 + $0xe4] sm:$0xf]
  %v84 = vld [vmem:[%s1 + $0xe8] sm:$0xf]
  %v85 = vld [vmem:[%s1 + $0xec] sm:$0xf]
  %v86 = vld [vmem:[%s1 + $0xf0] sm:$0xf]
  %v87 = vld [vmem:[%s1 + $0xf4] sm:$0xf]
  %v88 = vld [vmem:[%s1 + $0xf8] sm:$0xf]
  %v89 = vld [vmem:[%s1 + $0xfc] sm:$0xf]
  %v90 = vld [vmem:[%s1 + $0x100] sm:$0xf]
  %v91 = vld [vmem:[%s1 + $0x104] sm:$0xf]
  %v92 = vld [vmem:[%s1 + $0x108] sm:$0xf]
  %v93 = vld [vmem:[%s1 + $0x10c] sm:$0xf]
  %v94 = vld [vmem:[%s1 + $0x110] sm:$0xf]
  %v95 = vld [vmem:[%s1 + $0x114] sm:$0xf]
  %v96 = vld [vmem:[%s1 + $0x118] sm:$0xf]
  %v97 = vld [vmem:[%s1 + $0x11c] sm:$0xf]
  %v98 = vld [vmem:[%s1 + $0x120] sm:$0xf]
  %v99 = vld [vmem:[%s1 + $0x124] sm:$0xf]
  %v100 = vld [vmem:[%s1 + $0x128] sm:$0xf]
  %v101 = vld [vmem:[%s1 + $0x12c] sm:$0xf]
  %v102 = vld [vmem:[%s1 + $0x130] sm:$0xf]
  %v103 = vld [vmem:[%s1 + $0x134] sm:$0xf]
  %v104 = vld [vmem:[%s1 + $0x138] sm:$0xf]
  %v105 = vld [vmem:[%s1 + $0x13c] sm:$0xf]
  %v106 = vld [vmem:[%s1 + $0x140] sm:$0xf]
  %v107 = vld [vmem:[%s1 + $0x144] sm:$0xf]
  %v108 = vld [vmem:[%s1 + $0x148] sm:$0xf]
  %v109 = vld [vmem:[%s1 + $0x14c] sm:$0xf]
  %v110 = vld [vmem:[%s1 + $0x150] sm:$0xf]
  %v111 = vld [vmem:[%s1 + $0x154] sm:$0xf]
  %v112 = vld [vmem:[%s1 + $0x158] sm:$0xf]
  %v113 = vld [vmem:[%s1 + $0x15c] sm:$0xf]
  %v114 = vld [vmem:[%s1 + $0x160] sm:$0xf]
  %v115 = vld [vmem:[%s1 + $0x164] sm:$0xf]
  %v116 = vld [vmem:[%s1 + $0x168] sm:$0xf]
  %v117 = vld [vmem:[%s1 + $0x16c] sm:$0xf]
  %v118 = vld [vmem:[%s1 + $0x170] sm:$0xf]
  %v119 = vld [vmem:[%s1 + $0x174] sm:$0xf]
  %v120 = vld [vmem:[%s1 + $0x178] sm:$0xf]
  %v121 = vld [vmem:[%s1 + $0x17c] sm:$0xf]
  %v122 = vld [vmem:[%s1 + $0x180] sm:$0xf]
  %v123 = vld [vmem:[%s1 + $0x184] sm:$0xf]
  %v124 = vld [vmem:[%s1 + $0x188] sm:$0xf]
  %v125 = vld [vmem:[%s1 + $0x18c] sm:$0xf]
  %v126 = vld [vmem:[%s1 + $0x190] sm:$0xf]
  %v127 = vld [vmem:[%s1 + $0x194] sm:$0xf]
  %v128 = vld [vmem:[%s1 + $0x198] sm:$0xf]
  %v129 = vld [vmem:[%s1 + $0x19c] sm:$0xf]
  %v130 = vld [vmem:[%s1 + $0x1a0] sm:$0xf]
  %v131 = vld [vmem:[%s1 + $0x1a4] sm:$0xf]
  %v132 = vld [vmem:[%s1 + $0x1a8] sm:$0xf]
  %v133 = vld [vmem:[%s1 + $0x1ac] sm:$0xf]
  %v134 = vld [vmem:[%s1 + $0x1b0] sm:$0xf]
  %v135 = vld [vmem:[%s1 + $0x1b4] sm:$0xf]
  %v136 = vld [vmem:[%s1 + $0x1b8] sm:$0xf]
  %v137 = vld [vmem:[%s1 + $0x1bc] sm:$0xf]
  %v138 = vld [vmem:[%s1 + $0x1c0] sm:$0xf]
  %v139 = vld [vmem:[%s1 + $0x1c4] sm:$0xf]
  %v140 = vld [vmem:[%s1 + $0x1c8] sm:$0xf]
  %v141 = vld [vmem:[%s1 + $0x1cc] sm:$0xf]
  %v142 = vld [vmem:[%s1 + $0x1d0] sm:$0xf]
  %v143 = vld [vmem:[%s1 + $0x1d4] sm:$0xf]
  %v144 = vld [vmem:[%s1 + $0x1d8] sm:$0xf]
  %v145 = vld [vmem:[%s1 + $0x1dc] sm:$0xf]
  %v146 = vld [vmem:[%s1 + $0x1e0] sm:$0xf]
  %v147 = vld [vmem:[%s1 + $0x1e4] sm:$0xf]
  %v148 = vld [vmem:[%s1 + $0x1e8] sm:$0xf]
  %v149 = vld [vmem:[%s1 + $0x1ec] sm:$0xf]
  %v150 = vld [vmem:[%s1 + $0x1f0] sm:$0xf]
  %v151 = vld [vmem:[%s1 + $0x1f4] sm:$0xf]
  %v152 = vld [vmem:[%s1 + $0x1f8] sm:$0xf]
  %v153 = vld [vmem:[%s1 + $0x1fc] sm:$0xf]
  %v154 = vld [vmem:[%s1 + $0x200] sm:$0xf]
  %v155 = vld [vmem:[%s1 + $0x204] sm:$0xf]
  %v156 = vld [vmem:[%s1 + $0x208] sm:$0xf]
  %v157 = vld [vmem:[%s1 + $0x20c] sm:$0xf]
  %v158 = vld [vmem:[%s1 + $0x210] sm:$0xf]
  %v159 = vld [vmem:[%s1 + $0x214] sm:$0xf]
  %v160 = vld [vmem:[%s1 + $0x218] sm:$0xf]
  %v161 = vld [vmem:[%s1 + $0x21c] sm:$0xf]
  %v162 = vld [vmem:[%s1 + $0x220] sm:$0xf]
  %v163 = vld [vmem:[%s1 + $0x224] sm:$0xf]
  %v164 = vld [vmem:[%s1 + $0x228] sm:$0xf]
  %v165 = vld [vmem:[%s1 + $0x22c] sm:$0xf]
  %v166 = vld [vmem:[%s1 + $0x230] sm:$0xf]
  %v167 = vld [vmem:[%s1 + $0x234] sm:$0xf]
  %v168 = vld [vmem:[%s1 + $0x238] sm:$0xf]
  %v169 = vld [vmem:[%s1 + $0x23c] sm:$0xf]
  %v170 = vld [vmem:[%s1 + $0x240] sm:$0xf]
  %v171 = vld [vmem:[%s1 + $0x244] sm:$0xf]
  %v172 = vld [vmem:[%s1 + $0x248] sm:$0xf]
  %v173 = vld [vmem:[%s1 + $0x24c] sm:$0xf]
  %v174 = vld [vmem:[%s1 + $0x250] sm:$0xf]
  %v175 = vld [vmem:[%s1 + $0x254] sm:$0xf]
  %v176 = vld [vmem:[%s1 + $0x258] sm:$0xf]
  %v177 = vld [vmem:[%s1 + $0x25c] sm:$0xf]
  %v178 = vld [vmem:[%s1 + $0x260] sm:$0xf]
  %v179 = vld [vmem:[%s1 + $0x264] sm:$0xf]
  %v180 = vld [vmem:[%s1 + $0x268] sm:$0xf]
  %v181 = vld [vmem:[%s1 + $0x26c] sm:$0xf]
  %v182 = vld [vmem:[%s1 + $0x270] sm:$0xf]
  %v183 = vld [vmem:[%s1 + $0x274] sm:$0xf]
  %v184 = vld [vmem:[%s1 + $0x278] sm:$0xf]
  %v185 = vld [vmem:[%s1 + $0x27c] sm:$0xf]
  %v186 = vld [vmem:[%s1 + $0x280] sm:$0xf]
  %v187 = vld [vmem:[%s1 + $0x284] sm:$0xf]
  %v188 = vld [vmem:[%s1 + $0x288] sm:$0xf]
  %v189 = vld [vmem:[%s1 + $0x28c] sm:$0xf]
  %v190 = vld [vmem:[%s1 + $0x290] sm:$0xf]
  %v191 = vld [vmem:[%s1 + $0x294] sm:$0xf]
  %v192 = vld [vmem:[%s1 + $0x298] sm:$0xf]
  %v193 = vld [vmem:[%s1 + $0x29c] sm:$0xf]
  %v194 = vld [vmem:[%s1 + $0x2a0] sm:$0xf]
  %v195 = vld [vmem:[%s1 + $0x2a4] sm:$0xf]
  %v196 = vld [vmem:[%s1 + $0x2a8] sm:$0xf]
  %v197 = vld [vmem:[%s1 + $0x2ac] sm:$0xf]
  %v198 = vld [vmem:[%s1 + $0x2b0] sm:$0xf]
  %v199 = vld [vmem:[%s1 + $0x2b4] sm:$0xf]
  %v200 = vld [vmem:[%s1 + $0x2b8] sm:$0xf]
  %v201 = vld [vmem:[%s1 + $0x2bc] sm:$0xf]
  %v202 = vld [vmem:[%s1 + $0x2c0] sm:$0xf]
  %v203 = vld [vmem:[%s1 + $0x2c4] sm:$0xf]
  %v204 = vld [vmem:[%s1 + $0x2c8] sm:$0xf]
  %v205 = vld [vmem:[%s1 + $0x2cc] sm:$0xf]
  %v206 = vld [vmem:[%s1 + $0x2d0] sm:$0xf]
  %v207 = vld [vmem:[%s1 + $0x2d4] sm:$0xf]
  %v208 = vld [vmem:[%s1 + $0x2d8] sm:$0xf]
  %v209 = vld [vmem:[%s1 + $0x2dc] sm:$0xf]
  %v210 = vld [vmem:[%s1 + $0x2e0] sm:$0xf]
  %v211 = vld [vmem:[%s1 + $0x2e4] sm:$0xf]
  %v212 = vld [vmem:[%s1 + $0x2e8] sm:$0xf]
  %v213 = vld [vmem:[%s1 + $0x2ec] sm:$0xf]
  %v214 = vld [vmem:[%s1 + $0x2f0] sm:$0xf]
  %v215 = vld [vmem:[%s1 + $0x2f4] sm:$0xf]
  %v216 = vld [vmem:[%s1 + $0x2f8] sm:$0xf]
  %v217 = vld [vmem:[%s1 + $0x2fc] sm:$0xf]
  %v218 = vld [vmem:[%s1 + $0x300] sm:$0xf]
  %v219 = vld [vmem:[%s1 + $0x304] sm:$0xf]
  %v220 = vld [vmem:[%s1 + $0x308] sm:$0xf]
  %v221 = vld [vmem:[%s1 + $0x30c] sm:$0xf]
  %v222 = vld [vmem:[%s1 + $0x310] sm:$0xf]
  %v223 = vld [vmem:[%s1 + $0x314] sm:$0xf]
  %v224 = vld [vmem:[%s1 + $0x318] sm:$0xf]
  %v225 = vld [vmem:[%s1 + $0x31c] sm:$0xf]
  %v226 = vld [vmem:[%s1 + $0x320] sm:$0xf]
  %v227 = vld [vmem:[%s1 + $0x324] sm:$0xf]
  %v228 = vld [vmem:[%s1 + $0x328] sm:$0xf]
  %v229 = vld [vmem:[%s1 + $0x32c] sm:$0xf]
  %v230 = vld [vmem:[%s1 + $0x330] sm:$0xf]
  %v231 = vld [vmem:[%s1 + $0x334] sm:$0xf]
  %v232 = vld [vmem:[%s1 + $0x338] sm:$0xf]
  %v233 = vld [vmem:[%s1 + $0x33c] sm:$0xf]
  %v234 = vld [vmem:[%s1 + $0x340] sm:$0xf]
  %v235 = vld [vmem:[%s1 + $0x344] sm:$0xf]
  %v236 = vld [vmem:[%s1 + $0x348] sm:$0xf]
  %v237 = vld [vmem:[%s1 + $0x34c] sm:$0xf]
  %v238 = vld [vmem:[%s1 + $0x350] sm:$0xf]
  %v239 = vld [vmem:[%s1 + $0x354] sm:$0xf]
  %v240 = vld [vmem:[%s1 + $0x358] sm:$0xf]
  %v241 = vld [vmem:[%s1 + $0x35c] sm:$0xf]
  %v242 = vld [vmem:[%s1 + $0x360] sm:$0xf]
  %v243 = vld [vmem:[%s1 + $0x364] sm:$0xf]
  %v244 = vld [vmem:[%s1 + $0x368] sm:$0xf]
  %v245 = vld [vmem:[%s1 + $0x36c] sm:$0xf]
  %v246 = vld [vmem:[%s1 + $0x370] sm:$0xf]
  %v247 = vld [vmem:[%s1 + $0x374] sm:$0xf]
  %v248 = vld [vmem:[%s1 + $0x378] sm:$0xf]
  %v249 = vld [vmem:[%s1 + $0x37c] sm:$0xf]
  %v250 = vld [vmem:[%s1 + $0x380] sm:$0xf]
  %v251 = vld [vmem:[%s1 + $0x384] sm:$0xf]
  %v252 = vld [vmem:[%s1 + $0x388] sm:$0xf]
  %v253 = vld [vmem:[%s1 + $0x38c] sm:$0xf]
  %v254 = vld [vmem:[%s1 + $0x390] sm:$0xf]
  %v255 = vld [vmem:[%s1 + $0x394] sm:$0xf]
  %v256 = vld [vmem:[%s1 + $0x398] sm:$0xf]
  %v257 = vld [vmem:[%s1 + $0x39c] sm:$0xf]
  %v258 = vld [vmem:[%s1 + $0x3a0] sm:$0xf]
  %v259 = vld [vmem:[%s1 + $0x3a4] sm:$0xf]
  %v260 = vld [vmem:[%s1 + $0x3a8] sm:$0xf]
  %v261 = vld [vmem:[%s1 + $0x3ac] sm:$0xf]
  %v262 = vld [vmem:[%s1 + $0x3b0] sm:$0xf]
  %v263 = vld [vmem:[%s1 + $0x3b4] sm:$0xf]
  %v264 = vld [vmem:[%s1 + $0x3b8] sm:$0xf]
  %v265 = vld [vmem:[%s1 + $0x3bc] sm:$0xf]
  %v266 = vld [vmem:[%s1 + $0x3c0] sm:$0xf]
  %v267 = vld [vmem:[%s1 + $0x3c4] sm:$0xf]
  %v268 = vld [vmem:[%s1 + $0x3c8] sm:$0xf]
  %v269 = vld [vmem:[%s1 + $0x3cc] sm:$0xf]
  %v270 = vld [vmem:[%s1 + $0x3d0] sm:$0xf]
  %v271 = vld [vmem:[%s1 + $0x3d4] sm:$0xf]
  %v272 = vld [vmem:[%s1 + $0x3d8] sm:$0xf]
  %v273 = vld [vmem:[%s1 + $0x3dc] sm:$0xf]
  %v274 = vld [vmem:[%s1 + $0x3e0] sm:$0xf]
  %v275 = vld [vmem:[%s1 + $0x3e4] sm:$0xf]
  %v276 = vld [vmem:[%s1 + $0x3e8] sm:$0xf]
  %v277 = vld [vmem:[%s1 + $0x3ec] sm:$0xf]
  %v278 = vld [vmem:[%s1 + $0x3f0] sm:$0xf]
  %v279 = vld [vmem:[%s1 + $0x3f4] sm:$0xf]
  %v280 = vld [vmem:[%s1 + $0x3f8] sm:$0xf]
  %v281 = vld [vmem:[%s1 + $0x3fc] sm:$0xf]
  %v290 = vunpack.c.l.b16 %v18
  %v291 = vunpack.c.h.b16 %v18
  %v292 = vunpack.c.l.b16 %v19
  %v293 = vunpack.c.h.b16 %v19
  %v294 = vunpack.c.l.b16 %v20
  %v295 = vunpack.c.h.b16 %v20
  %v296 = vunpack.c.l.b16 %v21
  %v297 = vunpack.c.h.b16 %v21
  %v298 = vunpack.c.l.b16 %v22
  %v299 = vunpack.c.h.b16 %v22
  %v300 = vunpack.c.l.b16 %v23
  %v301 = vunpack.c.h.b16 %v23
  %v302 = vunpack.c.l.b16 %v24
  %v303 = vunpack.c.h.b16 %v24
  %v304 = vunpack.c.l.b16 %v25
  %v305 = vunpack.c.h.b16 %v25
  %v306 = vpack.c.b16 %v290, %v290
  %v307 = vpack.c.b16 %v291, %v291
  %v308 = vpack.c.b16 %v292, %v292
  %v309 = vpack.c.b16 %v293, %v293
  %v310 = vpack.c.b16 %v294, %v294
  %v311 = vpack.c.b16 %v295, %v295
  %v312 = vpack.c.b16 %v296, %v296
  %v313 = vpack.c.b16 %v297, %v297
  %v314 = vpack.c.b16 %v298, %v298
  %v315 = vpack.c.b16 %v299, %v299
  %v316 = vpack.c.b16 %v300, %v300
  %v317 = vpack.c.b16 %v301, %v301
  %v318 = vpack.c.b16 %v302, %v302
  %v319 = vpack.c.b16 %v303, %v303
  %v320 = vpack.c.b16 %v304, %v304
  %v321 = vpack.c.b16 %v305, %v305
  %v594 = vunpack.c.l.b16 %v26
  %v595 = vunpack.c.l.b16 %v27
  %v596 = vunpack.c.l.b16 %v28
  %v597 = vunpack.c.l.b16 %v29
  %v598 = vunpack.c.l.b16 %v30
  %v599 = vunpack.c.l.b16 %v31
  %v600 = vunpack.c.l.b16 %v32
  %v601 = vunpack.c.l.b16 %v33
  %v602 = vunpack.c.l.b16 %v34
  %v603 = vunpack.c.l.b16 %v35
  %v604 = vunpack.c.l.b16 %v36
  %v605 = vunpack.c.l.b16 %v37
  %v606 = vunpack.c.l.b16 %v38
  %v607 = vunpack.c.l.b16 %v39
  %v608 = vunpack.c.l.b16 %v40
  %v609 = vunpack.c.l.b16 %v41
  %v610 = vunpack.c.l.b16 %v42
  %v611 = vunpack.c.l.b16 %v43
  %v612 = vunpack.c.l.b16 %v44
  %v613 = vunpack.c.l.b16 %v45
  %v614 = vunpack.c.l.b16 %v46
  %v615 = vunpack.c.l.b16 %v47
  %v616 = vunpack.c.l.b16 %v48
  %v617 = vunpack.c.l.b16 %v49
  %v618 = vunpack.c.l.b16 %v50
  %v619 = vunpack.c.l.b16 %v51
  %v620 = vunpack.c.l.b16 %v52
  %v621 = vunpack.c.l.b16 %v53
  %v622 = vunpack.c.l.b16 %v54
  %v623 = vunpack.c.l.b16 %v55
  %v624 = vunpack.c.l.b16 %v56
  %v625 = vunpack.c.l.b16 %v57
  %v626 = vunpack.c.l.b16 %v58
  %v627 = vunpack.c.l.b16 %v59
  %v628 = vunpack.c.l.b16 %v60
  %v629 = vunpack.c.l.b16 %v61
  %v630 = vunpack.c.l.b16 %v62
  %v631 = vunpack.c.l.b16 %v63
  %v632 = vunpack.c.l.b16 %v64
  %v633 = vunpack.c.l.b16 %v65
  %v634 = vunpack.c.l.b16 %v66
  %v635 = vunpack.c.l.b16 %v67
  %v636 = vunpack.c.l.b16 %v68
  %v637 = vunpack.c.l.b16 %v69
  %v638 = vunpack.c.l.b16 %v70
  %v639 = vunpack.c.l.b16 %v71
  %v640 = vunpack.c.l.b16 %v72
  %v641 = vunpack.c.l.b16 %v73
  %v642 = vunpack.c.l.b16 %v74
  %v643 = vunpack.c.l.b16 %v75
  %v644 = vunpack.c.l.b16 %v76
  %v645 = vunpack.c.l.b16 %v77
  %v646 = vunpack.c.l.b16 %v78
  %v647 = vunpack.c.l.b16 %v79
  %v648 = vunpack.c.l.b16 %v80
  %v649 = vunpack.c.l.b16 %v81
  %v650 = vunpack.c.l.b16 %v82
  %v651 = vunpack.c.l.b16 %v83
  %v652 = vunpack.c.l.b16 %v84
  %v653 = vunpack.c.l.b16 %v85
  %v654 = vunpack.c.l.b16 %v86
  %v655 = vunpack.c.l.b16 %v87
  %v656 = vunpack.c.l.b16 %v88
  %v657 = vunpack.c.l.b16 %v89
  %v658 = vunpack.c.l.b16 %v90
  %v659 = vunpack.c.l.b16 %v91
  %v660 = vunpack.c.l.b16 %v92
  %v661 = vunpack.c.l.b16 %v93
  %v662 = vunpack.c.l.b16 %v94
  %v663 = vunpack.c.l.b16 %v95
  %v664 = vunpack.c.l.b16 %v96
  %v665 = vunpack.c.l.b16 %v97
  %v666 = vunpack.c.l.b16 %v98
  %v667 = vunpack.c.l.b16 %v99
  %v668 = vunpack.c.l.b16 %v100
  %v669 = vunpack.c.l.b16 %v101
  %v670 = vunpack.c.l.b16 %v102
  %v671 = vunpack.c.l.b16 %v103
  %v672 = vunpack.c.l.b16 %v104
  %v673 = vunpack.c.l.b16 %v105
  %v674 = vunpack.c.l.b16 %v106
  %v675 = vunpack.c.l.b16 %v107
  %v676 = vunpack.c.l.b16 %v108
  %v677 = vunpack.c.l.b16 %v109
  %v678 = vunpack.c.l.b16 %v110
  %v679 = vunpack.c.l.b16 %v111
  %v680 = vunpack.c.l.b16 %v112
  %v681 = vunpack.c.l.b16 %v113
  %v682 = vunpack.c.l.b16 %v114
  %v683 = vunpack.c.l.b16 %v115
  %v684 = vunpack.c.l.b16 %v116
  %v685 = vunpack.c.l.b16 %v117
  %v686 = vunpack.c.l.b16 %v118
  %v687 = vunpack.c.l.b16 %v119
  %v688 = vunpack.c.l.b16 %v120
  %v689 = vunpack.c.l.b16 %v121
  %v690 = vunpack.c.l.b16 %v122
  %v691 = vunpack.c.l.b16 %v123
  %v692 = vunpack.c.l.b16 %v124
  %v693 = vunpack.c.l.b16 %v125
  %v694 = vunpack.c.l.b16 %v126
  %v695 = vunpack.c.l.b16 %v127
  %v696 = vunpack.c.l.b16 %v128
  %v697 = vunpack.c.l.b16 %v129
  %v698 = vunpack.c.l.b16 %v130
  %v699 = vunpack.c.l.b16 %v131
  %v700 = vunpack.c.l.b16 %v132
  %v701 = vunpack.c.l.b16 %v133
  %v702 = vunpack.c.l.b16 %v134
  %v703 = vunpack.c.l.b16 %v135
  %v704 = vunpack.c.l.b16 %v136
  %v705 = vunpack.c.l.b16 %v137
  %v706 = vunpack.c.l.b16 %v138
  %v707 = vunpack.c.l.b16 %v139
  %v708 = vunpack.c.l.b16 %v140
  %v709 = vunpack.c.l.b16 %v141
  %v710 = vunpack.c.l.b16 %v142
  %v711 = vunpack.c.l.b16 %v143
  %v712 = vunpack.c.l.b16 %v144
  %v713 = vunpack.c.l.b16 %v145
  %v714 = vunpack.c.l.b16 %v146
  %v715 = vunpack.c.l.b16 %v147
  %v716 = vunpack.c.l.b16 %v148
  %v717 = vunpack.c.l.b16 %v149
  %v718 = vunpack.c.l.b16 %v150
  %v719 = vunpack.c.l.b16 %v151
  %v720 = vunpack.c.l.b16 %v152
  %v721 = vunpack.c.l.b16 %v153
  %v722 = vunpack.c.l.b16 %v154
  %v723 = vunpack.c.l.b16 %v155
  %v724 = vunpack.c.l.b16 %v156
  %v725 = vunpack.c.l.b16 %v157
  %v726 = vunpack.c.l.b16 %v158
  %v727 = vunpack.c.l.b16 %v159
  %v728 = vunpack.c.l.b16 %v160
  %v729 = vunpack.c.l.b16 %v161
  %v730 = vunpack.c.l.b16 %v162
  %v731 = vunpack.c.l.b16 %v163
  %v732 = vunpack.c.l.b16 %v164
  %v733 = vunpack.c.l.b16 %v165
  %v734 = vunpack.c.l.b16 %v166
  %v735 = vunpack.c.l.b16 %v167
  %v736 = vunpack.c.l.b16 %v168
  %v737 = vunpack.c.l.b16 %v169
  %v738 = vunpack.c.l.b16 %v170
  %v739 = vunpack.c.l.b16 %v171
  %v740 = vunpack.c.l.b16 %v172
  %v741 = vunpack.c.l.b16 %v173
  %v742 = vunpack.c.l.b16 %v174
  %v743 = vunpack.c.l.b16 %v175
  %v744 = vunpack.c.l.b16 %v176
  %v745 = vunpack.c.l.b16 %v177
  %v746 = vunpack.c.l.b16 %v178
  %v747 = vunpack.c.l.b16 %v179
  %v748 = vunpack.c.l.b16 %v180
  %v749 = vunpack.c.l.b16 %v181
  %v750 = vunpack.c.l.b16 %v182
  %v751 = vunpack.c.l.b16 %v183
  %v752 = vunpack.c.l.b16 %v184
  %v753 = vunpack.c.l.b16 %v185
  %v754 = vunpack.c.l.b16 %v186
  %v755 = vunpack.c.l.b16 %v187
  %v756 = vunpack.c.l.b16 %v188
  %v757 = vunpack.c.l.b16 %v189
  %v758 = vunpack.c.l.b16 %v190
  %v759 = vunpack.c.l.b16 %v191
  %v760 = vunpack.c.l.b16 %v192
  %v761 = vunpack.c.l.b16 %v193
  %v762 = vunpack.c.l.b16 %v194
  %v763 = vunpack.c.l.b16 %v195
  %v764 = vunpack.c.l.b16 %v196
  %v765 = vunpack.c.l.b16 %v197
  %v766 = vunpack.c.l.b16 %v198
  %v767 = vunpack.c.l.b16 %v199
  %v768 = vunpack.c.l.b16 %v200
  %v769 = vunpack.c.l.b16 %v201
  %v770 = vunpack.c.l.b16 %v202
  %v771 = vunpack.c.l.b16 %v203
  %v772 = vunpack.c.l.b16 %v204
  %v773 = vunpack.c.l.b16 %v205
  %v774 = vunpack.c.l.b16 %v206
  %v775 = vunpack.c.l.b16 %v207
  %v776 = vunpack.c.l.b16 %v208
  %v777 = vunpack.c.l.b16 %v209
  %v778 = vunpack.c.l.b16 %v210
  %v779 = vunpack.c.l.b16 %v211
  %v780 = vunpack.c.l.b16 %v212
  %v781 = vunpack.c.l.b16 %v213
  %v782 = vunpack.c.l.b16 %v214
  %v783 = vunpack.c.l.b16 %v215
  %v784 = vunpack.c.l.b16 %v216
  %v785 = vunpack.c.l.b16 %v217
  %v786 = vunpack.c.l.b16 %v218
  %v787 = vunpack.c.l.b16 %v219
  %v788 = vunpack.c.l.b16 %v220
  %v789 = vunpack.c.l.b16 %v221
  %v790 = vunpack.c.l.b16 %v222
  %v791 = vunpack.c.l.b16 %v223
  %v792 = vunpack.c.l.b16 %v224
  %v793 = vunpack.c.l.b16 %v225
  %v794 = vunpack.c.l.b16 %v226
  %v795 = vunpack.c.l.b16 %v227
  %v796 = vunpack.c.l.b16 %v228
  %v797 = vunpack.c.l.b16 %v229
  %v798 = vunpack.c.l.b16 %v230
  %v799 = vunpack.c.l.b16 %v231
  %v800 = vunpack.c.l.b16 %v232
  %v801 = vunpack.c.l.b16 %v233
  %v802 = vunpack.c.l.b16 %v234
  %v803 = vunpack.c.l.b16 %v235
  %v804 = vunpack.c.l.b16 %v236
  %v805 = vunpack.c.l.b16 %v237
  %v806 = vunpack.c.l.b16 %v238
  %v807 = vunpack.c.l.b16 %v239
  %v808 = vunpack.c.l.b16 %v240
  %v809 = vunpack.c.l.b16 %v241
  %v810 = vunpack.c.l.b16 %v242
  %v811 = vunpack.c.l.b16 %v243
  %v812 = vunpack.c.l.b16 %v244
  %v813 = vunpack.c.l.b16 %v245
  %v814 = vunpack.c.l.b16 %v246
  %v815 = vunpack.c.l.b16 %v247
  %v816 = vunpack.c.l.b16 %v248
  %v817 = vunpack.c.l.b16 %v249
  %v818 = vunpack.c.l.b16 %v250
  %v819 = vunpack.c.l.b16 %v251
  %v820 = vunpack.c.l.b16 %v252
  %v821 = vunpack.c.l.b16 %v253
  %v822 = vunpack.c.l.b16 %v254
  %v823 = vunpack.c.l.b16 %v255
  %v824 = vunpack.c.l.b16 %v256
  %v825 = vunpack.c.l.b16 %v257
  %v826 = vunpack.c.l.b16 %v258
  %v827 = vunpack.c.l.b16 %v259
  %v828 = vunpack.c.l.b16 %v260
  %v829 = vunpack.c.l.b16 %v261
  %v830 = vunpack.c.l.b16 %v262
  %v831 = vunpack.c.l.b16 %v263
  %v832 = vunpack.c.l.b16 %v264
  %v833 = vunpack.c.l.b16 %v265
  %v834 = vunpack.c.l.b16 %v266
  %v835 = vunpack.c.l.b16 %v267
  %v836 = vunpack.c.l.b16 %v268
  %v837 = vunpack.c.l.b16 %v269
  %v838 = vunpack.c.l.b16 %v270
  %v839 = vunpack.c.l.b16 %v271
  %v840 = vunpack.c.l.b16 %v272
  %v841 = vunpack.c.l.b16 %v273
  %v842 = vunpack.c.l.b16 %v274
  %v843 = vunpack.c.l.b16 %v275
  %v844 = vunpack.c.l.b16 %v276
  %v845 = vunpack.c.l.b16 %v277
  %v846 = vunpack.c.l.b16 %v278
  %v847 = vunpack.c.l.b16 %v279
  %v848 = vunpack.c.l.b16 %v280
  %v849 = vunpack.c.l.b16 %v281
  %v850 = vpack.c.b16 %v595, %v594
  %v851 = vpack.c.b16 %v597, %v596
  %v852 = vpack.c.b16 %v599, %v598
  %v853 = vpack.c.b16 %v601, %v600
  %v854 = vpack.c.b16 %v603, %v602
  %v855 = vpack.c.b16 %v605, %v604
  %v856 = vpack.c.b16 %v607, %v606
  %v857 = vpack.c.b16 %v609, %v608
  %v858 = vpack.c.b16 %v611, %v610
  %v859 = vpack.c.b16 %v613, %v612
  %v860 = vpack.c.b16 %v615, %v614
  %v861 = vpack.c.b16 %v617, %v616
  %v862 = vpack.c.b16 %v619, %v618
  %v863 = vpack.c.b16 %v621, %v620
  %v864 = vpack.c.b16 %v623, %v622
  %v865 = vpack.c.b16 %v625, %v624
  %v866 = vpack.c.b16 %v627, %v626
  %v867 = vpack.c.b16 %v629, %v628
  %v868 = vpack.c.b16 %v631, %v630
  %v869 = vpack.c.b16 %v633, %v632
  %v870 = vpack.c.b16 %v635, %v634
  %v871 = vpack.c.b16 %v637, %v636
  %v872 = vpack.c.b16 %v639, %v638
  %v873 = vpack.c.b16 %v641, %v640
  %v874 = vpack.c.b16 %v643, %v642
  %v875 = vpack.c.b16 %v645, %v644
  %v876 = vpack.c.b16 %v647, %v646
  %v877 = vpack.c.b16 %v649, %v648
  %v878 = vpack.c.b16 %v651, %v650
  %v879 = vpack.c.b16 %v653, %v652
  %v880 = vpack.c.b16 %v655, %v654
  %v881 = vpack.c.b16 %v657, %v656
  %v882 = vpack.c.b16 %v659, %v658
  %v883 = vpack.c.b16 %v661, %v660
  %v884 = vpack.c.b16 %v663, %v662
  %v885 = vpack.c.b16 %v665, %v664
  %v886 = vpack.c.b16 %v667, %v666
  %v887 = vpack.c.b16 %v669, %v668
  %v888 = vpack.c.b16 %v671, %v670
  %v889 = vpack.c.b16 %v673, %v672
  %v890 = vpack.c.b16 %v675, %v674
  %v891 = vpack.c.b16 %v677, %v676
  %v892 = vpack.c.b16 %v679, %v678
  %v893 = vpack.c.b16 %v681, %v680
  %v894 = vpack.c.b16 %v683, %v682
  %v895 = vpack.c.b16 %v685, %v684
  %v896 = vpack.c.b16 %v687, %v686
  %v897 = vpack.c.b16 %v689, %v688
  %v898 = vpack.c.b16 %v691, %v690
  %v899 = vpack.c.b16 %v693, %v692
  %v900 = vpack.c.b16 %v695, %v694
  %v901 = vpack.c.b16 %v697, %v696
  %v902 = vpack.c.b16 %v699, %v698
  %v903 = vpack.c.b16 %v701, %v700
  %v904 = vpack.c.b16 %v703, %v702
  %v905 = vpack.c.b16 %v705, %v704
  %v906 = vpack.c.b16 %v707, %v706
  %v907 = vpack.c.b16 %v709, %v708
  %v908 = vpack.c.b16 %v711, %v710
  %v909 = vpack.c.b16 %v713, %v712
  %v910 = vpack.c.b16 %v715, %v714
  %v911 = vpack.c.b16 %v717, %v716
  %v912 = vpack.c.b16 %v719, %v718
  %v913 = vpack.c.b16 %v721, %v720
  %v914 = vpack.c.b16 %v723, %v722
  %v915 = vpack.c.b16 %v725, %v724
  %v916 = vpack.c.b16 %v727, %v726
  %v917 = vpack.c.b16 %v729, %v728
  %v918 = vpack.c.b16 %v731, %v730
  %v919 = vpack.c.b16 %v733, %v732
  %v920 = vpack.c.b16 %v735, %v734
  %v921 = vpack.c.b16 %v737, %v736
  %v922 = vpack.c.b16 %v739, %v738
  %v923 = vpack.c.b16 %v741, %v740
  %v924 = vpack.c.b16 %v743, %v742
  %v925 = vpack.c.b16 %v745, %v744
  %v926 = vpack.c.b16 %v747, %v746
  %v927 = vpack.c.b16 %v749, %v748
  %v928 = vpack.c.b16 %v751, %v750
  %v929 = vpack.c.b16 %v753, %v752
  %v930 = vpack.c.b16 %v755, %v754
  %v931 = vpack.c.b16 %v757, %v756
  %v932 = vpack.c.b16 %v759, %v758
  %v933 = vpack.c.b16 %v761, %v760
  %v934 = vpack.c.b16 %v763, %v762
  %v935 = vpack.c.b16 %v765, %v764
  %v936 = vpack.c.b16 %v767, %v766
  %v937 = vpack.c.b16 %v769, %v768
  %v938 = vpack.c.b16 %v771, %v770
  %v939 = vpack.c.b16 %v773, %v772
  %v940 = vpack.c.b16 %v775, %v774
  %v941 = vpack.c.b16 %v777, %v776
  %v942 = vpack.c.b16 %v779, %v778
  %v943 = vpack.c.b16 %v781, %v780
  %v944 = vpack.c.b16 %v783, %v782
  %v945 = vpack.c.b16 %v785, %v784
  %v946 = vpack.c.b16 %v787, %v786
  %v947 = vpack.c.b16 %v789, %v788
  %v948 = vpack.c.b16 %v791, %v790
  %v949 = vpack.c.b16 %v793, %v792
  %v950 = vpack.c.b16 %v795, %v794
  %v951 = vpack.c.b16 %v797, %v796
  %v952 = vpack.c.b16 %v799, %v798
  %v953 = vpack.c.b16 %v801, %v800
  %v954 = vpack.c.b16 %v803, %v802
  %v955 = vpack.c.b16 %v805, %v804
  %v956 = vpack.c.b16 %v807, %v806
  %v957 = vpack.c.b16 %v809, %v808
  %v958 = vpack.c.b16 %v811, %v810
  %v959 = vpack.c.b16 %v813, %v812
  %v960 = vpack.c.b16 %v815, %v814
  %v961 = vpack.c.b16 %v817, %v816
  %v962 = vpack.c.b16 %v819, %v818
  %v963 = vpack.c.b16 %v821, %v820
  %v964 = vpack.c.b16 %v823, %v822
  %v965 = vpack.c.b16 %v825, %v824
  %v966 = vpack.c.b16 %v827, %v826
  %v967 = vpack.c.b16 %v829, %v828
  %v968 = vpack.c.b16 %v831, %v830
  %v969 = vpack.c.b16 %v833, %v832
  %v970 = vpack.c.b16 %v835, %v834
  %v971 = vpack.c.b16 %v837, %v836
  %v972 = vpack.c.b16 %v839, %v838
  %v973 = vpack.c.b16 %v841, %v840
  %v974 = vpack.c.b16 %v843, %v842
  %v975 = vpack.c.b16 %v845, %v844
  %v976 = vpack.c.b16 %v847, %v846
  %v977 = vpack.c.b16 %v849, %v848
  %1106 = vmatprep.subr.bf16.mxu0 0
  %1107 = vmatpush1.bf16.msra.mxu0 %v850
  %1108 = vmatprep.subr.bf16.mxu0 0
  %1109 = vmatpush1.bf16.msra.mxu0 %v851
  %1110 = vmatprep.subr.bf16.mxu0 0
  %1111 = vmatpush1.bf16.msra.mxu0 %v852
  %1112 = vmatprep.subr.bf16.mxu0 0
  %1113 = vmatpush1.bf16.msra.mxu0 %v853
  %1114 = vmatprep.subr.bf16.mxu0 0
  %1115 = vmatpush1.bf16.msra.mxu0 %v854
  %1116 = vmatprep.subr.bf16.mxu0 0
  %1117 = vmatpush1.bf16.msra.mxu0 %v855
  %1118 = vmatprep.subr.bf16.mxu0 0
  %1119 = vmatpush1.bf16.msra.mxu0 %v856
  %1120 = vmatprep.subr.bf16.mxu0 0
  %1121 = vmatpush1.bf16.msra.mxu0 %v857
  %1122 = vmatprep.subr.bf16.mxu0 0
  %1123 = vmatpush1.bf16.msra.mxu0 %v858
  %1124 = vmatprep.subr.bf16.mxu0 0
  %1125 = vmatpush1.bf16.msra.mxu0 %v859
  %1126 = vmatprep.subr.bf16.mxu0 0
  %1127 = vmatpush1.bf16.msra.mxu0 %v860
  %1128 = vmatprep.subr.bf16.mxu0 0
  %1129 = vmatpush1.bf16.msra.mxu0 %v861
  %1130 = vmatprep.subr.bf16.mxu0 0
  %1131 = vmatpush1.bf16.msra.mxu0 %v862
  %1132 = vmatprep.subr.bf16.mxu0 0
  %1133 = vmatpush1.bf16.msra.mxu0 %v863
  %1134 = vmatprep.subr.bf16.mxu0 0
  %1135 = vmatpush1.bf16.msra.mxu0 %v864
  %1136 = vmatprep.subr.bf16.mxu0 0
  %1137 = vmatpush1.bf16.msra.mxu0 %v865
  %1138 = vmatprep.mubr.bf16.mxu0 %v307
  %1139 = vmatmul.mubr.bf16.gmra.mrb[0].mxu0 %v306
  %v1140 = vpop.f32.mrb[0].mxu0
  %v1141 = vadd.f32 0.0, %v1140
  %v1142 = vpop.f32.mrb[0].mxu0
  %v1143 = vpop.f32.mrb[0].mxu0
  %v1144 = vpop.f32.mrb[0].mxu0
  %1145 = vdwg.mxu0
  %1146 = vmatprep.subr.bf16.mxu0 0
  %1147 = vmatpush1.bf16.msra.mxu0 %v866
  %1148 = vmatprep.subr.bf16.mxu0 0
  %1149 = vmatpush1.bf16.msra.mxu0 %v867
  %1150 = vmatprep.subr.bf16.mxu0 0
  %1151 = vmatpush1.bf16.msra.mxu0 %v868
  %1152 = vmatprep.subr.bf16.mxu0 0
  %1153 = vmatpush1.bf16.msra.mxu0 %v869
  %1154 = vmatprep.subr.bf16.mxu0 0
  %1155 = vmatpush1.bf16.msra.mxu0 %v870
  %1156 = vmatprep.subr.bf16.mxu0 0
  %1157 = vmatpush1.bf16.msra.mxu0 %v871
  %1158 = vmatprep.subr.bf16.mxu0 0
  %1159 = vmatpush1.bf16.msra.mxu0 %v872
  %1160 = vmatprep.subr.bf16.mxu0 0
  %1161 = vmatpush1.bf16.msra.mxu0 %v873
  %1162 = vmatprep.subr.bf16.mxu0 0
  %1163 = vmatpush1.bf16.msra.mxu0 %v874
  %1164 = vmatprep.subr.bf16.mxu0 0
  %1165 = vmatpush1.bf16.msra.mxu0 %v875
  %1166 = vmatprep.subr.bf16.mxu0 0
  %1167 = vmatpush1.bf16.msra.mxu0 %v876
  %1168 = vmatprep.subr.bf16.mxu0 0
  %1169 = vmatpush1.bf16.msra.mxu0 %v877
  %1170 = vmatprep.subr.bf16.mxu0 0
  %1171 = vmatpush1.bf16.msra.mxu0 %v878
  %1172 = vmatprep.subr.bf16.mxu0 0
  %1173 = vmatpush1.bf16.msra.mxu0 %v879
  %1174 = vmatprep.subr.bf16.mxu0 0
  %1175 = vmatpush1.bf16.msra.mxu0 %v880
  %1176 = vmatprep.subr.bf16.mxu0 0
  %1177 = vmatpush1.bf16.msra.mxu0 %v881
  %1178 = vmatprep.mubr.bf16.mxu0 %v309
  %1179 = vmatmul.mubr.bf16.gmra.mrb[0].mxu0 %v308
  %v1180 = vpop.f32.mrb[0].mxu0
  %v1181 = vadd.f32 %v1141, %v1180
  %v1182 = vpop.f32.mrb[0].mxu0
  %v1183 = vpop.f32.mrb[0].mxu0
  %v1184 = vpop.f32.mrb[0].mxu0
  %1185 = vdwg.mxu0
  %1186 = vmatprep.subr.bf16.mxu0 0
  %1187 = vmatpush1.bf16.msra.mxu0 %v882
  %1188 = vmatprep.subr.bf16.mxu0 0
  %1189 = vmatpush1.bf16.msra.mxu0 %v883
  %1190 = vmatprep.subr.bf16.mxu0 0
  %1191 = vmatpush1.bf16.msra.mxu0 %v884
  %1192 = vmatprep.subr.bf16.mxu0 0
  %1193 = vmatpush1.bf16.msra.mxu0 %v885
  %1194 = vmatprep.subr.bf16.mxu0 0
  %1195 = vmatpush1.bf16.msra.mxu0 %v886
  %1196 = vmatprep.subr.bf16.mxu0 0
  %1197 = vmatpush1.bf16.msra.mxu0 %v887
  %1198 = vmatprep.subr.bf16.mxu0 0
  %1199 = vmatpush1.bf16.msra.mxu0 %v888
  %1200 = vmatprep.subr.bf16.mxu0 0
  %1201 = vmatpush1.bf16.msra.mxu0 %v889
  %1202 = vmatprep.subr.bf16.mxu0 0
  %1203 = vmatpush1.bf16.msra.mxu0 %v890
  %1204 = vmatprep.subr.bf16.mxu0 0
  %1205 = vmatpush1.bf16.msra.mxu0 %v891
  %1206 = vmatprep.subr.bf16.mxu0 0
  %1207 = vmatpush1.bf16.msra.mxu0 %v892
  %1208 = vmatprep.subr.bf16.mxu0 0
  %1209 = vmatpush1.bf16.msra.mxu0 %v893
  %1210 = vmatprep.subr.bf16.mxu0 0
  %1211 = vmatpush1.bf16.msra.mxu0 %v894
  %1212 = vmatprep.subr.bf16.mxu0 0
  %1213 = vmatpush1.bf16.msra.mxu0 %v895
  %1214 = vmatprep.subr.bf16.mxu0 0
  %1215 = vmatpush1.bf16.msra.mxu0 %v896
  %1216 = vmatprep.subr.bf16.mxu0 0
  %1217 = vmatpush1.bf16.msra.mxu0 %v897
  %1218 = vmatprep.mubr.bf16.mxu0 %v311
  %1219 = vmatmul.mubr.bf16.gmra.mrb[0].mxu0 %v310
  %v1220 = vpop.f32.mrb[0].mxu0
  %v1221 = vadd.f32 %v1181, %v1220
  %v1222 = vpop.f32.mrb[0].mxu0
  %v1223 = vpop.f32.mrb[0].mxu0
  %v1224 = vpop.f32.mrb[0].mxu0
  %1225 = vdwg.mxu0
  %1226 = vmatprep.subr.bf16.mxu0 0
  %1227 = vmatpush1.bf16.msra.mxu0 %v898
  %1228 = vmatprep.subr.bf16.mxu0 0
  %1229 = vmatpush1.bf16.msra.mxu0 %v899
  %1230 = vmatprep.subr.bf16.mxu0 0
  %1231 = vmatpush1.bf16.msra.mxu0 %v900
  %1232 = vmatprep.subr.bf16.mxu0 0
  %1233 = vmatpush1.bf16.msra.mxu0 %v901
  %1234 = vmatprep.subr.bf16.mxu0 0
  %1235 = vmatpush1.bf16.msra.mxu0 %v902
  %1236 = vmatprep.subr.bf16.mxu0 0
  %1237 = vmatpush1.bf16.msra.mxu0 %v903
  %1238 = vmatprep.subr.bf16.mxu0 0
  %1239 = vmatpush1.bf16.msra.mxu0 %v904
  %1240 = vmatprep.subr.bf16.mxu0 0
  %1241 = vmatpush1.bf16.msra.mxu0 %v905
  %1242 = vmatprep.subr.bf16.mxu0 0
  %1243 = vmatpush1.bf16.msra.mxu0 %v906
  %1244 = vmatprep.subr.bf16.mxu0 0
  %1245 = vmatpush1.bf16.msra.mxu0 %v907
  %1246 = vmatprep.subr.bf16.mxu0 0
  %1247 = vmatpush1.bf16.msra.mxu0 %v908
  %1248 = vmatprep.subr.bf16.mxu0 0
  %1249 = vmatpush1.bf16.msra.mxu0 %v909
  %1250 = vmatprep.subr.bf16.mxu0 0
  %1251 = vmatpush1.bf16.msra.mxu0 %v910
  %1252 = vmatprep.subr.bf16.mxu0 0
  %1253 = vmatpush1.bf16.msra.mxu0 %v911
  %1254 = vmatprep.subr.bf16.mxu0 0
  %1255 = vmatpush1.bf16.msra.mxu0 %v912
  %1256 = vmatprep.subr.bf16.mxu0 0
  %1257 = vmatpush1.bf16.msra.mxu0 %v913
  %1258 = vmatprep.mubr.bf16.mxu0 %v313
  %1259 = vmatmul.mubr.bf16.gmra.mrb[0].mxu0 %v312
  %v1260 = vpop.f32.mrb[0].mxu0
  %v1261 = vadd.f32 %v1221, %v1260
  %v1262 = vpop.f32.mrb[0].mxu0
  %v1263 = vpop.f32.mrb[0].mxu0
  %v1264 = vpop.f32.mrb[0].mxu0
  %1265 = vdwg.mxu0
  %1266 = vmatprep.subr.bf16.mxu0 0
  %1267 = vmatpush1.bf16.msra.mxu0 %v914
  %1268 = vmatprep.subr.bf16.mxu0 0
  %1269 = vmatpush1.bf16.msra.mxu0 %v915
  %1270 = vmatprep.subr.bf16.mxu0 0
  %1271 = vmatpush1.bf16.msra.mxu0 %v916
  %1272 = vmatprep.subr.bf16.mxu0 0
  %1273 = vmatpush1.bf16.msra.mxu0 %v917
  %1274 = vmatprep.subr.bf16.mxu0 0
  %1275 = vmatpush1.bf16.msra.mxu0 %v918
  %1276 = vmatprep.subr.bf16.mxu0 0
  %1277 = vmatpush1.bf16.msra.mxu0 %v919
  %1278 = vmatprep.subr.bf16.mxu0 0
  %1279 = vmatpush1.bf16.msra.mxu0 %v920
  %1280 = vmatprep.subr.bf16.mxu0 0
  %1281 = vmatpush1.bf16.msra.mxu0 %v921
  %1282 = vmatprep.subr.bf16.mxu0 0
  %1283 = vmatpush1.bf16.msra.mxu0 %v922
  %1284 = vmatprep.subr.bf16.mxu0 0
  %1285 = vmatpush1.bf16.msra.mxu0 %v923
  %1286 = vmatprep.subr.bf16.mxu0 0
  %1287 = vmatpush1.bf16.msra.mxu0 %v924
  %1288 = vmatprep.subr.bf16.mxu0 0
  %1289 = vmatpush1.bf16.msra.mxu0 %v925
  %1290 = vmatprep.subr.bf16.mxu0 0
  %1291 = vmatpush1.bf16.msra.mxu0 %v926
  %1292 = vmatprep.subr.bf16.mxu0 0
  %1293 = vmatpush1.bf16.msra.mxu0 %v927
  %1294 = vmatprep.subr.bf16.mxu0 0
  %1295 = vmatpush1.bf16.msra.mxu0 %v928
  %1296 = vmatprep.subr.bf16.mxu0 0
  %1297 = vmatpush1.bf16.msra.mxu0 %v929
  %1298 = vmatprep.mubr.bf16.mxu0 %v315
  %1299 = vmatmul.mubr.bf16.gmra.mrb[0].mxu0 %v314
  %v1300 = vpop.f32.mrb[0].mxu0
  %v1301 = vadd.f32 %v1261, %v1300
  %v1302 = vpop.f32.mrb[0].mxu0
  %v1303 = vpop.f32.mrb[0].mxu0
  %v1304 = vpop.f32.mrb[0].mxu0
  %1305 = vdwg.mxu0
  %1306 = vmatprep.subr.bf16.mxu0 0
  %1307 = vmatpush1.bf16.msra.mxu0 %v930
  %1308 = vmatprep.subr.bf16.mxu0 0
  %1309 = vmatpush1.bf16.msra.mxu0 %v931
  %1310 = vmatprep.subr.bf16.mxu0 0
  %1311 = vmatpush1.bf16.msra.mxu0 %v932
  %1312 = vmatprep.subr.bf16.mxu0 0
  %1313 = vmatpush1.bf16.msra.mxu0 %v933
  %1314 = vmatprep.subr.bf16.mxu0 0
  %1315 = vmatpush1.bf16.msra.mxu0 %v934
  %1316 = vmatprep.subr.bf16.mxu0 0
  %1317 = vmatpush1.bf16.msra.mxu0 %v935
  %1318 = vmatprep.subr.bf16.mxu0 0
  %1319 = vmatpush1.bf16.msra.mxu0 %v936
  %1320 = vmatprep.subr.bf16.mxu0 0
  %1321 = vmatpush1.bf16.msra.mxu0 %v937
  %1322 = vmatprep.subr.bf16.mxu0 0
  %1323 = vmatpush1.bf16.msra.mxu0 %v938
  %1324 = vmatprep.subr.bf16.mxu0 0
  %1325 = vmatpush1.bf16.msra.mxu0 %v939
  %1326 = vmatprep.subr.bf16.mxu0 0
  %1327 = vmatpush1.bf16.msra.mxu0 %v940
  %1328 = vmatprep.subr.bf16.mxu0 0
  %1329 = vmatpush1.bf16.msra.mxu0 %v941
  %1330 = vmatprep.subr.bf16.mxu0 0
  %1331 = vmatpush1.bf16.msra.mxu0 %v942
  %1332 = vmatprep.subr.bf16.mxu0 0
  %1333 = vmatpush1.bf16.msra.mxu0 %v943
  %1334 = vmatprep.subr.bf16.mxu0 0
  %1335 = vmatpush1.bf16.msra.mxu0 %v944
  %1336 = vmatprep.subr.bf16.mxu0 0
  %1337 = vmatpush1.bf16.msra.mxu0 %v945
  %1338 = vmatprep.mubr.bf16.mxu0 %v317
  %1339 = vmatmul.mubr.bf16.gmra.mrb[0].mxu0 %v316
  %v1340 = vpop.f32.mrb[0].mxu0
  %v1341 = vadd.f32 %v1301, %v1340
  %v1342 = vpop.f32.mrb[0].mxu0
  %v1343 = vpop.f32.mrb[0].mxu0
  %v1344 = vpop.f32.mrb[0].mxu0
  %1345 = vdwg.mxu0
  %1346 = vmatprep.subr.bf16.mxu0 0
  %1347 = vmatpush1.bf16.msra.mxu0 %v946
  %1348 = vmatprep.subr.bf16.mxu0 0
  %1349 = vmatpush1.bf16.msra.mxu0 %v947
  %1350 = vmatprep.subr.bf16.mxu0 0
  %1351 = vmatpush1.bf16.msra.mxu0 %v948
  %1352 = vmatprep.subr.bf16.mxu0 0
  %1353 = vmatpush1.bf16.msra.mxu0 %v949
  %1354 = vmatprep.subr.bf16.mxu0 0
  %1355 = vmatpush1.bf16.msra.mxu0 %v950
  %1356 = vmatprep.subr.bf16.mxu0 0
  %1357 = vmatpush1.bf16.msra.mxu0 %v951
  %1358 = vmatprep.subr.bf16.mxu0 0
  %1359 = vmatpush1.bf16.msra.mxu0 %v952
  %1360 = vmatprep.subr.bf16.mxu0 0
  %1361 = vmatpush1.bf16.msra.mxu0 %v953
  %1362 = vmatprep.subr.bf16.mxu0 0
  %1363 = vmatpush1.bf16.msra.mxu0 %v954
  %1364 = vmatprep.subr.bf16.mxu0 0
  %1365 = vmatpush1.bf16.msra.mxu0 %v955
  %1366 = vmatprep.subr.bf16.mxu0 0
  %1367 = vmatpush1.bf16.msra.mxu0 %v956
  %1368 = vmatprep.subr.bf16.mxu0 0
  %1369 = vmatpush1.bf16.msra.mxu0 %v957
  %1370 = vmatprep.subr.bf16.mxu0 0
  %1371 = vmatpush1.bf16.msra.mxu0 %v958
  %1372 = vmatprep.subr.bf16.mxu0 0
  %1373 = vmatpush1.bf16.msra.mxu0 %v959
  %1374 = vmatprep.subr.bf16.mxu0 0
  %1375 = vmatpush1.bf16.msra.mxu0 %v960
  %1376 = vmatprep.subr.bf16.mxu0 0
  %1377 = vmatpush1.bf16.msra.mxu0 %v961
  %1378 = vmatprep.mubr.bf16.mxu0 %v319
  %1379 = vmatmul.mubr.bf16.gmra.mrb[0].mxu0 %v318
  %v1380 = vpop.f32.mrb[0].mxu0
  %v1381 = vadd.f32 %v1341, %v1380
  %v1382 = vpop.f32.mrb[0].mxu0
  %v1383 = vpop.f32.mrb[0].mxu0
  %v1384 = vpop.f32.mrb[0].mxu0
  %1385 = vdwg.mxu0
  %1386 = vmatprep.subr.bf16.mxu0 0
  %1387 = vmatpush1.bf16.msra.mxu0 %v962
  %1388 = vmatprep.subr.bf16.mxu0 0
  %1389 = vmatpush1.bf16.msra.mxu0 %v963
  %1390 = vmatprep.subr.bf16.mxu0 0
  %1391 = vmatpush1.bf16.msra.mxu0 %v964
  %1392 = vmatprep.subr.bf16.mxu0 0
  %1393 = vmatpush1.bf16.msra.mxu0 %v965
  %1394 = vmatprep.subr.bf16.mxu0 0
  %1395 = vmatpush1.bf16.msra.mxu0 %v966
  %1396 = vmatprep.subr.bf16.mxu0 0
  %1397 = vmatpush1.bf16.msra.mxu0 %v967
  %1398 = vmatprep.subr.bf16.mxu0 0
  %1399 = vmatpush1.bf16.msra.mxu0 %v968
  %1400 = vmatprep.subr.bf16.mxu0 0
  %1401 = vmatpush1.bf16.msra.mxu0 %v969
  %1402 = vmatprep.subr.bf16.mxu0 0
  %1403 = vmatpush1.bf16.msra.mxu0 %v970
  %1404 = vmatprep.subr.bf16.mxu0 0
  %1405 = vmatpush1.bf16.msra.mxu0 %v971
  %1406 = vmatprep.subr.bf16.mxu0 0
  %1407 = vmatpush1.bf16.msra.mxu0 %v972
  %1408 = vmatprep.subr.bf16.mxu0 0
  %1409 = vmatpush1.bf16.msra.mxu0 %v973
  %1410 = vmatprep.subr.bf16.mxu0 0
  %1411 = vmatpush1.bf16.msra.mxu0 %v974
  %1412 = vmatprep.subr.bf16.mxu0 0
  %1413 = vmatpush1.bf16.msra.mxu0 %v975
  %1414 = vmatprep.subr.bf16.mxu0 0
  %1415 = vmatpush1.bf16.msra.mxu0 %v976
  %1416 = vmatprep.subr.bf16.mxu0 0
  %1417 = vmatpush1.bf16.msra.mxu0 %v977
  %1418 = vmatprep.mubr.bf16.mxu0 %v321
  %1419 = vmatmul.mubr.bf16.gmra.mrb[0].mxu0 %v320
  %v1420 = vpop.f32.mrb[0].mxu0
  %v1421 = vadd.f32 %v1381, %v1420
  %v1422 = vpop.f32.mrb[0].mxu0
  %v1423 = vpop.f32.mrb[0].mxu0
  %v1424 = vpop.f32.mrb[0].mxu0
  %1425 = vdwg.mxu0
  %v1426 = vrot.slane %v1421, 4
  %v1427 = vadd.f32 %v1421, %v1426
  %v1428 = vrot.slane %v1427, 2
  %v1429 = vadd.f32 %v1427, %v1428
  %v1430 = vrot.slane %v1429, 1
  %v1431 = vadd.f32 %v1429, %v1430
  %v1432 = vmul.f32 %v1421, %v1421
  %v1433 = vrot.slane %v1432, 4
  %v1434 = vadd.f32 %v1432, %v1433
  %v1435 = vrot.slane %v1434, 2
  %v1436 = vadd.f32 %v1434, %v1435
  %v1437 = vrot.slane %v1436, 1
  %v1438 = vadd.f32 %v1436, %v1437
  %v1439 = vrcp.pop 8.0
  %v1440 = vmul.f32 %v1431, %v1439
  %v1441 = vmul.f32 %v1438, %v1439
  %v1442 = vmul.f32 %v1440, %v1440
  %v1443 = vsub.f32 %v1441, %v1442
  %v1444 = vmax.f32 %v1443, 0.0
  %v1445 = vsub.f32 %v1421, %v1440
  %v1446 = vadd.f32 %v1444, 1e-05
  %v1447 = vrsqrt.pop %v1446
  %v1448 = vmul.f32 %v1445, %v1447
  %v1449 = vld [vmem:[%s2] sm:$0x1]
  %v1451 = vlaneseq
  %v1452 = vshrl.u32 %v1451, 7
  %v1453 = vsub.s32 0, %v1452
  %v1454 = vrot.slane %v1449, %v1453
  %v1456 = vmul.f32 %v1448, %v1454
  %v1457 = vld [vmem:[%s3] sm:$0x1]
  %v1459 = vlaneseq
  %v1460 = vshrl.u32 %v1459, 7
  %v1461 = vsub.s32 0, %v1460
  %v1462 = vrot.slane %v1457, %v1461
  %v1464 = vadd.f32 %v1456, %v1462
  %vm1465 = vcmp.gt.f32.partialorder %v1464, 0.0
  %v1466 = vmul.f32 %v1464, 0.2
  %v1467 = vsel %vm1465, %v1464, %v1466
  %v1468 = vpack.c.bf16 %v1467, %v1467
  %1469 = vst [vmem:[%s4] sm:$0xf] %v1468
  // Predicated region
  $region18: #{discriminator_forward.8} parent=0 // pred_check
    _
  $region19: #{discriminator_forward.8} parent=0 // pred_check_branch
    %1471 = sbr.rel (0) target = $region21
  $region20: #{discriminator_forward.8} parent=0 // pred_region
    _
  $region21: #{discriminator_forward.8} parent=0 // pred_fallthru
    _
  // Predicated region
  $region22: #{discriminator_forward.8} parent=0 // pred_check
    _
  $region23: #{discriminator_forward.8} parent=0 // pred_check_branch
    %1473 = sbr.rel (0) target = $region25
  $region24: #{discriminator_forward.8} parent=0 // pred_region
    _
  $region25: #{discriminator_forward.8} parent=0 // pred_fallthru
    _

</llo_original>
